<compile_context>
chip_gen: v5e
topology: v5e:2x2
jax: 0.10.0
libtpu: 0.0.40
codegen_flags: <defaults>
</compile_context>

<pallas_src>
import numpy as np

import jax
import jax.numpy as jnp
from jax import lax
from jax.experimental import pallas as pl
from jax.experimental.pallas import tpu as pltpu


# -----------------------------------------------------------------------------
# Mish
# -----------------------------------------------------------------------------
def _mish(x):
    # Reference (pure JAX, f32): x * tanh(softplus(x)), stable softplus.
    sp = jnp.maximum(x, 0.0) + jnp.log(1.0 + jnp.exp(-jnp.abs(x)))
    return x * jnp.tanh(sp)


def _mish_fast(x):
    # In-kernel Mish with a single exp(-|x|) and one approx reciprocal:
    #   t = exp(-|x|);  tanh(softplus(x)) = ((1+t)^2 - s) / ((1+t)^2 + s)
    #   with s = t^2 for x >= 0 and s = 1 for x < 0.
    t = jnp.exp(-jnp.abs(x))
    u = (1.0 + t) * (1.0 + t)
    s = jnp.where(x >= 0, t * t, 1.0)
    return x * (u - s) * pl.reciprocal(u + s, approx=True)


# -----------------------------------------------------------------------------
# Trace-time constants: bilinear (align_corners=True) matrices, tap masks/cfgs.
# -----------------------------------------------------------------------------
def _interp_matrix(out_size, in_size):
    m = np.zeros((out_size, in_size), np.float32)
    if out_size == 1:
        src = np.zeros((1,), np.float64)
    else:
        src = np.arange(out_size, dtype=np.float64) * (in_size - 1) / (out_size - 1)
    i0 = np.clip(np.floor(src).astype(np.int64), 0, in_size - 1)
    i1 = np.minimum(i0 + 1, in_size - 1)
    f = (src - i0).astype(np.float32)
    m[np.arange(out_size), i0] += 1.0 - f
    m[np.arange(out_size), i1] += f
    return m


def _upsample_matrix(B, H, W, OH, OW):
    """[B*H*W, B*OH*OW]: batch-block-diagonal kron(Rh, Rw) so that
    out_flat = x_flat @ R  implements per-batch bilinear resize."""
    per = np.kron(_interp_matrix(OH, H).T, _interp_matrix(OW, W).T)   # [H*W, OH*OW]
    big = np.zeros((B * H * W, B * OH * OW), np.float32)
    for b in range(B):
        big[b * H * W:(b + 1) * H * W, b * OH * OW:(b + 1) * OH * OW] = per
    return big


_TAPS_S1 = [(ky - 1, kx - 1) for ky in range(3) for kx in range(3)]


def _tap_masks(B, H, W, taps):
    """[9, B*H*W] float 0/1 masks: 1 where the tap's source pixel is inside the
    (per-batch) image (i.e. not a padding read)."""
    ms = np.zeros((9, B * H * W), np.float32)
    for t, (dy, dx) in enumerate(taps):
        mh = ((np.arange(H) + dy >= 0) & (np.arange(H) + dy < H)).astype(np.float32)
        mw = ((np.arange(W) + dx >= 0) & (np.arange(W) + dx < W)).astype(np.float32)
        ms[t] = np.tile(np.outer(mh, mw).reshape(-1), B)
    return ms


def _s1_cfg(B, H, W, cin):
    """Stride-1 3x3 conv in flat [C, B*H*W] layout: per-tap lane shift + mask."""
    deltas = [dy * W + dx for dy, dx in _TAPS_S1]
    masks = _tap_masks(B, H, W, _TAPS_S1)
    cfg = dict(deltas=deltas, margin=W + 1, row0=[0] * 9, cin=cin,
               need=[not np.all(masks[t] == 1.0) for t in range(9)])
    return cfg, masks


def _s2_cfg(B, Ho, Wo, cin):
    """Stride-2 3x3 conv decomposed over the 4 input phase images, each flat
    [C, B*Ho*Wo]; per-tap: which phase, lane shift (-1/0 in each dim), mask."""
    taps, row0 = [], []
    for ky in range(3):
        for kx in range(3):
            py, dy = (0, 0) if ky == 1 else (1, -1 if ky == 0 else 0)
            px, dx = (0, 0) if kx == 1 else (1, -1 if kx == 0 else 0)
            taps.append((dy, dx))
            row0.append((py * 2 + px) * cin)
    deltas = [dy * Wo + dx for dy, dx in taps]
    masks = _tap_masks(B, Ho, Wo, taps)
    cfg = dict(deltas=deltas, margin=Wo + 1, row0=row0, cin=cin,
               need=[not np.all(masks[t] == 1.0) for t in range(9)])
    return cfg, masks


# -----------------------------------------------------------------------------
# Fused C2f kernel (one pallas_call per C2f stage; intermediates stay in VMEM).
# -----------------------------------------------------------------------------
def _make_c2f_kernel(mode, n, bn, ca=0, dn=None):
    def tap_acc(scr_ref, wt_ref, m_ref, tc):
        # sum over 9 taps of  W_tap @ (shifted, boundary-masked) activation
        acc = None
        for t in range(9):
            r0 = tc["row0"][t]
            s0 = tc["margin"] + tc["deltas"][t]
            xs = scr_ref[r0:r0 + tc["cin"], s0:s0 + n]
            if tc["need"][t]:
                xs = xs * m_ref[t:t + 1, :]
            d = jnp.dot(wt_ref[t], xs, preferred_element_type=jnp.float32)
            acc = d if acc is None else acc + d
        return acc

    def kernel(*refs):
        if mode == "up":
            xa_ref, xb_ref, r_ref = refs[:3]
            common = refs[3:18]
            o_ref, scr_bn = refs[18], refs[19]
        else:
            xph_ref, xb_ref, wdn_ref, bdn_ref, mdn_ref = refs[:5]
            common = refs[5:20]
            o_ref, scr_bn, scr_dn = refs[20], refs[21], refs[22]
        (w1a1_ref, w1a2_ref, w1b1_ref, w1b2_ref, b11_ref, b12_ref,
         wm1_ref, bm1_ref, wm2_ref, bm2_ref, mbn_ref,
         w21_ref, w22_ref, w2m_ref, b2_ref) = common

        scr_bn[...] = jnp.zeros_like(scr_bn)          # zero margins once
        xb = xb_ref[...]

        if mode == "up":
            xa = xa_ref[...]
            r = r_ref[...]

            def mix(w_a, w_b, b):
                # (W_a @ x_small) @ R  ==  W_a @ upsample(x_small)   (commuted)
                ta = jnp.dot(w_a, xa, preferred_element_type=jnp.float32)
                va = jnp.dot(ta.astype(jnp.bfloat16), r,
                             preferred_element_type=jnp.float32)
                vb = jnp.dot(w_b, xb, preferred_element_type=jnp.float32)
                return _mish_fast(va + vb + b)
        else:
            # stride-2 3x3 ConvBnAct computed in-kernel from 4 phase images
            scr_dn[...] = jnp.zeros_like(scr_dn)
            xph = xph_ref[...]                         # [4, ca, n] bf16
            for p in range(4):
                scr_dn[p * ca:(p + 1) * ca,
                       dn["margin"]:dn["margin"] + n] = xph[p]
            a = _mish_fast(tap_acc(scr_dn, wdn_ref, mdn_ref, dn) + bdn_ref[...])
            xa = a.astype(jnp.bfloat16)

            def mix(w_a, w_b, b):
                va = jnp.dot(w_a, xa, preferred_element_type=jnp.float32)
                vb = jnp.dot(w_b, xb, preferred_element_type=jnp.float32)
                return _mish_fast(va + vb + b)

        # cv1 (fused concat: one weight slice per operand), split into y1 / y2
        y1 = mix(w1a1_ref[...], w1b1_ref[...], b11_ref[...])
        y2 = mix(w1a2_ref[...], w1b2_ref[...], b12_ref[...])

        # bottleneck: two stride-1 3x3 ConvBnActs, VMEM-resident
        def conv3(y, wt_ref, b_ref):
            scr_bn[:, bn["margin"]:bn["margin"] + n] = y.astype(jnp.bfloat16)
            return _mish_fast(tap_acc(scr_bn, wt_ref, mbn_ref, bn) + b_ref[...])

        m1 = conv3(y2, wm1_ref, bm1_ref)
        m2 = conv3(m1, wm2_ref, bm2_ref)

        # cv2 over cat([y1, y2, m2])  (fused concat, per-operand weight slices)
        out = (jnp.dot(w21_ref[...], y1.astype(jnp.bfloat16),
                       preferred_element_type=jnp.float32)
               + jnp.dot(w22_ref[...], y2.astype(jnp.bfloat16),
                         preferred_element_type=jnp.float32)
               + jnp.dot(w2m_ref[...], m2.astype(jnp.bfloat16),
                         preferred_element_type=jnp.float32)
               + b2_ref[...])
        o_ref[...] = _mish_fast(out).astype(o_ref.dtype)

    return kernel


# -----------------------------------------------------------------------------
# Kernel-side parameter prep (BN scale folded into bf16 weights, tap layout).
# -----------------------------------------------------------------------------
def _fold3x3(cba):
    cout, cin = cba["cout"], cba["cins"][0]
    w = (cba["scale"] * cba["w"][0]).reshape(cout, 3, 3, cin)
    w = w.transpose(1, 2, 0, 3).reshape(9, cout, cin).astype(jnp.bfloat16)
    return w, cba["bias"]


def _prep_c2f_args(pc2f, mask_bn):
    c = pc2f["c"]
    cv1, cv2 = pc2f["cv1"], pc2f["cv2"]
    w1a = (cv1["scale"] * cv1["w"][0]).astype(jnp.bfloat16)     # [2c, ca]
    w1b = (cv1["scale"] * cv1["w"][1]).astype(jnp.bfloat16)     # [2c, cb]
    b1 = cv1["bias"]                                            # [2c, 1]
    wm1, bm1 = _fold3x3(pc2f["m_cv1"])
    wm2, bm2 = _fold3x3(pc2f["m_cv2"])
    w2y = (cv2["scale"] * cv2["w"][0]).astype(jnp.bfloat16)     # [cout, 2c]
    w2m = (cv2["scale"] * cv2["w"][1]).astype(jnp.bfloat16)     # [cout, c]
    b2 = cv2["bias"]
    return [w1a[:c], w1a[c:], w1b[:c], w1b[c:], b1[:c], b1[c:],
            wm1, bm1, wm2, bm2, mask_bn, w2y[:, :c], w2y[:, c:], w2m, b2]


_CPARAMS = pltpu.CompilerParams(vmem_limit_bytes=32 * 1024 * 1024)


# -----------------------------------------------------------------------------
# Fused-stage wrappers.  Activations are channel-major flat: [C, B*H*W].
# -----------------------------------------------------------------------------
def c2f_up(pc2f, xa, xb, geom_a, geom_o, out_dtype):
    """C2f(cat([upsample(xa), xb])).  xa: [ca, B*Ha*Wa] bf16, xb: [cb, N] bf16."""
    B, Ha, Wa = geom_a
    _, H, W = geom_o
    n = B * H * W
    c = pc2f["c"]
    cout = pc2f["cv2"]["cout"]

    r = jnp.asarray(_upsample_matrix(B, Ha, Wa, H, W), jnp.bfloat16)
    bn_cfg, bn_masks = _s1_cfg(B, H, W, c)
    mask_bn = jnp.asarray(bn_masks, jnp.bfloat16)

    args = [xa, xb, r] + _prep_c2f_args(pc2f, mask_bn)
    kernel = _make_c2f_kernel("up", n, bn_cfg)
    return pl.pallas_call(
        kernel,
        out_shape=jax.ShapeDtypeStruct((cout, n), out_dtype),
        scratch_shapes=[pltpu.VMEM((c, n + 2 * bn_cfg["margin"]), jnp.bfloat16)],
        compiler_params=_CPARAMS,
    )(*args)


def c2f_down(pdn, pc2f, x_prev, xb, geom_prev, geom_o, out_dtype):
    """C2f(cat([ConvBnAct_3x3_s2(x_prev), xb])).  x_prev: [ca, B*Hp*Wp]."""
    B, Hp, Wp = geom_prev
    _, H, W = geom_o
    assert Hp % 2 == 0 and Wp % 2 == 0 and H == Hp // 2 and W == Wp // 2
    n = B * H * W
    c = pc2f["c"]
    cout = pc2f["cv2"]["cout"]
    ca = int(x_prev.shape[0])

    # 2x2 phase split (thin XLA glue): x_pq[h', w'] = x[2h'+p, 2w'+q]
    x4 = x_prev.reshape(ca, B, Hp, Wp)
    xph = jnp.stack([x4[:, :, py::2, px::2].reshape(ca, n)
                     for py in (0, 1) for px in (0, 1)],
                    axis=0).astype(jnp.bfloat16)

    wdn, bdn = _fold3x3(pdn)
    dn_cfg, dn_masks = _s2_cfg(B, H, W, ca)
    mask_dn = jnp.asarray(dn_masks, jnp.bfloat16)
    bn_cfg, bn_masks = _s1_cfg(B, H, W, c)
    mask_bn = jnp.asarray(bn_masks, jnp.bfloat16)

    args = [xph, xb, wdn, bdn, mask_dn] + _prep_c2f_args(pc2f, mask_bn)
    kernel = _make_c2f_kernel("down", n, bn_cfg, ca=ca, dn=dn_cfg)
    return pl.pallas_call(
        kernel,
        out_shape=jax.ShapeDtypeStruct((cout, n), out_dtype),
        scratch_shapes=[pltpu.VMEM((c, n + 2 * bn_cfg["margin"]), jnp.bfloat16),
                        pltpu.VMEM((4 * ca, n + dn_cfg["margin"]), jnp.bfloat16)],
        compiler_params=_CPARAMS,
    )(*args)


def fpnpan_apply(params, p3, p4, p5):
    """FPNPAN.forward((p3,p4,p5)) -> (p3_fused_up, p4_fused_down, p5_fused_down)."""
    B, C3, H3, W3 = p3.shape
    _, C4, H4, W4 = p4.shape
    _, C5, H5, W5 = p5.shape

    def to_flat(x):                       # [B,C,H,W] -> [C, B*H*W] bf16
        return x.transpose(1, 0, 2, 3).reshape(x.shape[1], -1).astype(jnp.bfloat16)

    p3f, p4f, p5f = to_flat(p3), to_flat(p4), to_flat(p5)
    g3, g4, g5 = (B, H3, W3), (B, H4, W4), (B, H5, W5)

    p4_fu = c2f_up(params["p4_fuse_up"], p5f, p4f, g5, g4, jnp.bfloat16)
    p3_fu = c2f_up(params["p3_fuse_up"], p4_fu, p3f, g4, g3, jnp.float32)
    p4_fd = c2f_down(params["p3_down"], params["p4_fuse_down"], p3_fu, p4_fu,
                     g3, g4, jnp.float32)
    p5_fd = c2f_down(params["p4_down"], params["p5_fuse_down"], p4_fd, p5f,
                     g4, g5, jnp.float32)

    def from_flat(xf, g):                 # [C, B*H*W] -> [B,C,H,W]
        B_, H, W = g
        return xf.reshape(xf.shape[0], B_, H, W).transpose(1, 0, 2, 3)

    return from_flat(p3_fu, g3), from_flat(p4_fd, g4), from_flat(p5_fd, g5)


# -----------------------------------------------------------------------------
# Parameter init (f32 master weights in [Cout, k*k*Cin] layout + BN scale/bias).
# -----------------------------------------------------------------------------
def _init_cba(key, cins, cout, k):
    keys = jax.random.split(key, len(cins) + 2)
    fan_in = sum(cins) * k * k
    std = float(np.sqrt(2.0 / fan_in))
    w = [jax.random.normal(keys[i], (cout, k * k * cin), jnp.float32) * std
         for i, cin in enumerate(cins)]
    scale = jax.random.uniform(keys[-2], (cout, 1), jnp.float32, 0.75, 1.25)
    bias = jax.random.uniform(keys[-1], (cout, 1), jnp.float32, -0.1, 0.1)
    return dict(w=w, scale=scale, bias=bias, cins=tuple(cins), cout=cout, k=k)


def _init_c2f(key, cins, cout):
    c = cout // 2
    k1, k2, k3, k4 = jax.random.split(key, 4)
    return dict(cv1=_init_cba(k1, cins, 2 * c, 1),
                m_cv1=_init_cba(k2, [c], c, 3),
                m_cv2=_init_cba(k3, [c], c, 3),
                cv2=_init_cba(k4, [2 * c, c], cout, 1),
                c=c)


def init_fpnpan(key, in_channels):
    c3, c4, c5 = in_channels
    ks = jax.random.split(key, 6)
    return dict(
        p4_fuse_up=_init_c2f(ks[0], [c5, c4], c4),     # cat([up(p5), p4])
        p3_fuse_up=_init_c2f(ks[1], [c4, c3], c3),     # cat([up(p4_fu), p3])
        p3_down=_init_cba(ks[2], [c3], c3, 3),         # 3x3 stride 2
        p4_fuse_down=_init_c2f(ks[3], [c3, c4], c4),   # cat([down(p3_fu), p4_fu])
        p4_down=_init_cba(ks[4], [c4], c4, 3),         # 3x3 stride 2
        p5_fuse_down=_init_c2f(ks[5], [c4, c5], c5),   # cat([down(p4_fd), p5])
    )


# -----------------------------------------------------------------------------
# Pure-JAX (XLA, f32) reference.
# -----------------------------------------------------------------------------
def _ref_bilinear(x, out_h, out_w):
    B, C, H, W = x.shape
    ys = jnp.linspace(0.0, H - 1.0, out_h)
    xs = jnp.linspace(0.0, W - 1.0, out_w)
    y0 = jnp.clip(jnp.floor(ys).astype(jnp.int32), 0, H - 1)
    x0 = jnp.clip(jnp.floor(xs).astype(jnp.int32), 0, W - 1)
    y1 = jnp.minimum(y0 + 1, H - 1)
    x1 = jnp.minimum(x0 + 1, W - 1)
    fy = (ys - y0)[:, None]
    fx = (xs - x0)[None, :]
    g00 = x[:, :, y0[:, None], x0[None, :]]
    g01 = x[:, :, y0[:, None], x1[None, :]]
    g10 = x[:, :, y1[:, None], x0[None, :]]
    g11 = x[:, :, y1[:, None], x1[None, :]]
    top = g00 * (1.0 - fx) + g01 * fx
    bot = g10 * (1.0 - fx) + g11 * fx
    return top * (1.0 - fy) + bot * fy


def _ref_cba(params, xs, stride=1):
    k, cout = params["k"], params["cout"]
    x = xs[0] if len(xs) == 1 else jnp.concatenate(xs, axis=1)
    w = jnp.concatenate(
        [wp.reshape(cout, k, k, cin).transpose(0, 3, 1, 2)
         for wp, cin in zip(params["w"], params["cins"])], axis=1)
    pad = k // 2
    y = lax.conv_general_dilated(x, w, (stride, stride),
                                 ((pad, pad), (pad, pad)),
                                 dimension_numbers=("NCHW", "OIHW", "NCHW"))
    y = (y * params["scale"].reshape(1, cout, 1, 1)
         + params["bias"].reshape(1, cout, 1, 1))
    return _mish(y)


def _ref_c2f(params, xs):
    c = params["c"]
    y = _ref_cba(params["cv1"], xs)
    m = _ref_cba(params["m_cv2"], [_ref_cba(params["m_cv1"], [y[:, c:]])])
    return _ref_cba(params["cv2"], [y, m])


def _ref_fpnpan(params, p3, p4, p5):
    p5_up = _ref_bilinear(p5, p4.shape[2], p4.shape[3])
    p4_fu = _ref_c2f(params["p4_fuse_up"], [p5_up, p4])
    p4_up = _ref_bilinear(p4_fu, p3.shape[2], p3.shape[3])
    p3_fu = _ref_c2f(params["p3_fuse_up"], [p4_up, p3])
    p3_dn = _ref_cba(params["p3_down"], [p3_fu], stride=2)
    p4_fd = _ref_c2f(params["p4_fuse_down"], [p3_dn, p4_fu])
    p4_dn = _ref_cba(params["p4_down"], [p4_fd], stride=2)
    p5_fd = _ref_c2f(params["p5_fuse_down"], [p4_dn, p5])
    return p3_fu, p4_fd, p5_fd


# -----------------------------------------------------------------------------
if __name__ == "__main__":
    key = jax.random.PRNGKey(0)
    B = 2
    in_channels = [8, 16, 32]
    H3 = W3 = 16

    kp, kx3, kx4, kx5 = jax.random.split(key, 4)
    params = init_fpnpan(kp, in_channels)
    p3 = jax.random.normal(kx3, (B, in_channels[0], H3, W3), jnp.float32)
    p4 = jax.random.normal(kx4, (B, in_channels[1], H3 // 2, W3 // 2), jnp.float32)
    p5 = jax.random.normal(kx5, (B, in_channels[2], H3 // 4, W3 // 4), jnp.float32)

    fwd = jax.jit(lambda a, b, c: fpnpan_apply(params, a, b, c))
    p3_fu, p4_fd, p5_fd = jax.block_until_ready(fwd(p3, p4, p5))

    assert p3_fu.shape == (B, in_channels[0], H3, W3)
    assert p4_fd.shape == (B, in_channels[1], H3 // 2, W3 // 2)
    assert p5_fd.shape == (B, in_channels[2], H3 // 4, W3 // 4)

    r3, r4, r5 = _ref_fpnpan(params, p3, p4, p5)
    # Kernels use bf16 activations/weights (BN scale folded into bf16 weights),
    # bf16 inter-stage storage and an approximate reciprocal in Mish, so the
    # comparison against the f32 XLA reference needs a bf16-level tolerance.
    for got, ref in ((p3_fu, r3), (p4_fd, r4), (p5_fd, r5)):
        assert bool(jnp.all(jnp.isfinite(got)))
        assert jnp.allclose(got, ref, atol=8e-2, rtol=8e-2), (
            float(jnp.max(jnp.abs(got - ref))))

    print("KERNEL_OK")
</pallas_src>

<mosaic_0001>
module attributes {stable_mosaic.version = 11 : i64} {
  func.func @kernel(%arg0: memref<32x32xbf16, #tpu.memory_space<vmem>>, %arg1: memref<16x128xbf16, #tpu.memory_space<vmem>>, %arg2: memref<32x128xbf16, #tpu.memory_space<vmem>>, %arg3: memref<8x32xbf16, #tpu.memory_space<vmem>>, %arg4: memref<8x32xbf16, #tpu.memory_space<vmem>>, %arg5: memref<8x16xbf16, #tpu.memory_space<vmem>>, %arg6: memref<8x16xbf16, #tpu.memory_space<vmem>>, %arg7: memref<8x1xf32, #tpu.memory_space<vmem>>, %arg8: memref<8x1xf32, #tpu.memory_space<vmem>>, %arg9: memref<9x8x8xbf16, #tpu.memory_space<vmem>>, %arg10: memref<8x1xf32, #tpu.memory_space<vmem>>, %arg11: memref<9x8x8xbf16, #tpu.memory_space<vmem>>, %arg12: memref<8x1xf32, #tpu.memory_space<vmem>>, %arg13: memref<9x128xbf16, #tpu.memory_space<vmem>>, %arg14: memref<16x8xbf16, #tpu.memory_space<vmem>>, %arg15: memref<16x8xbf16, #tpu.memory_space<vmem>>, %arg16: memref<16x8xbf16, #tpu.memory_space<vmem>>, %arg17: memref<16x1xf32, #tpu.memory_space<vmem>>, %arg18: memref<16x128xbf16, #tpu.memory_space<vmem>>, %arg19: memref<8x146xbf16, #tpu.memory_space<vmem>>) attributes {dimension_semantics = [], scalar_prefetch = 0 : i64, scratch_operands = 1 : i64, tpu.core_type = #tpu.core_type<tc>} {
    %cst = arith.constant 0.000000e+00 : bf16
    %0 = vector.broadcast %cst : bf16 to vector<8x146xbf16>
    %c0 = arith.constant 0 : index
    %c0_0 = arith.constant 0 : index
    %1 = vector.load %arg19[%c0, %c0_0] : memref<8x146xbf16, #tpu.memory_space<vmem>>, vector<8x146xbf16>
    tpu.vector_store %arg19[%c0, %c0_0], %0 {strides = array<i32>} : memref<8x146xbf16, #tpu.memory_space<vmem>>, vector<8x146xbf16>,
    %c0_1 = arith.constant 0 : index
    %c0_2 = arith.constant 0 : index
    %2 = vector.load %arg1[%c0_1, %c0_2] : memref<16x128xbf16, #tpu.memory_space<vmem>>, vector<16x128xbf16>
    %c0_3 = arith.constant 0 : index
    %c0_4 = arith.constant 0 : index
    %3 = vector.load %arg0[%c0_3, %c0_4] : memref<32x32xbf16, #tpu.memory_space<vmem>>, vector<32x32xbf16>
    %c0_5 = arith.constant 0 : index
    %c0_6 = arith.constant 0 : index
    %4 = vector.load %arg2[%c0_5, %c0_6] : memref<32x128xbf16, #tpu.memory_space<vmem>>, vector<32x128xbf16>
    %c0_7 = arith.constant 0 : index
    %c0_8 = arith.constant 0 : index
    %5 = vector.load %arg3[%c0_7, %c0_8] : memref<8x32xbf16, #tpu.memory_space<vmem>>, vector<8x32xbf16>
    %c0_9 = arith.constant 0 : index
    %c0_10 = arith.constant 0 : index
    %6 = vector.load %arg5[%c0_9, %c0_10] : memref<8x16xbf16, #tpu.memory_space<vmem>>, vector<8x16xbf16>
    %c0_11 = arith.constant 0 : index
    %c0_12 = arith.constant 0 : index
    %7 = vector.load %arg7[%c0_11, %c0_12] : memref<8x1xf32, #tpu.memory_space<vmem>>, vector<8x1xf32>
    %cst_13 = arith.constant dense<0.000000e+00> : vector<8x32xf32>
    %8 = tpu.matmul %5, %3, %cst_13 {dimension_numbers = #tpu.dot_dimension_numbers<[1], [0], [0], [1], [0, 0, 1, 1], [], []>} : vector<8x32xbf16>, vector<32x32xbf16>, vector<8x32xf32> -> vector<8x32xf32>
    %9 = arith.truncf %8 : vector<8x32xf32> to vector<8x32xbf16>
    %cst_14 = arith.constant dense<0.000000e+00> : vector<8x128xf32>
    %10 = tpu.matmul %9, %4, %cst_14 {dimension_numbers = #tpu.dot_dimension_numbers<[1], [0], [0], [1], [0, 0, 1, 1], [], []>} : vector<8x32xbf16>, vector<32x128xbf16>, vector<8x128xf32> -> vector<8x128xf32>
    %cst_15 = arith.constant dense<0.000000e+00> : vector<8x128xf32>
    %11 = tpu.matmul %6, %2, %cst_15 {dimension_numbers = #tpu.dot_dimension_numbers<[1], [0], [0], [1], [0, 0, 1, 1], [], []>} : vector<8x16xbf16>, vector<16x128xbf16>, vector<8x128xf32> -> vector<8x128xf32>
    %12 = arith.addf %10, %11 : vector<8x128xf32>
    %13 = vector.broadcast %7 : vector<8x1xf32> to vector<8x128xf32>
    %14 = arith.addf %12, %13 : vector<8x128xf32>
    %15 = math.absf %14 : vector<8x128xf32>
    %cst_16 = arith.constant 0.000000e+00 : f32
    %16 = vector.broadcast %cst_16 : f32 to vector<8x128xf32>
    %17 = arith.subf %16, %15 : vector<8x128xf32>
    %18 = math.exp %17 : vector<8x128xf32>
    %cst_17 = arith.constant 1.000000e+00 : f32
    %19 = vector.broadcast %cst_17 : f32 to vector<8x128xf32>
    %20 = arith.addf %19, %18 : vector<8x128xf32>
    %cst_18 = arith.constant 1.000000e+00 : f32
    %21 = vector.broadcast %cst_18 : f32 to vector<8x128xf32>
    %22 = arith.addf %21, %18 : vector<8x128xf32>
    %23 = arith.mulf %20, %22 : vector<8x128xf32>
    %cst_19 = arith.constant 0.000000e+00 : f32
    %24 = vector.broadcast %cst_19 : f32 to vector<8x128xf32>
    %25 = arith.cmpf oge, %14, %24 : vector<8x128xf32>
    %26 = arith.mulf %18, %18 : vector<8x128xf32>
    %cst_20 = arith.constant 1.000000e+00 : f32
    %27 = vector.broadcast %cst_20 : f32 to vector<8x128xf32>
    %28 = arith.select %25, %26, %27 : vector<8x128xi1>, vector<8x128xf32>
    %29 = arith.subf %23, %28 : vector<8x128xf32>
    %30 = arith.mulf %14, %29 : vector<8x128xf32>
    %31 = arith.addf %23, %28 : vector<8x128xf32>
    %32 = tpu.reciprocal %31 {approx = true} : vector<8x128xf32> -> vector<8x128xf32>
    %33 = arith.mulf %30, %32 : vector<8x128xf32>
    %c0_21 = arith.constant 0 : index
    %c0_22 = arith.constant 0 : index
    %34 = vector.load %arg4[%c0_21, %c0_22] : memref<8x32xbf16, #tpu.memory_space<vmem>>, vector<8x32xbf16>
    %c0_23 = arith.constant 0 : index
    %c0_24 = arith.constant 0 : index
    %35 = vector.load %arg6[%c0_23, %c0_24] : memref<8x16xbf16, #tpu.memory_space<vmem>>, vector<8x16xbf16>
    %c0_25 = arith.constant 0 : index
    %c0_26 = arith.constant 0 : index
    %36 = vector.load %arg8[%c0_25, %c0_26] : memref<8x1xf32, #tpu.memory_space<vmem>>, vector<8x1xf32>
    %cst_27 = arith.constant dense<0.000000e+00> : vector<8x32xf32>
    %37 = tpu.matmul %34, %3, %cst_27 {dimension_numbers = #tpu.dot_dimension_numbers<[1], [0], [0], [1], [0, 0, 1, 1], [], []>} : vector<8x32xbf16>, vector<32x32xbf16>, vector<8x32xf32> -> vector<8x32xf32>
    %38 = arith.truncf %37 : vector<8x32xf32> to vector<8x32xbf16>
    %cst_28 = arith.constant dense<0.000000e+00> : vector<8x128xf32>
    %39 = tpu.matmul %38, %4, %cst_28 {dimension_numbers = #tpu.dot_dimension_numbers<[1], [0], [0], [1], [0, 0, 1, 1], [], []>} : vector<8x32xbf16>, vector<32x128xbf16>, vector<8x128xf32> -> vector<8x128xf32>
    %cst_29 = arith.constant dense<0.000000e+00> : vector<8x128xf32>
    %40 = tpu.matmul %35, %2, %cst_29 {dimension_numbers = #tpu.dot_dimension_numbers<[1], [0], [0], [1], [0, 0, 1, 1], [], []>} : vector<8x16xbf16>, vector<16x128xbf16>, vector<8x128xf32> -> vector<8x128xf32>
    %41 = arith.addf %39, %40 : vector<8x128xf32>
    %42 = vector.broadcast %36 : vector<8x1xf32> to vector<8x128xf32>
    %43 = arith.addf %41, %42 : vector<8x128xf32>
    %44 = math.absf %43 : vector<8x128xf32>
    %cst_30 = arith.constant 0.000000e+00 : f32
    %45 = vector.broadcast %cst_30 : f32 to vector<8x128xf32>
    %46 = arith.subf %45, %44 : vector<8x128xf32>
    %47 = math.exp %46 : vector<8x128xf32>
    %cst_31 = arith.constant 1.000000e+00 : f32
    %48 = vector.broadcast %cst_31 : f32 to vector<8x128xf32>
    %49 = arith.addf %48, %47 : vector<8x128xf32>
    %cst_32 = arith.constant 1.000000e+00 : f32
    %50 = vector.broadcast %cst_32 : f32 to vector<8x128xf32>
    %51 = arith.addf %50, %47 : vector<8x128xf32>
    %52 = arith.mulf %49, %51 : vector<8x128xf32>
    %cst_33 = arith.constant 0.000000e+00 : f32
    %53 = vector.broadcast %cst_33 : f32 to vector<8x128xf32>
    %54 = arith.cmpf oge, %43, %53 : vector<8x128xf32>
    %55 = arith.mulf %47, %47 : vector<8x128xf32>
    %cst_34 = arith.constant 1.000000e+00 : f32
    %56 = vector.broadcast %cst_34 : f32 to vector<8x128xf32>
    %57 = arith.select %54, %55, %56 : vector<8x128xi1>, vector<8x128xf32>
    %58 = arith.subf %52, %57 : vector<8x128xf32>
    %59 = arith.mulf %43, %58 : vector<8x128xf32>
    %60 = arith.addf %52, %57 : vector<8x128xf32>
    %61 = tpu.reciprocal %60 {approx = true} : vector<8x128xf32> -> vector<8x128xf32>
    %62 = arith.mulf %59, %61 : vector<8x128xf32>
    %63 = arith.truncf %62 : vector<8x128xf32> to vector<8x128xbf16>
    %c0_35 = arith.constant 0 : index
    %c9 = arith.constant 9 : index
    %64 = vector.load %arg19[%c0_35, %c9] : memref<8x146xbf16, #tpu.memory_space<vmem>>, vector<8x128xbf16>
    tpu.vector_store %arg19[%c0_35, %c9], %63 {strides = array<i32>} : memref<8x146xbf16, #tpu.memory_space<vmem>>, vector<8x128xbf16>,
    %c0_36 = arith.constant 0 : index
    %c0_37 = arith.constant 0 : index
    %65 = vector.load %arg19[%c0_36, %c0_37] : memref<8x146xbf16, #tpu.memory_space<vmem>>, vector<8x128xbf16>
    %c0_38 = arith.constant 0 : index
    %c0_39 = arith.constant 0 : index
    %66 = vector.load %arg13[%c0_38, %c0_39] : memref<9x128xbf16, #tpu.memory_space<vmem>>, vector<1x128xbf16>
    %67 = vector.broadcast %66 : vector<1x128xbf16> to vector<8x128xbf16>
    %68 = arith.mulf %65, %67 : vector<8x128xbf16>
    %c0_40 = arith.constant 0 : index
    %c0_41 = arith.constant 0 : index
    %c0_42 = arith.constant 0 : index
    %69 = vector.load %arg9[%c0_40, %c0_41, %c0_42] : memref<9x8x8xbf16, #tpu.memory_space<vmem>>, vector<1x8x8xbf16>
    %70 = vector.shape_cast %69 : vector<1x8x8xbf16> to vector<8x8xbf16>
    %cst_43 = arith.constant dense<0.000000e+00> : vector<8x128xf32>
    %71 = tpu.matmul %70, %68, %cst_43 {dimension_numbers = #tpu.dot_dimension_numbers<[1], [0], [0], [1], [0, 0, 1, 1], [], []>} : vector<8x8xbf16>, vector<8x128xbf16>, vector<8x128xf32> -> vector<8x128xf32>
    %c0_44 = arith.constant 0 : index
    %c1 = arith.constant 1 : index
    %72 = vector.load %arg19[%c0_44, %c1] : memref<8x146xbf16, #tpu.memory_space<vmem>>, vector<8x128xbf16>
    %c1_45 = arith.constant 1 : index
    %c0_46 = arith.constant 0 : index
    %73 = vector.load %arg13[%c1_45, %c0_46] : memref<9x128xbf16, #tpu.memory_space<vmem>>, vector<1x128xbf16>
    %74 = vector.broadcast %73 : vector<1x128xbf16> to vector<8x128xbf16>
    %75 = arith.mulf %72, %74 : vector<8x128xbf16>
    %c1_47 = arith.constant 1 : index
    %c0_48 = arith.constant 0 : index
    %c0_49 = arith.constant 0 : index
    %76 = vector.load %arg9[%c1_47, %c0_48, %c0_49] : memref<9x8x8xbf16, #tpu.memory_space<vmem>>, vector<1x8x8xbf16>
    %77 = vector.shape_cast %76 : vector<1x8x8xbf16> to vector<8x8xbf16>
    %cst_50 = arith.constant dense<0.000000e+00> : vector<8x128xf32>
    %78 = tpu.matmul %77, %75, %cst_50 {dimension_numbers = #tpu.dot_dimension_numbers<[1], [0], [0], [1], [0, 0, 1, 1], [], []>} : vector<8x8xbf16>, vector<8x128xbf16>, vector<8x128xf32> -> vector<8x128xf32>
    %79 = arith.addf %71, %78 : vector<8x128xf32>
    %c0_51 = arith.constant 0 : index
    %c2 = arith.constant 2 : index
    %80 = vector.load %arg19[%c0_51, %c2] : memref<8x146xbf16, #tpu.memory_space<vmem>>, vector<8x128xbf16>
    %c2_52 = arith.constant 2 : index
    %c0_53 = arith.constant 0 : index
    %81 = vector.load %arg13[%c2_52, %c0_53] : memref<9x128xbf16, #tpu.memory_space<vmem>>, vector<1x128xbf16>
    %82 = vector.broadcast %81 : vector<1x128xbf16> to vector<8x128xbf16>
    %83 = arith.mulf %80, %82 : vector<8x128xbf16>
    %c2_54 = arith.constant 2 : index
    %c0_55 = arith.constant 0 : index
    %c0_56 = arith.constant 0 : index
    %84 = vector.load %arg9[%c2_54, %c0_55, %c0_56] : memref<9x8x8xbf16, #tpu.memory_space<vmem>>, vector<1x8x8xbf16>
    %85 = vector.shape_cast %84 : vector<1x8x8xbf16> to vector<8x8xbf16>
    %cst_57 = arith.constant dense<0.000000e+00> : vector<8x128xf32>
    %86 = tpu.matmul %85, %83, %cst_57 {dimension_numbers = #tpu.dot_dimension_numbers<[1], [0], [0], [1], [0, 0, 1, 1], [], []>} : vector<8x8xbf16>, vector<8x128xbf16>, vector<8x128xf32> -> vector<8x128xf32>
    %87 = arith.addf %79, %86 : vector<8x128xf32>
    %c0_58 = arith.constant 0 : index
    %c8 = arith.constant 8 : index
    %88 = vector.load %arg19[%c0_58, %c8] : memref<8x146xbf16, #tpu.memory_space<vmem>>, vector<8x128xbf16>
    %c3 = arith.constant 3 : index
    %c0_59 = arith.constant 0 : index
    %89 = vector.load %arg13[%c3, %c0_59] : memref<9x128xbf16, #tpu.memory_space<vmem>>, vector<1x128xbf16>
    %90 = vector.broadcast %89 : vector<1x128xbf16> to vector<8x128xbf16>
    %91 = arith.mulf %88, %90 : vector<8x128xbf16>
    %c3_60 = arith.constant 3 : index
    %c0_61 = arith.constant 0 : index
    %c0_62 = arith.constant 0 : index
    %92 = vector.load %arg9[%c3_60, %c0_61, %c0_62] : memref<9x8x8xbf16, #tpu.memory_space<vmem>>, vector<1x8x8xbf16>
    %93 = vector.shape_cast %92 : vector<1x8x8xbf16> to vector<8x8xbf16>
    %cst_63 = arith.constant dense<0.000000e+00> : vector<8x128xf32>
    %94 = tpu.matmul %93, %91, %cst_63 {dimension_numbers = #tpu.dot_dimension_numbers<[1], [0], [0], [1], [0, 0, 1, 1], [], []>} : vector<8x8xbf16>, vector<8x128xbf16>, vector<8x128xf32> -> vector<8x128xf32>
    %95 = arith.addf %87, %94 : vector<8x128xf32>
    %c0_64 = arith.constant 0 : index
    %c9_65 = arith.constant 9 : index
    %96 = vector.load %arg19[%c0_64, %c9_65] : memref<8x146xbf16, #tpu.memory_space<vmem>>, vector<8x128xbf16>
    %c4 = arith.constant 4 : index
    %c0_66 = arith.constant 0 : index
    %c0_67 = arith.constant 0 : index
    %97 = vector.load %arg9[%c4, %c0_66, %c0_67] : memref<9x8x8xbf16, #tpu.memory_space<vmem>>, vector<1x8x8xbf16>
    %98 = vector.shape_cast %97 : vector<1x8x8xbf16> to vector<8x8xbf16>
    %cst_68 = arith.constant dense<0.000000e+00> : vector<8x128xf32>
    %99 = tpu.matmul %98, %96, %cst_68 {dimension_numbers = #tpu.dot_dimension_numbers<[1], [0], [0], [1], [0, 0, 1, 1], [], []>} : vector<8x8xbf16>, vector<8x128xbf16>, vector<8x128xf32> -> vector<8x128xf32>
    %100 = arith.addf %95, %99 : vector<8x128xf32>
    %c0_69 = arith.constant 0 : index
    %c10 = arith.constant 10 : index
    %101 = vector.load %arg19[%c0_69, %c10] : memref<8x146xbf16, #tpu.memory_space<vmem>>, vector<8x128xbf16>
    %c5 = arith.constant 5 : index
    %c0_70 = arith.constant 0 : index
    %102 = vector.load %arg13[%c5, %c0_70] : memref<9x128xbf16, #tpu.memory_space<vmem>>, vector<1x128xbf16>
    %103 = vector.broadcast %102 : vector<1x128xbf16> to vector<8x128xbf16>
    %104 = arith.mulf %101, %103 : vector<8x128xbf16>
    %c5_71 = arith.constant 5 : index
    %c0_72 = arith.constant 0 : index
    %c0_73 = arith.constant 0 : index
    %105 = vector.load %arg9[%c5_71, %c0_72, %c0_73] : memref<9x8x8xbf16, #tpu.memory_space<vmem>>, vector<1x8x8xbf16>
    %106 = vector.shape_cast %105 : vector<1x8x8xbf16> to vector<8x8xbf16>
    %cst_74 = arith.constant dense<0.000000e+00> : vector<8x128xf32>
    %107 = tpu.matmul %106, %104, %cst_74 {dimension_numbers = #tpu.dot_dimension_numbers<[1], [0], [0], [1], [0, 0, 1, 1], [], []>} : vector<8x8xbf16>, vector<8x128xbf16>, vector<8x128xf32> -> vector<8x128xf32>
    %108 = arith.addf %100, %107 : vector<8x128xf32>
    %c0_75 = arith.constant 0 : index
    %c16 = arith.constant 16 : index
    %109 = vector.load %arg19[%c0_75, %c16] : memref<8x146xbf16, #tpu.memory_space<vmem>>, vector<8x128xbf16>
    %c6 = arith.constant 6 : index
    %c0_76 = arith.constant 0 : index
    %110 = vector.load %arg13[%c6, %c0_76] : memref<9x128xbf16, #tpu.memory_space<vmem>>, vector<1x128xbf16>
    %111 = vector.broadcast %110 : vector<1x128xbf16> to vector<8x128xbf16>
    %112 = arith.mulf %109, %111 : vector<8x128xbf16>
    %c6_77 = arith.constant 6 : index
    %c0_78 = arith.constant 0 : index
    %c0_79 = arith.constant 0 : index
    %113 = vector.load %arg9[%c6_77, %c0_78, %c0_79] : memref<9x8x8xbf16, #tpu.memory_space<vmem>>, vector<1x8x8xbf16>
    %114 = vector.shape_cast %113 : vector<1x8x8xbf16> to vector<8x8xbf16>
    %cst_80 = arith.constant dense<0.000000e+00> : vector<8x128xf32>
    %115 = tpu.matmul %114, %112, %cst_80 {dimension_numbers = #tpu.dot_dimension_numbers<[1], [0], [0], [1], [0, 0, 1, 1], [], []>} : vector<8x8xbf16>, vector<8x128xbf16>, vector<8x128xf32> -> vector<8x128xf32>
    %116 = arith.addf %108, %115 : vector<8x128xf32>
    %c0_81 = arith.constant 0 : index
    %c17 = arith.constant 17 : index
    %117 = vector.load %arg19[%c0_81, %c17] : memref<8x146xbf16, #tpu.memory_space<vmem>>, vector<8x128xbf16>
    %c7 = arith.constant 7 : index
    %c0_82 = arith.constant 0 : index
    %118 = vector.load %arg13[%c7, %c0_82] : memref<9x128xbf16, #tpu.memory_space<vmem>>, vector<1x128xbf16>
    %119 = vector.broadcast %118 : vector<1x128xbf16> to vector<8x128xbf16>
    %120 = arith.mulf %117, %119 : vector<8x128xbf16>
    %c7_83 = arith.constant 7 : index
    %c0_84 = arith.constant 0 : index
    %c0_85 = arith.constant 0 : index
    %121 = vector.load %arg9[%c7_83, %c0_84, %c0_85] : memref<9x8x8xbf16, #tpu.memory_space<vmem>>, vector<1x8x8xbf16>
    %122 = vector.shape_cast %121 : vector<1x8x8xbf16> to vector<8x8xbf16>
    %cst_86 = arith.constant dense<0.000000e+00> : vector<8x128xf32>
    %123 = tpu.matmul %122, %120, %cst_86 {dimension_numbers = #tpu.dot_dimension_numbers<[1], [0], [0], [1], [0, 0, 1, 1], [], []>} : vector<8x8xbf16>, vector<8x128xbf16>, vector<8x128xf32> -> vector<8x128xf32>
    %124 = arith.addf %116, %123 : vector<8x128xf32>
    %c0_87 = arith.constant 0 : index
    %c18 = arith.constant 18 : index
    %125 = vector.load %arg19[%c0_87, %c18] : memref<8x146xbf16, #tpu.memory_space<vmem>>, vector<8x128xbf16>
    %c8_88 = arith.constant 8 : index
    %c0_89 = arith.constant 0 : index
    %126 = vector.load %arg13[%c8_88, %c0_89] : memref<9x128xbf16, #tpu.memory_space<vmem>>, vector<1x128xbf16>
    %127 = vector.broadcast %126 : vector<1x128xbf16> to vector<8x128xbf16>
    %128 = arith.mulf %125, %127 : vector<8x128xbf16>
    %c8_90 = arith.constant 8 : index
    %c0_91 = arith.constant 0 : index
    %c0_92 = arith.constant 0 : index
    %129 = vector.load %arg9[%c8_90, %c0_91, %c0_92] : memref<9x8x8xbf16, #tpu.memory_space<vmem>>, vector<1x8x8xbf16>
    %130 = vector.shape_cast %129 : vector<1x8x8xbf16> to vector<8x8xbf16>
    %cst_93 = arith.constant dense<0.000000e+00> : vector<8x128xf32>
    %131 = tpu.matmul %130, %128, %cst_93 {dimension_numbers = #tpu.dot_dimension_numbers<[1], [0], [0], [1], [0, 0, 1, 1], [], []>} : vector<8x8xbf16>, vector<8x128xbf16>, vector<8x128xf32> -> vector<8x128xf32>
    %132 = arith.addf %124, %131 : vector<8x128xf32>
    %c0_94 = arith.constant 0 : index
    %c0_95 = arith.constant 0 : index
    %133 = vector.load %arg10[%c0_94, %c0_95] : memref<8x1xf32, #tpu.memory_space<vmem>>, vector<8x1xf32>
    %134 = vector.broadcast %133 : vector<8x1xf32> to vector<8x128xf32>
    %135 = arith.addf %132, %134 : vector<8x128xf32>
    %136 = math.absf %135 : vector<8x128xf32>
    %cst_96 = arith.constant 0.000000e+00 : f32
    %137 = vector.broadcast %cst_96 : f32 to vector<8x128xf32>
    %138 = arith.subf %137, %136 : vector<8x128xf32>
    %139 = math.exp %138 : vector<8x128xf32>
    %cst_97 = arith.constant 1.000000e+00 : f32
    %140 = vector.broadcast %cst_97 : f32 to vector<8x128xf32>
    %141 = arith.addf %140, %139 : vector<8x128xf32>
    %cst_98 = arith.constant 1.000000e+00 : f32
    %142 = vector.broadcast %cst_98 : f32 to vector<8x128xf32>
    %143 = arith.addf %142, %139 : vector<8x128xf32>
    %144 = arith.mulf %141, %143 : vector<8x128xf32>
    %cst_99 = arith.constant 0.000000e+00 : f32
    %145 = vector.broadcast %cst_99 : f32 to vector<8x128xf32>
    %146 = arith.cmpf oge, %135, %145 : vector<8x128xf32>
    %147 = arith.mulf %139, %139 : vector<8x128xf32>
    %cst_100 = arith.constant 1.000000e+00 : f32
    %148 = vector.broadcast %cst_100 : f32 to vector<8x128xf32>
    %149 = arith.select %146, %147, %148 : vector<8x128xi1>, vector<8x128xf32>
    %150 = arith.subf %144, %149 : vector<8x128xf32>
    %151 = arith.mulf %135, %150 : vector<8x128xf32>
    %152 = arith.addf %144, %149 : vector<8x128xf32>
    %153 = tpu.reciprocal %152 {approx = true} : vector<8x128xf32> -> vector<8x128xf32>
    %154 = arith.mulf %151, %153 : vector<8x128xf32>
    %155 = arith.truncf %154 : vector<8x128xf32> to vector<8x128xbf16>
    %c0_101 = arith.constant 0 : index
    %c9_102 = arith.constant 9 : index
    %156 = vector.load %arg19[%c0_101, %c9_102] : memref<8x146xbf16, #tpu.memory_space<vmem>>, vector<8x128xbf16>
    tpu.vector_store %arg19[%c0_101, %c9_102], %155 {strides = array<i32>} : memref<8x146xbf16, #tpu.memory_space<vmem>>, vector<8x128xbf16>,
    %c0_103 = arith.constant 0 : index
    %c0_104 = arith.constant 0 : index
    %157 = vector.load %arg19[%c0_103, %c0_104] : memref<8x146xbf16, #tpu.memory_space<vmem>>, vector<8x128xbf16>
    %c0_105 = arith.constant 0 : index
    %c0_106 = arith.constant 0 : index
    %158 = vector.load %arg13[%c0_105, %c0_106] : memref<9x128xbf16, #tpu.memory_space<vmem>>, vector<1x128xbf16>
    %159 = vector.broadcast %158 : vector<1x128xbf16> to vector<8x128xbf16>
    %160 = arith.mulf %157, %159 : vector<8x128xbf16>
    %c0_107 = arith.constant 0 : index
    %c0_108 = arith.constant 0 : index
    %c0_109 = arith.constant 0 : index
    %161 = vector.load %arg11[%c0_107, %c0_108, %c0_109] : memref<9x8x8xbf16, #tpu.memory_space<vmem>>, vector<1x8x8xbf16>
    %162 = vector.shape_cast %161 : vector<1x8x8xbf16> to vector<8x8xbf16>
    %cst_110 = arith.constant dense<0.000000e+00> : vector<8x128xf32>
    %163 = tpu.matmul %162, %160, %cst_110 {dimension_numbers = #tpu.dot_dimension_numbers<[1], [0], [0], [1], [0, 0, 1, 1], [], []>} : vector<8x8xbf16>, vector<8x128xbf16>, vector<8x128xf32> -> vector<8x128xf32>
    %c0_111 = arith.constant 0 : index
    %c1_112 = arith.constant 1 : index
    %164 = vector.load %arg19[%c0_111, %c1_112] : memref<8x146xbf16, #tpu.memory_space<vmem>>, vector<8x128xbf16>
    %c1_113 = arith.constant 1 : index
    %c0_114 = arith.constant 0 : index
    %165 = vector.load %arg13[%c1_113, %c0_114] : memref<9x128xbf16, #tpu.memory_space<vmem>>, vector<1x128xbf16>
    %166 = vector.broadcast %165 : vector<1x128xbf16> to vector<8x128xbf16>
    %167 = arith.mulf %164, %166 : vector<8x128xbf16>
    %c1_115 = arith.constant 1 : index
    %c0_116 = arith.constant 0 : index
    %c0_117 = arith.constant 0 : index
    %168 = vector.load %arg11[%c1_115, %c0_116, %c0_117] : memref<9x8x8xbf16, #tpu.memory_space<vmem>>, vector<1x8x8xbf16>
    %169 = vector.shape_cast %168 : vector<1x8x8xbf16> to vector<8x8xbf16>
    %cst_118 = arith.constant dense<0.000000e+00> : vector<8x128xf32>
    %170 = tpu.matmul %169, %167, %cst_118 {dimension_numbers = #tpu.dot_dimension_numbers<[1], [0], [0], [1], [0, 0, 1, 1], [], []>} : vector<8x8xbf16>, vector<8x128xbf16>, vector<8x128xf32> -> vector<8x128xf32>
    %171 = arith.addf %163, %170 : vector<8x128xf32>
    %c0_119 = arith.constant 0 : index
    %c2_120 = arith.constant 2 : index
    %172 = vector.load %arg19[%c0_119, %c2_120] : memref<8x146xbf16, #tpu.memory_space<vmem>>, vector<8x128xbf16>
    %c2_121 = arith.constant 2 : index
    %c0_122 = arith.constant 0 : index
    %173 = vector.load %arg13[%c2_121, %c0_122] : memref<9x128xbf16, #tpu.memory_space<vmem>>, vector<1x128xbf16>
    %174 = vector.broadcast %173 : vector<1x128xbf16> to vector<8x128xbf16>
    %175 = arith.mulf %172, %174 : vector<8x128xbf16>
    %c2_123 = arith.constant 2 : index
    %c0_124 = arith.constant 0 : index
    %c0_125 = arith.constant 0 : index
    %176 = vector.load %arg11[%c2_123, %c0_124, %c0_125] : memref<9x8x8xbf16, #tpu.memory_space<vmem>>, vector<1x8x8xbf16>
    %177 = vector.shape_cast %176 : vector<1x8x8xbf16> to vector<8x8xbf16>
    %cst_126 = arith.constant dense<0.000000e+00> : vector<8x128xf32>
    %178 = tpu.matmul %177, %175, %cst_126 {dimension_numbers = #tpu.dot_dimension_numbers<[1], [0], [0], [1], [0, 0, 1, 1], [], []>} : vector<8x8xbf16>, vector<8x128xbf16>, vector<8x128xf32> -> vector<8x128xf32>
    %179 = arith.addf %171, %178 : vector<8x128xf32>
    %c0_127 = arith.constant 0 : index
    %c8_128 = arith.constant 8 : index
    %180 = vector.load %arg19[%c0_127, %c8_128] : memref<8x146xbf16, #tpu.memory_space<vmem>>, vector<8x128xbf16>
    %c3_129 = arith.constant 3 : index
    %c0_130 = arith.constant 0 : index
    %181 = vector.load %arg13[%c3_129, %c0_130] : memref<9x128xbf16, #tpu.memory_space<vmem>>, vector<1x128xbf16>
    %182 = vector.broadcast %181 : vector<1x128xbf16> to vector<8x128xbf16>
    %183 = arith.mulf %180, %182 : vector<8x128xbf16>
    %c3_131 = arith.constant 3 : index
    %c0_132 = arith.constant 0 : index
    %c0_133 = arith.constant 0 : index
    %184 = vector.load %arg11[%c3_131, %c0_132, %c0_133] : memref<9x8x8xbf16, #tpu.memory_space<vmem>>, vector<1x8x8xbf16>
    %185 = vector.shape_cast %184 : vector<1x8x8xbf16> to vector<8x8xbf16>
    %cst_134 = arith.constant dense<0.000000e+00> : vector<8x128xf32>
    %186 = tpu.matmul %185, %183, %cst_134 {dimension_numbers = #tpu.dot_dimension_numbers<[1], [0], [0], [1], [0, 0, 1, 1], [], []>} : vector<8x8xbf16>, vector<8x128xbf16>, vector<8x128xf32> -> vector<8x128xf32>
    %187 = arith.addf %179, %186 : vector<8x128xf32>
    %c0_135 = arith.constant 0 : index
    %c9_136 = arith.constant 9 : index
    %188 = vector.load %arg19[%c0_135, %c9_136] : memref<8x146xbf16, #tpu.memory_space<vmem>>, vector<8x128xbf16>
    %c4_137 = arith.constant 4 : index
    %c0_138 = arith.constant 0 : index
    %c0_139 = arith.constant 0 : index
    %189 = vector.load %arg11[%c4_137, %c0_138, %c0_139] : memref<9x8x8xbf16, #tpu.memory_space<vmem>>, vector<1x8x8xbf16>
    %190 = vector.shape_cast %189 : vector<1x8x8xbf16> to vector<8x8xbf16>
    %cst_140 = arith.constant dense<0.000000e+00> : vector<8x128xf32>
    %191 = tpu.matmul %190, %188, %cst_140 {dimension_numbers = #tpu.dot_dimension_numbers<[1], [0], [0], [1], [0, 0, 1, 1], [], []>} : vector<8x8xbf16>, vector<8x128xbf16>, vector<8x128xf32> -> vector<8x128xf32>
    %192 = arith.addf %187, %191 : vector<8x128xf32>
    %c0_141 = arith.constant 0 : index
    %c10_142 = arith.constant 10 : index
    %193 = vector.load %arg19[%c0_141, %c10_142] : memref<8x146xbf16, #tpu.memory_space<vmem>>, vector<8x128xbf16>
    %c5_143 = arith.constant 5 : index
    %c0_144 = arith.constant 0 : index
    %194 = vector.load %arg13[%c5_143, %c0_144] : memref<9x128xbf16, #tpu.memory_space<vmem>>, vector<1x128xbf16>
    %195 = vector.broadcast %194 : vector<1x128xbf16> to vector<8x128xbf16>
    %196 = arith.mulf %193, %195 : vector<8x128xbf16>
    %c5_145 = arith.constant 5 : index
    %c0_146 = arith.constant 0 : index
    %c0_147 = arith.constant 0 : index
    %197 = vector.load %arg11[%c5_145, %c0_146, %c0_147] : memref<9x8x8xbf16, #tpu.memory_space<vmem>>, vector<1x8x8xbf16>
    %198 = vector.shape_cast %197 : vector<1x8x8xbf16> to vector<8x8xbf16>
    %cst_148 = arith.constant dense<0.000000e+00> : vector<8x128xf32>
    %199 = tpu.matmul %198, %196, %cst_148 {dimension_numbers = #tpu.dot_dimension_numbers<[1], [0], [0], [1], [0, 0, 1, 1], [], []>} : vector<8x8xbf16>, vector<8x128xbf16>, vector<8x128xf32> -> vector<8x128xf32>
    %200 = arith.addf %192, %199 : vector<8x128xf32>
    %c0_149 = arith.constant 0 : index
    %c16_150 = arith.constant 16 : index
    %201 = vector.load %arg19[%c0_149, %c16_150] : memref<8x146xbf16, #tpu.memory_space<vmem>>, vector<8x128xbf16>
    %c6_151 = arith.constant 6 : index
    %c0_152 = arith.constant 0 : index
    %202 = vector.load %arg13[%c6_151, %c0_152] : memref<9x128xbf16, #tpu.memory_space<vmem>>, vector<1x128xbf16>
    %203 = vector.broadcast %202 : vector<1x128xbf16> to vector<8x128xbf16>
    %204 = arith.mulf %201, %203 : vector<8x128xbf16>
    %c6_153 = arith.constant 6 : index
    %c0_154 = arith.constant 0 : index
    %c0_155 = arith.constant 0 : index
    %205 = vector.load %arg11[%c6_153, %c0_154, %c0_155] : memref<9x8x8xbf16, #tpu.memory_space<vmem>>, vector<1x8x8xbf16>
    %206 = vector.shape_cast %205 : vector<1x8x8xbf16> to vector<8x8xbf16>
    %cst_156 = arith.constant dense<0.000000e+00> : vector<8x128xf32>
    %207 = tpu.matmul %206, %204, %cst_156 {dimension_numbers = #tpu.dot_dimension_numbers<[1], [0], [0], [1], [0, 0, 1, 1], [], []>} : vector<8x8xbf16>, vector<8x128xbf16>, vector<8x128xf32> -> vector<8x128xf32>
    %208 = arith.addf %200, %207 : vector<8x128xf32>
    %c0_157 = arith.constant 0 : index
    %c17_158 = arith.constant 17 : index
    %209 = vector.load %arg19[%c0_157, %c17_158] : memref<8x146xbf16, #tpu.memory_space<vmem>>, vector<8x128xbf16>
    %c7_159 = arith.constant 7 : index
    %c0_160 = arith.constant 0 : index
    %210 = vector.load %arg13[%c7_159, %c0_160] : memref<9x128xbf16, #tpu.memory_space<vmem>>, vector<1x128xbf16>
    %211 = vector.broadcast %210 : vector<1x128xbf16> to vector<8x128xbf16>
    %212 = arith.mulf %209, %211 : vector<8x128xbf16>
    %c7_161 = arith.constant 7 : index
    %c0_162 = arith.constant 0 : index
    %c0_163 = arith.constant 0 : index
    %213 = vector.load %arg11[%c7_161, %c0_162, %c0_163] : memref<9x8x8xbf16, #tpu.memory_space<vmem>>, vector<1x8x8xbf16>
    %214 = vector.shape_cast %213 : vector<1x8x8xbf16> to vector<8x8xbf16>
    %cst_164 = arith.constant dense<0.000000e+00> : vector<8x128xf32>
    %215 = tpu.matmul %214, %212, %cst_164 {dimension_numbers = #tpu.dot_dimension_numbers<[1], [0], [0], [1], [0, 0, 1, 1], [], []>} : vector<8x8xbf16>, vector<8x128xbf16>, vector<8x128xf32> -> vector<8x128xf32>
    %216 = arith.addf %208, %215 : vector<8x128xf32>
    %c0_165 = arith.constant 0 : index
    %c18_166 = arith.constant 18 : index
    %217 = vector.load %arg19[%c0_165, %c18_166] : memref<8x146xbf16, #tpu.memory_space<vmem>>, vector<8x128xbf16>
    %c8_167 = arith.constant 8 : index
    %c0_168 = arith.constant 0 : index
    %218 = vector.load %arg13[%c8_167, %c0_168] : memref<9x128xbf16, #tpu.memory_space<vmem>>, vector<1x128xbf16>
    %219 = vector.broadcast %218 : vector<1x128xbf16> to vector<8x128xbf16>
    %220 = arith.mulf %217, %219 : vector<8x128xbf16>
    %c8_169 = arith.constant 8 : index
    %c0_170 = arith.constant 0 : index
    %c0_171 = arith.constant 0 : index
    %221 = vector.load %arg11[%c8_169, %c0_170, %c0_171] : memref<9x8x8xbf16, #tpu.memory_space<vmem>>, vector<1x8x8xbf16>
    %222 = vector.shape_cast %221 : vector<1x8x8xbf16> to vector<8x8xbf16>
    %cst_172 = arith.constant dense<0.000000e+00> : vector<8x128xf32>
    %223 = tpu.matmul %222, %220, %cst_172 {dimension_numbers = #tpu.dot_dimension_numbers<[1], [0], [0], [1], [0, 0, 1, 1], [], []>} : vector<8x8xbf16>, vector<8x128xbf16>, vector<8x128xf32> -> vector<8x128xf32>
    %224 = arith.addf %216, %223 : vector<8x128xf32>
    %c0_173 = arith.constant 0 : index
    %c0_174 = arith.constant 0 : index
    %225 = vector.load %arg12[%c0_173, %c0_174] : memref<8x1xf32, #tpu.memory_space<vmem>>, vector<8x1xf32>
    %226 = vector.broadcast %225 : vector<8x1xf32> to vector<8x128xf32>
    %227 = arith.addf %224, %226 : vector<8x128xf32>
    %228 = math.absf %227 : vector<8x128xf32>
    %cst_175 = arith.constant 0.000000e+00 : f32
    %229 = vector.broadcast %cst_175 : f32 to vector<8x128xf32>
    %230 = arith.subf %229, %228 : vector<8x128xf32>
    %231 = math.exp %230 : vector<8x128xf32>
    %cst_176 = arith.constant 1.000000e+00 : f32
    %232 = vector.broadcast %cst_176 : f32 to vector<8x128xf32>
    %233 = arith.addf %232, %231 : vector<8x128xf32>
    %cst_177 = arith.constant 1.000000e+00 : f32
    %234 = vector.broadcast %cst_177 : f32 to vector<8x128xf32>
    %235 = arith.addf %234, %231 : vector<8x128xf32>
    %236 = arith.mulf %233, %235 : vector<8x128xf32>
    %cst_178 = arith.constant 0.000000e+00 : f32
    %237 = vector.broadcast %cst_178 : f32 to vector<8x128xf32>
    %238 = arith.cmpf oge, %227, %237 : vector<8x128xf32>
    %239 = arith.mulf %231, %231 : vector<8x128xf32>
    %cst_179 = arith.constant 1.000000e+00 : f32
    %240 = vector.broadcast %cst_179 : f32 to vector<8x128xf32>
    %241 = arith.select %238, %239, %240 : vector<8x128xi1>, vector<8x128xf32>
    %242 = arith.subf %236, %241 : vector<8x128xf32>
    %243 = arith.mulf %227, %242 : vector<8x128xf32>
    %244 = arith.addf %236, %241 : vector<8x128xf32>
    %245 = tpu.reciprocal %244 {approx = true} : vector<8x128xf32> -> vector<8x128xf32>
    %246 = arith.mulf %243, %245 : vector<8x128xf32>
    %c0_180 = arith.constant 0 : index
    %c0_181 = arith.constant 0 : index
    %247 = vector.load %arg14[%c0_180, %c0_181] : memref<16x8xbf16, #tpu.memory_space<vmem>>, vector<16x8xbf16>
    %248 = arith.truncf %33 : vector<8x128xf32> to vector<8x128xbf16>
    %cst_182 = arith.constant dense<0.000000e+00> : vector<16x128xf32>
    %249 = tpu.matmul %247, %248, %cst_182 {dimension_numbers = #tpu.dot_dimension_numbers<[1], [0], [0], [1], [0, 0, 1, 1], [], []>} : vector<16x8xbf16>, vector<8x128xbf16>, vector<16x128xf32> -> vector<16x128xf32>
    %c0_183 = arith.constant 0 : index
    %c0_184 = arith.constant 0 : index
    %250 = vector.load %arg15[%c0_183, %c0_184] : memref<16x8xbf16, #tpu.memory_space<vmem>>, vector<16x8xbf16>
    %251 = arith.truncf %62 : vector<8x128xf32> to vector<8x128xbf16>
    %cst_185 = arith.constant dense<0.000000e+00> : vector<16x128xf32>
    %252 = tpu.matmul %250, %251, %cst_185 {dimension_numbers = #tpu.dot_dimension_numbers<[1], [0], [0], [1], [0, 0, 1, 1], [], []>} : vector<16x8xbf16>, vector<8x128xbf16>, vector<16x128xf32> -> vector<16x128xf32>
    %253 = arith.addf %249, %252 : vector<16x128xf32>
    %c0_186 = arith.constant 0 : index
    %c0_187 = arith.constant 0 : index
    %254 = vector.load %arg16[%c0_186, %c0_187] : memref<16x8xbf16, #tpu.memory_space<vmem>>, vector<16x8xbf16>
    %255 = arith.truncf %246 : vector<8x128xf32> to vector<8x128xbf16>
    %cst_188 = arith.constant dense<0.000000e+00> : vector<16x128xf32>
    %256 = tpu.matmul %254, %255, %cst_188 {dimension_numbers = #tpu.dot_dimension_numbers<[1], [0], [0], [1], [0, 0, 1, 1], [], []>} : vector<16x8xbf16>, vector<8x128xbf16>, vector<16x128xf32> -> vector<16x128xf32>
    %257 = arith.addf %253, %256 : vector<16x128xf32>
    %c0_189 = arith.constant 0 : index
    %c0_190 = arith.constant 0 : index
    %258 = vector.load %arg17[%c0_189, %c0_190] : memref<16x1xf32, #tpu.memory_space<vmem>>, vector<16x1xf32>
    %259 = vector.broadcast %258 : vector<16x1xf32> to vector<16x128xf32>
    %260 = arith.addf %257, %259 : vector<16x128xf32>
    %261 = math.absf %260 : vector<16x128xf32>
    %cst_191 = arith.constant 0.000000e+00 : f32
    %262 = vector.broadcast %cst_191 : f32 to vector<16x128xf32>
    %263 = arith.subf %262, %261 : vector<16x128xf32>
    %264 = math.exp %263 : vector<16x128xf32>
    %cst_192 = arith.constant 1.000000e+00 : f32
    %265 = vector.broadcast %cst_192 : f32 to vector<16x128xf32>
    %266 = arith.addf %265, %264 : vector<16x128xf32>
    %cst_193 = arith.constant 1.000000e+00 : f32
    %267 = vector.broadcast %cst_193 : f32 to vector<16x128xf32>
    %268 = arith.addf %267, %264 : vector<16x128xf32>
    %269 = arith.mulf %266, %268 : vector<16x128xf32>
    %cst_194 = arith.constant 0.000000e+00 : f32
    %270 = vector.broadcast %cst_194 : f32 to vector<16x128xf32>
    %271 = arith.cmpf oge, %260, %270 : vector<16x128xf32>
    %272 = arith.mulf %264, %264 : vector<16x128xf32>
    %cst_195 = arith.constant 1.000000e+00 : f32
    %273 = vector.broadcast %cst_195 : f32 to vector<16x128xf32>
    %274 = arith.select %271, %272, %273 : vector<16x128xi1>, vector<16x128xf32>
    %275 = arith.subf %269, %274 : vector<16x128xf32>
    %276 = arith.mulf %260, %275 : vector<16x128xf32>
    %277 = arith.addf %269, %274 : vector<16x128xf32>
    %278 = tpu.reciprocal %277 {approx = true} : vector<16x128xf32> -> vector<16x128xf32>
    %279 = arith.mulf %276, %278 : vector<16x128xf32>
    %280 = arith.truncf %279 : vector<16x128xf32> to vector<16x128xbf16>
    %c0_196 = arith.constant 0 : index
    %c0_197 = arith.constant 0 : index
    %281 = vector.load %arg18[%c0_196, %c0_197] : memref<16x128xbf16, #tpu.memory_space<vmem>>, vector<16x128xbf16>
    tpu.vector_store %arg18[%c0_196, %c0_197], %280 {strides = array<i32>} : memref<16x128xbf16, #tpu.memory_space<vmem>>, vector<16x128xbf16>,
    return
  }
}

module attributes {stable_mosaic.version = 11 : i64} {
  func.func @kernel(%arg0: memref<16x128xbf16, #tpu.memory_space<vmem>>, %arg1: memref<8x512xbf16, #tpu.memory_space<vmem>>, %arg2: memref<128x512xbf16, #tpu.memory_space<vmem>>, %arg3: memref<4x16xbf16, #tpu.memory_space<vmem>>, %arg4: memref<4x16xbf16, #tpu.memory_space<vmem>>, %arg5: memref<4x8xbf16, #tpu.memory_space<vmem>>, %arg6: memref<4x8xbf16, #tpu.memory_space<vmem>>, %arg7: memref<4x1xf32, #tpu.memory_space<vmem>>, %arg8: memref<4x1xf32, #tpu.memory_space<vmem>>, %arg9: memref<9x4x4xbf16, #tpu.memory_space<vmem>>, %arg10: memref<4x1xf32, #tpu.memory_space<vmem>>, %arg11: memref<9x4x4xbf16, #tpu.memory_space<vmem>>, %arg12: memref<4x1xf32, #tpu.memory_space<vmem>>, %arg13: memref<9x512xbf16, #tpu.memory_space<vmem>>, %arg14: memref<8x4xbf16, #tpu.memory_space<vmem>>, %arg15: memref<8x4xbf16, #tpu.memory_space<vmem>>, %arg16: memref<8x4xbf16, #tpu.memory_space<vmem>>, %arg17: memref<8x1xf32, #tpu.memory_space<vmem>>, %arg18: memref<8x512xf32, #tpu.memory_space<vmem>>, %arg19: memref<4x546xbf16, #tpu.memory_space<vmem>>) attributes {dimension_semantics = [], scalar_prefetch = 0 : i64, scratch_operands = 1 : i64, tpu.core_type = #tpu.core_type<tc>} {
    %cst = arith.constant 0.000000e+00 : bf16
    %0 = vector.broadcast %cst : bf16 to vector<4x546xbf16>
    %c0 = arith.constant 0 : index
    %c0_0 = arith.constant 0 : index
    %1 = vector.load %arg19[%c0, %c0_0] : memref<4x546xbf16, #tpu.memory_space<vmem>>, vector<4x546xbf16>
    tpu.vector_store %arg19[%c0, %c0_0], %0 {strides = array<i32>} : memref<4x546xbf16, #tpu.memory_space<vmem>>, vector<4x546xbf16>,
    %c0_1 = arith.constant 0 : index
    %c0_2 = arith.constant 0 : index
    %2 = vector.load %arg1[%c0_1, %c0_2] : memref<8x512xbf16, #tpu.memory_space<vmem>>, vector<8x512xbf16>
    %c0_3 = arith.constant 0 : index
    %c0_4 = arith.constant 0 : index
    %3 = vector.load %arg0[%c0_3, %c0_4] : memref<16x128xbf16, #tpu.memory_space<vmem>>, vector<16x128xbf16>
    %c0_5 = arith.constant 0 : index
    %c0_6 = arith.constant 0 : index
    %4 = vector.load %arg2[%c0_5, %c0_6] : memref<128x512xbf16, #tpu.memory_space<vmem>>, vector<128x512xbf16>
    %c0_7 = arith.constant 0 : index
    %c0_8 = arith.constant 0 : index
    %5 = vector.load %arg3[%c0_7, %c0_8] : memref<4x16xbf16, #tpu.memory_space<vmem>>, vector<4x16xbf16>
    %c0_9 = arith.constant 0 : index
    %c0_10 = arith.constant 0 : index
    %6 = vector.load %arg5[%c0_9, %c0_10] : memref<4x8xbf16, #tpu.memory_space<vmem>>, vector<4x8xbf16>
    %c0_11 = arith.constant 0 : index
    %c0_12 = arith.constant 0 : index
    %7 = vector.load %arg7[%c0_11, %c0_12] : memref<4x1xf32, #tpu.memory_space<vmem>>, vector<4x1xf32>
    %cst_13 = arith.constant dense<0.000000e+00> : vector<4x128xf32>
    %8 = tpu.matmul %5, %3, %cst_13 {dimension_numbers = #tpu.dot_dimension_numbers<[1], [0], [0], [1], [0, 0, 1, 1], [], []>} : vector<4x16xbf16>, vector<16x128xbf16>, vector<4x128xf32> -> vector<4x128xf32>
    %9 = arith.truncf %8 : vector<4x128xf32> to vector<4x128xbf16>
    %cst_14 = arith.constant dense<0.000000e+00> : vector<4x512xf32>
    %10 = tpu.matmul %9, %4, %cst_14 {dimension_numbers = #tpu.dot_dimension_numbers<[1], [0], [0], [1], [0, 0, 1, 1], [], []>} : vector<4x128xbf16>, vector<128x512xbf16>, vector<4x512xf32> -> vector<4x512xf32>
    %cst_15 = arith.constant dense<0.000000e+00> : vector<4x512xf32>
    %11 = tpu.matmul %6, %2, %cst_15 {dimension_numbers = #tpu.dot_dimension_numbers<[1], [0], [0], [1], [0, 0, 1, 1], [], []>} : vector<4x8xbf16>, vector<8x512xbf16>, vector<4x512xf32> -> vector<4x512xf32>
    %12 = arith.addf %10, %11 : vector<4x512xf32>
    %13 = vector.broadcast %7 : vector<4x1xf32> to vector<4x512xf32>
    %14 = arith.addf %12, %13 : vector<4x512xf32>
    %15 = math.absf %14 : vector<4x512xf32>
    %cst_16 = arith.constant 0.000000e+00 : f32
    %16 = vector.broadcast %cst_16 : f32 to vector<4x512xf32>
    %17 = arith.subf %16, %15 : vector<4x512xf32>
    %18 = math.exp %17 : vector<4x512xf32>
    %cst_17 = arith.constant 1.000000e+00 : f32
    %19 = vector.broadcast %cst_17 : f32 to vector<4x512xf32>
    %20 = arith.addf %19, %18 : vector<4x512xf32>
    %cst_18 = arith.constant 1.000000e+00 : f32
    %21 = vector.broadcast %cst_18 : f32 to vector<4x512xf32>
    %22 = arith.addf %21, %18 : vector<4x512xf32>
    %23 = arith.mulf %20, %22 : vector<4x512xf32>
    %cst_19 = arith.constant 0.000000e+00 : f32
    %24 = vector.broadcast %cst_19 : f32 to vector<4x512xf32>
    %25 = arith.cmpf oge, %14, %24 : vector<4x512xf32>
    %26 = arith.mulf %18, %18 : vector<4x512xf32>
    %cst_20 = arith.constant 1.000000e+00 : f32
    %27 = vector.broadcast %cst_20 : f32 to vector<4x512xf32>
    %28 = arith.select %25, %26, %27 : vector<4x512xi1>, vector<4x512xf32>
    %29 = arith.subf %23, %28 : vector<4x512xf32>
    %30 = arith.mulf %14, %29 : vector<4x512xf32>
    %31 = arith.addf %23, %28 : vector<4x512xf32>
    %32 = tpu.reciprocal %31 {approx = true} : vector<4x512xf32> -> vector<4x512xf32>
    %33 = arith.mulf %30, %32 : vector<4x512xf32>
    %c0_21 = arith.constant 0 : index
    %c0_22 = arith.constant 0 : index
    %34 = vector.load %arg4[%c0_21, %c0_22] : memref<4x16xbf16, #tpu.memory_space<vmem>>, vector<4x16xbf16>
    %c0_23 = arith.constant 0 : index
    %c0_24 = arith.constant 0 : index
    %35 = vector.load %arg6[%c0_23, %c0_24] : memref<4x8xbf16, #tpu.memory_space<vmem>>, vector<4x8xbf16>
    %c0_25 = arith.constant 0 : index
    %c0_26 = arith.constant 0 : index
    %36 = vector.load %arg8[%c0_25, %c0_26] : memref<4x1xf32, #tpu.memory_space<vmem>>, vector<4x1xf32>
    %cst_27 = arith.constant dense<0.000000e+00> : vector<4x128xf32>
    %37 = tpu.matmul %34, %3, %cst_27 {dimension_numbers = #tpu.dot_dimension_numbers<[1], [0], [0], [1], [0, 0, 1, 1], [], []>} : vector<4x16xbf16>, vector<16x128xbf16>, vector<4x128xf32> -> vector<4x128xf32>
    %38 = arith.truncf %37 : vector<4x128xf32> to vector<4x128xbf16>
    %cst_28 = arith.constant dense<0.000000e+00> : vector<4x512xf32>
    %39 = tpu.matmul %38, %4, %cst_28 {dimension_numbers = #tpu.dot_dimension_numbers<[1], [0], [0], [1], [0, 0, 1, 1], [], []>} : vector<4x128xbf16>, vector<128x512xbf16>, vector<4x512xf32> -> vector<4x512xf32>
    %cst_29 = arith.constant dense<0.000000e+00> : vector<4x512xf32>
    %40 = tpu.matmul %35, %2, %cst_29 {dimension_numbers = #tpu.dot_dimension_numbers<[1], [0], [0], [1], [0, 0, 1, 1], [], []>} : vector<4x8xbf16>, vector<8x512xbf16>, vector<4x512xf32> -> vector<4x512xf32>
    %41 = arith.addf %39, %40 : vector<4x512xf32>
    %42 = vector.broadcast %36 : vector<4x1xf32> to vector<4x512xf32>
    %43 = arith.addf %41, %42 : vector<4x512xf32>
    %44 = math.absf %43 : vector<4x512xf32>
    %cst_30 = arith.constant 0.000000e+00 : f32
    %45 = vector.broadcast %cst_30 : f32 to vector<4x512xf32>
    %46 = arith.subf %45, %44 : vector<4x512xf32>
    %47 = math.exp %46 : vector<4x512xf32>
    %cst_31 = arith.constant 1.000000e+00 : f32
    %48 = vector.broadcast %cst_31 : f32 to vector<4x512xf32>
    %49 = arith.addf %48, %47 : vector<4x512xf32>
    %cst_32 = arith.constant 1.000000e+00 : f32
    %50 = vector.broadcast %cst_32 : f32 to vector<4x512xf32>
    %51 = arith.addf %50, %47 : vector<4x512xf32>
    %52 = arith.mulf %49, %51 : vector<4x512xf32>
    %cst_33 = arith.constant 0.000000e+00 : f32
    %53 = vector.broadcast %cst_33 : f32 to vector<4x512xf32>
    %54 = arith.cmpf oge, %43, %53 : vector<4x512xf32>
    %55 = arith.mulf %47, %47 : vector<4x512xf32>
    %cst_34 = arith.constant 1.000000e+00 : f32
    %56 = vector.broadcast %cst_34 : f32 to vector<4x512xf32>
    %57 = arith.select %54, %55, %56 : vector<4x512xi1>, vector<4x512xf32>
    %58 = arith.subf %52, %57 : vector<4x512xf32>
    %59 = arith.mulf %43, %58 : vector<4x512xf32>
    %60 = arith.addf %52, %57 : vector<4x512xf32>
    %61 = tpu.reciprocal %60 {approx = true} : vector<4x512xf32> -> vector<4x512xf32>
    %62 = arith.mulf %59, %61 : vector<4x512xf32>
    %63 = arith.truncf %62 : vector<4x512xf32> to vector<4x512xbf16>
    %c0_35 = arith.constant 0 : index
    %c17 = arith.constant 17 : index
    %64 = vector.load %arg19[%c0_35, %c17] : memref<4x546xbf16, #tpu.memory_space<vmem>>, vector<4x512xbf16>
    tpu.vector_store %arg19[%c0_35, %c17], %63 {strides = array<i32>} : memref<4x546xbf16, #tpu.memory_space<vmem>>, vector<4x512xbf16>,
    %c0_36 = arith.constant 0 : index
    %c0_37 = arith.constant 0 : index
    %65 = vector.load %arg19[%c0_36, %c0_37] : memref<4x546xbf16, #tpu.memory_space<vmem>>, vector<4x512xbf16>
    %c0_38 = arith.constant 0 : index
    %c0_39 = arith.constant 0 : index
    %66 = vector.load %arg13[%c0_38, %c0_39] : memref<9x512xbf16, #tpu.memory_space<vmem>>, vector<1x512xbf16>
    %67 = vector.broadcast %66 : vector<1x512xbf16> to vector<4x512xbf16>
    %68 = arith.mulf %65, %67 : vector<4x512xbf16>
    %c0_40 = arith.constant 0 : index
    %c0_41 = arith.constant 0 : index
    %c0_42 = arith.constant 0 : index
    %69 = vector.load %arg9[%c0_40, %c0_41, %c0_42] : memref<9x4x4xbf16, #tpu.memory_space<vmem>>, vector<1x4x4xbf16>
    %70 = vector.shape_cast %69 : vector<1x4x4xbf16> to vector<4x4xbf16>
    %cst_43 = arith.constant dense<0.000000e+00> : vector<4x512xf32>
    %71 = tpu.matmul %70, %68, %cst_43 {dimension_numbers = #tpu.dot_dimension_numbers<[1], [0], [0], [1], [0, 0, 1, 1], [], []>} : vector<4x4xbf16>, vector<4x512xbf16>, vector<4x512xf32> -> vector<4x512xf32>
    %c0_44 = arith.constant 0 : index
    %c1 = arith.constant 1 : index
    %72 = vector.load %arg19[%c0_44, %c1] : memref<4x546xbf16, #tpu.memory_space<vmem>>, vector<4x512xbf16>
    %c1_45 = arith.constant 1 : index
    %c0_46 = arith.constant 0 : index
    %73 = vector.load %arg13[%c1_45, %c0_46] : memref<9x512xbf16, #tpu.memory_space<vmem>>, vector<1x512xbf16>
    %74 = vector.broadcast %73 : vector<1x512xbf16> to vector<4x512xbf16>
    %75 = arith.mulf %72, %74 : vector<4x512xbf16>
    %c1_47 = arith.constant 1 : index
    %c0_48 = arith.constant 0 : index
    %c0_49 = arith.constant 0 : index
    %76 = vector.load %arg9[%c1_47, %c0_48, %c0_49] : memref<9x4x4xbf16, #tpu.memory_space<vmem>>, vector<1x4x4xbf16>
    %77 = vector.shape_cast %76 : vector<1x4x4xbf16> to vector<4x4xbf16>
    %cst_50 = arith.constant dense<0.000000e+00> : vector<4x512xf32>
    %78 = tpu.matmul %77, %75, %cst_50 {dimension_numbers = #tpu.dot_dimension_numbers<[1], [0], [0], [1], [0, 0, 1, 1], [], []>} : vector<4x4xbf16>, vector<4x512xbf16>, vector<4x512xf32> -> vector<4x512xf32>
    %79 = arith.addf %71, %78 : vector<4x512xf32>
    %c0_51 = arith.constant 0 : index
    %c2 = arith.constant 2 : index
    %80 = vector.load %arg19[%c0_51, %c2] : memref<4x546xbf16, #tpu.memory_space<vmem>>, vector<4x512xbf16>
    %c2_52 = arith.constant 2 : index
    %c0_53 = arith.constant 0 : index
    %81 = vector.load %arg13[%c2_52, %c0_53] : memref<9x512xbf16, #tpu.memory_space<vmem>>, vector<1x512xbf16>
    %82 = vector.broadcast %81 : vector<1x512xbf16> to vector<4x512xbf16>
    %83 = arith.mulf %80, %82 : vector<4x512xbf16>
    %c2_54 = arith.constant 2 : index
    %c0_55 = arith.constant 0 : index
    %c0_56 = arith.constant 0 : index
    %84 = vector.load %arg9[%c2_54, %c0_55, %c0_56] : memref<9x4x4xbf16, #tpu.memory_space<vmem>>, vector<1x4x4xbf16>
    %85 = vector.shape_cast %84 : vector<1x4x4xbf16> to vector<4x4xbf16>
    %cst_57 = arith.constant dense<0.000000e+00> : vector<4x512xf32>
    %86 = tpu.matmul %85, %83, %cst_57 {dimension_numbers = #tpu.dot_dimension_numbers<[1], [0], [0], [1], [0, 0, 1, 1], [], []>} : vector<4x4xbf16>, vector<4x512xbf16>, vector<4x512xf32> -> vector<4x512xf32>
    %87 = arith.addf %79, %86 : vector<4x512xf32>
    %c0_58 = arith.constant 0 : index
    %c16 = arith.constant 16 : index
    %88 = vector.load %arg19[%c0_58, %c16] : memref<4x546xbf16, #tpu.memory_space<vmem>>, vector<4x512xbf16>
    %c3 = arith.constant 3 : index
    %c0_59 = arith.constant 0 : index
    %89 = vector.load %arg13[%c3, %c0_59] : memref<9x512xbf16, #tpu.memory_space<vmem>>, vector<1x512xbf16>
    %90 = vector.broadcast %89 : vector<1x512xbf16> to vector<4x512xbf16>
    %91 = arith.mulf %88, %90 : vector<4x512xbf16>
    %c3_60 = arith.constant 3 : index
    %c0_61 = arith.constant 0 : index
    %c0_62 = arith.constant 0 : index
    %92 = vector.load %arg9[%c3_60, %c0_61, %c0_62] : memref<9x4x4xbf16, #tpu.memory_space<vmem>>, vector<1x4x4xbf16>
    %93 = vector.shape_cast %92 : vector<1x4x4xbf16> to vector<4x4xbf16>
    %cst_63 = arith.constant dense<0.000000e+00> : vector<4x512xf32>
    %94 = tpu.matmul %93, %91, %cst_63 {dimension_numbers = #tpu.dot_dimension_numbers<[1], [0], [0], [1], [0, 0, 1, 1], [], []>} : vector<4x4xbf16>, vector<4x512xbf16>, vector<4x512xf32> -> vector<4x512xf32>
    %95 = arith.addf %87, %94 : vector<4x512xf32>
    %c0_64 = arith.constant 0 : index
    %c17_65 = arith.constant 17 : index
    %96 = vector.load %arg19[%c0_64, %c17_65] : memref<4x546xbf16, #tpu.memory_space<vmem>>, vector<4x512xbf16>
    %c4 = arith.constant 4 : index
    %c0_66 = arith.constant 0 : index
    %c0_67 = arith.constant 0 : index
    %97 = vector.load %arg9[%c4, %c0_66, %c0_67] : memref<9x4x4xbf16, #tpu.memory_space<vmem>>, vector<1x4x4xbf16>
    %98 = vector.shape_cast %97 : vector<1x4x4xbf16> to vector<4x4xbf16>
    %cst_68 = arith.constant dense<0.000000e+00> : vector<4x512xf32>
    %99 = tpu.matmul %98, %96, %cst_68 {dimension_numbers = #tpu.dot_dimension_numbers<[1], [0], [0], [1], [0, 0, 1, 1], [], []>} : vector<4x4xbf16>, vector<4x512xbf16>, vector<4x512xf32> -> vector<4x512xf32>
    %100 = arith.addf %95, %99 : vector<4x512xf32>
    %c0_69 = arith.constant 0 : index
    %c18 = arith.constant 18 : index
    %101 = vector.load %arg19[%c0_69, %c18] : memref<4x546xbf16, #tpu.memory_space<vmem>>, vector<4x512xbf16>
    %c5 = arith.constant 5 : index
    %c0_70 = arith.constant 0 : index
    %102 = vector.load %arg13[%c5, %c0_70] : memref<9x512xbf16, #tpu.memory_space<vmem>>, vector<1x512xbf16>
    %103 = vector.broadcast %102 : vector<1x512xbf16> to vector<4x512xbf16>
    %104 = arith.mulf %101, %103 : vector<4x512xbf16>
    %c5_71 = arith.constant 5 : index
    %c0_72 = arith.constant 0 : index
    %c0_73 = arith.constant 0 : index
    %105 = vector.load %arg9[%c5_71, %c0_72, %c0_73] : memref<9x4x4xbf16, #tpu.memory_space<vmem>>, vector<1x4x4xbf16>
    %106 = vector.shape_cast %105 : vector<1x4x4xbf16> to vector<4x4xbf16>
    %cst_74 = arith.constant dense<0.000000e+00> : vector<4x512xf32>
    %107 = tpu.matmul %106, %104, %cst_74 {dimension_numbers = #tpu.dot_dimension_numbers<[1], [0], [0], [1], [0, 0, 1, 1], [], []>} : vector<4x4xbf16>, vector<4x512xbf16>, vector<4x512xf32> -> vector<4x512xf32>
    %108 = arith.addf %100, %107 : vector<4x512xf32>
    %c0_75 = arith.constant 0 : index
    %c32 = arith.constant 32 : index
    %109 = vector.load %arg19[%c0_75, %c32] : memref<4x546xbf16, #tpu.memory_space<vmem>>, vector<4x512xbf16>
    %c6 = arith.constant 6 : index
    %c0_76 = arith.constant 0 : index
    %110 = vector.load %arg13[%c6, %c0_76] : memref<9x512xbf16, #tpu.memory_space<vmem>>, vector<1x512xbf16>
    %111 = vector.broadcast %110 : vector<1x512xbf16> to vector<4x512xbf16>
    %112 = arith.mulf %109, %111 : vector<4x512xbf16>
    %c6_77 = arith.constant 6 : index
    %c0_78 = arith.constant 0 : index
    %c0_79 = arith.constant 0 : index
    %113 = vector.load %arg9[%c6_77, %c0_78, %c0_79] : memref<9x4x4xbf16, #tpu.memory_space<vmem>>, vector<1x4x4xbf16>
    %114 = vector.shape_cast %113 : vector<1x4x4xbf16> to vector<4x4xbf16>
    %cst_80 = arith.constant dense<0.000000e+00> : vector<4x512xf32>
    %115 = tpu.matmul %114, %112, %cst_80 {dimension_numbers = #tpu.dot_dimension_numbers<[1], [0], [0], [1], [0, 0, 1, 1], [], []>} : vector<4x4xbf16>, vector<4x512xbf16>, vector<4x512xf32> -> vector<4x512xf32>
    %116 = arith.addf %108, %115 : vector<4x512xf32>
    %c0_81 = arith.constant 0 : index
    %c33 = arith.constant 33 : index
    %117 = vector.load %arg19[%c0_81, %c33] : memref<4x546xbf16, #tpu.memory_space<vmem>>, vector<4x512xbf16>
    %c7 = arith.constant 7 : index
    %c0_82 = arith.constant 0 : index
    %118 = vector.load %arg13[%c7, %c0_82] : memref<9x512xbf16, #tpu.memory_space<vmem>>, vector<1x512xbf16>
    %119 = vector.broadcast %118 : vector<1x512xbf16> to vector<4x512xbf16>
    %120 = arith.mulf %117, %119 : vector<4x512xbf16>
    %c7_83 = arith.constant 7 : index
    %c0_84 = arith.constant 0 : index
    %c0_85 = arith.constant 0 : index
    %121 = vector.load %arg9[%c7_83, %c0_84, %c0_85] : memref<9x4x4xbf16, #tpu.memory_space<vmem>>, vector<1x4x4xbf16>
    %122 = vector.shape_cast %121 : vector<1x4x4xbf16> to vector<4x4xbf16>
    %cst_86 = arith.constant dense<0.000000e+00> : vector<4x512xf32>
    %123 = tpu.matmul %122, %120, %cst_86 {dimension_numbers = #tpu.dot_dimension_numbers<[1], [0], [0], [1], [0, 0, 1, 1], [], []>} : vector<4x4xbf16>, vector<4x512xbf16>, vector<4x512xf32> -> vector<4x512xf32>
    %124 = arith.addf %116, %123 : vector<4x512xf32>
    %c0_87 = arith.constant 0 : index
    %c34 = arith.constant 34 : index
    %125 = vector.load %arg19[%c0_87, %c34] : memref<4x546xbf16, #tpu.memory_space<vmem>>, vector<4x512xbf16>
    %c8 = arith.constant 8 : index
    %c0_88 = arith.constant 0 : index
    %126 = vector.load %arg13[%c8, %c0_88] : memref<9x512xbf16, #tpu.memory_space<vmem>>, vector<1x512xbf16>
    %127 = vector.broadcast %126 : vector<1x512xbf16> to vector<4x512xbf16>
    %128 = arith.mulf %125, %127 : vector<4x512xbf16>
    %c8_89 = arith.constant 8 : index
    %c0_90 = arith.constant 0 : index
    %c0_91 = arith.constant 0 : index
    %129 = vector.load %arg9[%c8_89, %c0_90, %c0_91] : memref<9x4x4xbf16, #tpu.memory_space<vmem>>, vector<1x4x4xbf16>
    %130 = vector.shape_cast %129 : vector<1x4x4xbf16> to vector<4x4xbf16>
    %cst_92 = arith.constant dense<0.000000e+00> : vector<4x512xf32>
    %131 = tpu.matmul %130, %128, %cst_92 {dimension_numbers = #tpu.dot_dimension_numbers<[1], [0], [0], [1], [0, 0, 1, 1], [], []>} : vector<4x4xbf16>, vector<4x512xbf16>, vector<4x512xf32> -> vector<4x512xf32>
    %132 = arith.addf %124, %131 : vector<4x512xf32>
    %c0_93 = arith.constant 0 : index
    %c0_94 = arith.constant 0 : index
    %133 = vector.load %arg10[%c0_93, %c0_94] : memref<4x1xf32, #tpu.memory_space<vmem>>, vector<4x1xf32>
    %134 = vector.broadcast %133 : vector<4x1xf32> to vector<4x512xf32>
    %135 = arith.addf %132, %134 : vector<4x512xf32>
    %136 = math.absf %135 : vector<4x512xf32>
    %cst_95 = arith.constant 0.000000e+00 : f32
    %137 = vector.broadcast %cst_95 : f32 to vector<4x512xf32>
    %138 = arith.subf %137, %136 : vector<4x512xf32>
    %139 = math.exp %138 : vector<4x512xf32>
    %cst_96 = arith.constant 1.000000e+00 : f32
    %140 = vector.broadcast %cst_96 : f32 to vector<4x512xf32>
    %141 = arith.addf %140, %139 : vector<4x512xf32>
    %cst_97 = arith.constant 1.000000e+00 : f32
    %142 = vector.broadcast %cst_97 : f32 to vector<4x512xf32>
    %143 = arith.addf %142, %139 : vector<4x512xf32>
    %144 = arith.mulf %141, %143 : vector<4x512xf32>
    %cst_98 = arith.constant 0.000000e+00 : f32
    %145 = vector.broadcast %cst_98 : f32 to vector<4x512xf32>
    %146 = arith.cmpf oge, %135, %145 : vector<4x512xf32>
    %147 = arith.mulf %139, %139 : vector<4x512xf32>
    %cst_99 = arith.constant 1.000000e+00 : f32
    %148 = vector.broadcast %cst_99 : f32 to vector<4x512xf32>
    %149 = arith.select %146, %147, %148 : vector<4x512xi1>, vector<4x512xf32>
    %150 = arith.subf %144, %149 : vector<4x512xf32>
    %151 = arith.mulf %135, %150 : vector<4x512xf32>
    %152 = arith.addf %144, %149 : vector<4x512xf32>
    %153 = tpu.reciprocal %152 {approx = true} : vector<4x512xf32> -> vector<4x512xf32>
    %154 = arith.mulf %151, %153 : vector<4x512xf32>
    %155 = arith.truncf %154 : vector<4x512xf32> to vector<4x512xbf16>
    %c0_100 = arith.constant 0 : index
    %c17_101 = arith.constant 17 : index
    %156 = vector.load %arg19[%c0_100, %c17_101] : memref<4x546xbf16, #tpu.memory_space<vmem>>, vector<4x512xbf16>
    tpu.vector_store %arg19[%c0_100, %c17_101], %155 {strides = array<i32>} : memref<4x546xbf16, #tpu.memory_space<vmem>>, vector<4x512xbf16>,
    %c0_102 = arith.constant 0 : index
    %c0_103 = arith.constant 0 : index
    %157 = vector.load %arg19[%c0_102, %c0_103] : memref<4x546xbf16, #tpu.memory_space<vmem>>, vector<4x512xbf16>
    %c0_104 = arith.constant 0 : index
    %c0_105 = arith.constant 0 : index
    %158 = vector.load %arg13[%c0_104, %c0_105] : memref<9x512xbf16, #tpu.memory_space<vmem>>, vector<1x512xbf16>
    %159 = vector.broadcast %158 : vector<1x512xbf16> to vector<4x512xbf16>
    %160 = arith.mulf %157, %159 : vector<4x512xbf16>
    %c0_106 = arith.constant 0 : index
    %c0_107 = arith.constant 0 : index
    %c0_108 = arith.constant 0 : index
    %161 = vector.load %arg11[%c0_106, %c0_107, %c0_108] : memref<9x4x4xbf16, #tpu.memory_space<vmem>>, vector<1x4x4xbf16>
    %162 = vector.shape_cast %161 : vector<1x4x4xbf16> to vector<4x4xbf16>
    %cst_109 = arith.constant dense<0.000000e+00> : vector<4x512xf32>
    %163 = tpu.matmul %162, %160, %cst_109 {dimension_numbers = #tpu.dot_dimension_numbers<[1], [0], [0], [1], [0, 0, 1, 1], [], []>} : vector<4x4xbf16>, vector<4x512xbf16>, vector<4x512xf32> -> vector<4x512xf32>
    %c0_110 = arith.constant 0 : index
    %c1_111 = arith.constant 1 : index
    %164 = vector.load %arg19[%c0_110, %c1_111] : memref<4x546xbf16, #tpu.memory_space<vmem>>, vector<4x512xbf16>
    %c1_112 = arith.constant 1 : index
    %c0_113 = arith.constant 0 : index
    %165 = vector.load %arg13[%c1_112, %c0_113] : memref<9x512xbf16, #tpu.memory_space<vmem>>, vector<1x512xbf16>
    %166 = vector.broadcast %165 : vector<1x512xbf16> to vector<4x512xbf16>
    %167 = arith.mulf %164, %166 : vector<4x512xbf16>
    %c1_114 = arith.constant 1 : index
    %c0_115 = arith.constant 0 : index
    %c0_116 = arith.constant 0 : index
    %168 = vector.load %arg11[%c1_114, %c0_115, %c0_116] : memref<9x4x4xbf16, #tpu.memory_space<vmem>>, vector<1x4x4xbf16>
    %169 = vector.shape_cast %168 : vector<1x4x4xbf16> to vector<4x4xbf16>
    %cst_117 = arith.constant dense<0.000000e+00> : vector<4x512xf32>
    %170 = tpu.matmul %169, %167, %cst_117 {dimension_numbers = #tpu.dot_dimension_numbers<[1], [0], [0], [1], [0, 0, 1, 1], [], []>} : vector<4x4xbf16>, vector<4x512xbf16>, vector<4x512xf32> -> vector<4x512xf32>
    %171 = arith.addf %163, %170 : vector<4x512xf32>
    %c0_118 = arith.constant 0 : index
    %c2_119 = arith.constant 2 : index
    %172 = vector.load %arg19[%c0_118, %c2_119] : memref<4x546xbf16, #tpu.memory_space<vmem>>, vector<4x512xbf16>
    %c2_120 = arith.constant 2 : index
    %c0_121 = arith.constant 0 : index
    %173 = vector.load %arg13[%c2_120, %c0_121] : memref<9x512xbf16, #tpu.memory_space<vmem>>, vector<1x512xbf16>
    %174 = vector.broadcast %173 : vector<1x512xbf16> to vector<4x512xbf16>
    %175 = arith.mulf %172, %174 : vector<4x512xbf16>
    %c2_122 = arith.constant 2 : index
    %c0_123 = arith.constant 0 : index
    %c0_124 = arith.constant 0 : index
    %176 = vector.load %arg11[%c2_122, %c0_123, %c0_124] : memref<9x4x4xbf16, #tpu.memory_space<vmem>>, vector<1x4x4xbf16>
    %177 = vector.shape_cast %176 : vector<1x4x4xbf16> to vector<4x4xbf16>
    %cst_125 = arith.constant dense<0.000000e+00> : vector<4x512xf32>
    %178 = tpu.matmul %177, %175, %cst_125 {dimension_numbers = #tpu.dot_dimension_numbers<[1], [0], [0], [1], [0, 0, 1, 1], [], []>} : vector<4x4xbf16>, vector<4x512xbf16>, vector<4x512xf32> -> vector<4x512xf32>
    %179 = arith.addf %171, %178 : vector<4x512xf32>
    %c0_126 = arith.constant 0 : index
    %c16_127 = arith.constant 16 : index
    %180 = vector.load %arg19[%c0_126, %c16_127] : memref<4x546xbf16, #tpu.memory_space<vmem>>, vector<4x512xbf16>
    %c3_128 = arith.constant 3 : index
    %c0_129 = arith.constant 0 : index
    %181 = vector.load %arg13[%c3_128, %c0_129] : memref<9x512xbf16, #tpu.memory_space<vmem>>, vector<1x512xbf16>
    %182 = vector.broadcast %181 : vector<1x512xbf16> to vector<4x512xbf16>
    %183 = arith.mulf %180, %182 : vector<4x512xbf16>
    %c3_130 = arith.constant 3 : index
    %c0_131 = arith.constant 0 : index
    %c0_132 = arith.constant 0 : index
    %184 = vector.load %arg11[%c3_130, %c0_131, %c0_132] : memref<9x4x4xbf16, #tpu.memory_space<vmem>>, vector<1x4x4xbf16>
    %185 = vector.shape_cast %184 : vector<1x4x4xbf16> to vector<4x4xbf16>
    %cst_133 = arith.constant dense<0.000000e+00> : vector<4x512xf32>
    %186 = tpu.matmul %185, %183, %cst_133 {dimension_numbers = #tpu.dot_dimension_numbers<[1], [0], [0], [1], [0, 0, 1, 1], [], []>} : vector<4x4xbf16>, vector<4x512xbf16>, vector<4x512xf32> -> vector<4x512xf32>
    %187 = arith.addf %179, %186 : vector<4x512xf32>
    %c0_134 = arith.constant 0 : index
    %c17_135 = arith.constant 17 : index
    %188 = vector.load %arg19[%c0_134, %c17_135] : memref<4x546xbf16, #tpu.memory_space<vmem>>, vector<4x512xbf16>
    %c4_136 = arith.constant 4 : index
    %c0_137 = arith.constant 0 : index
    %c0_138 = arith.constant 0 : index
    %189 = vector.load %arg11[%c4_136, %c0_137, %c0_138] : memref<9x4x4xbf16, #tpu.memory_space<vmem>>, vector<1x4x4xbf16>
    %190 = vector.shape_cast %189 : vector<1x4x4xbf16> to vector<4x4xbf16>
    %cst_139 = arith.constant dense<0.000000e+00> : vector<4x512xf32>
    %191 = tpu.matmul %190, %188, %cst_139 {dimension_numbers = #tpu.dot_dimension_numbers<[1], [0], [0], [1], [0, 0, 1, 1], [], []>} : vector<4x4xbf16>, vector<4x512xbf16>, vector<4x512xf32> -> vector<4x512xf32>
    %192 = arith.addf %187, %191 : vector<4x512xf32>
    %c0_140 = arith.constant 0 : index
    %c18_141 = arith.constant 18 : index
    %193 = vector.load %arg19[%c0_140, %c18_141] : memref<4x546xbf16, #tpu.memory_space<vmem>>, vector<4x512xbf16>
    %c5_142 = arith.constant 5 : index
    %c0_143 = arith.constant 0 : index
    %194 = vector.load %arg13[%c5_142, %c0_143] : memref<9x512xbf16, #tpu.memory_space<vmem>>, vector<1x512xbf16>
    %195 = vector.broadcast %194 : vector<1x512xbf16> to vector<4x512xbf16>
    %196 = arith.mulf %193, %195 : vector<4x512xbf16>
    %c5_144 = arith.constant 5 : index
    %c0_145 = arith.constant 0 : index
    %c0_146 = arith.constant 0 : index
    %197 = vector.load %arg11[%c5_144, %c0_145, %c0_146] : memref<9x4x4xbf16, #tpu.memory_space<vmem>>, vector<1x4x4xbf16>
    %198 = vector.shape_cast %197 : vector<1x4x4xbf16> to vector<4x4xbf16>
    %cst_147 = arith.constant dense<0.000000e+00> : vector<4x512xf32>
    %199 = tpu.matmul %198, %196, %cst_147 {dimension_numbers = #tpu.dot_dimension_numbers<[1], [0], [0], [1], [0, 0, 1, 1], [], []>} : vector<4x4xbf16>, vector<4x512xbf16>, vector<4x512xf32> -> vector<4x512xf32>
    %200 = arith.addf %192, %199 : vector<4x512xf32>
    %c0_148 = arith.constant 0 : index
    %c32_149 = arith.constant 32 : index
    %201 = vector.load %arg19[%c0_148, %c32_149] : memref<4x546xbf16, #tpu.memory_space<vmem>>, vector<4x512xbf16>
    %c6_150 = arith.constant 6 : index
    %c0_151 = arith.constant 0 : index
    %202 = vector.load %arg13[%c6_150, %c0_151] : memref<9x512xbf16, #tpu.memory_space<vmem>>, vector<1x512xbf16>
    %203 = vector.broadcast %202 : vector<1x512xbf16> to vector<4x512xbf16>
    %204 = arith.mulf %201, %203 : vector<4x512xbf16>
    %c6_152 = arith.constant 6 : index
    %c0_153 = arith.constant 0 : index
    %c0_154 = arith.constant 0 : index
    %205 = vector.load %arg11[%c6_152, %c0_153, %c0_154] : memref<9x4x4xbf16, #tpu.memory_space<vmem>>, vector<1x4x4xbf16>
    %206 = vector.shape_cast %205 : vector<1x4x4xbf16> to vector<4x4xbf16>
    %cst_155 = arith.constant dense<0.000000e+00> : vector<4x512xf32>
    %207 = tpu.matmul %206, %204, %cst_155 {dimension_numbers = #tpu.dot_dimension_numbers<[1], [0], [0], [1], [0, 0, 1, 1], [], []>} : vector<4x4xbf16>, vector<4x512xbf16>, vector<4x512xf32> -> vector<4x512xf32>
    %208 = arith.addf %200, %207 : vector<4x512xf32>
    %c0_156 = arith.constant 0 : index
    %c33_157 = arith.constant 33 : index
    %209 = vector.load %arg19[%c0_156, %c33_157] : memref<4x546xbf16, #tpu.memory_space<vmem>>, vector<4x512xbf16>
    %c7_158 = arith.constant 7 : index
    %c0_159 = arith.constant 0 : index
    %210 = vector.load %arg13[%c7_158, %c0_159] : memref<9x512xbf16, #tpu.memory_space<vmem>>, vector<1x512xbf16>
    %211 = vector.broadcast %210 : vector<1x512xbf16> to vector<4x512xbf16>
    %212 = arith.mulf %209, %211 : vector<4x512xbf16>
    %c7_160 = arith.constant 7 : index
    %c0_161 = arith.constant 0 : index
    %c0_162 = arith.constant 0 : index
    %213 = vector.load %arg11[%c7_160, %c0_161, %c0_162] : memref<9x4x4xbf16, #tpu.memory_space<vmem>>, vector<1x4x4xbf16>
    %214 = vector.shape_cast %213 : vector<1x4x4xbf16> to vector<4x4xbf16>
    %cst_163 = arith.constant dense<0.000000e+00> : vector<4x512xf32>
    %215 = tpu.matmul %214, %212, %cst_163 {dimension_numbers = #tpu.dot_dimension_numbers<[1], [0], [0], [1], [0, 0, 1, 1], [], []>} : vector<4x4xbf16>, vector<4x512xbf16>, vector<4x512xf32> -> vector<4x512xf32>
    %216 = arith.addf %208, %215 : vector<4x512xf32>
    %c0_164 = arith.constant 0 : index
    %c34_165 = arith.constant 34 : index
    %217 = vector.load %arg19[%c0_164, %c34_165] : memref<4x546xbf16, #tpu.memory_space<vmem>>, vector<4x512xbf16>
    %c8_166 = arith.constant 8 : index
    %c0_167 = arith.constant 0 : index
    %218 = vector.load %arg13[%c8_166, %c0_167] : memref<9x512xbf16, #tpu.memory_space<vmem>>, vector<1x512xbf16>
    %219 = vector.broadcast %218 : vector<1x512xbf16> to vector<4x512xbf16>
    %220 = arith.mulf %217, %219 : vector<4x512xbf16>
    %c8_168 = arith.constant 8 : index
    %c0_169 = arith.constant 0 : index
    %c0_170 = arith.constant 0 : index
    %221 = vector.load %arg11[%c8_168, %c0_169, %c0_170] : memref<9x4x4xbf16, #tpu.memory_space<vmem>>, vector<1x4x4xbf16>
    %222 = vector.shape_cast %221 : vector<1x4x4xbf16> to vector<4x4xbf16>
    %cst_171 = arith.constant dense<0.000000e+00> : vector<4x512xf32>
    %223 = tpu.matmul %222, %220, %cst_171 {dimension_numbers = #tpu.dot_dimension_numbers<[1], [0], [0], [1], [0, 0, 1, 1], [], []>} : vector<4x4xbf16>, vector<4x512xbf16>, vector<4x512xf32> -> vector<4x512xf32>
    %224 = arith.addf %216, %223 : vector<4x512xf32>
    %c0_172 = arith.constant 0 : index
    %c0_173 = arith.constant 0 : index
    %225 = vector.load %arg12[%c0_172, %c0_173] : memref<4x1xf32, #tpu.memory_space<vmem>>, vector<4x1xf32>
    %226 = vector.broadcast %225 : vector<4x1xf32> to vector<4x512xf32>
    %227 = arith.addf %224, %226 : vector<4x512xf32>
    %228 = math.absf %227 : vector<4x512xf32>
    %cst_174 = arith.constant 0.000000e+00 : f32
    %229 = vector.broadcast %cst_174 : f32 to vector<4x512xf32>
    %230 = arith.subf %229, %228 : vector<4x512xf32>
    %231 = math.exp %230 : vector<4x512xf32>
    %cst_175 = arith.constant 1.000000e+00 : f32
    %232 = vector.broadcast %cst_175 : f32 to vector<4x512xf32>
    %233 = arith.addf %232, %231 : vector<4x512xf32>
    %cst_176 = arith.constant 1.000000e+00 : f32
    %234 = vector.broadcast %cst_176 : f32 to vector<4x512xf32>
    %235 = arith.addf %234, %231 : vector<4x512xf32>
    %236 = arith.mulf %233, %235 : vector<4x512xf32>
    %cst_177 = arith.constant 0.000000e+00 : f32
    %237 = vector.broadcast %cst_177 : f32 to vector<4x512xf32>
    %238 = arith.cmpf oge, %227, %237 : vector<4x512xf32>
    %239 = arith.mulf %231, %231 : vector<4x512xf32>
    %cst_178 = arith.constant 1.000000e+00 : f32
    %240 = vector.broadcast %cst_178 : f32 to vector<4x512xf32>
    %241 = arith.select %238, %239, %240 : vector<4x512xi1>, vector<4x512xf32>
    %242 = arith.subf %236, %241 : vector<4x512xf32>
    %243 = arith.mulf %227, %242 : vector<4x512xf32>
    %244 = arith.addf %236, %241 : vector<4x512xf32>
    %245 = tpu.reciprocal %244 {approx = true} : vector<4x512xf32> -> vector<4x512xf32>
    %246 = arith.mulf %243, %245 : vector<4x512xf32>
    %c0_179 = arith.constant 0 : index
    %c0_180 = arith.constant 0 : index
    %247 = vector.load %arg14[%c0_179, %c0_180] : memref<8x4xbf16, #tpu.memory_space<vmem>>, vector<8x4xbf16>
    %248 = arith.truncf %33 : vector<4x512xf32> to vector<4x512xbf16>
    %cst_181 = arith.constant dense<0.000000e+00> : vector<8x512xf32>
    %249 = tpu.matmul %247, %248, %cst_181 {dimension_numbers = #tpu.dot_dimension_numbers<[1], [0], [0], [1], [0, 0, 1, 1], [], []>} : vector<8x4xbf16>, vector<4x512xbf16>, vector<8x512xf32> -> vector<8x512xf32>
    %c0_182 = arith.constant 0 : index
    %c0_183 = arith.constant 0 : index
    %250 = vector.load %arg15[%c0_182, %c0_183] : memref<8x4xbf16, #tpu.memory_space<vmem>>, vector<8x4xbf16>
    %251 = arith.truncf %62 : vector<4x512xf32> to vector<4x512xbf16>
    %cst_184 = arith.constant dense<0.000000e+00> : vector<8x512xf32>
    %252 = tpu.matmul %250, %251, %cst_184 {dimension_numbers = #tpu.dot_dimension_numbers<[1], [0], [0], [1], [0, 0, 1, 1], [], []>} : vector<8x4xbf16>, vector<4x512xbf16>, vector<8x512xf32> -> vector<8x512xf32>
    %253 = arith.addf %249, %252 : vector<8x512xf32>
    %c0_185 = arith.constant 0 : index
    %c0_186 = arith.constant 0 : index
    %254 = vector.load %arg16[%c0_185, %c0_186] : memref<8x4xbf16, #tpu.memory_space<vmem>>, vector<8x4xbf16>
    %255 = arith.truncf %246 : vector<4x512xf32> to vector<4x512xbf16>
    %cst_187 = arith.constant dense<0.000000e+00> : vector<8x512xf32>
    %256 = tpu.matmul %254, %255, %cst_187 {dimension_numbers = #tpu.dot_dimension_numbers<[1], [0], [0], [1], [0, 0, 1, 1], [], []>} : vector<8x4xbf16>, vector<4x512xbf16>, vector<8x512xf32> -> vector<8x512xf32>
    %257 = arith.addf %253, %256 : vector<8x512xf32>
    %c0_188 = arith.constant 0 : index
    %c0_189 = arith.constant 0 : index
    %258 = vector.load %arg17[%c0_188, %c0_189] : memref<8x1xf32, #tpu.memory_space<vmem>>, vector<8x1xf32>
    %259 = vector.broadcast %258 : vector<8x1xf32> to vector<8x512xf32>
    %260 = arith.addf %257, %259 : vector<8x512xf32>
    %261 = math.absf %260 : vector<8x512xf32>
    %cst_190 = arith.constant 0.000000e+00 : f32
    %262 = vector.broadcast %cst_190 : f32 to vector<8x512xf32>
    %263 = arith.subf %262, %261 : vector<8x512xf32>
    %264 = math.exp %263 : vector<8x512xf32>
    %cst_191 = arith.constant 1.000000e+00 : f32
    %265 = vector.broadcast %cst_191 : f32 to vector<8x512xf32>
    %266 = arith.addf %265, %264 : vector<8x512xf32>
    %cst_192 = arith.constant 1.000000e+00 : f32
    %267 = vector.broadcast %cst_192 : f32 to vector<8x512xf32>
    %268 = arith.addf %267, %264 : vector<8x512xf32>
    %269 = arith.mulf %266, %268 : vector<8x512xf32>
    %cst_193 = arith.constant 0.000000e+00 : f32
    %270 = vector.broadcast %cst_193 : f32 to vector<8x512xf32>
    %271 = arith.cmpf oge, %260, %270 : vector<8x512xf32>
    %272 = arith.mulf %264, %264 : vector<8x512xf32>
    %cst_194 = arith.constant 1.000000e+00 : f32
    %273 = vector.broadcast %cst_194 : f32 to vector<8x512xf32>
    %274 = arith.select %271, %272, %273 : vector<8x512xi1>, vector<8x512xf32>
    %275 = arith.subf %269, %274 : vector<8x512xf32>
    %276 = arith.mulf %260, %275 : vector<8x512xf32>
    %277 = arith.addf %269, %274 : vector<8x512xf32>
    %278 = tpu.reciprocal %277 {approx = true} : vector<8x512xf32> -> vector<8x512xf32>
    %279 = arith.mulf %276, %278 : vector<8x512xf32>
    %c0_195 = arith.constant 0 : index
    %c0_196 = arith.constant 0 : index
    %280 = vector.load %arg18[%c0_195, %c0_196] : memref<8x512xf32, #tpu.memory_space<vmem>>, vector<8x512xf32>
    tpu.vector_store %arg18[%c0_195, %c0_196], %279 {strides = array<i32>} : memref<8x512xf32, #tpu.memory_space<vmem>>, vector<8x512xf32>,
    return
  }
}

module attributes {stable_mosaic.version = 11 : i64} {
  func.func @kernel(%arg0: memref<4x8x128xbf16, #tpu.memory_space<vmem>>, %arg1: memref<16x128xbf16, #tpu.memory_space<vmem>>, %arg2: memref<9x8x8xbf16, #tpu.memory_space<vmem>>, %arg3: memref<8x1xf32, #tpu.memory_space<vmem>>, %arg4: memref<9x128xbf16, #tpu.memory_space<vmem>>, %arg5: memref<8x8xbf16, #tpu.memory_space<vmem>>, %arg6: memref<8x8xbf16, #tpu.memory_space<vmem>>, %arg7: memref<8x16xbf16, #tpu.memory_space<vmem>>, %arg8: memref<8x16xbf16, #tpu.memory_space<vmem>>, %arg9: memref<8x1xf32, #tpu.memory_space<vmem>>, %arg10: memref<8x1xf32, #tpu.memory_space<vmem>>, %arg11: memref<9x8x8xbf16, #tpu.memory_space<vmem>>, %arg12: memref<8x1xf32, #tpu.memory_space<vmem>>, %arg13: memref<9x8x8xbf16, #tpu.memory_space<vmem>>, %arg14: memref<8x1xf32, #tpu.memory_space<vmem>>, %arg15: memref<9x128xbf16, #tpu.memory_space<vmem>>, %arg16: memref<16x8xbf16, #tpu.memory_space<vmem>>, %arg17: memref<16x8xbf16, #tpu.memory_space<vmem>>, %arg18: memref<16x8xbf16, #tpu.memory_space<vmem>>, %arg19: memref<16x1xf32, #tpu.memory_space<vmem>>, %arg20: memref<16x128xf32, #tpu.memory_space<vmem>>, %arg21: memref<8x146xbf16, #tpu.memory_space<vmem>>, %arg22: memref<32x137xbf16, #tpu.memory_space<vmem>>) attributes {dimension_semantics = [], scalar_prefetch = 0 : i64, scratch_operands = 2 : i64, tpu.core_type = #tpu.core_type<tc>} {
    %cst = arith.constant 0.000000e+00 : bf16
    %0 = vector.broadcast %cst : bf16 to vector<8x146xbf16>
    %c0 = arith.constant 0 : index
    %c0_0 = arith.constant 0 : index
    %1 = vector.load %arg21[%c0, %c0_0] : memref<8x146xbf16, #tpu.memory_space<vmem>>, vector<8x146xbf16>
    tpu.vector_store %arg21[%c0, %c0_0], %0 {strides = array<i32>} : memref<8x146xbf16, #tpu.memory_space<vmem>>, vector<8x146xbf16>,
    %c0_1 = arith.constant 0 : index
    %c0_2 = arith.constant 0 : index
    %2 = vector.load %arg1[%c0_1, %c0_2] : memref<16x128xbf16, #tpu.memory_space<vmem>>, vector<16x128xbf16>
    %cst_3 = arith.constant 0.000000e+00 : bf16
    %3 = vector.broadcast %cst_3 : bf16 to vector<32x137xbf16>
    %c0_4 = arith.constant 0 : index
    %c0_5 = arith.constant 0 : index
    %4 = vector.load %arg22[%c0_4, %c0_5] : memref<32x137xbf16, #tpu.memory_space<vmem>>, vector<32x137xbf16>
    tpu.vector_store %arg22[%c0_4, %c0_5], %3 {strides = array<i32>} : memref<32x137xbf16, #tpu.memory_space<vmem>>, vector<32x137xbf16>,
    %c0_6 = arith.constant 0 : index
    %c0_7 = arith.constant 0 : index
    %c0_8 = arith.constant 0 : index
    %5 = vector.load %arg0[%c0_6, %c0_7, %c0_8] : memref<4x8x128xbf16, #tpu.memory_space<vmem>>, vector<4x8x128xbf16>
    %6 = vector.extract_strided_slice %5 {offsets = [0, 0, 0], sizes = [1, 8, 128], strides = [1, 1, 1]} : vector<4x8x128xbf16> to vector<1x8x128xbf16>
    %7 = vector.shape_cast %6 : vector<1x8x128xbf16> to vector<8x128xbf16>
    %c0_9 = arith.constant 0 : index
    %c9 = arith.constant 9 : index
    %8 = vector.load %arg22[%c0_9, %c9] : memref<32x137xbf16, #tpu.memory_space<vmem>>, vector<8x128xbf16>
    tpu.vector_store %arg22[%c0_9, %c9], %7 {strides = array<i32>} : memref<32x137xbf16, #tpu.memory_space<vmem>>, vector<8x128xbf16>,
    %9 = vector.extract_strided_slice %5 {offsets = [1, 0, 0], sizes = [1, 8, 128], strides = [1, 1, 1]} : vector<4x8x128xbf16> to vector<1x8x128xbf16>
    %10 = vector.shape_cast %9 : vector<1x8x128xbf16> to vector<8x128xbf16>
    %c8 = arith.constant 8 : index
    %c9_10 = arith.constant 9 : index
    %11 = vector.load %arg22[%c8, %c9_10] : memref<32x137xbf16, #tpu.memory_space<vmem>>, vector<8x128xbf16>
    tpu.vector_store %arg22[%c8, %c9_10], %10 {strides = array<i32>} : memref<32x137xbf16, #tpu.memory_space<vmem>>, vector<8x128xbf16>,
    %12 = vector.extract_strided_slice %5 {offsets = [2, 0, 0], sizes = [1, 8, 128], strides = [1, 1, 1]} : vector<4x8x128xbf16> to vector<1x8x128xbf16>
    %13 = vector.shape_cast %12 : vector<1x8x128xbf16> to vector<8x128xbf16>
    %c16 = arith.constant 16 : index
    %c9_11 = arith.constant 9 : index
    %14 = vector.load %arg22[%c16, %c9_11] : memref<32x137xbf16, #tpu.memory_space<vmem>>, vector<8x128xbf16>
    tpu.vector_store %arg22[%c16, %c9_11], %13 {strides = array<i32>} : memref<32x137xbf16, #tpu.memory_space<vmem>>, vector<8x128xbf16>,
    %15 = vector.extract_strided_slice %5 {offsets = [3, 0, 0], sizes = [1, 8, 128], strides = [1, 1, 1]} : vector<4x8x128xbf16> to vector<1x8x128xbf16>
    %16 = vector.shape_cast %15 : vector<1x8x128xbf16> to vector<8x128xbf16>
    %c24 = arith.constant 24 : index
    %c9_12 = arith.constant 9 : index
    %17 = vector.load %arg22[%c24, %c9_12] : memref<32x137xbf16, #tpu.memory_space<vmem>>, vector<8x128xbf16>
    tpu.vector_store %arg22[%c24, %c9_12], %16 {strides = array<i32>} : memref<32x137xbf16, #tpu.memory_space<vmem>>, vector<8x128xbf16>,
    %c24_13 = arith.constant 24 : index
    %c0_14 = arith.constant 0 : index
    %18 = vector.load %arg22[%c24_13, %c0_14] : memref<32x137xbf16, #tpu.memory_space<vmem>>, vector<8x128xbf16>
    %c0_15 = arith.constant 0 : index
    %c0_16 = arith.constant 0 : index
    %19 = vector.load %arg4[%c0_15, %c0_16] : memref<9x128xbf16, #tpu.memory_space<vmem>>, vector<1x128xbf16>
    %20 = vector.broadcast %19 : vector<1x128xbf16> to vector<8x128xbf16>
    %21 = arith.mulf %18, %20 : vector<8x128xbf16>
    %c0_17 = arith.constant 0 : index
    %c0_18 = arith.constant 0 : index
    %c0_19 = arith.constant 0 : index
    %22 = vector.load %arg2[%c0_17, %c0_18, %c0_19] : memref<9x8x8xbf16, #tpu.memory_space<vmem>>, vector<1x8x8xbf16>
    %23 = vector.shape_cast %22 : vector<1x8x8xbf16> to vector<8x8xbf16>
    %cst_20 = arith.constant dense<0.000000e+00> : vector<8x128xf32>
    %24 = tpu.matmul %23, %21, %cst_20 {dimension_numbers = #tpu.dot_dimension_numbers<[1], [0], [0], [1], [0, 0, 1, 1], [], []>} : vector<8x8xbf16>, vector<8x128xbf16>, vector<8x128xf32> -> vector<8x128xf32>
    %c16_21 = arith.constant 16 : index
    %c1 = arith.constant 1 : index
    %25 = vector.load %arg22[%c16_21, %c1] : memref<32x137xbf16, #tpu.memory_space<vmem>>, vector<8x128xbf16>
    %c1_22 = arith.constant 1 : index
    %c0_23 = arith.constant 0 : index
    %26 = vector.load %arg4[%c1_22, %c0_23] : memref<9x128xbf16, #tpu.memory_space<vmem>>, vector<1x128xbf16>
    %27 = vector.broadcast %26 : vector<1x128xbf16> to vector<8x128xbf16>
    %28 = arith.mulf %25, %27 : vector<8x128xbf16>
    %c1_24 = arith.constant 1 : index
    %c0_25 = arith.constant 0 : index
    %c0_26 = arith.constant 0 : index
    %29 = vector.load %arg2[%c1_24, %c0_25, %c0_26] : memref<9x8x8xbf16, #tpu.memory_space<vmem>>, vector<1x8x8xbf16>
    %30 = vector.shape_cast %29 : vector<1x8x8xbf16> to vector<8x8xbf16>
    %cst_27 = arith.constant dense<0.000000e+00> : vector<8x128xf32>
    %31 = tpu.matmul %30, %28, %cst_27 {dimension_numbers = #tpu.dot_dimension_numbers<[1], [0], [0], [1], [0, 0, 1, 1], [], []>} : vector<8x8xbf16>, vector<8x128xbf16>, vector<8x128xf32> -> vector<8x128xf32>
    %32 = arith.addf %24, %31 : vector<8x128xf32>
    %c24_28 = arith.constant 24 : index
    %c1_29 = arith.constant 1 : index
    %33 = vector.load %arg22[%c24_28, %c1_29] : memref<32x137xbf16, #tpu.memory_space<vmem>>, vector<8x128xbf16>
    %c2 = arith.constant 2 : index
    %c0_30 = arith.constant 0 : index
    %34 = vector.load %arg4[%c2, %c0_30] : memref<9x128xbf16, #tpu.memory_space<vmem>>, vector<1x128xbf16>
    %35 = vector.broadcast %34 : vector<1x128xbf16> to vector<8x128xbf16>
    %36 = arith.mulf %33, %35 : vector<8x128xbf16>
    %c2_31 = arith.constant 2 : index
    %c0_32 = arith.constant 0 : index
    %c0_33 = arith.constant 0 : index
    %37 = vector.load %arg2[%c2_31, %c0_32, %c0_33] : memref<9x8x8xbf16, #tpu.memory_space<vmem>>, vector<1x8x8xbf16>
    %38 = vector.shape_cast %37 : vector<1x8x8xbf16> to vector<8x8xbf16>
    %cst_34 = arith.constant dense<0.000000e+00> : vector<8x128xf32>
    %39 = tpu.matmul %38, %36, %cst_34 {dimension_numbers = #tpu.dot_dimension_numbers<[1], [0], [0], [1], [0, 0, 1, 1], [], []>} : vector<8x8xbf16>, vector<8x128xbf16>, vector<8x128xf32> -> vector<8x128xf32>
    %40 = arith.addf %32, %39 : vector<8x128xf32>
    %c8_35 = arith.constant 8 : index
    %c8_36 = arith.constant 8 : index
    %41 = vector.load %arg22[%c8_35, %c8_36] : memref<32x137xbf16, #tpu.memory_space<vmem>>, vector<8x128xbf16>
    %c3 = arith.constant 3 : index
    %c0_37 = arith.constant 0 : index
    %42 = vector.load %arg4[%c3, %c0_37] : memref<9x128xbf16, #tpu.memory_space<vmem>>, vector<1x128xbf16>
    %43 = vector.broadcast %42 : vector<1x128xbf16> to vector<8x128xbf16>
    %44 = arith.mulf %41, %43 : vector<8x128xbf16>
    %c3_38 = arith.constant 3 : index
    %c0_39 = arith.constant 0 : index
    %c0_40 = arith.constant 0 : index
    %45 = vector.load %arg2[%c3_38, %c0_39, %c0_40] : memref<9x8x8xbf16, #tpu.memory_space<vmem>>, vector<1x8x8xbf16>
    %46 = vector.shape_cast %45 : vector<1x8x8xbf16> to vector<8x8xbf16>
    %cst_41 = arith.constant dense<0.000000e+00> : vector<8x128xf32>
    %47 = tpu.matmul %46, %44, %cst_41 {dimension_numbers = #tpu.dot_dimension_numbers<[1], [0], [0], [1], [0, 0, 1, 1], [], []>} : vector<8x8xbf16>, vector<8x128xbf16>, vector<8x128xf32> -> vector<8x128xf32>
    %48 = arith.addf %40, %47 : vector<8x128xf32>
    %c0_42 = arith.constant 0 : index
    %c9_43 = arith.constant 9 : index
    %49 = vector.load %arg22[%c0_42, %c9_43] : memref<32x137xbf16, #tpu.memory_space<vmem>>, vector<8x128xbf16>
    %c4 = arith.constant 4 : index
    %c0_44 = arith.constant 0 : index
    %c0_45 = arith.constant 0 : index
    %50 = vector.load %arg2[%c4, %c0_44, %c0_45] : memref<9x8x8xbf16, #tpu.memory_space<vmem>>, vector<1x8x8xbf16>
    %51 = vector.shape_cast %50 : vector<1x8x8xbf16> to vector<8x8xbf16>
    %cst_46 = arith.constant dense<0.000000e+00> : vector<8x128xf32>
    %52 = tpu.matmul %51, %49, %cst_46 {dimension_numbers = #tpu.dot_dimension_numbers<[1], [0], [0], [1], [0, 0, 1, 1], [], []>} : vector<8x8xbf16>, vector<8x128xbf16>, vector<8x128xf32> -> vector<8x128xf32>
    %53 = arith.addf %48, %52 : vector<8x128xf32>
    %c8_47 = arith.constant 8 : index
    %c9_48 = arith.constant 9 : index
    %54 = vector.load %arg22[%c8_47, %c9_48] : memref<32x137xbf16, #tpu.memory_space<vmem>>, vector<8x128xbf16>
    %c5 = arith.constant 5 : index
    %c0_49 = arith.constant 0 : index
    %c0_50 = arith.constant 0 : index
    %55 = vector.load %arg2[%c5, %c0_49, %c0_50] : memref<9x8x8xbf16, #tpu.memory_space<vmem>>, vector<1x8x8xbf16>
    %56 = vector.shape_cast %55 : vector<1x8x8xbf16> to vector<8x8xbf16>
    %cst_51 = arith.constant dense<0.000000e+00> : vector<8x128xf32>
    %57 = tpu.matmul %56, %54, %cst_51 {dimension_numbers = #tpu.dot_dimension_numbers<[1], [0], [0], [1], [0, 0, 1, 1], [], []>} : vector<8x8xbf16>, vector<8x128xbf16>, vector<8x128xf32> -> vector<8x128xf32>
    %58 = arith.addf %53, %57 : vector<8x128xf32>
    %c24_52 = arith.constant 24 : index
    %c8_53 = arith.constant 8 : index
    %59 = vector.load %arg22[%c24_52, %c8_53] : memref<32x137xbf16, #tpu.memory_space<vmem>>, vector<8x128xbf16>
    %c6 = arith.constant 6 : index
    %c0_54 = arith.constant 0 : index
    %60 = vector.load %arg4[%c6, %c0_54] : memref<9x128xbf16, #tpu.memory_space<vmem>>, vector<1x128xbf16>
    %61 = vector.broadcast %60 : vector<1x128xbf16> to vector<8x128xbf16>
    %62 = arith.mulf %59, %61 : vector<8x128xbf16>
    %c6_55 = arith.constant 6 : index
    %c0_56 = arith.constant 0 : index
    %c0_57 = arith.constant 0 : index
    %63 = vector.load %arg2[%c6_55, %c0_56, %c0_57] : memref<9x8x8xbf16, #tpu.memory_space<vmem>>, vector<1x8x8xbf16>
    %64 = vector.shape_cast %63 : vector<1x8x8xbf16> to vector<8x8xbf16>
    %cst_58 = arith.constant dense<0.000000e+00> : vector<8x128xf32>
    %65 = tpu.matmul %64, %62, %cst_58 {dimension_numbers = #tpu.dot_dimension_numbers<[1], [0], [0], [1], [0, 0, 1, 1], [], []>} : vector<8x8xbf16>, vector<8x128xbf16>, vector<8x128xf32> -> vector<8x128xf32>
    %66 = arith.addf %58, %65 : vector<8x128xf32>
    %c16_59 = arith.constant 16 : index
    %c9_60 = arith.constant 9 : index
    %67 = vector.load %arg22[%c16_59, %c9_60] : memref<32x137xbf16, #tpu.memory_space<vmem>>, vector<8x128xbf16>
    %c7 = arith.constant 7 : index
    %c0_61 = arith.constant 0 : index
    %c0_62 = arith.constant 0 : index
    %68 = vector.load %arg2[%c7, %c0_61, %c0_62] : memref<9x8x8xbf16, #tpu.memory_space<vmem>>, vector<1x8x8xbf16>
    %69 = vector.shape_cast %68 : vector<1x8x8xbf16> to vector<8x8xbf16>
    %cst_63 = arith.constant dense<0.000000e+00> : vector<8x128xf32>
    %70 = tpu.matmul %69, %67, %cst_63 {dimension_numbers = #tpu.dot_dimension_numbers<[1], [0], [0], [1], [0, 0, 1, 1], [], []>} : vector<8x8xbf16>, vector<8x128xbf16>, vector<8x128xf32> -> vector<8x128xf32>
    %71 = arith.addf %66, %70 : vector<8x128xf32>
    %c24_64 = arith.constant 24 : index
    %c9_65 = arith.constant 9 : index
    %72 = vector.load %arg22[%c24_64, %c9_65] : memref<32x137xbf16, #tpu.memory_space<vmem>>, vector<8x128xbf16>
    %c8_66 = arith.constant 8 : index
    %c0_67 = arith.constant 0 : index
    %c0_68 = arith.constant 0 : index
    %73 = vector.load %arg2[%c8_66, %c0_67, %c0_68] : memref<9x8x8xbf16, #tpu.memory_space<vmem>>, vector<1x8x8xbf16>
    %74 = vector.shape_cast %73 : vector<1x8x8xbf16> to vector<8x8xbf16>
    %cst_69 = arith.constant dense<0.000000e+00> : vector<8x128xf32>
    %75 = tpu.matmul %74, %72, %cst_69 {dimension_numbers = #tpu.dot_dimension_numbers<[1], [0], [0], [1], [0, 0, 1, 1], [], []>} : vector<8x8xbf16>, vector<8x128xbf16>, vector<8x128xf32> -> vector<8x128xf32>
    %76 = arith.addf %71, %75 : vector<8x128xf32>
    %c0_70 = arith.constant 0 : index
    %c0_71 = arith.constant 0 : index
    %77 = vector.load %arg3[%c0_70, %c0_71] : memref<8x1xf32, #tpu.memory_space<vmem>>, vector<8x1xf32>
    %78 = vector.broadcast %77 : vector<8x1xf32> to vector<8x128xf32>
    %79 = arith.addf %76, %78 : vector<8x128xf32>
    %80 = math.absf %79 : vector<8x128xf32>
    %cst_72 = arith.constant 0.000000e+00 : f32
    %81 = vector.broadcast %cst_72 : f32 to vector<8x128xf32>
    %82 = arith.subf %81, %80 : vector<8x128xf32>
    %83 = math.exp %82 : vector<8x128xf32>
    %cst_73 = arith.constant 1.000000e+00 : f32
    %84 = vector.broadcast %cst_73 : f32 to vector<8x128xf32>
    %85 = arith.addf %84, %83 : vector<8x128xf32>
    %cst_74 = arith.constant 1.000000e+00 : f32
    %86 = vector.broadcast %cst_74 : f32 to vector<8x128xf32>
    %87 = arith.addf %86, %83 : vector<8x128xf32>
    %88 = arith.mulf %85, %87 : vector<8x128xf32>
    %cst_75 = arith.constant 0.000000e+00 : f32
    %89 = vector.broadcast %cst_75 : f32 to vector<8x128xf32>
    %90 = arith.cmpf oge, %79, %89 : vector<8x128xf32>
    %91 = arith.mulf %83, %83 : vector<8x128xf32>
    %cst_76 = arith.constant 1.000000e+00 : f32
    %92 = vector.broadcast %cst_76 : f32 to vector<8x128xf32>
    %93 = arith.select %90, %91, %92 : vector<8x128xi1>, vector<8x128xf32>
    %94 = arith.subf %88, %93 : vector<8x128xf32>
    %95 = arith.mulf %79, %94 : vector<8x128xf32>
    %96 = arith.addf %88, %93 : vector<8x128xf32>
    %97 = tpu.reciprocal %96 {approx = true} : vector<8x128xf32> -> vector<8x128xf32>
    %98 = arith.mulf %95, %97 : vector<8x128xf32>
    %99 = arith.truncf %98 : vector<8x128xf32> to vector<8x128xbf16>
    %c0_77 = arith.constant 0 : index
    %c0_78 = arith.constant 0 : index
    %100 = vector.load %arg5[%c0_77, %c0_78] : memref<8x8xbf16, #tpu.memory_space<vmem>>, vector<8x8xbf16>
    %c0_79 = arith.constant 0 : index
    %c0_80 = arith.constant 0 : index
    %101 = vector.load %arg7[%c0_79, %c0_80] : memref<8x16xbf16, #tpu.memory_space<vmem>>, vector<8x16xbf16>
    %c0_81 = arith.constant 0 : index
    %c0_82 = arith.constant 0 : index
    %102 = vector.load %arg9[%c0_81, %c0_82] : memref<8x1xf32, #tpu.memory_space<vmem>>, vector<8x1xf32>
    %cst_83 = arith.constant dense<0.000000e+00> : vector<8x128xf32>
    %103 = tpu.matmul %100, %99, %cst_83 {dimension_numbers = #tpu.dot_dimension_numbers<[1], [0], [0], [1], [0, 0, 1, 1], [], []>} : vector<8x8xbf16>, vector<8x128xbf16>, vector<8x128xf32> -> vector<8x128xf32>
    %cst_84 = arith.constant dense<0.000000e+00> : vector<8x128xf32>
    %104 = tpu.matmul %101, %2, %cst_84 {dimension_numbers = #tpu.dot_dimension_numbers<[1], [0], [0], [1], [0, 0, 1, 1], [], []>} : vector<8x16xbf16>, vector<16x128xbf16>, vector<8x128xf32> -> vector<8x128xf32>
    %105 = arith.addf %103, %104 : vector<8x128xf32>
    %106 = vector.broadcast %102 : vector<8x1xf32> to vector<8x128xf32>
    %107 = arith.addf %105, %106 : vector<8x128xf32>
    %108 = math.absf %107 : vector<8x128xf32>
    %cst_85 = arith.constant 0.000000e+00 : f32
    %109 = vector.broadcast %cst_85 : f32 to vector<8x128xf32>
    %110 = arith.subf %109, %108 : vector<8x128xf32>
    %111 = math.exp %110 : vector<8x128xf32>
    %cst_86 = arith.constant 1.000000e+00 : f32
    %112 = vector.broadcast %cst_86 : f32 to vector<8x128xf32>
    %113 = arith.addf %112, %111 : vector<8x128xf32>
    %cst_87 = arith.constant 1.000000e+00 : f32
    %114 = vector.broadcast %cst_87 : f32 to vector<8x128xf32>
    %115 = arith.addf %114, %111 : vector<8x128xf32>
    %116 = arith.mulf %113, %115 : vector<8x128xf32>
    %cst_88 = arith.constant 0.000000e+00 : f32
    %117 = vector.broadcast %cst_88 : f32 to vector<8x128xf32>
    %118 = arith.cmpf oge, %107, %117 : vector<8x128xf32>
    %119 = arith.mulf %111, %111 : vector<8x128xf32>
    %cst_89 = arith.constant 1.000000e+00 : f32
    %120 = vector.broadcast %cst_89 : f32 to vector<8x128xf32>
    %121 = arith.select %118, %119, %120 : vector<8x128xi1>, vector<8x128xf32>
    %122 = arith.subf %116, %121 : vector<8x128xf32>
    %123 = arith.mulf %107, %122 : vector<8x128xf32>
    %124 = arith.addf %116, %121 : vector<8x128xf32>
    %125 = tpu.reciprocal %124 {approx = true} : vector<8x128xf32> -> vector<8x128xf32>
    %126 = arith.mulf %123, %125 : vector<8x128xf32>
    %c0_90 = arith.constant 0 : index
    %c0_91 = arith.constant 0 : index
    %127 = vector.load %arg6[%c0_90, %c0_91] : memref<8x8xbf16, #tpu.memory_space<vmem>>, vector<8x8xbf16>
    %c0_92 = arith.constant 0 : index
    %c0_93 = arith.constant 0 : index
    %128 = vector.load %arg8[%c0_92, %c0_93] : memref<8x16xbf16, #tpu.memory_space<vmem>>, vector<8x16xbf16>
    %c0_94 = arith.constant 0 : index
    %c0_95 = arith.constant 0 : index
    %129 = vector.load %arg10[%c0_94, %c0_95] : memref<8x1xf32, #tpu.memory_space<vmem>>, vector<8x1xf32>
    %cst_96 = arith.constant dense<0.000000e+00> : vector<8x128xf32>
    %130 = tpu.matmul %127, %99, %cst_96 {dimension_numbers = #tpu.dot_dimension_numbers<[1], [0], [0], [1], [0, 0, 1, 1], [], []>} : vector<8x8xbf16>, vector<8x128xbf16>, vector<8x128xf32> -> vector<8x128xf32>
    %cst_97 = arith.constant dense<0.000000e+00> : vector<8x128xf32>
    %131 = tpu.matmul %128, %2, %cst_97 {dimension_numbers = #tpu.dot_dimension_numbers<[1], [0], [0], [1], [0, 0, 1, 1], [], []>} : vector<8x16xbf16>, vector<16x128xbf16>, vector<8x128xf32> -> vector<8x128xf32>
    %132 = arith.addf %130, %131 : vector<8x128xf32>
    %133 = vector.broadcast %129 : vector<8x1xf32> to vector<8x128xf32>
    %134 = arith.addf %132, %133 : vector<8x128xf32>
    %135 = math.absf %134 : vector<8x128xf32>
    %cst_98 = arith.constant 0.000000e+00 : f32
    %136 = vector.broadcast %cst_98 : f32 to vector<8x128xf32>
    %137 = arith.subf %136, %135 : vector<8x128xf32>
    %138 = math.exp %137 : vector<8x128xf32>
    %cst_99 = arith.constant 1.000000e+00 : f32
    %139 = vector.broadcast %cst_99 : f32 to vector<8x128xf32>
    %140 = arith.addf %139, %138 : vector<8x128xf32>
    %cst_100 = arith.constant 1.000000e+00 : f32
    %141 = vector.broadcast %cst_100 : f32 to vector<8x128xf32>
    %142 = arith.addf %141, %138 : vector<8x128xf32>
    %143 = arith.mulf %140, %142 : vector<8x128xf32>
    %cst_101 = arith.constant 0.000000e+00 : f32
    %144 = vector.broadcast %cst_101 : f32 to vector<8x128xf32>
    %145 = arith.cmpf oge, %134, %144 : vector<8x128xf32>
    %146 = arith.mulf %138, %138 : vector<8x128xf32>
    %cst_102 = arith.constant 1.000000e+00 : f32
    %147 = vector.broadcast %cst_102 : f32 to vector<8x128xf32>
    %148 = arith.select %145, %146, %147 : vector<8x128xi1>, vector<8x128xf32>
    %149 = arith.subf %143, %148 : vector<8x128xf32>
    %150 = arith.mulf %134, %149 : vector<8x128xf32>
    %151 = arith.addf %143, %148 : vector<8x128xf32>
    %152 = tpu.reciprocal %151 {approx = true} : vector<8x128xf32> -> vector<8x128xf32>
    %153 = arith.mulf %150, %152 : vector<8x128xf32>
    %154 = arith.truncf %153 : vector<8x128xf32> to vector<8x128xbf16>
    %c0_103 = arith.constant 0 : index
    %c9_104 = arith.constant 9 : index
    %155 = vector.load %arg21[%c0_103, %c9_104] : memref<8x146xbf16, #tpu.memory_space<vmem>>, vector<8x128xbf16>
    tpu.vector_store %arg21[%c0_103, %c9_104], %154 {strides = array<i32>} : memref<8x146xbf16, #tpu.memory_space<vmem>>, vector<8x128xbf16>,
    %c0_105 = arith.constant 0 : index
    %c0_106 = arith.constant 0 : index
    %156 = vector.load %arg21[%c0_105, %c0_106] : memref<8x146xbf16, #tpu.memory_space<vmem>>, vector<8x128xbf16>
    %c0_107 = arith.constant 0 : index
    %c0_108 = arith.constant 0 : index
    %157 = vector.load %arg15[%c0_107, %c0_108] : memref<9x128xbf16, #tpu.memory_space<vmem>>, vector<1x128xbf16>
    %158 = vector.broadcast %157 : vector<1x128xbf16> to vector<8x128xbf16>
    %159 = arith.mulf %156, %158 : vector<8x128xbf16>
    %c0_109 = arith.constant 0 : index
    %c0_110 = arith.constant 0 : index
    %c0_111 = arith.constant 0 : index
    %160 = vector.load %arg11[%c0_109, %c0_110, %c0_111] : memref<9x8x8xbf16, #tpu.memory_space<vmem>>, vector<1x8x8xbf16>
    %161 = vector.shape_cast %160 : vector<1x8x8xbf16> to vector<8x8xbf16>
    %cst_112 = arith.constant dense<0.000000e+00> : vector<8x128xf32>
    %162 = tpu.matmul %161, %159, %cst_112 {dimension_numbers = #tpu.dot_dimension_numbers<[1], [0], [0], [1], [0, 0, 1, 1], [], []>} : vector<8x8xbf16>, vector<8x128xbf16>, vector<8x128xf32> -> vector<8x128xf32>
    %c0_113 = arith.constant 0 : index
    %c1_114 = arith.constant 1 : index
    %163 = vector.load %arg21[%c0_113, %c1_114] : memref<8x146xbf16, #tpu.memory_space<vmem>>, vector<8x128xbf16>
    %c1_115 = arith.constant 1 : index
    %c0_116 = arith.constant 0 : index
    %164 = vector.load %arg15[%c1_115, %c0_116] : memref<9x128xbf16, #tpu.memory_space<vmem>>, vector<1x128xbf16>
    %165 = vector.broadcast %164 : vector<1x128xbf16> to vector<8x128xbf16>
    %166 = arith.mulf %163, %165 : vector<8x128xbf16>
    %c1_117 = arith.constant 1 : index
    %c0_118 = arith.constant 0 : index
    %c0_119 = arith.constant 0 : index
    %167 = vector.load %arg11[%c1_117, %c0_118, %c0_119] : memref<9x8x8xbf16, #tpu.memory_space<vmem>>, vector<1x8x8xbf16>
    %168 = vector.shape_cast %167 : vector<1x8x8xbf16> to vector<8x8xbf16>
    %cst_120 = arith.constant dense<0.000000e+00> : vector<8x128xf32>
    %169 = tpu.matmul %168, %166, %cst_120 {dimension_numbers = #tpu.dot_dimension_numbers<[1], [0], [0], [1], [0, 0, 1, 1], [], []>} : vector<8x8xbf16>, vector<8x128xbf16>, vector<8x128xf32> -> vector<8x128xf32>
    %170 = arith.addf %162, %169 : vector<8x128xf32>
    %c0_121 = arith.constant 0 : index
    %c2_122 = arith.constant 2 : index
    %171 = vector.load %arg21[%c0_121, %c2_122] : memref<8x146xbf16, #tpu.memory_space<vmem>>, vector<8x128xbf16>
    %c2_123 = arith.constant 2 : index
    %c0_124 = arith.constant 0 : index
    %172 = vector.load %arg15[%c2_123, %c0_124] : memref<9x128xbf16, #tpu.memory_space<vmem>>, vector<1x128xbf16>
    %173 = vector.broadcast %172 : vector<1x128xbf16> to vector<8x128xbf16>
    %174 = arith.mulf %171, %173 : vector<8x128xbf16>
    %c2_125 = arith.constant 2 : index
    %c0_126 = arith.constant 0 : index
    %c0_127 = arith.constant 0 : index
    %175 = vector.load %arg11[%c2_125, %c0_126, %c0_127] : memref<9x8x8xbf16, #tpu.memory_space<vmem>>, vector<1x8x8xbf16>
    %176 = vector.shape_cast %175 : vector<1x8x8xbf16> to vector<8x8xbf16>
    %cst_128 = arith.constant dense<0.000000e+00> : vector<8x128xf32>
    %177 = tpu.matmul %176, %174, %cst_128 {dimension_numbers = #tpu.dot_dimension_numbers<[1], [0], [0], [1], [0, 0, 1, 1], [], []>} : vector<8x8xbf16>, vector<8x128xbf16>, vector<8x128xf32> -> vector<8x128xf32>
    %178 = arith.addf %170, %177 : vector<8x128xf32>
    %c0_129 = arith.constant 0 : index
    %c8_130 = arith.constant 8 : index
    %179 = vector.load %arg21[%c0_129, %c8_130] : memref<8x146xbf16, #tpu.memory_space<vmem>>, vector<8x128xbf16>
    %c3_131 = arith.constant 3 : index
    %c0_132 = arith.constant 0 : index
    %180 = vector.load %arg15[%c3_131, %c0_132] : memref<9x128xbf16, #tpu.memory_space<vmem>>, vector<1x128xbf16>
    %181 = vector.broadcast %180 : vector<1x128xbf16> to vector<8x128xbf16>
    %182 = arith.mulf %179, %181 : vector<8x128xbf16>
    %c3_133 = arith.constant 3 : index
    %c0_134 = arith.constant 0 : index
    %c0_135 = arith.constant 0 : index
    %183 = vector.load %arg11[%c3_133, %c0_134, %c0_135] : memref<9x8x8xbf16, #tpu.memory_space<vmem>>, vector<1x8x8xbf16>
    %184 = vector.shape_cast %183 : vector<1x8x8xbf16> to vector<8x8xbf16>
    %cst_136 = arith.constant dense<0.000000e+00> : vector<8x128xf32>
    %185 = tpu.matmul %184, %182, %cst_136 {dimension_numbers = #tpu.dot_dimension_numbers<[1], [0], [0], [1], [0, 0, 1, 1], [], []>} : vector<8x8xbf16>, vector<8x128xbf16>, vector<8x128xf32> -> vector<8x128xf32>
    %186 = arith.addf %178, %185 : vector<8x128xf32>
    %c0_137 = arith.constant 0 : index
    %c9_138 = arith.constant 9 : index
    %187 = vector.load %arg21[%c0_137, %c9_138] : memref<8x146xbf16, #tpu.memory_space<vmem>>, vector<8x128xbf16>
    %c4_139 = arith.constant 4 : index
    %c0_140 = arith.constant 0 : index
    %c0_141 = arith.constant 0 : index
    %188 = vector.load %arg11[%c4_139, %c0_140, %c0_141] : memref<9x8x8xbf16, #tpu.memory_space<vmem>>, vector<1x8x8xbf16>
    %189 = vector.shape_cast %188 : vector<1x8x8xbf16> to vector<8x8xbf16>
    %cst_142 = arith.constant dense<0.000000e+00> : vector<8x128xf32>
    %190 = tpu.matmul %189, %187, %cst_142 {dimension_numbers = #tpu.dot_dimension_numbers<[1], [0], [0], [1], [0, 0, 1, 1], [], []>} : vector<8x8xbf16>, vector<8x128xbf16>, vector<8x128xf32> -> vector<8x128xf32>
    %191 = arith.addf %186, %190 : vector<8x128xf32>
    %c0_143 = arith.constant 0 : index
    %c10 = arith.constant 10 : index
    %192 = vector.load %arg21[%c0_143, %c10] : memref<8x146xbf16, #tpu.memory_space<vmem>>, vector<8x128xbf16>
    %c5_144 = arith.constant 5 : index
    %c0_145 = arith.constant 0 : index
    %193 = vector.load %arg15[%c5_144, %c0_145] : memref<9x128xbf16, #tpu.memory_space<vmem>>, vector<1x128xbf16>
    %194 = vector.broadcast %193 : vector<1x128xbf16> to vector<8x128xbf16>
    %195 = arith.mulf %192, %194 : vector<8x128xbf16>
    %c5_146 = arith.constant 5 : index
    %c0_147 = arith.constant 0 : index
    %c0_148 = arith.constant 0 : index
    %196 = vector.load %arg11[%c5_146, %c0_147, %c0_148] : memref<9x8x8xbf16, #tpu.memory_space<vmem>>, vector<1x8x8xbf16>
    %197 = vector.shape_cast %196 : vector<1x8x8xbf16> to vector<8x8xbf16>
    %cst_149 = arith.constant dense<0.000000e+00> : vector<8x128xf32>
    %198 = tpu.matmul %197, %195, %cst_149 {dimension_numbers = #tpu.dot_dimension_numbers<[1], [0], [0], [1], [0, 0, 1, 1], [], []>} : vector<8x8xbf16>, vector<8x128xbf16>, vector<8x128xf32> -> vector<8x128xf32>
    %199 = arith.addf %191, %198 : vector<8x128xf32>
    %c0_150 = arith.constant 0 : index
    %c16_151 = arith.constant 16 : index
    %200 = vector.load %arg21[%c0_150, %c16_151] : memref<8x146xbf16, #tpu.memory_space<vmem>>, vector<8x128xbf16>
    %c6_152 = arith.constant 6 : index
    %c0_153 = arith.constant 0 : index
    %201 = vector.load %arg15[%c6_152, %c0_153] : memref<9x128xbf16, #tpu.memory_space<vmem>>, vector<1x128xbf16>
    %202 = vector.broadcast %201 : vector<1x128xbf16> to vector<8x128xbf16>
    %203 = arith.mulf %200, %202 : vector<8x128xbf16>
    %c6_154 = arith.constant 6 : index
    %c0_155 = arith.constant 0 : index
    %c0_156 = arith.constant 0 : index
    %204 = vector.load %arg11[%c6_154, %c0_155, %c0_156] : memref<9x8x8xbf16, #tpu.memory_space<vmem>>, vector<1x8x8xbf16>
    %205 = vector.shape_cast %204 : vector<1x8x8xbf16> to vector<8x8xbf16>
    %cst_157 = arith.constant dense<0.000000e+00> : vector<8x128xf32>
    %206 = tpu.matmul %205, %203, %cst_157 {dimension_numbers = #tpu.dot_dimension_numbers<[1], [0], [0], [1], [0, 0, 1, 1], [], []>} : vector<8x8xbf16>, vector<8x128xbf16>, vector<8x128xf32> -> vector<8x128xf32>
    %207 = arith.addf %199, %206 : vector<8x128xf32>
    %c0_158 = arith.constant 0 : index
    %c17 = arith.constant 17 : index
    %208 = vector.load %arg21[%c0_158, %c17] : memref<8x146xbf16, #tpu.memory_space<vmem>>, vector<8x128xbf16>
    %c7_159 = arith.constant 7 : index
    %c0_160 = arith.constant 0 : index
    %209 = vector.load %arg15[%c7_159, %c0_160] : memref<9x128xbf16, #tpu.memory_space<vmem>>, vector<1x128xbf16>
    %210 = vector.broadcast %209 : vector<1x128xbf16> to vector<8x128xbf16>
    %211 = arith.mulf %208, %210 : vector<8x128xbf16>
    %c7_161 = arith.constant 7 : index
    %c0_162 = arith.constant 0 : index
    %c0_163 = arith.constant 0 : index
    %212 = vector.load %arg11[%c7_161, %c0_162, %c0_163] : memref<9x8x8xbf16, #tpu.memory_space<vmem>>, vector<1x8x8xbf16>
    %213 = vector.shape_cast %212 : vector<1x8x8xbf16> to vector<8x8xbf16>
    %cst_164 = arith.constant dense<0.000000e+00> : vector<8x128xf32>
    %214 = tpu.matmul %213, %211, %cst_164 {dimension_numbers = #tpu.dot_dimension_numbers<[1], [0], [0], [1], [0, 0, 1, 1], [], []>} : vector<8x8xbf16>, vector<8x128xbf16>, vector<8x128xf32> -> vector<8x128xf32>
    %215 = arith.addf %207, %214 : vector<8x128xf32>
    %c0_165 = arith.constant 0 : index
    %c18 = arith.constant 18 : index
    %216 = vector.load %arg21[%c0_165, %c18] : memref<8x146xbf16, #tpu.memory_space<vmem>>, vector<8x128xbf16>
    %c8_166 = arith.constant 8 : index
    %c0_167 = arith.constant 0 : index
    %217 = vector.load %arg15[%c8_166, %c0_167] : memref<9x128xbf16, #tpu.memory_space<vmem>>, vector<1x128xbf16>
    %218 = vector.broadcast %217 : vector<1x128xbf16> to vector<8x128xbf16>
    %219 = arith.mulf %216, %218 : vector<8x128xbf16>
    %c8_168 = arith.constant 8 : index
    %c0_169 = arith.constant 0 : index
    %c0_170 = arith.constant 0 : index
    %220 = vector.load %arg11[%c8_168, %c0_169, %c0_170] : memref<9x8x8xbf16, #tpu.memory_space<vmem>>, vector<1x8x8xbf16>
    %221 = vector.shape_cast %220 : vector<1x8x8xbf16> to vector<8x8xbf16>
    %cst_171 = arith.constant dense<0.000000e+00> : vector<8x128xf32>
    %222 = tpu.matmul %221, %219, %cst_171 {dimension_numbers = #tpu.dot_dimension_numbers<[1], [0], [0], [1], [0, 0, 1, 1], [], []>} : vector<8x8xbf16>, vector<8x128xbf16>, vector<8x128xf32> -> vector<8x128xf32>
    %223 = arith.addf %215, %222 : vector<8x128xf32>
    %c0_172 = arith.constant 0 : index
    %c0_173 = arith.constant 0 : index
    %224 = vector.load %arg12[%c0_172, %c0_173] : memref<8x1xf32, #tpu.memory_space<vmem>>, vector<8x1xf32>
    %225 = vector.broadcast %224 : vector<8x1xf32> to vector<8x128xf32>
    %226 = arith.addf %223, %225 : vector<8x128xf32>
    %227 = math.absf %226 : vector<8x128xf32>
    %cst_174 = arith.constant 0.000000e+00 : f32
    %228 = vector.broadcast %cst_174 : f32 to vector<8x128xf32>
    %229 = arith.subf %228, %227 : vector<8x128xf32>
    %230 = math.exp %229 : vector<8x128xf32>
    %cst_175 = arith.constant 1.000000e+00 : f32
    %231 = vector.broadcast %cst_175 : f32 to vector<8x128xf32>
    %232 = arith.addf %231, %230 : vector<8x128xf32>
    %cst_176 = arith.constant 1.000000e+00 : f32
    %233 = vector.broadcast %cst_176 : f32 to vector<8x128xf32>
    %234 = arith.addf %233, %230 : vector<8x128xf32>
    %235 = arith.mulf %232, %234 : vector<8x128xf32>
    %cst_177 = arith.constant 0.000000e+00 : f32
    %236 = vector.broadcast %cst_177 : f32 to vector<8x128xf32>
    %237 = arith.cmpf oge, %226, %236 : vector<8x128xf32>
    %238 = arith.mulf %230, %230 : vector<8x128xf32>
    %cst_178 = arith.constant 1.000000e+00 : f32
    %239 = vector.broadcast %cst_178 : f32 to vector<8x128xf32>
    %240 = arith.select %237, %238, %239 : vector<8x128xi1>, vector<8x128xf32>
    %241 = arith.subf %235, %240 : vector<8x128xf32>
    %242 = arith.mulf %226, %241 : vector<8x128xf32>
    %243 = arith.addf %235, %240 : vector<8x128xf32>
    %244 = tpu.reciprocal %243 {approx = true} : vector<8x128xf32> -> vector<8x128xf32>
    %245 = arith.mulf %242, %244 : vector<8x128xf32>
    %246 = arith.truncf %245 : vector<8x128xf32> to vector<8x128xbf16>
    %c0_179 = arith.constant 0 : index
    %c9_180 = arith.constant 9 : index
    %247 = vector.load %arg21[%c0_179, %c9_180] : memref<8x146xbf16, #tpu.memory_space<vmem>>, vector<8x128xbf16>
    tpu.vector_store %arg21[%c0_179, %c9_180], %246 {strides = array<i32>} : memref<8x146xbf16, #tpu.memory_space<vmem>>, vector<8x128xbf16>,
    %c0_181 = arith.constant 0 : index
    %c0_182 = arith.constant 0 : index
    %248 = vector.load %arg21[%c0_181, %c0_182] : memref<8x146xbf16, #tpu.memory_space<vmem>>, vector<8x128xbf16>
    %c0_183 = arith.constant 0 : index
    %c0_184 = arith.constant 0 : index
    %249 = vector.load %arg15[%c0_183, %c0_184] : memref<9x128xbf16, #tpu.memory_space<vmem>>, vector<1x128xbf16>
    %250 = vector.broadcast %249 : vector<1x128xbf16> to vector<8x128xbf16>
    %251 = arith.mulf %248, %250 : vector<8x128xbf16>
    %c0_185 = arith.constant 0 : index
    %c0_186 = arith.constant 0 : index
    %c0_187 = arith.constant 0 : index
    %252 = vector.load %arg13[%c0_185, %c0_186, %c0_187] : memref<9x8x8xbf16, #tpu.memory_space<vmem>>, vector<1x8x8xbf16>
    %253 = vector.shape_cast %252 : vector<1x8x8xbf16> to vector<8x8xbf16>
    %cst_188 = arith.constant dense<0.000000e+00> : vector<8x128xf32>
    %254 = tpu.matmul %253, %251, %cst_188 {dimension_numbers = #tpu.dot_dimension_numbers<[1], [0], [0], [1], [0, 0, 1, 1], [], []>} : vector<8x8xbf16>, vector<8x128xbf16>, vector<8x128xf32> -> vector<8x128xf32>
    %c0_189 = arith.constant 0 : index
    %c1_190 = arith.constant 1 : index
    %255 = vector.load %arg21[%c0_189, %c1_190] : memref<8x146xbf16, #tpu.memory_space<vmem>>, vector<8x128xbf16>
    %c1_191 = arith.constant 1 : index
    %c0_192 = arith.constant 0 : index
    %256 = vector.load %arg15[%c1_191, %c0_192] : memref<9x128xbf16, #tpu.memory_space<vmem>>, vector<1x128xbf16>
    %257 = vector.broadcast %256 : vector<1x128xbf16> to vector<8x128xbf16>
    %258 = arith.mulf %255, %257 : vector<8x128xbf16>
    %c1_193 = arith.constant 1 : index
    %c0_194 = arith.constant 0 : index
    %c0_195 = arith.constant 0 : index
    %259 = vector.load %arg13[%c1_193, %c0_194, %c0_195] : memref<9x8x8xbf16, #tpu.memory_space<vmem>>, vector<1x8x8xbf16>
    %260 = vector.shape_cast %259 : vector<1x8x8xbf16> to vector<8x8xbf16>
    %cst_196 = arith.constant dense<0.000000e+00> : vector<8x128xf32>
    %261 = tpu.matmul %260, %258, %cst_196 {dimension_numbers = #tpu.dot_dimension_numbers<[1], [0], [0], [1], [0, 0, 1, 1], [], []>} : vector<8x8xbf16>, vector<8x128xbf16>, vector<8x128xf32> -> vector<8x128xf32>
    %262 = arith.addf %254, %261 : vector<8x128xf32>
    %c0_197 = arith.constant 0 : index
    %c2_198 = arith.constant 2 : index
    %263 = vector.load %arg21[%c0_197, %c2_198] : memref<8x146xbf16, #tpu.memory_space<vmem>>, vector<8x128xbf16>
    %c2_199 = arith.constant 2 : index
    %c0_200 = arith.constant 0 : index
    %264 = vector.load %arg15[%c2_199, %c0_200] : memref<9x128xbf16, #tpu.memory_space<vmem>>, vector<1x128xbf16>
    %265 = vector.broadcast %264 : vector<1x128xbf16> to vector<8x128xbf16>
    %266 = arith.mulf %263, %265 : vector<8x128xbf16>
    %c2_201 = arith.constant 2 : index
    %c0_202 = arith.constant 0 : index
    %c0_203 = arith.constant 0 : index
    %267 = vector.load %arg13[%c2_201, %c0_202, %c0_203] : memref<9x8x8xbf16, #tpu.memory_space<vmem>>, vector<1x8x8xbf16>
    %268 = vector.shape_cast %267 : vector<1x8x8xbf16> to vector<8x8xbf16>
    %cst_204 = arith.constant dense<0.000000e+00> : vector<8x128xf32>
    %269 = tpu.matmul %268, %266, %cst_204 {dimension_numbers = #tpu.dot_dimension_numbers<[1], [0], [0], [1], [0, 0, 1, 1], [], []>} : vector<8x8xbf16>, vector<8x128xbf16>, vector<8x128xf32> -> vector<8x128xf32>
    %270 = arith.addf %262, %269 : vector<8x128xf32>
    %c0_205 = arith.constant 0 : index
    %c8_206 = arith.constant 8 : index
    %271 = vector.load %arg21[%c0_205, %c8_206] : memref<8x146xbf16, #tpu.memory_space<vmem>>, vector<8x128xbf16>
    %c3_207 = arith.constant 3 : index
    %c0_208 = arith.constant 0 : index
    %272 = vector.load %arg15[%c3_207, %c0_208] : memref<9x128xbf16, #tpu.memory_space<vmem>>, vector<1x128xbf16>
    %273 = vector.broadcast %272 : vector<1x128xbf16> to vector<8x128xbf16>
    %274 = arith.mulf %271, %273 : vector<8x128xbf16>
    %c3_209 = arith.constant 3 : index
    %c0_210 = arith.constant 0 : index
    %c0_211 = arith.constant 0 : index
    %275 = vector.load %arg13[%c3_209, %c0_210, %c0_211] : memref<9x8x8xbf16, #tpu.memory_space<vmem>>, vector<1x8x8xbf16>
    %276 = vector.shape_cast %275 : vector<1x8x8xbf16> to vector<8x8xbf16>
    %cst_212 = arith.constant dense<0.000000e+00> : vector<8x128xf32>
    %277 = tpu.matmul %276, %274, %cst_212 {dimension_numbers = #tpu.dot_dimension_numbers<[1], [0], [0], [1], [0, 0, 1, 1], [], []>} : vector<8x8xbf16>, vector<8x128xbf16>, vector<8x128xf32> -> vector<8x128xf32>
    %278 = arith.addf %270, %277 : vector<8x128xf32>
    %c0_213 = arith.constant 0 : index
    %c9_214 = arith.constant 9 : index
    %279 = vector.load %arg21[%c0_213, %c9_214] : memref<8x146xbf16, #tpu.memory_space<vmem>>, vector<8x128xbf16>
    %c4_215 = arith.constant 4 : index
    %c0_216 = arith.constant 0 : index
    %c0_217 = arith.constant 0 : index
    %280 = vector.load %arg13[%c4_215, %c0_216, %c0_217] : memref<9x8x8xbf16, #tpu.memory_space<vmem>>, vector<1x8x8xbf16>
    %281 = vector.shape_cast %280 : vector<1x8x8xbf16> to vector<8x8xbf16>
    %cst_218 = arith.constant dense<0.000000e+00> : vector<8x128xf32>
    %282 = tpu.matmul %281, %279, %cst_218 {dimension_numbers = #tpu.dot_dimension_numbers<[1], [0], [0], [1], [0, 0, 1, 1], [], []>} : vector<8x8xbf16>, vector<8x128xbf16>, vector<8x128xf32> -> vector<8x128xf32>
    %283 = arith.addf %278, %282 : vector<8x128xf32>
    %c0_219 = arith.constant 0 : index
    %c10_220 = arith.constant 10 : index
    %284 = vector.load %arg21[%c0_219, %c10_220] : memref<8x146xbf16, #tpu.memory_space<vmem>>, vector<8x128xbf16>
    %c5_221 = arith.constant 5 : index
    %c0_222 = arith.constant 0 : index
    %285 = vector.load %arg15[%c5_221, %c0_222] : memref<9x128xbf16, #tpu.memory_space<vmem>>, vector<1x128xbf16>
    %286 = vector.broadcast %285 : vector<1x128xbf16> to vector<8x128xbf16>
    %287 = arith.mulf %284, %286 : vector<8x128xbf16>
    %c5_223 = arith.constant 5 : index
    %c0_224 = arith.constant 0 : index
    %c0_225 = arith.constant 0 : index
    %288 = vector.load %arg13[%c5_223, %c0_224, %c0_225] : memref<9x8x8xbf16, #tpu.memory_space<vmem>>, vector<1x8x8xbf16>
    %289 = vector.shape_cast %288 : vector<1x8x8xbf16> to vector<8x8xbf16>
    %cst_226 = arith.constant dense<0.000000e+00> : vector<8x128xf32>
    %290 = tpu.matmul %289, %287, %cst_226 {dimension_numbers = #tpu.dot_dimension_numbers<[1], [0], [0], [1], [0, 0, 1, 1], [], []>} : vector<8x8xbf16>, vector<8x128xbf16>, vector<8x128xf32> -> vector<8x128xf32>
    %291 = arith.addf %283, %290 : vector<8x128xf32>
    %c0_227 = arith.constant 0 : index
    %c16_228 = arith.constant 16 : index
    %292 = vector.load %arg21[%c0_227, %c16_228] : memref<8x146xbf16, #tpu.memory_space<vmem>>, vector<8x128xbf16>
    %c6_229 = arith.constant 6 : index
    %c0_230 = arith.constant 0 : index
    %293 = vector.load %arg15[%c6_229, %c0_230] : memref<9x128xbf16, #tpu.memory_space<vmem>>, vector<1x128xbf16>
    %294 = vector.broadcast %293 : vector<1x128xbf16> to vector<8x128xbf16>
    %295 = arith.mulf %292, %294 : vector<8x128xbf16>
    %c6_231 = arith.constant 6 : index
    %c0_232 = arith.constant 0 : index
    %c0_233 = arith.constant 0 : index
    %296 = vector.load %arg13[%c6_231, %c0_232, %c0_233] : memref<9x8x8xbf16, #tpu.memory_space<vmem>>, vector<1x8x8xbf16>
    %297 = vector.shape_cast %296 : vector<1x8x8xbf16> to vector<8x8xbf16>
    %cst_234 = arith.constant dense<0.000000e+00> : vector<8x128xf32>
    %298 = tpu.matmul %297, %295, %cst_234 {dimension_numbers = #tpu.dot_dimension_numbers<[1], [0], [0], [1], [0, 0, 1, 1], [], []>} : vector<8x8xbf16>, vector<8x128xbf16>, vector<8x128xf32> -> vector<8x128xf32>
    %299 = arith.addf %291, %298 : vector<8x128xf32>
    %c0_235 = arith.constant 0 : index
    %c17_236 = arith.constant 17 : index
    %300 = vector.load %arg21[%c0_235, %c17_236] : memref<8x146xbf16, #tpu.memory_space<vmem>>, vector<8x128xbf16>
    %c7_237 = arith.constant 7 : index
    %c0_238 = arith.constant 0 : index
    %301 = vector.load %arg15[%c7_237, %c0_238] : memref<9x128xbf16, #tpu.memory_space<vmem>>, vector<1x128xbf16>
    %302 = vector.broadcast %301 : vector<1x128xbf16> to vector<8x128xbf16>
    %303 = arith.mulf %300, %302 : vector<8x128xbf16>
    %c7_239 = arith.constant 7 : index
    %c0_240 = arith.constant 0 : index
    %c0_241 = arith.constant 0 : index
    %304 = vector.load %arg13[%c7_239, %c0_240, %c0_241] : memref<9x8x8xbf16, #tpu.memory_space<vmem>>, vector<1x8x8xbf16>
    %305 = vector.shape_cast %304 : vector<1x8x8xbf16> to vector<8x8xbf16>
    %cst_242 = arith.constant dense<0.000000e+00> : vector<8x128xf32>
    %306 = tpu.matmul %305, %303, %cst_242 {dimension_numbers = #tpu.dot_dimension_numbers<[1], [0], [0], [1], [0, 0, 1, 1], [], []>} : vector<8x8xbf16>, vector<8x128xbf16>, vector<8x128xf32> -> vector<8x128xf32>
    %307 = arith.addf %299, %306 : vector<8x128xf32>
    %c0_243 = arith.constant 0 : index
    %c18_244 = arith.constant 18 : index
    %308 = vector.load %arg21[%c0_243, %c18_244] : memref<8x146xbf16, #tpu.memory_space<vmem>>, vector<8x128xbf16>
    %c8_245 = arith.constant 8 : index
    %c0_246 = arith.constant 0 : index
    %309 = vector.load %arg15[%c8_245, %c0_246] : memref<9x128xbf16, #tpu.memory_space<vmem>>, vector<1x128xbf16>
    %310 = vector.broadcast %309 : vector<1x128xbf16> to vector<8x128xbf16>
    %311 = arith.mulf %308, %310 : vector<8x128xbf16>
    %c8_247 = arith.constant 8 : index
    %c0_248 = arith.constant 0 : index
    %c0_249 = arith.constant 0 : index
    %312 = vector.load %arg13[%c8_247, %c0_248, %c0_249] : memref<9x8x8xbf16, #tpu.memory_space<vmem>>, vector<1x8x8xbf16>
    %313 = vector.shape_cast %312 : vector<1x8x8xbf16> to vector<8x8xbf16>
    %cst_250 = arith.constant dense<0.000000e+00> : vector<8x128xf32>
    %314 = tpu.matmul %313, %311, %cst_250 {dimension_numbers = #tpu.dot_dimension_numbers<[1], [0], [0], [1], [0, 0, 1, 1], [], []>} : vector<8x8xbf16>, vector<8x128xbf16>, vector<8x128xf32> -> vector<8x128xf32>
    %315 = arith.addf %307, %314 : vector<8x128xf32>
    %c0_251 = arith.constant 0 : index
    %c0_252 = arith.constant 0 : index
    %316 = vector.load %arg14[%c0_251, %c0_252] : memref<8x1xf32, #tpu.memory_space<vmem>>, vector<8x1xf32>
    %317 = vector.broadcast %316 : vector<8x1xf32> to vector<8x128xf32>
    %318 = arith.addf %315, %317 : vector<8x128xf32>
    %319 = math.absf %318 : vector<8x128xf32>
    %cst_253 = arith.constant 0.000000e+00 : f32
    %320 = vector.broadcast %cst_253 : f32 to vector<8x128xf32>
    %321 = arith.subf %320, %319 : vector<8x128xf32>
    %322 = math.exp %321 : vector<8x128xf32>
    %cst_254 = arith.constant 1.000000e+00 : f32
    %323 = vector.broadcast %cst_254 : f32 to vector<8x128xf32>
    %324 = arith.addf %323, %322 : vector<8x128xf32>
    %cst_255 = arith.constant 1.000000e+00 : f32
    %325 = vector.broadcast %cst_255 : f32 to vector<8x128xf32>
    %326 = arith.addf %325, %322 : vector<8x128xf32>
    %327 = arith.mulf %324, %326 : vector<8x128xf32>
    %cst_256 = arith.constant 0.000000e+00 : f32
    %328 = vector.broadcast %cst_256 : f32 to vector<8x128xf32>
    %329 = arith.cmpf oge, %318, %328 : vector<8x128xf32>
    %330 = arith.mulf %322, %322 : vector<8x128xf32>
    %cst_257 = arith.constant 1.000000e+00 : f32
    %331 = vector.broadcast %cst_257 : f32 to vector<8x128xf32>
    %332 = arith.select %329, %330, %331 : vector<8x128xi1>, vector<8x128xf32>
    %333 = arith.subf %327, %332 : vector<8x128xf32>
    %334 = arith.mulf %318, %333 : vector<8x128xf32>
    %335 = arith.addf %327, %332 : vector<8x128xf32>
    %336 = tpu.reciprocal %335 {approx = true} : vector<8x128xf32> -> vector<8x128xf32>
    %337 = arith.mulf %334, %336 : vector<8x128xf32>
    %c0_258 = arith.constant 0 : index
    %c0_259 = arith.constant 0 : index
    %338 = vector.load %arg16[%c0_258, %c0_259] : memref<16x8xbf16, #tpu.memory_space<vmem>>, vector<16x8xbf16>
    %339 = arith.truncf %126 : vector<8x128xf32> to vector<8x128xbf16>
    %cst_260 = arith.constant dense<0.000000e+00> : vector<16x128xf32>
    %340 = tpu.matmul %338, %339, %cst_260 {dimension_numbers = #tpu.dot_dimension_numbers<[1], [0], [0], [1], [0, 0, 1, 1], [], []>} : vector<16x8xbf16>, vector<8x128xbf16>, vector<16x128xf32> -> vector<16x128xf32>
    %c0_261 = arith.constant 0 : index
    %c0_262 = arith.constant 0 : index
    %341 = vector.load %arg17[%c0_261, %c0_262] : memref<16x8xbf16, #tpu.memory_space<vmem>>, vector<16x8xbf16>
    %342 = arith.truncf %153 : vector<8x128xf32> to vector<8x128xbf16>
    %cst_263 = arith.constant dense<0.000000e+00> : vector<16x128xf32>
    %343 = tpu.matmul %341, %342, %cst_263 {dimension_numbers = #tpu.dot_dimension_numbers<[1], [0], [0], [1], [0, 0, 1, 1], [], []>} : vector<16x8xbf16>, vector<8x128xbf16>, vector<16x128xf32> -> vector<16x128xf32>
    %344 = arith.addf %340, %343 : vector<16x128xf32>
    %c0_264 = arith.constant 0 : index
    %c0_265 = arith.constant 0 : index
    %345 = vector.load %arg18[%c0_264, %c0_265] : memref<16x8xbf16, #tpu.memory_space<vmem>>, vector<16x8xbf16>
    %346 = arith.truncf %337 : vector<8x128xf32> to vector<8x128xbf16>
    %cst_266 = arith.constant dense<0.000000e+00> : vector<16x128xf32>
    %347 = tpu.matmul %345, %346, %cst_266 {dimension_numbers = #tpu.dot_dimension_numbers<[1], [0], [0], [1], [0, 0, 1, 1], [], []>} : vector<16x8xbf16>, vector<8x128xbf16>, vector<16x128xf32> -> vector<16x128xf32>
    %348 = arith.addf %344, %347 : vector<16x128xf32>
    %c0_267 = arith.constant 0 : index
    %c0_268 = arith.constant 0 : index
    %349 = vector.load %arg19[%c0_267, %c0_268] : memref<16x1xf32, #tpu.memory_space<vmem>>, vector<16x1xf32>
    %350 = vector.broadcast %349 : vector<16x1xf32> to vector<16x128xf32>
    %351 = arith.addf %348, %350 : vector<16x128xf32>
    %352 = math.absf %351 : vector<16x128xf32>
    %cst_269 = arith.constant 0.000000e+00 : f32
    %353 = vector.broadcast %cst_269 : f32 to vector<16x128xf32>
    %354 = arith.subf %353, %352 : vector<16x128xf32>
    %355 = math.exp %354 : vector<16x128xf32>
    %cst_270 = arith.constant 1.000000e+00 : f32
    %356 = vector.broadcast %cst_270 : f32 to vector<16x128xf32>
    %357 = arith.addf %356, %355 : vector<16x128xf32>
    %cst_271 = arith.constant 1.000000e+00 : f32
    %358 = vector.broadcast %cst_271 : f32 to vector<16x128xf32>
    %359 = arith.addf %358, %355 : vector<16x128xf32>
    %360 = arith.mulf %357, %359 : vector<16x128xf32>
    %cst_272 = arith.constant 0.000000e+00 : f32
    %361 = vector.broadcast %cst_272 : f32 to vector<16x128xf32>
    %362 = arith.cmpf oge, %351, %361 : vector<16x128xf32>
    %363 = arith.mulf %355, %355 : vector<16x128xf32>
    %cst_273 = arith.constant 1.000000e+00 : f32
    %364 = vector.broadcast %cst_273 : f32 to vector<16x128xf32>
    %365 = arith.select %362, %363, %364 : vector<16x128xi1>, vector<16x128xf32>
    %366 = arith.subf %360, %365 : vector<16x128xf32>
    %367 = arith.mulf %351, %366 : vector<16x128xf32>
    %368 = arith.addf %360, %365 : vector<16x128xf32>
    %369 = tpu.reciprocal %368 {approx = true} : vector<16x128xf32> -> vector<16x128xf32>
    %370 = arith.mulf %367, %369 : vector<16x128xf32>
    %c0_274 = arith.constant 0 : index
    %c0_275 = arith.constant 0 : index
    %371 = vector.load %arg20[%c0_274, %c0_275] : memref<16x128xf32, #tpu.memory_space<vmem>>, vector<16x128xf32>
    tpu.vector_store %arg20[%c0_274, %c0_275], %370 {strides = array<i32>} : memref<16x128xf32, #tpu.memory_space<vmem>>, vector<16x128xf32>,
    return
  }
}

module attributes {stable_mosaic.version = 11 : i64} {
  func.func @kernel(%arg0: memref<4x16x32xbf16, #tpu.memory_space<vmem>>, %arg1: memref<32x32xbf16, #tpu.memory_space<vmem>>, %arg2: memref<9x16x16xbf16, #tpu.memory_space<vmem>>, %arg3: memref<16x1xf32, #tpu.memory_space<vmem>>, %arg4: memref<9x32xbf16, #tpu.memory_space<vmem>>, %arg5: memref<16x16xbf16, #tpu.memory_space<vmem>>, %arg6: memref<16x16xbf16, #tpu.memory_space<vmem>>, %arg7: memref<16x32xbf16, #tpu.memory_space<vmem>>, %arg8: memref<16x32xbf16, #tpu.memory_space<vmem>>, %arg9: memref<16x1xf32, #tpu.memory_space<vmem>>, %arg10: memref<16x1xf32, #tpu.memory_space<vmem>>, %arg11: memref<9x16x16xbf16, #tpu.memory_space<vmem>>, %arg12: memref<16x1xf32, #tpu.memory_space<vmem>>, %arg13: memref<9x16x16xbf16, #tpu.memory_space<vmem>>, %arg14: memref<16x1xf32, #tpu.memory_space<vmem>>, %arg15: memref<9x32xbf16, #tpu.memory_space<vmem>>, %arg16: memref<32x16xbf16, #tpu.memory_space<vmem>>, %arg17: memref<32x16xbf16, #tpu.memory_space<vmem>>, %arg18: memref<32x16xbf16, #tpu.memory_space<vmem>>, %arg19: memref<32x1xf32, #tpu.memory_space<vmem>>, %arg20: memref<32x32xf32, #tpu.memory_space<vmem>>, %arg21: memref<16x42xbf16, #tpu.memory_space<vmem>>, %arg22: memref<64x37xbf16, #tpu.memory_space<vmem>>) attributes {dimension_semantics = [], scalar_prefetch = 0 : i64, scratch_operands = 2 : i64, tpu.core_type = #tpu.core_type<tc>} {
    %cst = arith.constant 0.000000e+00 : bf16
    %0 = vector.broadcast %cst : bf16 to vector<16x42xbf16>
    %c0 = arith.constant 0 : index
    %c0_0 = arith.constant 0 : index
    %1 = vector.load %arg21[%c0, %c0_0] : memref<16x42xbf16, #tpu.memory_space<vmem>>, vector<16x42xbf16>
    tpu.vector_store %arg21[%c0, %c0_0], %0 {strides = array<i32>} : memref<16x42xbf16, #tpu.memory_space<vmem>>, vector<16x42xbf16>,
    %c0_1 = arith.constant 0 : index
    %c0_2 = arith.constant 0 : index
    %2 = vector.load %arg1[%c0_1, %c0_2] : memref<32x32xbf16, #tpu.memory_space<vmem>>, vector<32x32xbf16>
    %cst_3 = arith.constant 0.000000e+00 : bf16
    %3 = vector.broadcast %cst_3 : bf16 to vector<64x37xbf16>
    %c0_4 = arith.constant 0 : index
    %c0_5 = arith.constant 0 : index
    %4 = vector.load %arg22[%c0_4, %c0_5] : memref<64x37xbf16, #tpu.memory_space<vmem>>, vector<64x37xbf16>
    tpu.vector_store %arg22[%c0_4, %c0_5], %3 {strides = array<i32>} : memref<64x37xbf16, #tpu.memory_space<vmem>>, vector<64x37xbf16>,
    %c0_6 = arith.constant 0 : index
    %c0_7 = arith.constant 0 : index
    %c0_8 = arith.constant 0 : index
    %5 = vector.load %arg0[%c0_6, %c0_7, %c0_8] : memref<4x16x32xbf16, #tpu.memory_space<vmem>>, vector<4x16x32xbf16>
    %6 = vector.extract_strided_slice %5 {offsets = [0, 0, 0], sizes = [1, 16, 32], strides = [1, 1, 1]} : vector<4x16x32xbf16> to vector<1x16x32xbf16>
    %7 = vector.shape_cast %6 : vector<1x16x32xbf16> to vector<16x32xbf16>
    %c0_9 = arith.constant 0 : index
    %c5 = arith.constant 5 : index
    %8 = vector.load %arg22[%c0_9, %c5] : memref<64x37xbf16, #tpu.memory_space<vmem>>, vector<16x32xbf16>
    tpu.vector_store %arg22[%c0_9, %c5], %7 {strides = array<i32>} : memref<64x37xbf16, #tpu.memory_space<vmem>>, vector<16x32xbf16>,
    %9 = vector.extract_strided_slice %5 {offsets = [1, 0, 0], sizes = [1, 16, 32], strides = [1, 1, 1]} : vector<4x16x32xbf16> to vector<1x16x32xbf16>
    %10 = vector.shape_cast %9 : vector<1x16x32xbf16> to vector<16x32xbf16>
    %c16 = arith.constant 16 : index
    %c5_10 = arith.constant 5 : index
    %11 = vector.load %arg22[%c16, %c5_10] : memref<64x37xbf16, #tpu.memory_space<vmem>>, vector<16x32xbf16>
    tpu.vector_store %arg22[%c16, %c5_10], %10 {strides = array<i32>} : memref<64x37xbf16, #tpu.memory_space<vmem>>, vector<16x32xbf16>,
    %12 = vector.extract_strided_slice %5 {offsets = [2, 0, 0], sizes = [1, 16, 32], strides = [1, 1, 1]} : vector<4x16x32xbf16> to vector<1x16x32xbf16>
    %13 = vector.shape_cast %12 : vector<1x16x32xbf16> to vector<16x32xbf16>
    %c32 = arith.constant 32 : index
    %c5_11 = arith.constant 5 : index
    %14 = vector.load %arg22[%c32, %c5_11] : memref<64x37xbf16, #tpu.memory_space<vmem>>, vector<16x32xbf16>
    tpu.vector_store %arg22[%c32, %c5_11], %13 {strides = array<i32>} : memref<64x37xbf16, #tpu.memory_space<vmem>>, vector<16x32xbf16>,
    %15 = vector.extract_strided_slice %5 {offsets = [3, 0, 0], sizes = [1, 16, 32], strides = [1, 1, 1]} : vector<4x16x32xbf16> to vector<1x16x32xbf16>
    %16 = vector.shape_cast %15 : vector<1x16x32xbf16> to vector<16x32xbf16>
    %c48 = arith.constant 48 : index
    %c5_12 = arith.constant 5 : index
    %17 = vector.load %arg22[%c48, %c5_12] : memref<64x37xbf16, #tpu.memory_space<vmem>>, vector<16x32xbf16>
    tpu.vector_store %arg22[%c48, %c5_12], %16 {strides = array<i32>} : memref<64x37xbf16, #tpu.memory_space<vmem>>, vector<16x32xbf16>,
    %c48_13 = arith.constant 48 : index
    %c0_14 = arith.constant 0 : index
    %18 = vector.load %arg22[%c48_13, %c0_14] : memref<64x37xbf16, #tpu.memory_space<vmem>>, vector<16x32xbf16>
    %c0_15 = arith.constant 0 : index
    %c0_16 = arith.constant 0 : index
    %19 = vector.load %arg4[%c0_15, %c0_16] : memref<9x32xbf16, #tpu.memory_space<vmem>>, vector<1x32xbf16>
    %20 = vector.broadcast %19 : vector<1x32xbf16> to vector<16x32xbf16>
    %21 = arith.mulf %18, %20 : vector<16x32xbf16>
    %c0_17 = arith.constant 0 : index
    %c0_18 = arith.constant 0 : index
    %c0_19 = arith.constant 0 : index
    %22 = vector.load %arg2[%c0_17, %c0_18, %c0_19] : memref<9x16x16xbf16, #tpu.memory_space<vmem>>, vector<1x16x16xbf16>
    %23 = vector.shape_cast %22 : vector<1x16x16xbf16> to vector<16x16xbf16>
    %cst_20 = arith.constant dense<0.000000e+00> : vector<16x32xf32>
    %24 = tpu.matmul %23, %21, %cst_20 {dimension_numbers = #tpu.dot_dimension_numbers<[1], [0], [0], [1], [0, 0, 1, 1], [], []>} : vector<16x16xbf16>, vector<16x32xbf16>, vector<16x32xf32> -> vector<16x32xf32>
    %c32_21 = arith.constant 32 : index
    %c1 = arith.constant 1 : index
    %25 = vector.load %arg22[%c32_21, %c1] : memref<64x37xbf16, #tpu.memory_space<vmem>>, vector<16x32xbf16>
    %c1_22 = arith.constant 1 : index
    %c0_23 = arith.constant 0 : index
    %26 = vector.load %arg4[%c1_22, %c0_23] : memref<9x32xbf16, #tpu.memory_space<vmem>>, vector<1x32xbf16>
    %27 = vector.broadcast %26 : vector<1x32xbf16> to vector<16x32xbf16>
    %28 = arith.mulf %25, %27 : vector<16x32xbf16>
    %c1_24 = arith.constant 1 : index
    %c0_25 = arith.constant 0 : index
    %c0_26 = arith.constant 0 : index
    %29 = vector.load %arg2[%c1_24, %c0_25, %c0_26] : memref<9x16x16xbf16, #tpu.memory_space<vmem>>, vector<1x16x16xbf16>
    %30 = vector.shape_cast %29 : vector<1x16x16xbf16> to vector<16x16xbf16>
    %cst_27 = arith.constant dense<0.000000e+00> : vector<16x32xf32>
    %31 = tpu.matmul %30, %28, %cst_27 {dimension_numbers = #tpu.dot_dimension_numbers<[1], [0], [0], [1], [0, 0, 1, 1], [], []>} : vector<16x16xbf16>, vector<16x32xbf16>, vector<16x32xf32> -> vector<16x32xf32>
    %32 = arith.addf %24, %31 : vector<16x32xf32>
    %c48_28 = arith.constant 48 : index
    %c1_29 = arith.constant 1 : index
    %33 = vector.load %arg22[%c48_28, %c1_29] : memref<64x37xbf16, #tpu.memory_space<vmem>>, vector<16x32xbf16>
    %c2 = arith.constant 2 : index
    %c0_30 = arith.constant 0 : index
    %34 = vector.load %arg4[%c2, %c0_30] : memref<9x32xbf16, #tpu.memory_space<vmem>>, vector<1x32xbf16>
    %35 = vector.broadcast %34 : vector<1x32xbf16> to vector<16x32xbf16>
    %36 = arith.mulf %33, %35 : vector<16x32xbf16>
    %c2_31 = arith.constant 2 : index
    %c0_32 = arith.constant 0 : index
    %c0_33 = arith.constant 0 : index
    %37 = vector.load %arg2[%c2_31, %c0_32, %c0_33] : memref<9x16x16xbf16, #tpu.memory_space<vmem>>, vector<1x16x16xbf16>
    %38 = vector.shape_cast %37 : vector<1x16x16xbf16> to vector<16x16xbf16>
    %cst_34 = arith.constant dense<0.000000e+00> : vector<16x32xf32>
    %39 = tpu.matmul %38, %36, %cst_34 {dimension_numbers = #tpu.dot_dimension_numbers<[1], [0], [0], [1], [0, 0, 1, 1], [], []>} : vector<16x16xbf16>, vector<16x32xbf16>, vector<16x32xf32> -> vector<16x32xf32>
    %40 = arith.addf %32, %39 : vector<16x32xf32>
    %c16_35 = arith.constant 16 : index
    %c4 = arith.constant 4 : index
    %41 = vector.load %arg22[%c16_35, %c4] : memref<64x37xbf16, #tpu.memory_space<vmem>>, vector<16x32xbf16>
    %c3 = arith.constant 3 : index
    %c0_36 = arith.constant 0 : index
    %42 = vector.load %arg4[%c3, %c0_36] : memref<9x32xbf16, #tpu.memory_space<vmem>>, vector<1x32xbf16>
    %43 = vector.broadcast %42 : vector<1x32xbf16> to vector<16x32xbf16>
    %44 = arith.mulf %41, %43 : vector<16x32xbf16>
    %c3_37 = arith.constant 3 : index
    %c0_38 = arith.constant 0 : index
    %c0_39 = arith.constant 0 : index
    %45 = vector.load %arg2[%c3_37, %c0_38, %c0_39] : memref<9x16x16xbf16, #tpu.memory_space<vmem>>, vector<1x16x16xbf16>
    %46 = vector.shape_cast %45 : vector<1x16x16xbf16> to vector<16x16xbf16>
    %cst_40 = arith.constant dense<0.000000e+00> : vector<16x32xf32>
    %47 = tpu.matmul %46, %44, %cst_40 {dimension_numbers = #tpu.dot_dimension_numbers<[1], [0], [0], [1], [0, 0, 1, 1], [], []>} : vector<16x16xbf16>, vector<16x32xbf16>, vector<16x32xf32> -> vector<16x32xf32>
    %48 = arith.addf %40, %47 : vector<16x32xf32>
    %c0_41 = arith.constant 0 : index
    %c5_42 = arith.constant 5 : index
    %49 = vector.load %arg22[%c0_41, %c5_42] : memref<64x37xbf16, #tpu.memory_space<vmem>>, vector<16x32xbf16>
    %c4_43 = arith.constant 4 : index
    %c0_44 = arith.constant 0 : index
    %c0_45 = arith.constant 0 : index
    %50 = vector.load %arg2[%c4_43, %c0_44, %c0_45] : memref<9x16x16xbf16, #tpu.memory_space<vmem>>, vector<1x16x16xbf16>
    %51 = vector.shape_cast %50 : vector<1x16x16xbf16> to vector<16x16xbf16>
    %cst_46 = arith.constant dense<0.000000e+00> : vector<16x32xf32>
    %52 = tpu.matmul %51, %49, %cst_46 {dimension_numbers = #tpu.dot_dimension_numbers<[1], [0], [0], [1], [0, 0, 1, 1], [], []>} : vector<16x16xbf16>, vector<16x32xbf16>, vector<16x32xf32> -> vector<16x32xf32>
    %53 = arith.addf %48, %52 : vector<16x32xf32>
    %c16_47 = arith.constant 16 : index
    %c5_48 = arith.constant 5 : index
    %54 = vector.load %arg22[%c16_47, %c5_48] : memref<64x37xbf16, #tpu.memory_space<vmem>>, vector<16x32xbf16>
    %c5_49 = arith.constant 5 : index
    %c0_50 = arith.constant 0 : index
    %c0_51 = arith.constant 0 : index
    %55 = vector.load %arg2[%c5_49, %c0_50, %c0_51] : memref<9x16x16xbf16, #tpu.memory_space<vmem>>, vector<1x16x16xbf16>
    %56 = vector.shape_cast %55 : vector<1x16x16xbf16> to vector<16x16xbf16>
    %cst_52 = arith.constant dense<0.000000e+00> : vector<16x32xf32>
    %57 = tpu.matmul %56, %54, %cst_52 {dimension_numbers = #tpu.dot_dimension_numbers<[1], [0], [0], [1], [0, 0, 1, 1], [], []>} : vector<16x16xbf16>, vector<16x32xbf16>, vector<16x32xf32> -> vector<16x32xf32>
    %58 = arith.addf %53, %57 : vector<16x32xf32>
    %c48_53 = arith.constant 48 : index
    %c4_54 = arith.constant 4 : index
    %59 = vector.load %arg22[%c48_53, %c4_54] : memref<64x37xbf16, #tpu.memory_space<vmem>>, vector<16x32xbf16>
    %c6 = arith.constant 6 : index
    %c0_55 = arith.constant 0 : index
    %60 = vector.load %arg4[%c6, %c0_55] : memref<9x32xbf16, #tpu.memory_space<vmem>>, vector<1x32xbf16>
    %61 = vector.broadcast %60 : vector<1x32xbf16> to vector<16x32xbf16>
    %62 = arith.mulf %59, %61 : vector<16x32xbf16>
    %c6_56 = arith.constant 6 : index
    %c0_57 = arith.constant 0 : index
    %c0_58 = arith.constant 0 : index
    %63 = vector.load %arg2[%c6_56, %c0_57, %c0_58] : memref<9x16x16xbf16, #tpu.memory_space<vmem>>, vector<1x16x16xbf16>
    %64 = vector.shape_cast %63 : vector<1x16x16xbf16> to vector<16x16xbf16>
    %cst_59 = arith.constant dense<0.000000e+00> : vector<16x32xf32>
    %65 = tpu.matmul %64, %62, %cst_59 {dimension_numbers = #tpu.dot_dimension_numbers<[1], [0], [0], [1], [0, 0, 1, 1], [], []>} : vector<16x16xbf16>, vector<16x32xbf16>, vector<16x32xf32> -> vector<16x32xf32>
    %66 = arith.addf %58, %65 : vector<16x32xf32>
    %c32_60 = arith.constant 32 : index
    %c5_61 = arith.constant 5 : index
    %67 = vector.load %arg22[%c32_60, %c5_61] : memref<64x37xbf16, #tpu.memory_space<vmem>>, vector<16x32xbf16>
    %c7 = arith.constant 7 : index
    %c0_62 = arith.constant 0 : index
    %c0_63 = arith.constant 0 : index
    %68 = vector.load %arg2[%c7, %c0_62, %c0_63] : memref<9x16x16xbf16, #tpu.memory_space<vmem>>, vector<1x16x16xbf16>
    %69 = vector.shape_cast %68 : vector<1x16x16xbf16> to vector<16x16xbf16>
    %cst_64 = arith.constant dense<0.000000e+00> : vector<16x32xf32>
    %70 = tpu.matmul %69, %67, %cst_64 {dimension_numbers = #tpu.dot_dimension_numbers<[1], [0], [0], [1], [0, 0, 1, 1], [], []>} : vector<16x16xbf16>, vector<16x32xbf16>, vector<16x32xf32> -> vector<16x32xf32>
    %71 = arith.addf %66, %70 : vector<16x32xf32>
    %c48_65 = arith.constant 48 : index
    %c5_66 = arith.constant 5 : index
    %72 = vector.load %arg22[%c48_65, %c5_66] : memref<64x37xbf16, #tpu.memory_space<vmem>>, vector<16x32xbf16>
    %c8 = arith.constant 8 : index
    %c0_67 = arith.constant 0 : index
    %c0_68 = arith.constant 0 : index
    %73 = vector.load %arg2[%c8, %c0_67, %c0_68] : memref<9x16x16xbf16, #tpu.memory_space<vmem>>, vector<1x16x16xbf16>
    %74 = vector.shape_cast %73 : vector<1x16x16xbf16> to vector<16x16xbf16>
    %cst_69 = arith.constant dense<0.000000e+00> : vector<16x32xf32>
    %75 = tpu.matmul %74, %72, %cst_69 {dimension_numbers = #tpu.dot_dimension_numbers<[1], [0], [0], [1], [0, 0, 1, 1], [], []>} : vector<16x16xbf16>, vector<16x32xbf16>, vector<16x32xf32> -> vector<16x32xf32>
    %76 = arith.addf %71, %75 : vector<16x32xf32>
    %c0_70 = arith.constant 0 : index
    %c0_71 = arith.constant 0 : index
    %77 = vector.load %arg3[%c0_70, %c0_71] : memref<16x1xf32, #tpu.memory_space<vmem>>, vector<16x1xf32>
    %78 = vector.broadcast %77 : vector<16x1xf32> to vector<16x32xf32>
    %79 = arith.addf %76, %78 : vector<16x32xf32>
    %80 = math.absf %79 : vector<16x32xf32>
    %cst_72 = arith.constant 0.000000e+00 : f32
    %81 = vector.broadcast %cst_72 : f32 to vector<16x32xf32>
    %82 = arith.subf %81, %80 : vector<16x32xf32>
    %83 = math.exp %82 : vector<16x32xf32>
    %cst_73 = arith.constant 1.000000e+00 : f32
    %84 = vector.broadcast %cst_73 : f32 to vector<16x32xf32>
    %85 = arith.addf %84, %83 : vector<16x32xf32>
    %cst_74 = arith.constant 1.000000e+00 : f32
    %86 = vector.broadcast %cst_74 : f32 to vector<16x32xf32>
    %87 = arith.addf %86, %83 : vector<16x32xf32>
    %88 = arith.mulf %85, %87 : vector<16x32xf32>
    %cst_75 = arith.constant 0.000000e+00 : f32
    %89 = vector.broadcast %cst_75 : f32 to vector<16x32xf32>
    %90 = arith.cmpf oge, %79, %89 : vector<16x32xf32>
    %91 = arith.mulf %83, %83 : vector<16x32xf32>
    %cst_76 = arith.constant 1.000000e+00 : f32
    %92 = vector.broadcast %cst_76 : f32 to vector<16x32xf32>
    %93 = arith.select %90, %91, %92 : vector<16x32xi1>, vector<16x32xf32>
    %94 = arith.subf %88, %93 : vector<16x32xf32>
    %95 = arith.mulf %79, %94 : vector<16x32xf32>
    %96 = arith.addf %88, %93 : vector<16x32xf32>
    %97 = tpu.reciprocal %96 {approx = true} : vector<16x32xf32> -> vector<16x32xf32>
    %98 = arith.mulf %95, %97 : vector<16x32xf32>
    %99 = arith.truncf %98 : vector<16x32xf32> to vector<16x32xbf16>
    %c0_77 = arith.constant 0 : index
    %c0_78 = arith.constant 0 : index
    %100 = vector.load %arg5[%c0_77, %c0_78] : memref<16x16xbf16, #tpu.memory_space<vmem>>, vector<16x16xbf16>
    %c0_79 = arith.constant 0 : index
    %c0_80 = arith.constant 0 : index
    %101 = vector.load %arg7[%c0_79, %c0_80] : memref<16x32xbf16, #tpu.memory_space<vmem>>, vector<16x32xbf16>
    %c0_81 = arith.constant 0 : index
    %c0_82 = arith.constant 0 : index
    %102 = vector.load %arg9[%c0_81, %c0_82] : memref<16x1xf32, #tpu.memory_space<vmem>>, vector<16x1xf32>
    %cst_83 = arith.constant dense<0.000000e+00> : vector<16x32xf32>
    %103 = tpu.matmul %100, %99, %cst_83 {dimension_numbers = #tpu.dot_dimension_numbers<[1], [0], [0], [1], [0, 0, 1, 1], [], []>} : vector<16x16xbf16>, vector<16x32xbf16>, vector<16x32xf32> -> vector<16x32xf32>
    %cst_84 = arith.constant dense<0.000000e+00> : vector<16x32xf32>
    %104 = tpu.matmul %101, %2, %cst_84 {dimension_numbers = #tpu.dot_dimension_numbers<[1], [0], [0], [1], [0, 0, 1, 1], [], []>} : vector<16x32xbf16>, vector<32x32xbf16>, vector<16x32xf32> -> vector<16x32xf32>
    %105 = arith.addf %103, %104 : vector<16x32xf32>
    %106 = vector.broadcast %102 : vector<16x1xf32> to vector<16x32xf32>
    %107 = arith.addf %105, %106 : vector<16x32xf32>
    %108 = math.absf %107 : vector<16x32xf32>
    %cst_85 = arith.constant 0.000000e+00 : f32
    %109 = vector.broadcast %cst_85 : f32 to vector<16x32xf32>
    %110 = arith.subf %109, %108 : vector<16x32xf32>
    %111 = math.exp %110 : vector<16x32xf32>
    %cst_86 = arith.constant 1.000000e+00 : f32
    %112 = vector.broadcast %cst_86 : f32 to vector<16x32xf32>
    %113 = arith.addf %112, %111 : vector<16x32xf32>
    %cst_87 = arith.constant 1.000000e+00 : f32
    %114 = vector.broadcast %cst_87 : f32 to vector<16x32xf32>
    %115 = arith.addf %114, %111 : vector<16x32xf32>
    %116 = arith.mulf %113, %115 : vector<16x32xf32>
    %cst_88 = arith.constant 0.000000e+00 : f32
    %117 = vector.broadcast %cst_88 : f32 to vector<16x32xf32>
    %118 = arith.cmpf oge, %107, %117 : vector<16x32xf32>
    %119 = arith.mulf %111, %111 : vector<16x32xf32>
    %cst_89 = arith.constant 1.000000e+00 : f32
    %120 = vector.broadcast %cst_89 : f32 to vector<16x32xf32>
    %121 = arith.select %118, %119, %120 : vector<16x32xi1>, vector<16x32xf32>
    %122 = arith.subf %116, %121 : vector<16x32xf32>
    %123 = arith.mulf %107, %122 : vector<16x32xf32>
    %124 = arith.addf %116, %121 : vector<16x32xf32>
    %125 = tpu.reciprocal %124 {approx = true} : vector<16x32xf32> -> vector<16x32xf32>
    %126 = arith.mulf %123, %125 : vector<16x32xf32>
    %c0_90 = arith.constant 0 : index
    %c0_91 = arith.constant 0 : index
    %127 = vector.load %arg6[%c0_90, %c0_91] : memref<16x16xbf16, #tpu.memory_space<vmem>>, vector<16x16xbf16>
    %c0_92 = arith.constant 0 : index
    %c0_93 = arith.constant 0 : index
    %128 = vector.load %arg8[%c0_92, %c0_93] : memref<16x32xbf16, #tpu.memory_space<vmem>>, vector<16x32xbf16>
    %c0_94 = arith.constant 0 : index
    %c0_95 = arith.constant 0 : index
    %129 = vector.load %arg10[%c0_94, %c0_95] : memref<16x1xf32, #tpu.memory_space<vmem>>, vector<16x1xf32>
    %cst_96 = arith.constant dense<0.000000e+00> : vector<16x32xf32>
    %130 = tpu.matmul %127, %99, %cst_96 {dimension_numbers = #tpu.dot_dimension_numbers<[1], [0], [0], [1], [0, 0, 1, 1], [], []>} : vector<16x16xbf16>, vector<16x32xbf16>, vector<16x32xf32> -> vector<16x32xf32>
    %cst_97 = arith.constant dense<0.000000e+00> : vector<16x32xf32>
    %131 = tpu.matmul %128, %2, %cst_97 {dimension_numbers = #tpu.dot_dimension_numbers<[1], [0], [0], [1], [0, 0, 1, 1], [], []>} : vector<16x32xbf16>, vector<32x32xbf16>, vector<16x32xf32> -> vector<16x32xf32>
    %132 = arith.addf %130, %131 : vector<16x32xf32>
    %133 = vector.broadcast %129 : vector<16x1xf32> to vector<16x32xf32>
    %134 = arith.addf %132, %133 : vector<16x32xf32>
    %135 = math.absf %134 : vector<16x32xf32>
    %cst_98 = arith.constant 0.000000e+00 : f32
    %136 = vector.broadcast %cst_98 : f32 to vector<16x32xf32>
    %137 = arith.subf %136, %135 : vector<16x32xf32>
    %138 = math.exp %137 : vector<16x32xf32>
    %cst_99 = arith.constant 1.000000e+00 : f32
    %139 = vector.broadcast %cst_99 : f32 to vector<16x32xf32>
    %140 = arith.addf %139, %138 : vector<16x32xf32>
    %cst_100 = arith.constant 1.000000e+00 : f32
    %141 = vector.broadcast %cst_100 : f32 to vector<16x32xf32>
    %142 = arith.addf %141, %138 : vector<16x32xf32>
    %143 = arith.mulf %140, %142 : vector<16x32xf32>
    %cst_101 = arith.constant 0.000000e+00 : f32
    %144 = vector.broadcast %cst_101 : f32 to vector<16x32xf32>
    %145 = arith.cmpf oge, %134, %144 : vector<16x32xf32>
    %146 = arith.mulf %138, %138 : vector<16x32xf32>
    %cst_102 = arith.constant 1.000000e+00 : f32
    %147 = vector.broadcast %cst_102 : f32 to vector<16x32xf32>
    %148 = arith.select %145, %146, %147 : vector<16x32xi1>, vector<16x32xf32>
    %149 = arith.subf %143, %148 : vector<16x32xf32>
    %150 = arith.mulf %134, %149 : vector<16x32xf32>
    %151 = arith.addf %143, %148 : vector<16x32xf32>
    %152 = tpu.reciprocal %151 {approx = true} : vector<16x32xf32> -> vector<16x32xf32>
    %153 = arith.mulf %150, %152 : vector<16x32xf32>
    %154 = arith.truncf %153 : vector<16x32xf32> to vector<16x32xbf16>
    %c0_103 = arith.constant 0 : index
    %c5_104 = arith.constant 5 : index
    %155 = vector.load %arg21[%c0_103, %c5_104] : memref<16x42xbf16, #tpu.memory_space<vmem>>, vector<16x32xbf16>
    tpu.vector_store %arg21[%c0_103, %c5_104], %154 {strides = array<i32>} : memref<16x42xbf16, #tpu.memory_space<vmem>>, vector<16x32xbf16>,
    %c0_105 = arith.constant 0 : index
    %c0_106 = arith.constant 0 : index
    %156 = vector.load %arg21[%c0_105, %c0_106] : memref<16x42xbf16, #tpu.memory_space<vmem>>, vector<16x32xbf16>
    %c0_107 = arith.constant 0 : index
    %c0_108 = arith.constant 0 : index
    %157 = vector.load %arg15[%c0_107, %c0_108] : memref<9x32xbf16, #tpu.memory_space<vmem>>, vector<1x32xbf16>
    %158 = vector.broadcast %157 : vector<1x32xbf16> to vector<16x32xbf16>
    %159 = arith.mulf %156, %158 : vector<16x32xbf16>
    %c0_109 = arith.constant 0 : index
    %c0_110 = arith.constant 0 : index
    %c0_111 = arith.constant 0 : index
    %160 = vector.load %arg11[%c0_109, %c0_110, %c0_111] : memref<9x16x16xbf16, #tpu.memory_space<vmem>>, vector<1x16x16xbf16>
    %161 = vector.shape_cast %160 : vector<1x16x16xbf16> to vector<16x16xbf16>
    %cst_112 = arith.constant dense<0.000000e+00> : vector<16x32xf32>
    %162 = tpu.matmul %161, %159, %cst_112 {dimension_numbers = #tpu.dot_dimension_numbers<[1], [0], [0], [1], [0, 0, 1, 1], [], []>} : vector<16x16xbf16>, vector<16x32xbf16>, vector<16x32xf32> -> vector<16x32xf32>
    %c0_113 = arith.constant 0 : index
    %c1_114 = arith.constant 1 : index
    %163 = vector.load %arg21[%c0_113, %c1_114] : memref<16x42xbf16, #tpu.memory_space<vmem>>, vector<16x32xbf16>
    %c1_115 = arith.constant 1 : index
    %c0_116 = arith.constant 0 : index
    %164 = vector.load %arg15[%c1_115, %c0_116] : memref<9x32xbf16, #tpu.memory_space<vmem>>, vector<1x32xbf16>
    %165 = vector.broadcast %164 : vector<1x32xbf16> to vector<16x32xbf16>
    %166 = arith.mulf %163, %165 : vector<16x32xbf16>
    %c1_117 = arith.constant 1 : index
    %c0_118 = arith.constant 0 : index
    %c0_119 = arith.constant 0 : index
    %167 = vector.load %arg11[%c1_117, %c0_118, %c0_119] : memref<9x16x16xbf16, #tpu.memory_space<vmem>>, vector<1x16x16xbf16>
    %168 = vector.shape_cast %167 : vector<1x16x16xbf16> to vector<16x16xbf16>
    %cst_120 = arith.constant dense<0.000000e+00> : vector<16x32xf32>
    %169 = tpu.matmul %168, %166, %cst_120 {dimension_numbers = #tpu.dot_dimension_numbers<[1], [0], [0], [1], [0, 0, 1, 1], [], []>} : vector<16x16xbf16>, vector<16x32xbf16>, vector<16x32xf32> -> vector<16x32xf32>
    %170 = arith.addf %162, %169 : vector<16x32xf32>
    %c0_121 = arith.constant 0 : index
    %c2_122 = arith.constant 2 : index
    %171 = vector.load %arg21[%c0_121, %c2_122] : memref<16x42xbf16, #tpu.memory_space<vmem>>, vector<16x32xbf16>
    %c2_123 = arith.constant 2 : index
    %c0_124 = arith.constant 0 : index
    %172 = vector.load %arg15[%c2_123, %c0_124] : memref<9x32xbf16, #tpu.memory_space<vmem>>, vector<1x32xbf16>
    %173 = vector.broadcast %172 : vector<1x32xbf16> to vector<16x32xbf16>
    %174 = arith.mulf %171, %173 : vector<16x32xbf16>
    %c2_125 = arith.constant 2 : index
    %c0_126 = arith.constant 0 : index
    %c0_127 = arith.constant 0 : index
    %175 = vector.load %arg11[%c2_125, %c0_126, %c0_127] : memref<9x16x16xbf16, #tpu.memory_space<vmem>>, vector<1x16x16xbf16>
    %176 = vector.shape_cast %175 : vector<1x16x16xbf16> to vector<16x16xbf16>
    %cst_128 = arith.constant dense<0.000000e+00> : vector<16x32xf32>
    %177 = tpu.matmul %176, %174, %cst_128 {dimension_numbers = #tpu.dot_dimension_numbers<[1], [0], [0], [1], [0, 0, 1, 1], [], []>} : vector<16x16xbf16>, vector<16x32xbf16>, vector<16x32xf32> -> vector<16x32xf32>
    %178 = arith.addf %170, %177 : vector<16x32xf32>
    %c0_129 = arith.constant 0 : index
    %c4_130 = arith.constant 4 : index
    %179 = vector.load %arg21[%c0_129, %c4_130] : memref<16x42xbf16, #tpu.memory_space<vmem>>, vector<16x32xbf16>
    %c3_131 = arith.constant 3 : index
    %c0_132 = arith.constant 0 : index
    %180 = vector.load %arg15[%c3_131, %c0_132] : memref<9x32xbf16, #tpu.memory_space<vmem>>, vector<1x32xbf16>
    %181 = vector.broadcast %180 : vector<1x32xbf16> to vector<16x32xbf16>
    %182 = arith.mulf %179, %181 : vector<16x32xbf16>
    %c3_133 = arith.constant 3 : index
    %c0_134 = arith.constant 0 : index
    %c0_135 = arith.constant 0 : index
    %183 = vector.load %arg11[%c3_133, %c0_134, %c0_135] : memref<9x16x16xbf16, #tpu.memory_space<vmem>>, vector<1x16x16xbf16>
    %184 = vector.shape_cast %183 : vector<1x16x16xbf16> to vector<16x16xbf16>
    %cst_136 = arith.constant dense<0.000000e+00> : vector<16x32xf32>
    %185 = tpu.matmul %184, %182, %cst_136 {dimension_numbers = #tpu.dot_dimension_numbers<[1], [0], [0], [1], [0, 0, 1, 1], [], []>} : vector<16x16xbf16>, vector<16x32xbf16>, vector<16x32xf32> -> vector<16x32xf32>
    %186 = arith.addf %178, %185 : vector<16x32xf32>
    %c0_137 = arith.constant 0 : index
    %c5_138 = arith.constant 5 : index
    %187 = vector.load %arg21[%c0_137, %c5_138] : memref<16x42xbf16, #tpu.memory_space<vmem>>, vector<16x32xbf16>
    %c4_139 = arith.constant 4 : index
    %c0_140 = arith.constant 0 : index
    %c0_141 = arith.constant 0 : index
    %188 = vector.load %arg11[%c4_139, %c0_140, %c0_141] : memref<9x16x16xbf16, #tpu.memory_space<vmem>>, vector<1x16x16xbf16>
    %189 = vector.shape_cast %188 : vector<1x16x16xbf16> to vector<16x16xbf16>
    %cst_142 = arith.constant dense<0.000000e+00> : vector<16x32xf32>
    %190 = tpu.matmul %189, %187, %cst_142 {dimension_numbers = #tpu.dot_dimension_numbers<[1], [0], [0], [1], [0, 0, 1, 1], [], []>} : vector<16x16xbf16>, vector<16x32xbf16>, vector<16x32xf32> -> vector<16x32xf32>
    %191 = arith.addf %186, %190 : vector<16x32xf32>
    %c0_143 = arith.constant 0 : index
    %c6_144 = arith.constant 6 : index
    %192 = vector.load %arg21[%c0_143, %c6_144] : memref<16x42xbf16, #tpu.memory_space<vmem>>, vector<16x32xbf16>
    %c5_145 = arith.constant 5 : index
    %c0_146 = arith.constant 0 : index
    %193 = vector.load %arg15[%c5_145, %c0_146] : memref<9x32xbf16, #tpu.memory_space<vmem>>, vector<1x32xbf16>
    %194 = vector.broadcast %193 : vector<1x32xbf16> to vector<16x32xbf16>
    %195 = arith.mulf %192, %194 : vector<16x32xbf16>
    %c5_147 = arith.constant 5 : index
    %c0_148 = arith.constant 0 : index
    %c0_149 = arith.constant 0 : index
    %196 = vector.load %arg11[%c5_147, %c0_148, %c0_149] : memref<9x16x16xbf16, #tpu.memory_space<vmem>>, vector<1x16x16xbf16>
    %197 = vector.shape_cast %196 : vector<1x16x16xbf16> to vector<16x16xbf16>
    %cst_150 = arith.constant dense<0.000000e+00> : vector<16x32xf32>
    %198 = tpu.matmul %197, %195, %cst_150 {dimension_numbers = #tpu.dot_dimension_numbers<[1], [0], [0], [1], [0, 0, 1, 1], [], []>} : vector<16x16xbf16>, vector<16x32xbf16>, vector<16x32xf32> -> vector<16x32xf32>
    %199 = arith.addf %191, %198 : vector<16x32xf32>
    %c0_151 = arith.constant 0 : index
    %c8_152 = arith.constant 8 : index
    %200 = vector.load %arg21[%c0_151, %c8_152] : memref<16x42xbf16, #tpu.memory_space<vmem>>, vector<16x32xbf16>
    %c6_153 = arith.constant 6 : index
    %c0_154 = arith.constant 0 : index
    %201 = vector.load %arg15[%c6_153, %c0_154] : memref<9x32xbf16, #tpu.memory_space<vmem>>, vector<1x32xbf16>
    %202 = vector.broadcast %201 : vector<1x32xbf16> to vector<16x32xbf16>
    %203 = arith.mulf %200, %202 : vector<16x32xbf16>
    %c6_155 = arith.constant 6 : index
    %c0_156 = arith.constant 0 : index
    %c0_157 = arith.constant 0 : index
    %204 = vector.load %arg11[%c6_155, %c0_156, %c0_157] : memref<9x16x16xbf16, #tpu.memory_space<vmem>>, vector<1x16x16xbf16>
    %205 = vector.shape_cast %204 : vector<1x16x16xbf16> to vector<16x16xbf16>
    %cst_158 = arith.constant dense<0.000000e+00> : vector<16x32xf32>
    %206 = tpu.matmul %205, %203, %cst_158 {dimension_numbers = #tpu.dot_dimension_numbers<[1], [0], [0], [1], [0, 0, 1, 1], [], []>} : vector<16x16xbf16>, vector<16x32xbf16>, vector<16x32xf32> -> vector<16x32xf32>
    %207 = arith.addf %199, %206 : vector<16x32xf32>
    %c0_159 = arith.constant 0 : index
    %c9 = arith.constant 9 : index
    %208 = vector.load %arg21[%c0_159, %c9] : memref<16x42xbf16, #tpu.memory_space<vmem>>, vector<16x32xbf16>
    %c7_160 = arith.constant 7 : index
    %c0_161 = arith.constant 0 : index
    %209 = vector.load %arg15[%c7_160, %c0_161] : memref<9x32xbf16, #tpu.memory_space<vmem>>, vector<1x32xbf16>
    %210 = vector.broadcast %209 : vector<1x32xbf16> to vector<16x32xbf16>
    %211 = arith.mulf %208, %210 : vector<16x32xbf16>
    %c7_162 = arith.constant 7 : index
    %c0_163 = arith.constant 0 : index
    %c0_164 = arith.constant 0 : index
    %212 = vector.load %arg11[%c7_162, %c0_163, %c0_164] : memref<9x16x16xbf16, #tpu.memory_space<vmem>>, vector<1x16x16xbf16>
    %213 = vector.shape_cast %212 : vector<1x16x16xbf16> to vector<16x16xbf16>
    %cst_165 = arith.constant dense<0.000000e+00> : vector<16x32xf32>
    %214 = tpu.matmul %213, %211, %cst_165 {dimension_numbers = #tpu.dot_dimension_numbers<[1], [0], [0], [1], [0, 0, 1, 1], [], []>} : vector<16x16xbf16>, vector<16x32xbf16>, vector<16x32xf32> -> vector<16x32xf32>
    %215 = arith.addf %207, %214 : vector<16x32xf32>
    %c0_166 = arith.constant 0 : index
    %c10 = arith.constant 10 : index
    %216 = vector.load %arg21[%c0_166, %c10] : memref<16x42xbf16, #tpu.memory_space<vmem>>, vector<16x32xbf16>
    %c8_167 = arith.constant 8 : index
    %c0_168 = arith.constant 0 : index
    %217 = vector.load %arg15[%c8_167, %c0_168] : memref<9x32xbf16, #tpu.memory_space<vmem>>, vector<1x32xbf16>
    %218 = vector.broadcast %217 : vector<1x32xbf16> to vector<16x32xbf16>
    %219 = arith.mulf %216, %218 : vector<16x32xbf16>
    %c8_169 = arith.constant 8 : index
    %c0_170 = arith.constant 0 : index
    %c0_171 = arith.constant 0 : index
    %220 = vector.load %arg11[%c8_169, %c0_170, %c0_171] : memref<9x16x16xbf16, #tpu.memory_space<vmem>>, vector<1x16x16xbf16>
    %221 = vector.shape_cast %220 : vector<1x16x16xbf16> to vector<16x16xbf16>
    %cst_172 = arith.constant dense<0.000000e+00> : vector<16x32xf32>
    %222 = tpu.matmul %221, %219, %cst_172 {dimension_numbers = #tpu.dot_dimension_numbers<[1], [0], [0], [1], [0, 0, 1, 1], [], []>} : vector<16x16xbf16>, vector<16x32xbf16>, vector<16x32xf32> -> vector<16x32xf32>
    %223 = arith.addf %215, %222 : vector<16x32xf32>
    %c0_173 = arith.constant 0 : index
    %c0_174 = arith.constant 0 : index
    %224 = vector.load %arg12[%c0_173, %c0_174] : memref<16x1xf32, #tpu.memory_space<vmem>>, vector<16x1xf32>
    %225 = vector.broadcast %224 : vector<16x1xf32> to vector<16x32xf32>
    %226 = arith.addf %223, %225 : vector<16x32xf32>
    %227 = math.absf %226 : vector<16x32xf32>
    %cst_175 = arith.constant 0.000000e+00 : f32
    %228 = vector.broadcast %cst_175 : f32 to vector<16x32xf32>
    %229 = arith.subf %228, %227 : vector<16x32xf32>
    %230 = math.exp %229 : vector<16x32xf32>
    %cst_176 = arith.constant 1.000000e+00 : f32
    %231 = vector.broadcast %cst_176 : f32 to vector<16x32xf32>
    %232 = arith.addf %231, %230 : vector<16x32xf32>
    %cst_177 = arith.constant 1.000000e+00 : f32
    %233 = vector.broadcast %cst_177 : f32 to vector<16x32xf32>
    %234 = arith.addf %233, %230 : vector<16x32xf32>
    %235 = arith.mulf %232, %234 : vector<16x32xf32>
    %cst_178 = arith.constant 0.000000e+00 : f32
    %236 = vector.broadcast %cst_178 : f32 to vector<16x32xf32>
    %237 = arith.cmpf oge, %226, %236 : vector<16x32xf32>
    %238 = arith.mulf %230, %230 : vector<16x32xf32>
    %cst_179 = arith.constant 1.000000e+00 : f32
    %239 = vector.broadcast %cst_179 : f32 to vector<16x32xf32>
    %240 = arith.select %237, %238, %239 : vector<16x32xi1>, vector<16x32xf32>
    %241 = arith.subf %235, %240 : vector<16x32xf32>
    %242 = arith.mulf %226, %241 : vector<16x32xf32>
    %243 = arith.addf %235, %240 : vector<16x32xf32>
    %244 = tpu.reciprocal %243 {approx = true} : vector<16x32xf32> -> vector<16x32xf32>
    %245 = arith.mulf %242, %244 : vector<16x32xf32>
    %246 = arith.truncf %245 : vector<16x32xf32> to vector<16x32xbf16>
    %c0_180 = arith.constant 0 : index
    %c5_181 = arith.constant 5 : index
    %247 = vector.load %arg21[%c0_180, %c5_181] : memref<16x42xbf16, #tpu.memory_space<vmem>>, vector<16x32xbf16>
    tpu.vector_store %arg21[%c0_180, %c5_181], %246 {strides = array<i32>} : memref<16x42xbf16, #tpu.memory_space<vmem>>, vector<16x32xbf16>,
    %c0_182 = arith.constant 0 : index
    %c0_183 = arith.constant 0 : index
    %248 = vector.load %arg21[%c0_182, %c0_183] : memref<16x42xbf16, #tpu.memory_space<vmem>>, vector<16x32xbf16>
    %c0_184 = arith.constant 0 : index
    %c0_185 = arith.constant 0 : index
    %249 = vector.load %arg15[%c0_184, %c0_185] : memref<9x32xbf16, #tpu.memory_space<vmem>>, vector<1x32xbf16>
    %250 = vector.broadcast %249 : vector<1x32xbf16> to vector<16x32xbf16>
    %251 = arith.mulf %248, %250 : vector<16x32xbf16>
    %c0_186 = arith.constant 0 : index
    %c0_187 = arith.constant 0 : index
    %c0_188 = arith.constant 0 : index
    %252 = vector.load %arg13[%c0_186, %c0_187, %c0_188] : memref<9x16x16xbf16, #tpu.memory_space<vmem>>, vector<1x16x16xbf16>
    %253 = vector.shape_cast %252 : vector<1x16x16xbf16> to vector<16x16xbf16>
    %cst_189 = arith.constant dense<0.000000e+00> : vector<16x32xf32>
    %254 = tpu.matmul %253, %251, %cst_189 {dimension_numbers = #tpu.dot_dimension_numbers<[1], [0], [0], [1], [0, 0, 1, 1], [], []>} : vector<16x16xbf16>, vector<16x32xbf16>, vector<16x32xf32> -> vector<16x32xf32>
    %c0_190 = arith.constant 0 : index
    %c1_191 = arith.constant 1 : index
    %255 = vector.load %arg21[%c0_190, %c1_191] : memref<16x42xbf16, #tpu.memory_space<vmem>>, vector<16x32xbf16>
    %c1_192 = arith.constant 1 : index
    %c0_193 = arith.constant 0 : index
    %256 = vector.load %arg15[%c1_192, %c0_193] : memref<9x32xbf16, #tpu.memory_space<vmem>>, vector<1x32xbf16>
    %257 = vector.broadcast %256 : vector<1x32xbf16> to vector<16x32xbf16>
    %258 = arith.mulf %255, %257 : vector<16x32xbf16>
    %c1_194 = arith.constant 1 : index
    %c0_195 = arith.constant 0 : index
    %c0_196 = arith.constant 0 : index
    %259 = vector.load %arg13[%c1_194, %c0_195, %c0_196] : memref<9x16x16xbf16, #tpu.memory_space<vmem>>, vector<1x16x16xbf16>
    %260 = vector.shape_cast %259 : vector<1x16x16xbf16> to vector<16x16xbf16>
    %cst_197 = arith.constant dense<0.000000e+00> : vector<16x32xf32>
    %261 = tpu.matmul %260, %258, %cst_197 {dimension_numbers = #tpu.dot_dimension_numbers<[1], [0], [0], [1], [0, 0, 1, 1], [], []>} : vector<16x16xbf16>, vector<16x32xbf16>, vector<16x32xf32> -> vector<16x32xf32>
    %262 = arith.addf %254, %261 : vector<16x32xf32>
    %c0_198 = arith.constant 0 : index
    %c2_199 = arith.constant 2 : index
    %263 = vector.load %arg21[%c0_198, %c2_199] : memref<16x42xbf16, #tpu.memory_space<vmem>>, vector<16x32xbf16>
    %c2_200 = arith.constant 2 : index
    %c0_201 = arith.constant 0 : index
    %264 = vector.load %arg15[%c2_200, %c0_201] : memref<9x32xbf16, #tpu.memory_space<vmem>>, vector<1x32xbf16>
    %265 = vector.broadcast %264 : vector<1x32xbf16> to vector<16x32xbf16>
    %266 = arith.mulf %263, %265 : vector<16x32xbf16>
    %c2_202 = arith.constant 2 : index
    %c0_203 = arith.constant 0 : index
    %c0_204 = arith.constant 0 : index
    %267 = vector.load %arg13[%c2_202, %c0_203, %c0_204] : memref<9x16x16xbf16, #tpu.memory_space<vmem>>, vector<1x16x16xbf16>
    %268 = vector.shape_cast %267 : vector<1x16x16xbf16> to vector<16x16xbf16>
    %cst_205 = arith.constant dense<0.000000e+00> : vector<16x32xf32>
    %269 = tpu.matmul %268, %266, %cst_205 {dimension_numbers = #tpu.dot_dimension_numbers<[1], [0], [0], [1], [0, 0, 1, 1], [], []>} : vector<16x16xbf16>, vector<16x32xbf16>, vector<16x32xf32> -> vector<16x32xf32>
    %270 = arith.addf %262, %269 : vector<16x32xf32>
    %c0_206 = arith.constant 0 : index
    %c4_207 = arith.constant 4 : index
    %271 = vector.load %arg21[%c0_206, %c4_207] : memref<16x42xbf16, #tpu.memory_space<vmem>>, vector<16x32xbf16>
    %c3_208 = arith.constant 3 : index
    %c0_209 = arith.constant 0 : index
    %272 = vector.load %arg15[%c3_208, %c0_209] : memref<9x32xbf16, #tpu.memory_space<vmem>>, vector<1x32xbf16>
    %273 = vector.broadcast %272 : vector<1x32xbf16> to vector<16x32xbf16>
    %274 = arith.mulf %271, %273 : vector<16x32xbf16>
    %c3_210 = arith.constant 3 : index
    %c0_211 = arith.constant 0 : index
    %c0_212 = arith.constant 0 : index
    %275 = vector.load %arg13[%c3_210, %c0_211, %c0_212] : memref<9x16x16xbf16, #tpu.memory_space<vmem>>, vector<1x16x16xbf16>
    %276 = vector.shape_cast %275 : vector<1x16x16xbf16> to vector<16x16xbf16>
    %cst_213 = arith.constant dense<0.000000e+00> : vector<16x32xf32>
    %277 = tpu.matmul %276, %274, %cst_213 {dimension_numbers = #tpu.dot_dimension_numbers<[1], [0], [0], [1], [0, 0, 1, 1], [], []>} : vector<16x16xbf16>, vector<16x32xbf16>, vector<16x32xf32> -> vector<16x32xf32>
    %278 = arith.addf %270, %277 : vector<16x32xf32>
    %c0_214 = arith.constant 0 : index
    %c5_215 = arith.constant 5 : index
    %279 = vector.load %arg21[%c0_214, %c5_215] : memref<16x42xbf16, #tpu.memory_space<vmem>>, vector<16x32xbf16>
    %c4_216 = arith.constant 4 : index
    %c0_217 = arith.constant 0 : index
    %c0_218 = arith.constant 0 : index
    %280 = vector.load %arg13[%c4_216, %c0_217, %c0_218] : memref<9x16x16xbf16, #tpu.memory_space<vmem>>, vector<1x16x16xbf16>
    %281 = vector.shape_cast %280 : vector<1x16x16xbf16> to vector<16x16xbf16>
    %cst_219 = arith.constant dense<0.000000e+00> : vector<16x32xf32>
    %282 = tpu.matmul %281, %279, %cst_219 {dimension_numbers = #tpu.dot_dimension_numbers<[1], [0], [0], [1], [0, 0, 1, 1], [], []>} : vector<16x16xbf16>, vector<16x32xbf16>, vector<16x32xf32> -> vector<16x32xf32>
    %283 = arith.addf %278, %282 : vector<16x32xf32>
    %c0_220 = arith.constant 0 : index
    %c6_221 = arith.constant 6 : index
    %284 = vector.load %arg21[%c0_220, %c6_221] : memref<16x42xbf16, #tpu.memory_space<vmem>>, vector<16x32xbf16>
    %c5_222 = arith.constant 5 : index
    %c0_223 = arith.constant 0 : index
    %285 = vector.load %arg15[%c5_222, %c0_223] : memref<9x32xbf16, #tpu.memory_space<vmem>>, vector<1x32xbf16>
    %286 = vector.broadcast %285 : vector<1x32xbf16> to vector<16x32xbf16>
    %287 = arith.mulf %284, %286 : vector<16x32xbf16>
    %c5_224 = arith.constant 5 : index
    %c0_225 = arith.constant 0 : index
    %c0_226 = arith.constant 0 : index
    %288 = vector.load %arg13[%c5_224, %c0_225, %c0_226] : memref<9x16x16xbf16, #tpu.memory_space<vmem>>, vector<1x16x16xbf16>
    %289 = vector.shape_cast %288 : vector<1x16x16xbf16> to vector<16x16xbf16>
    %cst_227 = arith.constant dense<0.000000e+00> : vector<16x32xf32>
    %290 = tpu.matmul %289, %287, %cst_227 {dimension_numbers = #tpu.dot_dimension_numbers<[1], [0], [0], [1], [0, 0, 1, 1], [], []>} : vector<16x16xbf16>, vector<16x32xbf16>, vector<16x32xf32> -> vector<16x32xf32>
    %291 = arith.addf %283, %290 : vector<16x32xf32>
    %c0_228 = arith.constant 0 : index
    %c8_229 = arith.constant 8 : index
    %292 = vector.load %arg21[%c0_228, %c8_229] : memref<16x42xbf16, #tpu.memory_space<vmem>>, vector<16x32xbf16>
    %c6_230 = arith.constant 6 : index
    %c0_231 = arith.constant 0 : index
    %293 = vector.load %arg15[%c6_230, %c0_231] : memref<9x32xbf16, #tpu.memory_space<vmem>>, vector<1x32xbf16>
    %294 = vector.broadcast %293 : vector<1x32xbf16> to vector<16x32xbf16>
    %295 = arith.mulf %292, %294 : vector<16x32xbf16>
    %c6_232 = arith.constant 6 : index
    %c0_233 = arith.constant 0 : index
    %c0_234 = arith.constant 0 : index
    %296 = vector.load %arg13[%c6_232, %c0_233, %c0_234] : memref<9x16x16xbf16, #tpu.memory_space<vmem>>, vector<1x16x16xbf16>
    %297 = vector.shape_cast %296 : vector<1x16x16xbf16> to vector<16x16xbf16>
    %cst_235 = arith.constant dense<0.000000e+00> : vector<16x32xf32>
    %298 = tpu.matmul %297, %295, %cst_235 {dimension_numbers = #tpu.dot_dimension_numbers<[1], [0], [0], [1], [0, 0, 1, 1], [], []>} : vector<16x16xbf16>, vector<16x32xbf16>, vector<16x32xf32> -> vector<16x32xf32>
    %299 = arith.addf %291, %298 : vector<16x32xf32>
    %c0_236 = arith.constant 0 : index
    %c9_237 = arith.constant 9 : index
    %300 = vector.load %arg21[%c0_236, %c9_237] : memref<16x42xbf16, #tpu.memory_space<vmem>>, vector<16x32xbf16>
    %c7_238 = arith.constant 7 : index
    %c0_239 = arith.constant 0 : index
    %301 = vector.load %arg15[%c7_238, %c0_239] : memref<9x32xbf16, #tpu.memory_space<vmem>>, vector<1x32xbf16>
    %302 = vector.broadcast %301 : vector<1x32xbf16> to vector<16x32xbf16>
    %303 = arith.mulf %300, %302 : vector<16x32xbf16>
    %c7_240 = arith.constant 7 : index
    %c0_241 = arith.constant 0 : index
    %c0_242 = arith.constant 0 : index
    %304 = vector.load %arg13[%c7_240, %c0_241, %c0_242] : memref<9x16x16xbf16, #tpu.memory_space<vmem>>, vector<1x16x16xbf16>
    %305 = vector.shape_cast %304 : vector<1x16x16xbf16> to vector<16x16xbf16>
    %cst_243 = arith.constant dense<0.000000e+00> : vector<16x32xf32>
    %306 = tpu.matmul %305, %303, %cst_243 {dimension_numbers = #tpu.dot_dimension_numbers<[1], [0], [0], [1], [0, 0, 1, 1], [], []>} : vector<16x16xbf16>, vector<16x32xbf16>, vector<16x32xf32> -> vector<16x32xf32>
    %307 = arith.addf %299, %306 : vector<16x32xf32>
    %c0_244 = arith.constant 0 : index
    %c10_245 = arith.constant 10 : index
    %308 = vector.load %arg21[%c0_244, %c10_245] : memref<16x42xbf16, #tpu.memory_space<vmem>>, vector<16x32xbf16>
    %c8_246 = arith.constant 8 : index
    %c0_247 = arith.constant 0 : index
    %309 = vector.load %arg15[%c8_246, %c0_247] : memref<9x32xbf16, #tpu.memory_space<vmem>>, vector<1x32xbf16>
    %310 = vector.broadcast %309 : vector<1x32xbf16> to vector<16x32xbf16>
    %311 = arith.mulf %308, %310 : vector<16x32xbf16>
    %c8_248 = arith.constant 8 : index
    %c0_249 = arith.constant 0 : index
    %c0_250 = arith.constant 0 : index
    %312 = vector.load %arg13[%c8_248, %c0_249, %c0_250] : memref<9x16x16xbf16, #tpu.memory_space<vmem>>, vector<1x16x16xbf16>
    %313 = vector.shape_cast %312 : vector<1x16x16xbf16> to vector<16x16xbf16>
    %cst_251 = arith.constant dense<0.000000e+00> : vector<16x32xf32>
    %314 = tpu.matmul %313, %311, %cst_251 {dimension_numbers = #tpu.dot_dimension_numbers<[1], [0], [0], [1], [0, 0, 1, 1], [], []>} : vector<16x16xbf16>, vector<16x32xbf16>, vector<16x32xf32> -> vector<16x32xf32>
    %315 = arith.addf %307, %314 : vector<16x32xf32>
    %c0_252 = arith.constant 0 : index
    %c0_253 = arith.constant 0 : index
    %316 = vector.load %arg14[%c0_252, %c0_253] : memref<16x1xf32, #tpu.memory_space<vmem>>, vector<16x1xf32>
    %317 = vector.broadcast %316 : vector<16x1xf32> to vector<16x32xf32>
    %318 = arith.addf %315, %317 : vector<16x32xf32>
    %319 = math.absf %318 : vector<16x32xf32>
    %cst_254 = arith.constant 0.000000e+00 : f32
    %320 = vector.broadcast %cst_254 : f32 to vector<16x32xf32>
    %321 = arith.subf %320, %319 : vector<16x32xf32>
    %322 = math.exp %321 : vector<16x32xf32>
    %cst_255 = arith.constant 1.000000e+00 : f32
    %323 = vector.broadcast %cst_255 : f32 to vector<16x32xf32>
    %324 = arith.addf %323, %322 : vector<16x32xf32>
    %cst_256 = arith.constant 1.000000e+00 : f32
    %325 = vector.broadcast %cst_256 : f32 to vector<16x32xf32>
    %326 = arith.addf %325, %322 : vector<16x32xf32>
    %327 = arith.mulf %324, %326 : vector<16x32xf32>
    %cst_257 = arith.constant 0.000000e+00 : f32
    %328 = vector.broadcast %cst_257 : f32 to vector<16x32xf32>
    %329 = arith.cmpf oge, %318, %328 : vector<16x32xf32>
    %330 = arith.mulf %322, %322 : vector<16x32xf32>
    %cst_258 = arith.constant 1.000000e+00 : f32
    %331 = vector.broadcast %cst_258 : f32 to vector<16x32xf32>
    %332 = arith.select %329, %330, %331 : vector<16x32xi1>, vector<16x32xf32>
    %333 = arith.subf %327, %332 : vector<16x32xf32>
    %334 = arith.mulf %318, %333 : vector<16x32xf32>
    %335 = arith.addf %327, %332 : vector<16x32xf32>
    %336 = tpu.reciprocal %335 {approx = true} : vector<16x32xf32> -> vector<16x32xf32>
    %337 = arith.mulf %334, %336 : vector<16x32xf32>
    %c0_259 = arith.constant 0 : index
    %c0_260 = arith.constant 0 : index
    %338 = vector.load %arg16[%c0_259, %c0_260] : memref<32x16xbf16, #tpu.memory_space<vmem>>, vector<32x16xbf16>
    %339 = arith.truncf %126 : vector<16x32xf32> to vector<16x32xbf16>
    %cst_261 = arith.constant dense<0.000000e+00> : vector<32x32xf32>
    %340 = tpu.matmul %338, %339, %cst_261 {dimension_numbers = #tpu.dot_dimension_numbers<[1], [0], [0], [1], [0, 0, 1, 1], [], []>} : vector<32x16xbf16>, vector<16x32xbf16>, vector<32x32xf32> -> vector<32x32xf32>
    %c0_262 = arith.constant 0 : index
    %c0_263 = arith.constant 0 : index
    %341 = vector.load %arg17[%c0_262, %c0_263] : memref<32x16xbf16, #tpu.memory_space<vmem>>, vector<32x16xbf16>
    %342 = arith.truncf %153 : vector<16x32xf32> to vector<16x32xbf16>
    %cst_264 = arith.constant dense<0.000000e+00> : vector<32x32xf32>
    %343 = tpu.matmul %341, %342, %cst_264 {dimension_numbers = #tpu.dot_dimension_numbers<[1], [0], [0], [1], [0, 0, 1, 1], [], []>} : vector<32x16xbf16>, vector<16x32xbf16>, vector<32x32xf32> -> vector<32x32xf32>
    %344 = arith.addf %340, %343 : vector<32x32xf32>
    %c0_265 = arith.constant 0 : index
    %c0_266 = arith.constant 0 : index
    %345 = vector.load %arg18[%c0_265, %c0_266] : memref<32x16xbf16, #tpu.memory_space<vmem>>, vector<32x16xbf16>
    %346 = arith.truncf %337 : vector<16x32xf32> to vector<16x32xbf16>
    %cst_267 = arith.constant dense<0.000000e+00> : vector<32x32xf32>
    %347 = tpu.matmul %345, %346, %cst_267 {dimension_numbers = #tpu.dot_dimension_numbers<[1], [0], [0], [1], [0, 0, 1, 1], [], []>} : vector<32x16xbf16>, vector<16x32xbf16>, vector<32x32xf32> -> vector<32x32xf32>
    %348 = arith.addf %344, %347 : vector<32x32xf32>
    %c0_268 = arith.constant 0 : index
    %c0_269 = arith.constant 0 : index
    %349 = vector.load %arg19[%c0_268, %c0_269] : memref<32x1xf32, #tpu.memory_space<vmem>>, vector<32x1xf32>
    %350 = vector.broadcast %349 : vector<32x1xf32> to vector<32x32xf32>
    %351 = arith.addf %348, %350 : vector<32x32xf32>
    %352 = math.absf %351 : vector<32x32xf32>
    %cst_270 = arith.constant 0.000000e+00 : f32
    %353 = vector.broadcast %cst_270 : f32 to vector<32x32xf32>
    %354 = arith.subf %353, %352 : vector<32x32xf32>
    %355 = math.exp %354 : vector<32x32xf32>
    %cst_271 = arith.constant 1.000000e+00 : f32
    %356 = vector.broadcast %cst_271 : f32 to vector<32x32xf32>
    %357 = arith.addf %356, %355 : vector<32x32xf32>
    %cst_272 = arith.constant 1.000000e+00 : f32
    %358 = vector.broadcast %cst_272 : f32 to vector<32x32xf32>
    %359 = arith.addf %358, %355 : vector<32x32xf32>
    %360 = arith.mulf %357, %359 : vector<32x32xf32>
    %cst_273 = arith.constant 0.000000e+00 : f32
    %361 = vector.broadcast %cst_273 : f32 to vector<32x32xf32>
    %362 = arith.cmpf oge, %351, %361 : vector<32x32xf32>
    %363 = arith.mulf %355, %355 : vector<32x32xf32>
    %cst_274 = arith.constant 1.000000e+00 : f32
    %364 = vector.broadcast %cst_274 : f32 to vector<32x32xf32>
    %365 = arith.select %362, %363, %364 : vector<32x32xi1>, vector<32x32xf32>
    %366 = arith.subf %360, %365 : vector<32x32xf32>
    %367 = arith.mulf %351, %366 : vector<32x32xf32>
    %368 = arith.addf %360, %365 : vector<32x32xf32>
    %369 = tpu.reciprocal %368 {approx = true} : vector<32x32xf32> -> vector<32x32xf32>
    %370 = arith.mulf %367, %369 : vector<32x32xf32>
    %c0_275 = arith.constant 0 : index
    %c0_276 = arith.constant 0 : index
    %371 = vector.load %arg20[%c0_275, %c0_276] : memref<32x32xf32, #tpu.memory_space<vmem>>, vector<32x32xf32>
    tpu.vector_store %arg20[%c0_275, %c0_276], %370 {strides = array<i32>} : memref<32x32xf32, #tpu.memory_space<vmem>>, vector<32x32xf32>,
    return
  }
}

</mosaic_0001>

<llo_original>
// kernel: _lambda_.4
$region0: #{_lambda_.4}
  #allocation0 [shape = 'u32[]', space=smem, size = 0x4, offset = 0x4, fixed_abs, tag = 'smem constant byte address 0x4 - core index']
  #allocation1 [shape = 'u32[72,128]{1,0:T(1,128)}', space=vmem, size = 0x9000, scoped, tag = 'internal scratch']
  #allocation2 [shape = 'bf16[8,146]{1,0:T(8,128)(2,1)}', space=vmem, size = 0x1000, scoped, tag = 'scratch operand']
  %s0 = inlined_call_operand.vmem [shape: bf16[32,32], index: 0, kind: input, shape index: {}]
  %s1 = inlined_call_operand.vmem [shape: bf16[16,128], index: 1, kind: input, shape index: {}]
  %s2 = inlined_call_operand.vmem [shape: bf16[32,128], index: 2, kind: input, shape index: {}]
  %s3 = inlined_call_operand.hbm [shape: bf16[8,32], index: 3, kind: input, shape index: {}]
  %s4 = inlined_call_operand.hbm [shape: bf16[8,32], index: 4, kind: input, shape index: {}]
  %s5 = inlined_call_operand.vmem [shape: bf16[8,16], index: 5, kind: input, shape index: {}]
  %s6 = inlined_call_operand.vmem [shape: bf16[8,16], index: 6, kind: input, shape index: {}]
  %s7 = inlined_call_operand.hbm [shape: f32[8,1], index: 7, kind: input, shape index: {}]
  %s8 = inlined_call_operand.hbm [shape: f32[8,1], index: 8, kind: input, shape index: {}]
  %s9 = inlined_call_operand.vmem [shape: bf16[9,8,8], index: 9, kind: input, shape index: {}]
  %s10 = inlined_call_operand.hbm [shape: f32[8,1], index: 10, kind: input, shape index: {}]
  %s11 = inlined_call_operand.vmem [shape: bf16[9,8,8], index: 11, kind: input, shape index: {}]
  %s12 = inlined_call_operand.hbm [shape: f32[8,1], index: 12, kind: input, shape index: {}]
  %s13 = inlined_call_operand.vmem [shape: bf16[9,128], index: 13, kind: input, shape index: {}]
  %s14 = inlined_call_operand.vmem [shape: bf16[16,8], index: 14, kind: input, shape index: {}]
  %s15 = inlined_call_operand.vmem [shape: bf16[16,8], index: 15, kind: input, shape index: {}]
  %s16 = inlined_call_operand.vmem [shape: bf16[16,8], index: 16, kind: input, shape index: {}]
  %s17 = inlined_call_operand.vmem [shape: f32[16,1], index: 17, kind: input, shape index: {}]
  %s18 = inlined_call_operand.vmem [shape: bf16[16,128], index: 18, kind: output, shape index: {}]
  %s19 = sld [smem:[#allocation0]]
  $region106: #{_lambda_.4} parent=0
    _
  %s21 = ssub.s32 1, %s19
  %s22 = scalar_select 0, %s21, %s19
  $region1: #{_lambda_.4} parent=0
    #allocation3 [shape = 'u8[2048]{0}', space=vmem, size = 0x800, scoped, tag = 'input window, operand 3, single buffered']
    #allocation4 [shape = 's32[1]{0}', space=sflag, size = 0x4, scoped, tag = 'scoped memory for _lambda_.4']
    #allocation5 [shape = 'u8[2048]{0}', space=vmem, size = 0x800, scoped, tag = 'input window, operand 4, single buffered']
    #allocation6 [shape = 's32[1]{0}', space=sflag, size = 0x4, scoped, tag = 'scoped memory for _lambda_.4']
    #allocation7 [shape = 'u8[4096]{0}', space=vmem, size = 0x1000, scoped, tag = 'input window, operand 7, single buffered']
    #allocation8 [shape = 'u8[4096]{0}', space=vmem, size = 0x1000, scoped, tag = 'input window, operand 8, single buffered']
    #allocation9 [shape = 's32[1]{0}', space=sflag, size = 0x4, scoped, tag = 'scoped memory for _lambda_.4']
    #allocation10 [shape = 'u8[4096]{0}', space=vmem, size = 0x1000, scoped, tag = 'input window, operand 10, single buffered']
    #allocation11 [shape = 'u8[4096]{0}', space=vmem, size = 0x1000, scoped, tag = 'input window, operand 12, single buffered']
    #allocation12 [shape = 's32[1]{0}', space=sflag, size = 0x4, scoped, tag = 'scoped memory for _lambda_.4']
    %23 = vsyncpa [#allocation4], 0
    %24 = vsyncpa [#allocation6], 0
    %25 = vsyncpa [#allocation9], 0
    %26 = vsyncpa [#allocation12], 0
    // Predicated region
    $region2: #{_lambda_.4} parent=1 // pred_check
      _
    $region3: #{_lambda_.4} parent=1 // pred_check_branch
      %28 = sbr.rel (0) target = $region5
    $region4: #{_lambda_.4} parent=1 // pred_region
      _
    $region5: #{_lambda_.4} parent=1 // pred_fallthru
      _
    // Predicated region
    $region6: #{_lambda_.4} parent=1 // pred_check
      _
    $region7: #{_lambda_.4} parent=1 // pred_check_branch
      %30 = sbr.rel (0) target = $region9
    $region8: #{_lambda_.4} parent=1 // pred_region
      _
    $region9: #{_lambda_.4} parent=1 // pred_fallthru
      _
    // Predicated region
    $region10: #{_lambda_.4} parent=1 // pred_check
      _
    $region11: #{_lambda_.4} parent=1 // pred_check_branch
      %32 = sbr.rel (0) target = $region13
    $region12: #{_lambda_.4} parent=1 // pred_region
      _
    $region13: #{_lambda_.4} parent=1 // pred_fallthru
      _
    // Predicated region
    $region14: #{_lambda_.4} parent=1 // pred_check
      _
    $region15: #{_lambda_.4} parent=1 // pred_check_branch
      %34 = sbr.rel (0) target = $region17
    $region16: #{_lambda_.4} parent=1 // pred_region
      %36 = vsyncadd [#allocation4], 0
      %s38 = sshll.u32 %s3, 4
      %s39 = int_to_ptr.hbm [resolvable:$true] %s38
      %s40 = sshll.u32 [#allocation3], 4
      %s41 = int_to_ptr.vmem [resolvable:$true] %s40
      %43 = dma.hbm_to_vmem [thread:$0]  %s39, 64, %s41, [#allocation4]
    $region17: #{_lambda_.4} parent=1 // pred_fallthru
      _
    // Predicated region
    $region18: #{_lambda_.4} parent=1 // pred_check
      _
    $region19: #{_lambda_.4} parent=1 // pred_check_branch
      %45 = sbr.rel (0) target = $region21
    $region20: #{_lambda_.4} parent=1 // pred_region
      %47 = vsyncadd [#allocation6], 0
      %s49 = sshll.u32 %s4, 4
      %s50 = int_to_ptr.hbm [resolvable:$true] %s49
      %s51 = sshll.u32 [#allocation5], 4
      %s52 = int_to_ptr.vmem [resolvable:$true] %s51
      %54 = dma.hbm_to_vmem [thread:$0]  %s50, 64, %s52, [#allocation6]
    $region21: #{_lambda_.4} parent=1 // pred_fallthru
      _
    // Predicated region
    $region22: #{_lambda_.4} parent=1 // pred_check
      _
    $region23: #{_lambda_.4} parent=1 // pred_check_branch
      %56 = sbr.rel (0) target = $region25
    $region24: #{_lambda_.4} parent=1 // pred_region
      _
    $region25: #{_lambda_.4} parent=1 // pred_fallthru
      _
    // Predicated region
    $region26: #{_lambda_.4} parent=1 // pred_check
      _
    $region27: #{_lambda_.4} parent=1 // pred_check_branch
      %58 = sbr.rel (0) target = $region29
    $region28: #{_lambda_.4} parent=1 // pred_region
      _
    $region29: #{_lambda_.4} parent=1 // pred_fallthru
      _
    // Predicated region
    $region30: #{_lambda_.4} parent=1 // pred_check
      _
    $region31: #{_lambda_.4} parent=1 // pred_check_branch
      %60 = sbr.rel (0) target = $region33
    $region32: #{_lambda_.4} parent=1 // pred_region
      %62 = vsyncadd [#allocation6], 0
      %s64 = sshll.u32 %s7, 4
      %s65 = int_to_ptr.hbm [resolvable:$true] %s64
      %s66 = sshll.u32 [#allocation7], 4
      %s67 = int_to_ptr.vmem [resolvable:$true] %s66
      %69 = dma.hbm_to_vmem [thread:$0]  %s65, 128, %s67, [#allocation6]
    $region33: #{_lambda_.4} parent=1 // pred_fallthru
      _
    // Predicated region
    $region34: #{_lambda_.4} parent=1 // pred_check
      _
    $region35: #{_lambda_.4} parent=1 // pred_check_branch
      %71 = sbr.rel (0) target = $region37
    $region36: #{_lambda_.4} parent=1 // pred_region
      %73 = vsyncadd [#allocation9], 0
      %s75 = sshll.u32 %s8, 4
      %s76 = int_to_ptr.hbm [resolvable:$true] %s75
      %s77 = sshll.u32 [#allocation8], 4
      %s78 = int_to_ptr.vmem [resolvable:$true] %s77
      %80 = dma.hbm_to_vmem [thread:$0]  %s76, 128, %s78, [#allocation9]
    $region37: #{_lambda_.4} parent=1 // pred_fallthru
      _
    // Predicated region
    $region38: #{_lambda_.4} parent=1 // pred_check
      _
    $region39: #{_lambda_.4} parent=1 // pred_check_branch
      %82 = sbr.rel (0) target = $region41
    $region40: #{_lambda_.4} parent=1 // pred_region
      _
    $region41: #{_lambda_.4} parent=1 // pred_fallthru
      _
    // Predicated region
    $region42: #{_lambda_.4} parent=1 // pred_check
      _
    $region43: #{_lambda_.4} parent=1 // pred_check_branch
      %84 = sbr.rel (0) target = $region45
    $region44: #{_lambda_.4} parent=1 // pred_region
      %86 = vsyncadd [#allocation9], 0
      %s88 = sshll.u32 %s10, 4
      %s89 = int_to_ptr.hbm [resolvable:$true] %s88
      %s90 = sshll.u32 [#allocation10], 4
      %s91 = int_to_ptr.vmem [resolvable:$true] %s90
      %93 = dma.hbm_to_vmem [thread:$0]  %s89, 128, %s91, [#allocation9]
    $region45: #{_lambda_.4} parent=1 // pred_fallthru
      _
    // Predicated region
    $region46: #{_lambda_.4} parent=1 // pred_check
      _
    $region47: #{_lambda_.4} parent=1 // pred_check_branch
      %95 = sbr.rel (0) target = $region49
    $region48: #{_lambda_.4} parent=1 // pred_region
      _
    $region49: #{_lambda_.4} parent=1 // pred_fallthru
      _
    // Predicated region
    $region50: #{_lambda_.4} parent=1 // pred_check
      _
    $region51: #{_lambda_.4} parent=1 // pred_check_branch
      %97 = sbr.rel (0) target = $region53
    $region52: #{_lambda_.4} parent=1 // pred_region
      %99 = vsyncadd [#allocation12], 0
      %s101 = sshll.u32 %s12, 4
      %s102 = int_to_ptr.hbm [resolvable:$true] %s101
      %s103 = sshll.u32 [#allocation11], 4
      %s104 = int_to_ptr.vmem [resolvable:$true] %s103
      %106 = dma.hbm_to_vmem [thread:$0]  %s102, 128, %s104, [#allocation12]
    $region53: #{_lambda_.4} parent=1 // pred_fallthru
      _
    // Predicated region
    $region54: #{_lambda_.4} parent=1 // pred_check
      _
    $region55: #{_lambda_.4} parent=1 // pred_check_branch
      %108 = sbr.rel (0) target = $region57
    $region56: #{_lambda_.4} parent=1 // pred_region
      _
    $region57: #{_lambda_.4} parent=1 // pred_fallthru
      _
    // Predicated region
    $region58: #{_lambda_.4} parent=1 // pred_check
      _
    $region59: #{_lambda_.4} parent=1 // pred_check_branch
      %110 = sbr.rel (0) target = $region61
    $region60: #{_lambda_.4} parent=1 // pred_region
      _
    $region61: #{_lambda_.4} parent=1 // pred_fallthru
      _
    // Predicated region
    $region62: #{_lambda_.4} parent=1 // pred_check
      _
    $region63: #{_lambda_.4} parent=1 // pred_check_branch
      %112 = sbr.rel (0) target = $region65
    $region64: #{_lambda_.4} parent=1 // pred_region
      _
    $region65: #{_lambda_.4} parent=1 // pred_fallthru
      _
    // Predicated region
    $region66: #{_lambda_.4} parent=1 // pred_check
      _
    $region67: #{_lambda_.4} parent=1 // pred_check_branch
      %114 = sbr.rel (0) target = $region69
    $region68: #{_lambda_.4} parent=1 // pred_region
      _
    $region69: #{_lambda_.4} parent=1 // pred_fallthru
      _
    // Predicated region
    $region70: #{_lambda_.4} parent=1 // pred_check
      _
    $region71: #{_lambda_.4} parent=1 // pred_check_branch
      %116 = sbr.rel (0) target = $region73
    $region72: #{_lambda_.4} parent=1 // pred_region
      _
    $region73: #{_lambda_.4} parent=1 // pred_fallthru
      _
    // Predicated region
    $region74: #{_lambda_.4} parent=1 // pred_check
      _
    $region75: #{_lambda_.4} parent=1 // pred_check_branch
      %118 = sbr.rel (0) target = $region77
    $region76: #{_lambda_.4} parent=1 // pred_region
      %120 = dma.done [#allocation4], 64
    $region77: #{_lambda_.4} parent=1 // pred_fallthru
      _
    // Predicated region
    $region78: #{_lambda_.4} parent=1 // pred_check
      _
    $region79: #{_lambda_.4} parent=1 // pred_check_branch
      %122 = sbr.rel (0) target = $region81
    $region80: #{_lambda_.4} parent=1 // pred_region
      %124 = dma.done [#allocation6], 64
    $region81: #{_lambda_.4} parent=1 // pred_fallthru
      _
    // Predicated region
    $region82: #{_lambda_.4} parent=1 // pred_check
      _
    $region83: #{_lambda_.4} parent=1 // pred_check_branch
      %126 = sbr.rel (0) target = $region85
    $region84: #{_lambda_.4} parent=1 // pred_region
      %128 = dma.done [#allocation6], 128
    $region85: #{_lambda_.4} parent=1 // pred_fallthru
      _
    // Predicated region
    $region86: #{_lambda_.4} parent=1 // pred_check
      _
    $region87: #{_lambda_.4} parent=1 // pred_check_branch
      %130 = sbr.rel (0) target = $region89
    $region88: #{_lambda_.4} parent=1 // pred_region
      %132 = dma.done [#allocation9], 128
    $region89: #{_lambda_.4} parent=1 // pred_fallthru
      _
    // Predicated region
    $region90: #{_lambda_.4} parent=1 // pred_check
      _
    $region91: #{_lambda_.4} parent=1 // pred_check_branch
      %134 = sbr.rel (0) target = $region93
    $region92: #{_lambda_.4} parent=1 // pred_region
      %136 = dma.done [#allocation9], 128
    $region93: #{_lambda_.4} parent=1 // pred_fallthru
      _
    // Predicated region
    $region94: #{_lambda_.4} parent=1 // pred_check
      _
    $region95: #{_lambda_.4} parent=1 // pred_check_branch
      %138 = sbr.rel (0) target = $region97
    $region96: #{_lambda_.4} parent=1 // pred_region
      %140 = dma.done [#allocation12], 128
    $region97: #{_lambda_.4} parent=1 // pred_fallthru
      _
    %vm142 = vcmask 1043456
    %vm143 = vcmask 146436
    %vm144 = vmor %vm143, %vm142
    %145 = vst.msk [vmem:[#allocation2] sm:$0xff] %vm144, 0
    %v146 = vld [vmem:[%s1] sm:$0xf]
    %v147 = vld [vmem:[%s1 + $0x4] sm:$0xf]
    %v148 = vld [vmem:[%s0] sm:$0xf]
    %v149 = vld [vmem:[%s0 + $0x4] sm:$0xf]
    %v150 = vld [vmem:[%s0 + $0x8] sm:$0xf]
    %v151 = vld [vmem:[%s0 + $0xc] sm:$0xf]
    %v152 = vld [vmem:[%s2] sm:$0xf]
    %v153 = vld [vmem:[%s2 + $0x4] sm:$0xf]
    %v154 = vld [vmem:[%s2 + $0x8] sm:$0xf]
    %v155 = vld [vmem:[%s2 + $0xc] sm:$0xf]
    %v156 = vld [vmem:[#allocation3] sm:$0xf]
    %v157 = vld [vmem:[%s5] sm:$0xf]
    %v158 = vld [vmem:[#allocation7] sm:$0xff]
    %v163 = vunpack.c.l.b16 %v148
    %v164 = vunpack.c.l.b16 %v149
    %v165 = vunpack.c.l.b16 %v150
    %v166 = vunpack.c.l.b16 %v151
    %v167 = vpack.c.b16 %v164, %v163
    %v168 = vpack.c.b16 %v166, %v165
    %vm171 = vcmask 261120
    %v173 = vsel %vm171, %v156, 0
    %175 = vmatpush.bf16.msra.mxu0 0
    %176 = vmatpush.bf16.msra.mxu0 0
    %177 = vmatpush.bf16.msra.mxu0 0
    %178 = vmatpush.bf16.msra.mxu0 0
    %179 = vmatpush.bf16.msra.mxu0 0
    %180 = vmatpush.bf16.msra.mxu0 0
    %181 = vmatpush.bf16.msra.mxu0 %v168
    %182 = vmatpush.bf16.msra.mxu0 %v167
    %183 = vmatmul.bf16.gmra.mxu0 %v173
    %v184 = vpop.f32.mrf.mxu0
    %v185 = vadd.f32 0.0, %v184
    %v186 = vpop.f32.mrf.mxu0
    %187 = vdwg.mxu0
    %v188 = vpack.c.bf16 %v185, %v185
    %v191 = vunpack.c.l.b16 %v146
    %v192 = vunpack.c.l.b16 %v147
    %v193 = vpack.c.b16 %v192, %v191
    %vm195 = vcmask 130048
    %v197 = vsel %vm195, %v157, 0
    %199 = vmatpush.bf16.msra.mxu0 0
    %200 = vmatpush.bf16.msra.mxu0 0
    %201 = vmatpush.bf16.msra.mxu0 0
    %202 = vmatpush.bf16.msra.mxu0 0
    %203 = vmatpush.bf16.msra.mxu0 0
    %204 = vmatpush.bf16.msra.mxu0 0
    %205 = vmatpush.bf16.msra.mxu0 0
    %206 = vmatpush.bf16.msra.mxu0 %v193
    %207 = vmatmul.bf16.gmra.mxu0 %v197
    %v208 = vpop.f32.mrf.mxu0
    %v209 = vadd.f32 0.0, %v208
    %v210 = vpop.f32.mrf.mxu0
    %211 = vdwg.mxu0
    %v216 = vunpack.c.l.b16 %v152
    %v217 = vunpack.c.l.b16 %v153
    %v218 = vunpack.c.l.b16 %v154
    %v219 = vunpack.c.l.b16 %v155
    %v220 = vpack.c.b16 %v217, %v216
    %v221 = vpack.c.b16 %v219, %v218
    %v225 = vsel %vm171, %v188, 0
    %227 = vmatpush.bf16.msra.mxu0 0
    %228 = vmatpush.bf16.msra.mxu0 0
    %229 = vmatpush.bf16.msra.mxu0 0
    %230 = vmatpush.bf16.msra.mxu0 0
    %231 = vmatpush.bf16.msra.mxu0 0
    %232 = vmatpush.bf16.msra.mxu0 0
    %233 = vmatpush.bf16.msra.mxu0 %v221
    %234 = vmatpush.bf16.msra.mxu0 %v220
    %235 = vmatmul.bf16.gmra.mxu0 %v225
    %v236 = vpop.f32.mrf.mxu0
    %v237 = vadd.f32 %v209, %v236
    %v238 = vpop.f32.mrf.mxu0
    %239 = vdwg.mxu0
    %241 = vset.pattern.permute.xlu0 0
    %242 = vperm.xlu0 %241, %v158
    %v243 = vpop.permute.xlu0 %242
    %v245 = vadd.f32 %v237, %v243
    %v246 = vand.u32 2147483647, %v245
    %v247 = vsub.f32 0.0, %v246
    %v248 = vmul.f32 %v247, 1.442695
    %v249 = vpow.pop %v248
    %v250 = vadd.f32 %v249, 1.0
    %v251 = vmul.f32 %v250, %v250
    %vm252 = vcmp.ge.f32.partialorder %v245, 0.0
    %v253 = vmul.f32 %v249, %v249
    %v254 = vsel %vm252, %v253, 1.0
    %v255 = vsub.f32 %v251, %v254
    %v256 = vmul.f32 %v245, %v255
    %v257 = vadd.f32 %v251, %v254
    %v258 = vrcp.pop %v257
    %v259 = vmul.f32 %v256, %v258
    %v260 = vld [vmem:[#allocation5] sm:$0xf]
    %v261 = vld [vmem:[%s6] sm:$0xf]
    %v262 = vld [vmem:[#allocation8] sm:$0xff]
    %v264 = vsel %vm171, %v260, 0
    %266 = vmatpush.bf16.msra.mxu0 0
    %267 = vmatpush.bf16.msra.mxu0 0
    %268 = vmatpush.bf16.msra.mxu0 0
    %269 = vmatpush.bf16.msra.mxu0 0
    %270 = vmatpush.bf16.msra.mxu0 0
    %271 = vmatpush.bf16.msra.mxu0 0
    %272 = vmatpush.bf16.msra.mxu0 %v168
    %273 = vmatpush.bf16.msra.mxu0 %v167
    %274 = vmatmul.bf16.gmra.mxu0 %v264
    %v275 = vpop.f32.mrf.mxu0
    %v276 = vadd.f32 0.0, %v275
    %v277 = vpop.f32.mrf.mxu0
    %278 = vdwg.mxu0
    %v279 = vpack.c.bf16 %v276, %v276
    %v281 = vsel %vm195, %v261, 0
    %283 = vmatpush.bf16.msra.mxu0 0
    %284 = vmatpush.bf16.msra.mxu0 0
    %285 = vmatpush.bf16.msra.mxu0 0
    %286 = vmatpush.bf16.msra.mxu0 0
    %287 = vmatpush.bf16.msra.mxu0 0
    %288 = vmatpush.bf16.msra.mxu0 0
    %289 = vmatpush.bf16.msra.mxu0 0
    %290 = vmatpush.bf16.msra.mxu0 %v193
    %291 = vmatmul.bf16.gmra.mxu0 %v281
    %v292 = vpop.f32.mrf.mxu0
    %v293 = vadd.f32 0.0, %v292
    %v294 = vpop.f32.mrf.mxu0
    %295 = vdwg.mxu0
    %v297 = vsel %vm171, %v279, 0
    %299 = vmatpush.bf16.msra.mxu0 0
    %300 = vmatpush.bf16.msra.mxu0 0
    %301 = vmatpush.bf16.msra.mxu0 0
    %302 = vmatpush.bf16.msra.mxu0 0
    %303 = vmatpush.bf16.msra.mxu0 0
    %304 = vmatpush.bf16.msra.mxu0 0
    %305 = vmatpush.bf16.msra.mxu0 %v221
    %306 = vmatpush.bf16.msra.mxu0 %v220
    %307 = vmatmul.bf16.gmra.mxu0 %v297
    %v308 = vpop.f32.mrf.mxu0
    %v309 = vadd.f32 %v293, %v308
    %v310 = vpop.f32.mrf.mxu0
    %311 = vdwg.mxu0
    %313 = vset.pattern.permute.xlu0 0
    %314 = vperm.xlu0 %313, %v262
    %v315 = vpop.permute.xlu0 %314
    %v317 = vadd.f32 %v309, %v315
    %v318 = vand.u32 2147483647, %v317
    %v319 = vsub.f32 0.0, %v318
    %v320 = vmul.f32 %v319, 1.442695
    %v321 = vpow.pop %v320
    %v322 = vadd.f32 %v321, 1.0
    %v323 = vmul.f32 %v322, %v322
    %vm324 = vcmp.ge.f32.partialorder %v317, 0.0
    %v325 = vmul.f32 %v321, %v321
    %v326 = vsel %vm324, %v325, 1.0
    %v327 = vsub.f32 %v323, %v326
    %v328 = vmul.f32 %v317, %v327
    %v329 = vadd.f32 %v323, %v326
    %v330 = vrcp.pop %v329
    %v331 = vmul.f32 %v328, %v330
    %v332 = vpack.c.bf16 %v331, %v331
    %334 = vrot.lane.b32.xlu0 %v332, 9
    %v335 = vpop.permute.xlu0 %334
    %v336 = vrot.slane %v335, 4
    %vm337 = vcmask 72704
    %v338 = vsel %vm337, %v336, %v335
    %vm340 = vcmask 1043528
    %vm341 = vcmask 72708
    %vm342 = vmor %vm341, %vm340
    %343 = vst.msk [vmem:[#allocation2] sm:$0xff] %vm342, %v338
    %v344 = vld [vmem:[#allocation2] sm:$0xf]
    %v345 = vld [vmem:[%s13] sm:$0x1]
    %v347 = vpack.i.b16 %v345, %v345
    %v349 = vperm.slane %v347, 0
    %v350 = vunpack.c.l.bf16 %v344
    %v351 = vunpack.c.l.bf16 %v349
    %v352 = vmul.f32 %v350, %v351
    %v353 = vpack.c.bf16 %v352, %v352
    %v354 = vld [vmem:[%s9] sm:$0xf]
    %v355 = vld [vmem:[#allocation2] sm:$0xff]
    %v356 = vshrl.u32 %v345, 16
    %v357 = vpack.i.b16 %v356, %v356
    %v359 = vperm.slane %v357, 0
    %v360 = vunpack.c.l.bf16 %v355
    %v361 = vunpack.c.h.bf16 %v355
    %v362 = vunpack.c.l.bf16 %v359
    %364 = vrot.lane.b32.xlu0 %v362, 1
    %v365 = vpop.permute.xlu0 %364
    %v367 = vmul.f32 %v360, %v365
    %v368 = vmul.f32 %v361, %v365
    %v369 = vpack.c.bf16 %v367, %v367
    %v370 = vpack.c.bf16 %v368, %v368
    %s371 = scalar_lea.vmem %s9, 4
    %v372 = vld [vmem:[%s371] sm:$0xf]
    %375 = vrot.lane.b32.xlu0 %v369, 127
    %v376 = vpop.permute.xlu0 %375
    %377 = vrot.lane.b32.xlu0 %v370, 127
    %v378 = vpop.permute.xlu0 %377
    %vm379 = vcmask 1039360
    %v380 = vsel %vm379, %v376, %v378
    %vm381 = vcmask 64512
    %v383 = vsel %vm381, %v372, 0
    %v386 = vsel %vm142, %v380, 0
    %388 = vmatpush.bf16.msra.mxu0 0
    %389 = vmatpush.bf16.msra.mxu0 0
    %390 = vmatpush.bf16.msra.mxu0 0
    %391 = vmatpush.bf16.msra.mxu0 0
    %392 = vmatpush.bf16.msra.mxu0 0
    %393 = vmatpush.bf16.msra.mxu0 0
    %394 = vmatpush.bf16.msra.mxu0 0
    %395 = vmatpush.bf16.msra.mxu0 %v386
    %396 = vmatmul.bf16.gmra.mxu0 %v383
    %v397 = vpop.f32.mrf.mxu0
    %v398 = vadd.f32 0.0, %v397
    %v399 = vpop.f32.mrf.mxu0
    %400 = vdwg.mxu0
    %v402 = vsel %vm381, %v354, 0
    %v405 = vsel %vm142, %v353, 0
    %407 = vmatpush.bf16.msra.mxu0 0
    %408 = vmatpush.bf16.msra.mxu0 0
    %409 = vmatpush.bf16.msra.mxu0 0
    %410 = vmatpush.bf16.msra.mxu0 0
    %411 = vmatpush.bf16.msra.mxu0 0
    %412 = vmatpush.bf16.msra.mxu0 0
    %413 = vmatpush.bf16.msra.mxu0 0
    %414 = vmatpush.bf16.msra.mxu0 %v405
    %415 = vmatmul.bf16.gmra.mxu0 %v402
    %v416 = vpop.f32.mrf.mxu0
    %v417 = vadd.f32 %v398, %v416
    %v418 = vpop.f32.mrf.mxu0
    %419 = vdwg.mxu0
    %v420 = vld [vmem:[%s13] sm:$0x2]
    %v422 = vpack.i.b16 %v420, %v420
    %v424 = vperm.slane %v422, 1
    %v425 = vunpack.c.l.bf16 %v424
    %427 = vrot.lane.b32.xlu0 %v425, 2
    %v428 = vpop.permute.xlu0 %427
    %v430 = vmul.f32 %v360, %v428
    %v431 = vmul.f32 %v361, %v428
    %v432 = vpack.c.bf16 %v430, %v430
    %v433 = vpack.c.bf16 %v431, %v431
    %s434 = scalar_lea.vmem %s9, 8
    %v435 = vld [vmem:[%s434] sm:$0xf]
    %438 = vrot.lane.b32.xlu0 %v432, 126
    %v439 = vpop.permute.xlu0 %438
    %440 = vrot.lane.b32.xlu0 %v433, 126
    %v441 = vpop.permute.xlu0 %440
    %vm442 = vcmask 1031168
    %v443 = vsel %vm442, %v439, %v441
    %v445 = vsel %vm381, %v435, 0
    %v448 = vsel %vm142, %v443, 0
    %450 = vmatpush.bf16.msra.mxu0 0
    %451 = vmatpush.bf16.msra.mxu0 0
    %452 = vmatpush.bf16.msra.mxu0 0
    %453 = vmatpush.bf16.msra.mxu0 0
    %454 = vmatpush.bf16.msra.mxu0 0
    %455 = vmatpush.bf16.msra.mxu0 0
    %456 = vmatpush.bf16.msra.mxu0 0
    %457 = vmatpush.bf16.msra.mxu0 %v448
    %458 = vmatmul.bf16.gmra.mxu0 %v445
    %v459 = vpop.f32.mrf.mxu0
    %v460 = vadd.f32 0.0, %v459
    %v461 = vpop.f32.mrf.mxu0
    %462 = vdwg.mxu0
    %v463 = vadd.f32 %v417, %v460
    %v464 = vshrl.u32 %v420, 16
    %v465 = vpack.i.b16 %v464, %v464
    %v467 = vperm.slane %v465, 1
    %v468 = vunpack.c.l.bf16 %v467
    %470 = vrot.lane.b32.xlu0 %v468, 8
    %v471 = vpop.permute.xlu0 %470
    %v473 = vmul.f32 %v360, %v471
    %v474 = vmul.f32 %v361, %v471
    %v475 = vpack.c.bf16 %v473, %v473
    %v476 = vpack.c.bf16 %v474, %v474
    %s477 = scalar_lea.vmem %s9, 12
    %v478 = vld [vmem:[%s477] sm:$0xf]
    %481 = vrot.lane.b32.xlu0 %v475, 120
    %v482 = vpop.permute.xlu0 %481
    %483 = vrot.lane.b32.xlu0 %v476, 120
    %v484 = vpop.permute.xlu0 %483
    %vm485 = vcmask 982016
    %v486 = vsel %vm485, %v482, %v484
    %v488 = vsel %vm381, %v478, 0
    %v491 = vsel %vm142, %v486, 0
    %493 = vmatpush.bf16.msra.mxu0 0
    %494 = vmatpush.bf16.msra.mxu0 0
    %495 = vmatpush.bf16.msra.mxu0 0
    %496 = vmatpush.bf16.msra.mxu0 0
    %497 = vmatpush.bf16.msra.mxu0 0
    %498 = vmatpush.bf16.msra.mxu0 0
    %499 = vmatpush.bf16.msra.mxu0 0
    %500 = vmatpush.bf16.msra.mxu0 %v491
    %501 = vmatmul.bf16.gmra.mxu0 %v488
    %v502 = vpop.f32.mrf.mxu0
    %v503 = vadd.f32 0.0, %v502
    %v504 = vpop.f32.mrf.mxu0
    %505 = vdwg.mxu0
    %v506 = vadd.f32 %v463, %v503
    %s507 = scalar_lea.vmem %s9, 16
    %v508 = vld [vmem:[%s507] sm:$0xf]
    %v510 = vunpack.c.l.b16 %v355
    %v511 = vunpack.c.h.b16 %v355
    %v512 = vpack.c.b16 %v510, %v510
    %v513 = vpack.c.b16 %v511, %v511
    %514 = vrot.lane.b32.xlu0 %v512, 119
    %v515 = vpop.permute.xlu0 %514
    %516 = vrot.lane.b32.xlu0 %v513, 119
    %v517 = vpop.permute.xlu0 %516
    %vm518 = vcmask 973824
    %v519 = vsel %vm518, %v515, %v517
    %v521 = vsel %vm381, %v508, 0
    %v524 = vsel %vm142, %v519, 0
    %526 = vmatpush.bf16.msra.mxu0 0
    %527 = vmatpush.bf16.msra.mxu0 0
    %528 = vmatpush.bf16.msra.mxu0 0
    %529 = vmatpush.bf16.msra.mxu0 0
    %530 = vmatpush.bf16.msra.mxu0 0
    %531 = vmatpush.bf16.msra.mxu0 0
    %532 = vmatpush.bf16.msra.mxu0 0
    %533 = vmatpush.bf16.msra.mxu0 %v524
    %534 = vmatmul.bf16.gmra.mxu0 %v521
    %v535 = vpop.f32.mrf.mxu0
    %v536 = vadd.f32 0.0, %v535
    %v537 = vpop.f32.mrf.mxu0
    %538 = vdwg.mxu0
    %v539 = vadd.f32 %v506, %v536
    %v540 = vld [vmem:[%s13] sm:$0x4]
    %v542 = vshrl.u32 %v540, 16
    %v543 = vpack.i.b16 %v542, %v542
    %v545 = vperm.slane %v543, 2
    %v546 = vunpack.c.l.bf16 %v545
    %548 = vrot.lane.b32.xlu0 %v546, 10
    %v549 = vpop.permute.xlu0 %548
    %v551 = vmul.f32 %v360, %v549
    %v552 = vmul.f32 %v361, %v549
    %v553 = vpack.c.bf16 %v551, %v551
    %v554 = vpack.c.bf16 %v552, %v552
    %s555 = scalar_lea.vmem %s9, 20
    %v556 = vld [vmem:[%s555] sm:$0xf]
    %559 = vrot.lane.b32.xlu0 %v553, 118
    %v560 = vpop.permute.xlu0 %559
    %561 = vrot.lane.b32.xlu0 %v554, 118
    %v562 = vpop.permute.xlu0 %561
    %vm563 = vcmask 965632
    %v564 = vsel %vm563, %v560, %v562
    %v566 = vsel %vm381, %v556, 0
    %v569 = vsel %vm142, %v564, 0
    %571 = vmatpush.bf16.msra.mxu0 0
    %572 = vmatpush.bf16.msra.mxu0 0
    %573 = vmatpush.bf16.msra.mxu0 0
    %574 = vmatpush.bf16.msra.mxu0 0
    %575 = vmatpush.bf16.msra.mxu0 0
    %576 = vmatpush.bf16.msra.mxu0 0
    %577 = vmatpush.bf16.msra.mxu0 0
    %578 = vmatpush.bf16.msra.mxu0 %v569
    %579 = vmatmul.bf16.gmra.mxu0 %v566
    %v580 = vpop.f32.mrf.mxu0
    %v581 = vadd.f32 0.0, %v580
    %v582 = vpop.f32.mrf.mxu0
    %583 = vdwg.mxu0
    %v584 = vadd.f32 %v539, %v581
    %v585 = vld [vmem:[%s13] sm:$0x8]
    %v587 = vpack.i.b16 %v585, %v585
    %v589 = vperm.slane %v587, 3
    %v590 = vunpack.c.l.bf16 %v589
    %592 = vrot.lane.b32.xlu0 %v590, 16
    %v593 = vpop.permute.xlu0 %592
    %v595 = vmul.f32 %v360, %v593
    %v596 = vmul.f32 %v361, %v593
    %v597 = vpack.c.bf16 %v595, %v595
    %v598 = vpack.c.bf16 %v596, %v596
    %s599 = scalar_lea.vmem %s9, 24
    %v600 = vld [vmem:[%s599] sm:$0xf]
    %603 = vrot.lane.b32.xlu0 %v597, 112
    %v604 = vpop.permute.xlu0 %603
    %605 = vrot.lane.b32.xlu0 %v598, 112
    %v606 = vpop.permute.xlu0 %605
    %vm607 = vcmask 916480
    %v608 = vsel %vm607, %v604, %v606
    %v610 = vsel %vm381, %v600, 0
    %v613 = vsel %vm142, %v608, 0
    %615 = vmatpush.bf16.msra.mxu0 0
    %616 = vmatpush.bf16.msra.mxu0 0
    %617 = vmatpush.bf16.msra.mxu0 0
    %618 = vmatpush.bf16.msra.mxu0 0
    %619 = vmatpush.bf16.msra.mxu0 0
    %620 = vmatpush.bf16.msra.mxu0 0
    %621 = vmatpush.bf16.msra.mxu0 0
    %622 = vmatpush.bf16.msra.mxu0 %v613
    %623 = vmatmul.bf16.gmra.mxu0 %v610
    %v624 = vpop.f32.mrf.mxu0
    %v625 = vadd.f32 0.0, %v624
    %v626 = vpop.f32.mrf.mxu0
    %627 = vdwg.mxu0
    %v628 = vadd.f32 %v584, %v625
    %v629 = vshrl.u32 %v585, 16
    %v630 = vpack.i.b16 %v629, %v629
    %v632 = vperm.slane %v630, 3
    %v633 = vunpack.c.l.bf16 %v632
    %635 = vrot.lane.b32.xlu0 %v633, 17
    %v636 = vpop.permute.xlu0 %635
    %v638 = vmul.f32 %v360, %v636
    %v639 = vmul.f32 %v361, %v636
    %v640 = vpack.c.bf16 %v638, %v638
    %v641 = vpack.c.bf16 %v639, %v639
    %s642 = scalar_lea.vmem %s9, 28
    %v643 = vld [vmem:[%s642] sm:$0xf]
    %646 = vrot.lane.b32.xlu0 %v640, 111
    %v647 = vpop.permute.xlu0 %646
    %648 = vrot.lane.b32.xlu0 %v641, 111
    %v649 = vpop.permute.xlu0 %648
    %vm650 = vcmask 908288
    %v651 = vsel %vm650, %v647, %v649
    %v653 = vsel %vm381, %v643, 0
    %v656 = vsel %vm142, %v651, 0
    %658 = vmatpush.bf16.msra.mxu0 0
    %659 = vmatpush.bf16.msra.mxu0 0
    %660 = vmatpush.bf16.msra.mxu0 0
    %661 = vmatpush.bf16.msra.mxu0 0
    %662 = vmatpush.bf16.msra.mxu0 0
    %663 = vmatpush.bf16.msra.mxu0 0
    %664 = vmatpush.bf16.msra.mxu0 0
    %665 = vmatpush.bf16.msra.mxu0 %v656
    %666 = vmatmul.bf16.gmra.mxu0 %v653
    %v667 = vpop.f32.mrf.mxu0
    %v668 = vadd.f32 0.0, %v667
    %v669 = vpop.f32.mrf.mxu0
    %670 = vdwg.mxu0
    %v671 = vadd.f32 %v628, %v668
    %v672 = vld [vmem:[%s13 + $0x4] sm:$0x1]
    %v674 = vpack.i.b16 %v672, %v672
    %v676 = vperm.slane %v674, 0
    %v677 = vunpack.c.l.bf16 %v676
    %679 = vrot.lane.b32.xlu0 %v677, 18
    %v680 = vpop.permute.xlu0 %679
    %v682 = vmul.f32 %v360, %v680
    %v683 = vmul.f32 %v361, %v680
    %v684 = vpack.c.bf16 %v682, %v682
    %v685 = vpack.c.bf16 %v683, %v683
    %s686 = scalar_lea.vmem %s9, 32
    %v687 = vld [vmem:[%s686] sm:$0xf]
    %690 = vrot.lane.b32.xlu0 %v684, 110
    %v691 = vpop.permute.xlu0 %690
    %692 = vrot.lane.b32.xlu0 %v685, 110
    %v693 = vpop.permute.xlu0 %692
    %vm694 = vcmask 900096
    %v695 = vsel %vm694, %v691, %v693
    %v697 = vsel %vm381, %v687, 0
    %v700 = vsel %vm142, %v695, 0
    %702 = vmatpush.bf16.msra.mxu0 0
    %703 = vmatpush.bf16.msra.mxu0 0
    %704 = vmatpush.bf16.msra.mxu0 0
    %705 = vmatpush.bf16.msra.mxu0 0
    %706 = vmatpush.bf16.msra.mxu0 0
    %707 = vmatpush.bf16.msra.mxu0 0
    %708 = vmatpush.bf16.msra.mxu0 0
    %709 = vmatpush.bf16.msra.mxu0 %v700
    %710 = vmatmul.bf16.gmra.mxu0 %v697
    %v711 = vpop.f32.mrf.mxu0
    %v712 = vadd.f32 0.0, %v711
    %v713 = vpop.f32.mrf.mxu0
    %714 = vdwg.mxu0
    %v715 = vadd.f32 %v671, %v712
    %v716 = vld [vmem:[#allocation10] sm:$0xff]
    %718 = vset.pattern.permute.xlu0 0
    %719 = vperm.xlu0 %718, %v716
    %v720 = vpop.permute.xlu0 %719
    %v722 = vadd.f32 %v715, %v720
    %v723 = vand.u32 2147483647, %v722
    %v724 = vsub.f32 0.0, %v723
    %v725 = vmul.f32 %v724, 1.442695
    %v726 = vpow.pop %v725
    %v727 = vadd.f32 %v726, 1.0
    %v728 = vmul.f32 %v727, %v727
    %vm729 = vcmp.ge.f32.partialorder %v722, 0.0
    %v730 = vmul.f32 %v726, %v726
    %v731 = vsel %vm729, %v730, 1.0
    %v732 = vsub.f32 %v728, %v731
    %v733 = vmul.f32 %v722, %v732
    %v734 = vadd.f32 %v728, %v731
    %v735 = vrcp.pop %v734
    %v736 = vmul.f32 %v733, %v735
    %v737 = vpack.c.bf16 %v736, %v736
    %739 = vrot.lane.b32.xlu0 %v737, 9
    %v740 = vpop.permute.xlu0 %739
    %v741 = vrot.slane %v740, 4
    %v742 = vsel %vm337, %v741, %v740
    %744 = vst.msk [vmem:[#allocation2] sm:$0xff] %vm342, %v742
    %v745 = vld [vmem:[#allocation2] sm:$0xf]
    %v746 = vld [vmem:[%s13] sm:$0x1]
    %v748 = vpack.i.b16 %v746, %v746
    %v750 = vperm.slane %v748, 0
    %v751 = vunpack.c.l.bf16 %v745
    %v752 = vunpack.c.l.bf16 %v750
    %v753 = vmul.f32 %v751, %v752
    %v754 = vpack.c.bf16 %v753, %v753
    %v755 = vld [vmem:[%s11] sm:$0xf]
    %v756 = vld [vmem:[#allocation2] sm:$0xff]
    %v757 = vshrl.u32 %v746, 16
    %v758 = vpack.i.b16 %v757, %v757
    %v760 = vperm.slane %v758, 0
    %v761 = vunpack.c.l.bf16 %v756
    %v762 = vunpack.c.h.bf16 %v756
    %v763 = vunpack.c.l.bf16 %v760
    %765 = vrot.lane.b32.xlu0 %v763, 1
    %v766 = vpop.permute.xlu0 %765
    %v768 = vmul.f32 %v761, %v766
    %v769 = vmul.f32 %v762, %v766
    %v770 = vpack.c.bf16 %v768, %v768
    %v771 = vpack.c.bf16 %v769, %v769
    %s772 = scalar_lea.vmem %s11, 4
    %v773 = vld [vmem:[%s772] sm:$0xf]
    %776 = vrot.lane.b32.xlu0 %v770, 127
    %v777 = vpop.permute.xlu0 %776
    %778 = vrot.lane.b32.xlu0 %v771, 127
    %v779 = vpop.permute.xlu0 %778
    %v780 = vsel %vm379, %v777, %v779
    %v782 = vsel %vm381, %v773, 0
    %v785 = vsel %vm142, %v780, 0
    %787 = vmatpush.bf16.msra.mxu0 0
    %788 = vmatpush.bf16.msra.mxu0 0
    %789 = vmatpush.bf16.msra.mxu0 0
    %790 = vmatpush.bf16.msra.mxu0 0
    %791 = vmatpush.bf16.msra.mxu0 0
    %792 = vmatpush.bf16.msra.mxu0 0
    %793 = vmatpush.bf16.msra.mxu0 0
    %794 = vmatpush.bf16.msra.mxu0 %v785
    %795 = vmatmul.bf16.gmra.mxu0 %v782
    %v796 = vpop.f32.mrf.mxu0
    %v797 = vadd.f32 0.0, %v796
    %v798 = vpop.f32.mrf.mxu0
    %799 = vdwg.mxu0
    %v801 = vsel %vm381, %v755, 0
    %v804 = vsel %vm142, %v754, 0
    %806 = vmatpush.bf16.msra.mxu0 0
    %807 = vmatpush.bf16.msra.mxu0 0
    %808 = vmatpush.bf16.msra.mxu0 0
    %809 = vmatpush.bf16.msra.mxu0 0
    %810 = vmatpush.bf16.msra.mxu0 0
    %811 = vmatpush.bf16.msra.mxu0 0
    %812 = vmatpush.bf16.msra.mxu0 0
    %813 = vmatpush.bf16.msra.mxu0 %v804
    %814 = vmatmul.bf16.gmra.mxu0 %v801
    %v815 = vpop.f32.mrf.mxu0
    %v816 = vadd.f32 %v797, %v815
    %v817 = vpop.f32.mrf.mxu0
    %818 = vdwg.mxu0
    %v819 = vld [vmem:[%s13] sm:$0x2]
    %v821 = vpack.i.b16 %v819, %v819
    %v823 = vperm.slane %v821, 1
    %v824 = vunpack.c.l.bf16 %v823
    %826 = vrot.lane.b32.xlu0 %v824, 2
    %v827 = vpop.permute.xlu0 %826
    %v829 = vmul.f32 %v761, %v827
    %v830 = vmul.f32 %v762, %v827
    %v831 = vpack.c.bf16 %v829, %v829
    %v832 = vpack.c.bf16 %v830, %v830
    %s833 = scalar_lea.vmem %s11, 8
    %v834 = vld [vmem:[%s833] sm:$0xf]
    %837 = vrot.lane.b32.xlu0 %v831, 126
    %v838 = vpop.permute.xlu0 %837
    %839 = vrot.lane.b32.xlu0 %v832, 126
    %v840 = vpop.permute.xlu0 %839
    %v841 = vsel %vm442, %v838, %v840
    %v843 = vsel %vm381, %v834, 0
    %v846 = vsel %vm142, %v841, 0
    %848 = vmatpush.bf16.msra.mxu0 0
    %849 = vmatpush.bf16.msra.mxu0 0
    %850 = vmatpush.bf16.msra.mxu0 0
    %851 = vmatpush.bf16.msra.mxu0 0
    %852 = vmatpush.bf16.msra.mxu0 0
    %853 = vmatpush.bf16.msra.mxu0 0
    %854 = vmatpush.bf16.msra.mxu0 0
    %855 = vmatpush.bf16.msra.mxu0 %v846
    %856 = vmatmul.bf16.gmra.mxu0 %v843
    %v857 = vpop.f32.mrf.mxu0
    %v858 = vadd.f32 0.0, %v857
    %v859 = vpop.f32.mrf.mxu0
    %860 = vdwg.mxu0
    %v861 = vadd.f32 %v816, %v858
    %v862 = vshrl.u32 %v819, 16
    %v863 = vpack.i.b16 %v862, %v862
    %v865 = vperm.slane %v863, 1
    %v866 = vunpack.c.l.bf16 %v865
    %868 = vrot.lane.b32.xlu0 %v866, 8
    %v869 = vpop.permute.xlu0 %868
    %v871 = vmul.f32 %v761, %v869
    %v872 = vmul.f32 %v762, %v869
    %v873 = vpack.c.bf16 %v871, %v871
    %v874 = vpack.c.bf16 %v872, %v872
    %s875 = scalar_lea.vmem %s11, 12
    %v876 = vld [vmem:[%s875] sm:$0xf]
    %879 = vrot.lane.b32.xlu0 %v873, 120
    %v880 = vpop.permute.xlu0 %879
    %881 = vrot.lane.b32.xlu0 %v874, 120
    %v882 = vpop.permute.xlu0 %881
    %v883 = vsel %vm485, %v880, %v882
    %v885 = vsel %vm381, %v876, 0
    %v888 = vsel %vm142, %v883, 0
    %890 = vmatpush.bf16.msra.mxu0 0
    %891 = vmatpush.bf16.msra.mxu0 0
    %892 = vmatpush.bf16.msra.mxu0 0
    %893 = vmatpush.bf16.msra.mxu0 0
    %894 = vmatpush.bf16.msra.mxu0 0
    %895 = vmatpush.bf16.msra.mxu0 0
    %896 = vmatpush.bf16.msra.mxu0 0
    %897 = vmatpush.bf16.msra.mxu0 %v888
    %898 = vmatmul.bf16.gmra.mxu0 %v885
    %v899 = vpop.f32.mrf.mxu0
    %v900 = vadd.f32 0.0, %v899
    %v901 = vpop.f32.mrf.mxu0
    %902 = vdwg.mxu0
    %v903 = vadd.f32 %v861, %v900
    %s904 = scalar_lea.vmem %s11, 16
    %v905 = vld [vmem:[%s904] sm:$0xf]
    %v907 = vunpack.c.l.b16 %v756
    %v908 = vunpack.c.h.b16 %v756
    %v909 = vpack.c.b16 %v907, %v907
    %v910 = vpack.c.b16 %v908, %v908
    %911 = vrot.lane.b32.xlu0 %v909, 119
    %v912 = vpop.permute.xlu0 %911
    %913 = vrot.lane.b32.xlu0 %v910, 119
    %v914 = vpop.permute.xlu0 %913
    %v915 = vsel %vm518, %v912, %v914
    %v917 = vsel %vm381, %v905, 0
    %v920 = vsel %vm142, %v915, 0
    %922 = vmatpush.bf16.msra.mxu0 0
    %923 = vmatpush.bf16.msra.mxu0 0
    %924 = vmatpush.bf16.msra.mxu0 0
    %925 = vmatpush.bf16.msra.mxu0 0
    %926 = vmatpush.bf16.msra.mxu0 0
    %927 = vmatpush.bf16.msra.mxu0 0
    %928 = vmatpush.bf16.msra.mxu0 0
    %929 = vmatpush.bf16.msra.mxu0 %v920
    %930 = vmatmul.bf16.gmra.mxu0 %v917
    %v931 = vpop.f32.mrf.mxu0
    %v932 = vadd.f32 0.0, %v931
    %v933 = vpop.f32.mrf.mxu0
    %934 = vdwg.mxu0
    %v935 = vadd.f32 %v903, %v932
    %v936 = vld [vmem:[%s13] sm:$0x4]
    %v938 = vshrl.u32 %v936, 16
    %v939 = vpack.i.b16 %v938, %v938
    %v941 = vperm.slane %v939, 2
    %v942 = vunpack.c.l.bf16 %v941
    %944 = vrot.lane.b32.xlu0 %v942, 10
    %v945 = vpop.permute.xlu0 %944
    %v947 = vmul.f32 %v761, %v945
    %v948 = vmul.f32 %v762, %v945
    %v949 = vpack.c.bf16 %v947, %v947
    %v950 = vpack.c.bf16 %v948, %v948
    %s951 = scalar_lea.vmem %s11, 20
    %v952 = vld [vmem:[%s951] sm:$0xf]
    %955 = vrot.lane.b32.xlu0 %v949, 118
    %v956 = vpop.permute.xlu0 %955
    %957 = vrot.lane.b32.xlu0 %v950, 118
    %v958 = vpop.permute.xlu0 %957
    %v959 = vsel %vm563, %v956, %v958
    %v961 = vsel %vm381, %v952, 0
    %v964 = vsel %vm142, %v959, 0
    %966 = vmatpush.bf16.msra.mxu0 0
    %967 = vmatpush.bf16.msra.mxu0 0
    %968 = vmatpush.bf16.msra.mxu0 0
    %969 = vmatpush.bf16.msra.mxu0 0
    %970 = vmatpush.bf16.msra.mxu0 0
    %971 = vmatpush.bf16.msra.mxu0 0
    %972 = vmatpush.bf16.msra.mxu0 0
    %973 = vmatpush.bf16.msra.mxu0 %v964
    %974 = vmatmul.bf16.gmra.mxu0 %v961
    %v975 = vpop.f32.mrf.mxu0
    %v976 = vadd.f32 0.0, %v975
    %v977 = vpop.f32.mrf.mxu0
    %978 = vdwg.mxu0
    %v979 = vadd.f32 %v935, %v976
    %v980 = vld [vmem:[%s13] sm:$0x8]
    %v982 = vpack.i.b16 %v980, %v980
    %v984 = vperm.slane %v982, 3
    %v985 = vunpack.c.l.bf16 %v984
    %987 = vrot.lane.b32.xlu0 %v985, 16
    %v988 = vpop.permute.xlu0 %987
    %v990 = vmul.f32 %v761, %v988
    %v991 = vmul.f32 %v762, %v988
    %v992 = vpack.c.bf16 %v990, %v990
    %v993 = vpack.c.bf16 %v991, %v991
    %s994 = scalar_lea.vmem %s11, 24
    %v995 = vld [vmem:[%s994] sm:$0xf]
    %998 = vrot.lane.b32.xlu0 %v992, 112
    %v999 = vpop.permute.xlu0 %998
    %1000 = vrot.lane.b32.xlu0 %v993, 112
    %v1001 = vpop.permute.xlu0 %1000
    %v1002 = vsel %vm607, %v999, %v1001
    %v1004 = vsel %vm381, %v995, 0
    %v1007 = vsel %vm142, %v1002, 0
    %1009 = vmatpush.bf16.msra.mxu0 0
    %1010 = vmatpush.bf16.msra.mxu0 0
    %1011 = vmatpush.bf16.msra.mxu0 0
    %1012 = vmatpush.bf16.msra.mxu0 0
    %1013 = vmatpush.bf16.msra.mxu0 0
    %1014 = vmatpush.bf16.msra.mxu0 0
    %1015 = vmatpush.bf16.msra.mxu0 0
    %1016 = vmatpush.bf16.msra.mxu0 %v1007
    %1017 = vmatmul.bf16.gmra.mxu0 %v1004
    %v1018 = vpop.f32.mrf.mxu0
    %v1019 = vadd.f32 0.0, %v1018
    %v1020 = vpop.f32.mrf.mxu0
    %1021 = vdwg.mxu0
    %v1022 = vadd.f32 %v979, %v1019
    %v1023 = vshrl.u32 %v980, 16
    %v1024 = vpack.i.b16 %v1023, %v1023
    %v1026 = vperm.slane %v1024, 3
    %v1027 = vunpack.c.l.bf16 %v1026
    %1029 = vrot.lane.b32.xlu0 %v1027, 17
    %v1030 = vpop.permute.xlu0 %1029
    %v1032 = vmul.f32 %v761, %v1030
    %v1033 = vmul.f32 %v762, %v1030
    %v1034 = vpack.c.bf16 %v1032, %v1032
    %v1035 = vpack.c.bf16 %v1033, %v1033
    %s1036 = scalar_lea.vmem %s11, 28
    %v1037 = vld [vmem:[%s1036] sm:$0xf]
    %1040 = vrot.lane.b32.xlu0 %v1034, 111
    %v1041 = vpop.permute.xlu0 %1040
    %1042 = vrot.lane.b32.xlu0 %v1035, 111
    %v1043 = vpop.permute.xlu0 %1042
    %v1044 = vsel %vm650, %v1041, %v1043
    %v1046 = vsel %vm381, %v1037, 0
    %v1049 = vsel %vm142, %v1044, 0
    %1051 = vmatpush.bf16.msra.mxu0 0
    %1052 = vmatpush.bf16.msra.mxu0 0
    %1053 = vmatpush.bf16.msra.mxu0 0
    %1054 = vmatpush.bf16.msra.mxu0 0
    %1055 = vmatpush.bf16.msra.mxu0 0
    %1056 = vmatpush.bf16.msra.mxu0 0
    %1057 = vmatpush.bf16.msra.mxu0 0
    %1058 = vmatpush.bf16.msra.mxu0 %v1049
    %1059 = vmatmul.bf16.gmra.mxu0 %v1046
    %v1060 = vpop.f32.mrf.mxu0
    %v1061 = vadd.f32 0.0, %v1060
    %v1062 = vpop.f32.mrf.mxu0
    %1063 = vdwg.mxu0
    %v1064 = vadd.f32 %v1022, %v1061
    %v1065 = vld [vmem:[%s13 + $0x4] sm:$0x1]
    %v1067 = vpack.i.b16 %v1065, %v1065
    %v1069 = vperm.slane %v1067, 0
    %v1070 = vunpack.c.l.bf16 %v1069
    %1072 = vrot.lane.b32.xlu0 %v1070, 18
    %v1073 = vpop.permute.xlu0 %1072
    %v1075 = vmul.f32 %v761, %v1073
    %v1076 = vmul.f32 %v762, %v1073
    %v1077 = vpack.c.bf16 %v1075, %v1075
    %v1078 = vpack.c.bf16 %v1076, %v1076
    %s1079 = scalar_lea.vmem %s11, 32
    %v1080 = vld [vmem:[%s1079] sm:$0xf]
    %1083 = vrot.lane.b32.xlu0 %v1077, 110
    %v1084 = vpop.permute.xlu0 %1083
    %1085 = vrot.lane.b32.xlu0 %v1078, 110
    %v1086 = vpop.permute.xlu0 %1085
    %v1087 = vsel %vm694, %v1084, %v1086
    %v1089 = vsel %vm381, %v1080, 0
    %v1092 = vsel %vm142, %v1087, 0
    %1094 = vmatpush.bf16.msra.mxu0 0
    %1095 = vmatpush.bf16.msra.mxu0 0
    %1096 = vmatpush.bf16.msra.mxu0 0
    %1097 = vmatpush.bf16.msra.mxu0 0
    %1098 = vmatpush.bf16.msra.mxu0 0
    %1099 = vmatpush.bf16.msra.mxu0 0
    %1100 = vmatpush.bf16.msra.mxu0 0
    %1101 = vmatpush.bf16.msra.mxu0 %v1092
    %1102 = vmatmul.bf16.gmra.mxu0 %v1089
    %v1103 = vpop.f32.mrf.mxu0
    %v1104 = vadd.f32 0.0, %v1103
    %v1105 = vpop.f32.mrf.mxu0
    %1106 = vdwg.mxu0
    %v1107 = vadd.f32 %v1064, %v1104
    %v1108 = vld [vmem:[#allocation11] sm:$0xff]
    %1110 = vset.pattern.permute.xlu0 0
    %1111 = vperm.xlu0 %1110, %v1108
    %v1112 = vpop.permute.xlu0 %1111
    %v1114 = vadd.f32 %v1107, %v1112
    %v1115 = vand.u32 2147483647, %v1114
    %v1116 = vsub.f32 0.0, %v1115
    %v1117 = vmul.f32 %v1116, 1.442695
    %v1118 = vpow.pop %v1117
    %v1119 = vadd.f32 %v1118, 1.0
    %v1120 = vmul.f32 %v1119, %v1119
    %vm1121 = vcmp.ge.f32.partialorder %v1114, 0.0
    %v1122 = vmul.f32 %v1118, %v1118
    %v1123 = vsel %vm1121, %v1122, 1.0
    %v1124 = vsub.f32 %v1120, %v1123
    %v1125 = vmul.f32 %v1114, %v1124
    %v1126 = vadd.f32 %v1120, %v1123
    %v1127 = vrcp.pop %v1126
    %v1128 = vmul.f32 %v1125, %v1127
    %v1129 = vld [vmem:[%s14] sm:$0xf]
    %v1130 = vld [vmem:[%s14 + $0x4] sm:$0xf]
    %v1131 = vpack.c.bf16 %v259, %v259
    %v1132 = vld [vmem:[%s15] sm:$0xf]
    %v1133 = vld [vmem:[%s15 + $0x4] sm:$0xf]
    %v1136 = vunpack.c.l.b16 %v1132
    %v1137 = vunpack.c.l.b16 %v1133
    %v1138 = vpack.c.b16 %v1137, %v1136
    %v1140 = vsel %vm381, %v1138, 0
    %v1143 = vsel %vm142, %v332, 0
    %1145 = vmatpush.bf16.msra.mxu0 0
    %1146 = vmatpush.bf16.msra.mxu0 0
    %1147 = vmatpush.bf16.msra.mxu0 0
    %1148 = vmatpush.bf16.msra.mxu0 0
    %1149 = vmatpush.bf16.msra.mxu0 0
    %1150 = vmatpush.bf16.msra.mxu0 0
    %1151 = vmatpush.bf16.msra.mxu0 0
    %1152 = vmatpush.bf16.msra.mxu0 %v1143
    %1153 = vmatmul.bf16.gmra.mxu0 %v1140
    %v1154 = vpop.f32.mrf.mxu0
    %v1155 = vadd.f32 0.0, %v1154
    %v1156 = vpop.f32.mrf.mxu0
    %v1157 = vadd.f32 0.0, %v1156
    %1158 = vdwg.mxu0
    %v1161 = vunpack.c.l.b16 %v1129
    %v1162 = vunpack.c.l.b16 %v1130
    %v1163 = vpack.c.b16 %v1162, %v1161
    %v1165 = vsel %vm381, %v1163, 0
    %v1168 = vsel %vm142, %v1131, 0
    %1170 = vmatpush.bf16.msra.mxu0 0
    %1171 = vmatpush.bf16.msra.mxu0 0
    %1172 = vmatpush.bf16.msra.mxu0 0
    %1173 = vmatpush.bf16.msra.mxu0 0
    %1174 = vmatpush.bf16.msra.mxu0 0
    %1175 = vmatpush.bf16.msra.mxu0 0
    %1176 = vmatpush.bf16.msra.mxu0 0
    %1177 = vmatpush.bf16.msra.mxu0 %v1168
    %1178 = vmatmul.bf16.gmra.mxu0 %v1165
    %v1179 = vpop.f32.mrf.mxu0
    %v1180 = vadd.f32 %v1155, %v1179
    %v1181 = vpop.f32.mrf.mxu0
    %v1182 = vadd.f32 %v1157, %v1181
    %1183 = vdwg.mxu0
    %v1184 = vld [vmem:[%s16] sm:$0xf]
    %v1185 = vld [vmem:[%s16 + $0x4] sm:$0xf]
    %v1186 = vpack.c.bf16 %v1128, %v1128
    %v1189 = vunpack.c.l.b16 %v1184
    %v1190 = vunpack.c.l.b16 %v1185
    %v1191 = vpack.c.b16 %v1190, %v1189
    %v1193 = vsel %vm381, %v1191, 0
    %v1196 = vsel %vm142, %v1186, 0
    %1198 = vmatpush.bf16.msra.mxu0 0
    %1199 = vmatpush.bf16.msra.mxu0 0
    %1200 = vmatpush.bf16.msra.mxu0 0
    %1201 = vmatpush.bf16.msra.mxu0 0
    %1202 = vmatpush.bf16.msra.mxu0 0
    %1203 = vmatpush.bf16.msra.mxu0 0
    %1204 = vmatpush.bf16.msra.mxu0 0
    %1205 = vmatpush.bf16.msra.mxu0 %v1196
    %1206 = vmatmul.bf16.gmra.mxu0 %v1193
    %v1207 = vpop.f32.mrf.mxu0
    %v1208 = vadd.f32 0.0, %v1207
    %v1209 = vpop.f32.mrf.mxu0
    %v1210 = vadd.f32 0.0, %v1209
    %1211 = vdwg.mxu0
    %v1212 = vadd.f32 %v1180, %v1208
    %v1213 = vadd.f32 %v1182, %v1210
    %v1214 = vld [vmem:[%s17] sm:$0xff]
    %v1215 = vld [vmem:[%s17 + $0x8] sm:$0xff]
    %1217 = vset.pattern.permute.xlu0 0
    %1218 = vperm.xlu0 %1217, %v1214
    %v1219 = vpop.permute.xlu0 %1218
    %1222 = vset.pattern.permute.xlu0 0
    %1223 = vperm.xlu0 %1222, %v1215
    %v1224 = vpop.permute.xlu0 %1223
    %v1226 = vadd.f32 %v1212, %v1219
    %v1227 = vadd.f32 %v1213, %v1224
    %v1228 = vand.u32 2147483647, %v1226
    %v1229 = vand.u32 2147483647, %v1227
    %v1230 = vsub.f32 0.0, %v1228
    %v1231 = vsub.f32 0.0, %v1229
    %v1232 = vmul.f32 %v1230, 1.442695
    %v1233 = vpow.pop %v1232
    %v1234 = vmul.f32 %v1231, 1.442695
    %v1235 = vpow.pop %v1234
    %v1236 = vadd.f32 %v1233, 1.0
    %v1237 = vadd.f32 %v1235, 1.0
    %v1238 = vmul.f32 %v1236, %v1236
    %v1239 = vmul.f32 %v1237, %v1237
    %vm1240 = vcmp.ge.f32.partialorder %v1226, 0.0
    %vm1241 = vcmp.ge.f32.partialorder %v1227, 0.0
    %v1242 = vmul.f32 %v1233, %v1233
    %v1243 = vmul.f32 %v1235, %v1235
    %v1244 = vsel %vm1240, %v1242, 1.0
    %v1245 = vsel %vm1241, %v1243, 1.0
    %v1246 = vsub.f32 %v1238, %v1244
    %v1247 = vsub.f32 %v1239, %v1245
    %v1248 = vmul.f32 %v1226, %v1246
    %v1249 = vmul.f32 %v1227, %v1247
    %v1250 = vadd.f32 %v1238, %v1244
    %v1251 = vadd.f32 %v1239, %v1245
    %v1252 = vrcp.pop %v1250
    %v1253 = vrcp.pop %v1251
    %v1254 = vmul.f32 %v1248, %v1252
    %v1255 = vmul.f32 %v1249, %v1253
    %v1256 = vpack.c.bf16 %v1254, %v1254
    %v1257 = vpack.c.bf16 %v1255, %v1255
    %1258 = vst [vmem:[%s18] sm:$0xf] %v1256
    %1259 = vst [vmem:[%s18 + $0x4] sm:$0xf] %v1257
    // Predicated region
    $region98: #{_lambda_.4} parent=1 // pred_check
      _
    $region99: #{_lambda_.4} parent=1 // pred_check_branch
      %1261 = sbr.rel (0) target = $region101
    $region100: #{_lambda_.4} parent=1 // pred_region
      _
    $region101: #{_lambda_.4} parent=1 // pred_fallthru
      _
    // Predicated region
    $region102: #{_lambda_.4} parent=1 // pred_check
      _
    $region103: #{_lambda_.4} parent=1 // pred_check_branch
      %1263 = sbr.rel (0) target = $region105
    $region104: #{_lambda_.4} parent=1 // pred_region
      _
    $region105: #{_lambda_.4} parent=1 // pred_fallthru
      _
    %1264 = vsyncpa [#allocation4], 1
    %1265 = vsyncpa [#allocation6], 1
    %1266 = vsyncpa [#allocation9], 1
    %1267 = vsyncpa [#allocation12], 1

// kernel: _lambda_.6
$region0: #{_lambda_.6}
  #allocation0 [shape = 'u32[]', space=smem, size = 0x4, offset = 0x4, fixed_abs, tag = 'smem constant byte address 0x4 - core index']
  #allocation1 [shape = 'u32[72,128]{1,0:T(1,128)}', space=vmem, size = 0x9000, scoped, tag = 'internal scratch']
  #allocation2 [shape = 'bf16[8,146]{1,0:T(8,128)(2,1)}', space=vmem, size = 0x1000, scoped, tag = 'scratch operand']
  #allocation3 [shape = 'bf16[32,137]{1,0:T(8,128)(2,1)}', space=vmem, size = 0x4000, scoped, tag = 'scratch operand']
  %s0 = inlined_call_operand.vmem [shape: bf16[4,8,128], index: 0, kind: input, shape index: {}]
  %s1 = inlined_call_operand.vmem [shape: bf16[16,128], index: 1, kind: input, shape index: {}]
  %s2 = inlined_call_operand.vmem [shape: bf16[9,8,8], index: 2, kind: input, shape index: {}]
  %s3 = inlined_call_operand.vmem [shape: f32[8,1], index: 3, kind: input, shape index: {}]
  %s4 = inlined_call_operand.vmem [shape: bf16[9,128], index: 4, kind: input, shape index: {}]
  %s5 = inlined_call_operand.vmem [shape: bf16[8,8], index: 5, kind: input, shape index: {}]
  %s6 = inlined_call_operand.vmem [shape: bf16[8,8], index: 6, kind: input, shape index: {}]
  %s7 = inlined_call_operand.vmem [shape: bf16[8,16], index: 7, kind: input, shape index: {}]
  %s8 = inlined_call_operand.vmem [shape: bf16[8,16], index: 8, kind: input, shape index: {}]
  %s9 = inlined_call_operand.vmem [shape: f32[8,1], index: 9, kind: input, shape index: {}]
  %s10 = inlined_call_operand.vmem [shape: f32[8,1], index: 10, kind: input, shape index: {}]
  %s11 = inlined_call_operand.vmem [shape: bf16[9,8,8], index: 11, kind: input, shape index: {}]
  %s12 = inlined_call_operand.vmem [shape: f32[8,1], index: 12, kind: input, shape index: {}]
  %s13 = inlined_call_operand.vmem [shape: bf16[9,8,8], index: 13, kind: input, shape index: {}]
  %s14 = inlined_call_operand.vmem [shape: f32[8,1], index: 14, kind: input, shape index: {}]
  %s15 = inlined_call_operand.vmem [shape: bf16[9,128], index: 15, kind: input, shape index: {}]
  %s16 = inlined_call_operand.vmem [shape: bf16[16,8], index: 16, kind: input, shape index: {}]
  %s17 = inlined_call_operand.vmem [shape: bf16[16,8], index: 17, kind: input, shape index: {}]
  %s18 = inlined_call_operand.vmem [shape: bf16[16,8], index: 18, kind: input, shape index: {}]
  %s19 = inlined_call_operand.vmem [shape: f32[16,1], index: 19, kind: input, shape index: {}]
  %s20 = inlined_call_operand.vmem [shape: f32[16,128], index: 20, kind: output, shape index: {}]
  %s21 = sld [smem:[#allocation0]]
  $region90: #{_lambda_.6} parent=0
    _
  %s23 = ssub.s32 1, %s21
  %s24 = scalar_select 0, %s23, %s21
  // Predicated region
  $region2: #{_lambda_.6} parent=0 // pred_check
    _
  $region3: #{_lambda_.6} parent=0 // pred_check_branch
    %26 = sbr.rel (0) target = $region5
  $region4: #{_lambda_.6} parent=0 // pred_region
    _
  $region5: #{_lambda_.6} parent=0 // pred_fallthru
    _
  // Predicated region
  $region6: #{_lambda_.6} parent=0 // pred_check
    _
  $region7: #{_lambda_.6} parent=0 // pred_check_branch
    %28 = sbr.rel (0) target = $region9
  $region8: #{_lambda_.6} parent=0 // pred_region
    _
  $region9: #{_lambda_.6} parent=0 // pred_fallthru
    _
  // Predicated region
  $region10: #{_lambda_.6} parent=0 // pred_check
    _
  $region11: #{_lambda_.6} parent=0 // pred_check_branch
    %30 = sbr.rel (0) target = $region13
  $region12: #{_lambda_.6} parent=0 // pred_region
    _
  $region13: #{_lambda_.6} parent=0 // pred_fallthru
    _
  // Predicated region
  $region14: #{_lambda_.6} parent=0 // pred_check
    _
  $region15: #{_lambda_.6} parent=0 // pred_check_branch
    %32 = sbr.rel (0) target = $region17
  $region16: #{_lambda_.6} parent=0 // pred_region
    _
  $region17: #{_lambda_.6} parent=0 // pred_fallthru
    _
  // Predicated region
  $region18: #{_lambda_.6} parent=0 // pred_check
    _
  $region19: #{_lambda_.6} parent=0 // pred_check_branch
    %34 = sbr.rel (0) target = $region21
  $region20: #{_lambda_.6} parent=0 // pred_region
    _
  $region21: #{_lambda_.6} parent=0 // pred_fallthru
    _
  // Predicated region
  $region22: #{_lambda_.6} parent=0 // pred_check
    _
  $region23: #{_lambda_.6} parent=0 // pred_check_branch
    %36 = sbr.rel (0) target = $region25
  $region24: #{_lambda_.6} parent=0 // pred_region
    _
  $region25: #{_lambda_.6} parent=0 // pred_fallthru
    _
  // Predicated region
  $region26: #{_lambda_.6} parent=0 // pred_check
    _
  $region27: #{_lambda_.6} parent=0 // pred_check_branch
    %38 = sbr.rel (0) target = $region29
  $region28: #{_lambda_.6} parent=0 // pred_region
    _
  $region29: #{_lambda_.6} parent=0 // pred_fallthru
    _
  // Predicated region
  $region30: #{_lambda_.6} parent=0 // pred_check
    _
  $region31: #{_lambda_.6} parent=0 // pred_check_branch
    %40 = sbr.rel (0) target = $region33
  $region32: #{_lambda_.6} parent=0 // pred_region
    _
  $region33: #{_lambda_.6} parent=0 // pred_fallthru
    _
  // Predicated region
  $region34: #{_lambda_.6} parent=0 // pred_check
    _
  $region35: #{_lambda_.6} parent=0 // pred_check_branch
    %42 = sbr.rel (0) target = $region37
  $region36: #{_lambda_.6} parent=0 // pred_region
    _
  $region37: #{_lambda_.6} parent=0 // pred_fallthru
    _
  // Predicated region
  $region38: #{_lambda_.6} parent=0 // pred_check
    _
  $region39: #{_lambda_.6} parent=0 // pred_check_branch
    %44 = sbr.rel (0) target = $region41
  $region40: #{_lambda_.6} parent=0 // pred_region
    _
  $region41: #{_lambda_.6} parent=0 // pred_fallthru
    _
  // Predicated region
  $region42: #{_lambda_.6} parent=0 // pred_check
    _
  $region43: #{_lambda_.6} parent=0 // pred_check_branch
    %46 = sbr.rel (0) target = $region45
  $region44: #{_lambda_.6} parent=0 // pred_region
    _
  $region45: #{_lambda_.6} parent=0 // pred_fallthru
    _
  // Predicated region
  $region46: #{_lambda_.6} parent=0 // pred_check
    _
  $region47: #{_lambda_.6} parent=0 // pred_check_branch
    %48 = sbr.rel (0) target = $region49
  $region48: #{_lambda_.6} parent=0 // pred_region
    _
  $region49: #{_lambda_.6} parent=0 // pred_fallthru
    _
  // Predicated region
  $region50: #{_lambda_.6} parent=0 // pred_check
    _
  $region51: #{_lambda_.6} parent=0 // pred_check_branch
    %50 = sbr.rel (0) target = $region53
  $region52: #{_lambda_.6} parent=0 // pred_region
    _
  $region53: #{_lambda_.6} parent=0 // pred_fallthru
    _
  // Predicated region
  $region54: #{_lambda_.6} parent=0 // pred_check
    _
  $region55: #{_lambda_.6} parent=0 // pred_check_branch
    %52 = sbr.rel (0) target = $region57
  $region56: #{_lambda_.6} parent=0 // pred_region
    _
  $region57: #{_lambda_.6} parent=0 // pred_fallthru
    _
  // Predicated region
  $region58: #{_lambda_.6} parent=0 // pred_check
    _
  $region59: #{_lambda_.6} parent=0 // pred_check_branch
    %54 = sbr.rel (0) target = $region61
  $region60: #{_lambda_.6} parent=0 // pred_region
    _
  $region61: #{_lambda_.6} parent=0 // pred_fallthru
    _
  // Predicated region
  $region62: #{_lambda_.6} parent=0 // pred_check
    _
  $region63: #{_lambda_.6} parent=0 // pred_check_branch
    %56 = sbr.rel (0) target = $region65
  $region64: #{_lambda_.6} parent=0 // pred_region
    _
  $region65: #{_lambda_.6} parent=0 // pred_fallthru
    _
  // Predicated region
  $region66: #{_lambda_.6} parent=0 // pred_check
    _
  $region67: #{_lambda_.6} parent=0 // pred_check_branch
    %58 = sbr.rel (0) target = $region69
  $region68: #{_lambda_.6} parent=0 // pred_region
    _
  $region69: #{_lambda_.6} parent=0 // pred_fallthru
    _
  // Predicated region
  $region70: #{_lambda_.6} parent=0 // pred_check
    _
  $region71: #{_lambda_.6} parent=0 // pred_check_branch
    %60 = sbr.rel (0) target = $region73
  $region72: #{_lambda_.6} parent=0 // pred_region
    _
  $region73: #{_lambda_.6} parent=0 // pred_fallthru
    _
  // Predicated region
  $region74: #{_lambda_.6} parent=0 // pred_check
    _
  $region75: #{_lambda_.6} parent=0 // pred_check_branch
    %62 = sbr.rel (0) target = $region77
  $region76: #{_lambda_.6} parent=0 // pred_region
    _
  $region77: #{_lambda_.6} parent=0 // pred_fallthru
    _
  // Predicated region
  $region78: #{_lambda_.6} parent=0 // pred_check
    _
  $region79: #{_lambda_.6} parent=0 // pred_check_branch
    %64 = sbr.rel (0) target = $region81
  $region80: #{_lambda_.6} parent=0 // pred_region
    _
  $region81: #{_lambda_.6} parent=0 // pred_fallthru
    _
  %vm66 = vcmask 1043456
  %vm67 = vcmask 146436
  %vm68 = vmor %vm67, %vm66
  %69 = vst.msk [vmem:[#allocation2] sm:$0xff] %vm68, 0
  %v70 = vld [vmem:[%s1] sm:$0xf]
  %v71 = vld [vmem:[%s1 + $0x4] sm:$0xf]
  %vm72 = vcmask 72708
  %vm73 = vmor %vm72, %vm66
  %74 = vst.msk [vmem:[#allocation3] sm:$0xff] %vm73, 0
  %75 = vst.msk [vmem:[#allocation3 + $0x8] sm:$0xff] %vm73, 0
  %76 = vst.msk [vmem:[#allocation3 + $0x10] sm:$0xff] %vm73, 0
  %77 = vst.msk [vmem:[#allocation3 + $0x18] sm:$0xff] %vm73, 0
  %v78 = vld [vmem:[%s0] sm:$0xf]
  %v79 = vld [vmem:[%s0 + $0x4] sm:$0xf]
  %v80 = vld [vmem:[%s0 + $0x8] sm:$0xf]
  %v81 = vld [vmem:[%s0 + $0xc] sm:$0xf]
  %83 = vrot.lane.b32.xlu0 %v78, 9
  %v84 = vpop.permute.xlu0 %83
  %v85 = vrot.slane %v84, 4
  %vm86 = vcmask 72704
  %v87 = vsel %vm86, %v85, %v84
  %vm89 = vcmask 1043528
  %vm90 = vmor %vm72, %vm89
  %91 = vst.msk [vmem:[#allocation3] sm:$0xff] %vm90, %v87
  %93 = vrot.lane.b32.xlu0 %v79, 9
  %v94 = vpop.permute.xlu0 %93
  %v95 = vrot.slane %v94, 4
  %v96 = vsel %vm86, %v95, %v94
  %98 = vst.msk [vmem:[#allocation3 + $0x8] sm:$0xff] %vm90, %v96
  %100 = vrot.lane.b32.xlu0 %v80, 9
  %v101 = vpop.permute.xlu0 %100
  %v102 = vrot.slane %v101, 4
  %v103 = vsel %vm86, %v102, %v101
  %105 = vst.msk [vmem:[#allocation3 + $0x10] sm:$0xff] %vm90, %v103
  %107 = vrot.lane.b32.xlu0 %v81, 9
  %v108 = vpop.permute.xlu0 %107
  %v109 = vrot.slane %v108, 4
  %v110 = vsel %vm86, %v109, %v108
  %112 = vst.msk [vmem:[#allocation3 + $0x18] sm:$0xff] %vm90, %v110
  %v113 = vld [vmem:[#allocation3 + $0x18] sm:$0xf]
  %v114 = vld [vmem:[%s4] sm:$0x1]
  %v116 = vpack.i.b16 %v114, %v114
  %v118 = vperm.slane %v116, 0
  %v119 = vunpack.c.l.bf16 %v113
  %v120 = vunpack.c.l.bf16 %v118
  %v121 = vmul.f32 %v119, %v120
  %v122 = vpack.c.bf16 %v121, %v121
  %v123 = vld [vmem:[%s2] sm:$0xf]
  %v124 = vld [vmem:[#allocation3 + $0x10] sm:$0xff]
  %v125 = vshrl.u32 %v114, 16
  %v126 = vpack.i.b16 %v125, %v125
  %v128 = vperm.slane %v126, 0
  %v129 = vunpack.c.l.bf16 %v124
  %v130 = vunpack.c.h.bf16 %v124
  %v131 = vunpack.c.l.bf16 %v128
  %133 = vrot.lane.b32.xlu0 %v131, 1
  %v134 = vpop.permute.xlu0 %133
  %v136 = vmul.f32 %v129, %v134
  %v137 = vmul.f32 %v130, %v134
  %v138 = vpack.c.bf16 %v136, %v136
  %v139 = vpack.c.bf16 %v137, %v137
  %s140 = scalar_lea.vmem %s2, 4
  %v141 = vld [vmem:[%s140] sm:$0xf]
  %144 = vrot.lane.b32.xlu0 %v138, 127
  %v145 = vpop.permute.xlu0 %144
  %146 = vrot.lane.b32.xlu0 %v139, 127
  %v147 = vpop.permute.xlu0 %146
  %vm148 = vcmask 1039360
  %v149 = vsel %vm148, %v145, %v147
  %vm150 = vcmask 64512
  %v152 = vsel %vm150, %v141, 0
  %v155 = vsel %vm66, %v149, 0
  %157 = vmatpush.bf16.msra.mxu0 0
  %158 = vmatpush.bf16.msra.mxu0 0
  %159 = vmatpush.bf16.msra.mxu0 0
  %160 = vmatpush.bf16.msra.mxu0 0
  %161 = vmatpush.bf16.msra.mxu0 0
  %162 = vmatpush.bf16.msra.mxu0 0
  %163 = vmatpush.bf16.msra.mxu0 0
  %164 = vmatpush.bf16.msra.mxu0 %v155
  %165 = vmatmul.bf16.gmra.mxu0 %v152
  %v166 = vpop.f32.mrf.mxu0
  %v167 = vadd.f32 0.0, %v166
  %v168 = vpop.f32.mrf.mxu0
  %169 = vdwg.mxu0
  %v171 = vsel %vm150, %v123, 0
  %v174 = vsel %vm66, %v122, 0
  %176 = vmatpush.bf16.msra.mxu0 0
  %177 = vmatpush.bf16.msra.mxu0 0
  %178 = vmatpush.bf16.msra.mxu0 0
  %179 = vmatpush.bf16.msra.mxu0 0
  %180 = vmatpush.bf16.msra.mxu0 0
  %181 = vmatpush.bf16.msra.mxu0 0
  %182 = vmatpush.bf16.msra.mxu0 0
  %183 = vmatpush.bf16.msra.mxu0 %v174
  %184 = vmatmul.bf16.gmra.mxu0 %v171
  %v185 = vpop.f32.mrf.mxu0
  %v186 = vadd.f32 %v167, %v185
  %v187 = vpop.f32.mrf.mxu0
  %188 = vdwg.mxu0
  %v189 = vld [vmem:[#allocation3 + $0x18] sm:$0xff]
  %v190 = vld [vmem:[%s4] sm:$0x2]
  %v192 = vpack.i.b16 %v190, %v190
  %v194 = vperm.slane %v192, 1
  %v195 = vunpack.c.l.bf16 %v189
  %v196 = vunpack.c.h.bf16 %v189
  %v197 = vunpack.c.l.bf16 %v194
  %199 = vrot.lane.b32.xlu0 %v197, 1
  %v200 = vpop.permute.xlu0 %199
  %v202 = vmul.f32 %v195, %v200
  %v203 = vmul.f32 %v196, %v200
  %v204 = vpack.c.bf16 %v202, %v202
  %v205 = vpack.c.bf16 %v203, %v203
  %s206 = scalar_lea.vmem %s2, 8
  %v207 = vld [vmem:[%s206] sm:$0xf]
  %210 = vrot.lane.b32.xlu0 %v204, 127
  %v211 = vpop.permute.xlu0 %210
  %212 = vrot.lane.b32.xlu0 %v205, 127
  %v213 = vpop.permute.xlu0 %212
  %v214 = vsel %vm148, %v211, %v213
  %v216 = vsel %vm150, %v207, 0
  %v219 = vsel %vm66, %v214, 0
  %221 = vmatpush.bf16.msra.mxu0 0
  %222 = vmatpush.bf16.msra.mxu0 0
  %223 = vmatpush.bf16.msra.mxu0 0
  %224 = vmatpush.bf16.msra.mxu0 0
  %225 = vmatpush.bf16.msra.mxu0 0
  %226 = vmatpush.bf16.msra.mxu0 0
  %227 = vmatpush.bf16.msra.mxu0 0
  %228 = vmatpush.bf16.msra.mxu0 %v219
  %229 = vmatmul.bf16.gmra.mxu0 %v216
  %v230 = vpop.f32.mrf.mxu0
  %v231 = vadd.f32 0.0, %v230
  %v232 = vpop.f32.mrf.mxu0
  %233 = vdwg.mxu0
  %v234 = vadd.f32 %v186, %v231
  %v235 = vld [vmem:[#allocation3 + $0x8] sm:$0xff]
  %v236 = vshrl.u32 %v190, 16
  %v237 = vpack.i.b16 %v236, %v236
  %v239 = vperm.slane %v237, 1
  %v240 = vunpack.c.l.bf16 %v235
  %v241 = vunpack.c.h.bf16 %v235
  %v242 = vunpack.c.l.bf16 %v239
  %244 = vrot.lane.b32.xlu0 %v242, 8
  %v245 = vpop.permute.xlu0 %244
  %v247 = vmul.f32 %v240, %v245
  %v248 = vmul.f32 %v241, %v245
  %v249 = vpack.c.bf16 %v247, %v247
  %v250 = vpack.c.bf16 %v248, %v248
  %s251 = scalar_lea.vmem %s2, 12
  %v252 = vld [vmem:[%s251] sm:$0xf]
  %255 = vrot.lane.b32.xlu0 %v249, 120
  %v256 = vpop.permute.xlu0 %255
  %257 = vrot.lane.b32.xlu0 %v250, 120
  %v258 = vpop.permute.xlu0 %257
  %vm259 = vcmask 982016
  %v260 = vsel %vm259, %v256, %v258
  %v262 = vsel %vm150, %v252, 0
  %v265 = vsel %vm66, %v260, 0
  %267 = vmatpush.bf16.msra.mxu0 0
  %268 = vmatpush.bf16.msra.mxu0 0
  %269 = vmatpush.bf16.msra.mxu0 0
  %270 = vmatpush.bf16.msra.mxu0 0
  %271 = vmatpush.bf16.msra.mxu0 0
  %272 = vmatpush.bf16.msra.mxu0 0
  %273 = vmatpush.bf16.msra.mxu0 0
  %274 = vmatpush.bf16.msra.mxu0 %v265
  %275 = vmatmul.bf16.gmra.mxu0 %v262
  %v276 = vpop.f32.mrf.mxu0
  %v277 = vadd.f32 0.0, %v276
  %v278 = vpop.f32.mrf.mxu0
  %279 = vdwg.mxu0
  %v280 = vadd.f32 %v234, %v277
  %v281 = vld [vmem:[#allocation3] sm:$0xff]
  %s282 = scalar_lea.vmem %s2, 16
  %v283 = vld [vmem:[%s282] sm:$0xf]
  %v285 = vunpack.c.l.b16 %v281
  %v286 = vunpack.c.h.b16 %v281
  %v287 = vpack.c.b16 %v285, %v285
  %v288 = vpack.c.b16 %v286, %v286
  %289 = vrot.lane.b32.xlu0 %v287, 119
  %v290 = vpop.permute.xlu0 %289
  %291 = vrot.lane.b32.xlu0 %v288, 119
  %v292 = vpop.permute.xlu0 %291
  %vm293 = vcmask 973824
  %v294 = vsel %vm293, %v290, %v292
  %v296 = vsel %vm150, %v283, 0
  %v299 = vsel %vm66, %v294, 0
  %301 = vmatpush.bf16.msra.mxu0 0
  %302 = vmatpush.bf16.msra.mxu0 0
  %303 = vmatpush.bf16.msra.mxu0 0
  %304 = vmatpush.bf16.msra.mxu0 0
  %305 = vmatpush.bf16.msra.mxu0 0
  %306 = vmatpush.bf16.msra.mxu0 0
  %307 = vmatpush.bf16.msra.mxu0 0
  %308 = vmatpush.bf16.msra.mxu0 %v299
  %309 = vmatmul.bf16.gmra.mxu0 %v296
  %v310 = vpop.f32.mrf.mxu0
  %v311 = vadd.f32 0.0, %v310
  %v312 = vpop.f32.mrf.mxu0
  %313 = vdwg.mxu0
  %v314 = vadd.f32 %v280, %v311
  %s315 = scalar_lea.vmem %s2, 20
  %v316 = vld [vmem:[%s315] sm:$0xf]
  %v318 = vunpack.c.l.b16 %v235
  %v319 = vunpack.c.h.b16 %v235
  %v320 = vpack.c.b16 %v318, %v318
  %v321 = vpack.c.b16 %v319, %v319
  %322 = vrot.lane.b32.xlu0 %v320, 119
  %v323 = vpop.permute.xlu0 %322
  %324 = vrot.lane.b32.xlu0 %v321, 119
  %v325 = vpop.permute.xlu0 %324
  %v326 = vsel %vm293, %v323, %v325
  %v328 = vsel %vm150, %v316, 0
  %v331 = vsel %vm66, %v326, 0
  %333 = vmatpush.bf16.msra.mxu0 0
  %334 = vmatpush.bf16.msra.mxu0 0
  %335 = vmatpush.bf16.msra.mxu0 0
  %336 = vmatpush.bf16.msra.mxu0 0
  %337 = vmatpush.bf16.msra.mxu0 0
  %338 = vmatpush.bf16.msra.mxu0 0
  %339 = vmatpush.bf16.msra.mxu0 0
  %340 = vmatpush.bf16.msra.mxu0 %v331
  %341 = vmatmul.bf16.gmra.mxu0 %v328
  %v342 = vpop.f32.mrf.mxu0
  %v343 = vadd.f32 0.0, %v342
  %v344 = vpop.f32.mrf.mxu0
  %345 = vdwg.mxu0
  %v346 = vadd.f32 %v314, %v343
  %v347 = vld [vmem:[%s4] sm:$0x8]
  %v349 = vpack.i.b16 %v347, %v347
  %v351 = vperm.slane %v349, 3
  %v352 = vunpack.c.l.bf16 %v351
  %354 = vrot.lane.b32.xlu0 %v352, 8
  %v355 = vpop.permute.xlu0 %354
  %v357 = vmul.f32 %v195, %v355
  %v358 = vmul.f32 %v196, %v355
  %v359 = vpack.c.bf16 %v357, %v357
  %v360 = vpack.c.bf16 %v358, %v358
  %s361 = scalar_lea.vmem %s2, 24
  %v362 = vld [vmem:[%s361] sm:$0xf]
  %365 = vrot.lane.b32.xlu0 %v359, 120
  %v366 = vpop.permute.xlu0 %365
  %367 = vrot.lane.b32.xlu0 %v360, 120
  %v368 = vpop.permute.xlu0 %367
  %v369 = vsel %vm259, %v366, %v368
  %v371 = vsel %vm150, %v362, 0
  %v374 = vsel %vm66, %v369, 0
  %376 = vmatpush.bf16.msra.mxu0 0
  %377 = vmatpush.bf16.msra.mxu0 0
  %378 = vmatpush.bf16.msra.mxu0 0
  %379 = vmatpush.bf16.msra.mxu0 0
  %380 = vmatpush.bf16.msra.mxu0 0
  %381 = vmatpush.bf16.msra.mxu0 0
  %382 = vmatpush.bf16.msra.mxu0 0
  %383 = vmatpush.bf16.msra.mxu0 %v374
  %384 = vmatmul.bf16.gmra.mxu0 %v371
  %v385 = vpop.f32.mrf.mxu0
  %v386 = vadd.f32 0.0, %v385
  %v387 = vpop.f32.mrf.mxu0
  %388 = vdwg.mxu0
  %v389 = vadd.f32 %v346, %v386
  %s390 = scalar_lea.vmem %s2, 28
  %v391 = vld [vmem:[%s390] sm:$0xf]
  %v393 = vunpack.c.l.b16 %v124
  %v394 = vunpack.c.h.b16 %v124
  %v395 = vpack.c.b16 %v393, %v393
  %v396 = vpack.c.b16 %v394, %v394
  %397 = vrot.lane.b32.xlu0 %v395, 119
  %v398 = vpop.permute.xlu0 %397
  %399 = vrot.lane.b32.xlu0 %v396, 119
  %v400 = vpop.permute.xlu0 %399
  %v401 = vsel %vm293, %v398, %v400
  %v403 = vsel %vm150, %v391, 0
  %v406 = vsel %vm66, %v401, 0
  %408 = vmatpush.bf16.msra.mxu0 0
  %409 = vmatpush.bf16.msra.mxu0 0
  %410 = vmatpush.bf16.msra.mxu0 0
  %411 = vmatpush.bf16.msra.mxu0 0
  %412 = vmatpush.bf16.msra.mxu0 0
  %413 = vmatpush.bf16.msra.mxu0 0
  %414 = vmatpush.bf16.msra.mxu0 0
  %415 = vmatpush.bf16.msra.mxu0 %v406
  %416 = vmatmul.bf16.gmra.mxu0 %v403
  %v417 = vpop.f32.mrf.mxu0
  %v418 = vadd.f32 0.0, %v417
  %v419 = vpop.f32.mrf.mxu0
  %420 = vdwg.mxu0
  %v421 = vadd.f32 %v389, %v418
  %s422 = scalar_lea.vmem %s2, 32
  %v423 = vld [vmem:[%s422] sm:$0xf]
  %v425 = vunpack.c.l.b16 %v189
  %v426 = vunpack.c.h.b16 %v189
  %v427 = vpack.c.b16 %v425, %v425
  %v428 = vpack.c.b16 %v426, %v426
  %429 = vrot.lane.b32.xlu0 %v427, 119
  %v430 = vpop.permute.xlu0 %429
  %431 = vrot.lane.b32.xlu0 %v428, 119
  %v432 = vpop.permute.xlu0 %431
  %v433 = vsel %vm293, %v430, %v432
  %v435 = vsel %vm150, %v423, 0
  %v438 = vsel %vm66, %v433, 0
  %440 = vmatpush.bf16.msra.mxu0 0
  %441 = vmatpush.bf16.msra.mxu0 0
  %442 = vmatpush.bf16.msra.mxu0 0
  %443 = vmatpush.bf16.msra.mxu0 0
  %444 = vmatpush.bf16.msra.mxu0 0
  %445 = vmatpush.bf16.msra.mxu0 0
  %446 = vmatpush.bf16.msra.mxu0 0
  %447 = vmatpush.bf16.msra.mxu0 %v438
  %448 = vmatmul.bf16.gmra.mxu0 %v435
  %v449 = vpop.f32.mrf.mxu0
  %v450 = vadd.f32 0.0, %v449
  %v451 = vpop.f32.mrf.mxu0
  %452 = vdwg.mxu0
  %v453 = vadd.f32 %v421, %v450
  %v454 = vld [vmem:[%s3] sm:$0xff]
  %456 = vset.pattern.permute.xlu0 0
  %457 = vperm.xlu0 %456, %v454
  %v458 = vpop.permute.xlu0 %457
  %v460 = vadd.f32 %v453, %v458
  %v461 = vand.u32 2147483647, %v460
  %v462 = vsub.f32 0.0, %v461
  %v463 = vmul.f32 %v462, 1.442695
  %v464 = vpow.pop %v463
  %v465 = vadd.f32 %v464, 1.0
  %v466 = vmul.f32 %v465, %v465
  %vm467 = vcmp.ge.f32.partialorder %v460, 0.0
  %v468 = vmul.f32 %v464, %v464
  %v469 = vsel %vm467, %v468, 1.0
  %v470 = vsub.f32 %v466, %v469
  %v471 = vmul.f32 %v460, %v470
  %v472 = vadd.f32 %v466, %v469
  %v473 = vrcp.pop %v472
  %v474 = vmul.f32 %v471, %v473
  %v475 = vpack.c.bf16 %v474, %v474
  %v476 = vld [vmem:[%s5] sm:$0xf]
  %v477 = vld [vmem:[%s7] sm:$0xf]
  %v478 = vld [vmem:[%s9] sm:$0xff]
  %v481 = vunpack.c.l.b16 %v70
  %v482 = vunpack.c.l.b16 %v71
  %v483 = vpack.c.b16 %v482, %v481
  %vm485 = vcmask 130048
  %v487 = vsel %vm485, %v477, 0
  %489 = vmatpush.bf16.msra.mxu0 0
  %490 = vmatpush.bf16.msra.mxu0 0
  %491 = vmatpush.bf16.msra.mxu0 0
  %492 = vmatpush.bf16.msra.mxu0 0
  %493 = vmatpush.bf16.msra.mxu0 0
  %494 = vmatpush.bf16.msra.mxu0 0
  %495 = vmatpush.bf16.msra.mxu0 0
  %496 = vmatpush.bf16.msra.mxu0 %v483
  %497 = vmatmul.bf16.gmra.mxu0 %v487
  %v498 = vpop.f32.mrf.mxu0
  %v499 = vadd.f32 0.0, %v498
  %v500 = vpop.f32.mrf.mxu0
  %501 = vdwg.mxu0
  %v503 = vsel %vm150, %v476, 0
  %v506 = vsel %vm66, %v475, 0
  %508 = vmatpush.bf16.msra.mxu0 0
  %509 = vmatpush.bf16.msra.mxu0 0
  %510 = vmatpush.bf16.msra.mxu0 0
  %511 = vmatpush.bf16.msra.mxu0 0
  %512 = vmatpush.bf16.msra.mxu0 0
  %513 = vmatpush.bf16.msra.mxu0 0
  %514 = vmatpush.bf16.msra.mxu0 0
  %515 = vmatpush.bf16.msra.mxu0 %v506
  %516 = vmatmul.bf16.gmra.mxu0 %v503
  %v517 = vpop.f32.mrf.mxu0
  %v518 = vadd.f32 %v499, %v517
  %v519 = vpop.f32.mrf.mxu0
  %520 = vdwg.mxu0
  %522 = vset.pattern.permute.xlu0 0
  %523 = vperm.xlu0 %522, %v478
  %v524 = vpop.permute.xlu0 %523
  %v526 = vadd.f32 %v518, %v524
  %v527 = vand.u32 2147483647, %v526
  %v528 = vsub.f32 0.0, %v527
  %v529 = vmul.f32 %v528, 1.442695
  %v530 = vpow.pop %v529
  %v531 = vadd.f32 %v530, 1.0
  %v532 = vmul.f32 %v531, %v531
  %vm533 = vcmp.ge.f32.partialorder %v526, 0.0
  %v534 = vmul.f32 %v530, %v530
  %v535 = vsel %vm533, %v534, 1.0
  %v536 = vsub.f32 %v532, %v535
  %v537 = vmul.f32 %v526, %v536
  %v538 = vadd.f32 %v532, %v535
  %v539 = vrcp.pop %v538
  %v540 = vmul.f32 %v537, %v539
  %v541 = vld [vmem:[%s6] sm:$0xf]
  %v542 = vld [vmem:[%s8] sm:$0xf]
  %v543 = vld [vmem:[%s10] sm:$0xff]
  %v545 = vsel %vm485, %v542, 0
  %547 = vmatpush.bf16.msra.mxu0 0
  %548 = vmatpush.bf16.msra.mxu0 0
  %549 = vmatpush.bf16.msra.mxu0 0
  %550 = vmatpush.bf16.msra.mxu0 0
  %551 = vmatpush.bf16.msra.mxu0 0
  %552 = vmatpush.bf16.msra.mxu0 0
  %553 = vmatpush.bf16.msra.mxu0 0
  %554 = vmatpush.bf16.msra.mxu0 %v483
  %555 = vmatmul.bf16.gmra.mxu0 %v545
  %v556 = vpop.f32.mrf.mxu0
  %v557 = vadd.f32 0.0, %v556
  %v558 = vpop.f32.mrf.mxu0
  %559 = vdwg.mxu0
  %v561 = vsel %vm150, %v541, 0
  %563 = vmatpush.bf16.msra.mxu0 0
  %564 = vmatpush.bf16.msra.mxu0 0
  %565 = vmatpush.bf16.msra.mxu0 0
  %566 = vmatpush.bf16.msra.mxu0 0
  %567 = vmatpush.bf16.msra.mxu0 0
  %568 = vmatpush.bf16.msra.mxu0 0
  %569 = vmatpush.bf16.msra.mxu0 0
  %570 = vmatpush.bf16.msra.mxu0 %v506
  %571 = vmatmul.bf16.gmra.mxu0 %v561
  %v572 = vpop.f32.mrf.mxu0
  %v573 = vadd.f32 %v557, %v572
  %v574 = vpop.f32.mrf.mxu0
  %575 = vdwg.mxu0
  %577 = vset.pattern.permute.xlu0 0
  %578 = vperm.xlu0 %577, %v543
  %v579 = vpop.permute.xlu0 %578
  %v581 = vadd.f32 %v573, %v579
  %v582 = vand.u32 2147483647, %v581
  %v583 = vsub.f32 0.0, %v582
  %v584 = vmul.f32 %v583, 1.442695
  %v585 = vpow.pop %v584
  %v586 = vadd.f32 %v585, 1.0
  %v587 = vmul.f32 %v586, %v586
  %vm588 = vcmp.ge.f32.partialorder %v581, 0.0
  %v589 = vmul.f32 %v585, %v585
  %v590 = vsel %vm588, %v589, 1.0
  %v591 = vsub.f32 %v587, %v590
  %v592 = vmul.f32 %v581, %v591
  %v593 = vadd.f32 %v587, %v590
  %v594 = vrcp.pop %v593
  %v595 = vmul.f32 %v592, %v594
  %v596 = vpack.c.bf16 %v595, %v595
  %598 = vrot.lane.b32.xlu0 %v596, 9
  %v599 = vpop.permute.xlu0 %598
  %v600 = vrot.slane %v599, 4
  %v601 = vsel %vm86, %v600, %v599
  %603 = vst.msk [vmem:[#allocation2] sm:$0xff] %vm90, %v601
  %v604 = vld [vmem:[#allocation2] sm:$0xf]
  %v605 = vld [vmem:[%s15] sm:$0x1]
  %v607 = vpack.i.b16 %v605, %v605
  %v609 = vperm.slane %v607, 0
  %v610 = vunpack.c.l.bf16 %v604
  %v611 = vunpack.c.l.bf16 %v609
  %v612 = vmul.f32 %v610, %v611
  %v613 = vpack.c.bf16 %v612, %v612
  %v614 = vld [vmem:[%s11] sm:$0xf]
  %v615 = vld [vmem:[#allocation2] sm:$0xff]
  %v616 = vshrl.u32 %v605, 16
  %v617 = vpack.i.b16 %v616, %v616
  %v619 = vperm.slane %v617, 0
  %v620 = vunpack.c.l.bf16 %v615
  %v621 = vunpack.c.h.bf16 %v615
  %v622 = vunpack.c.l.bf16 %v619
  %624 = vrot.lane.b32.xlu0 %v622, 1
  %v625 = vpop.permute.xlu0 %624
  %v627 = vmul.f32 %v620, %v625
  %v628 = vmul.f32 %v621, %v625
  %v629 = vpack.c.bf16 %v627, %v627
  %v630 = vpack.c.bf16 %v628, %v628
  %s631 = scalar_lea.vmem %s11, 4
  %v632 = vld [vmem:[%s631] sm:$0xf]
  %635 = vrot.lane.b32.xlu0 %v629, 127
  %v636 = vpop.permute.xlu0 %635
  %637 = vrot.lane.b32.xlu0 %v630, 127
  %v638 = vpop.permute.xlu0 %637
  %v639 = vsel %vm148, %v636, %v638
  %v641 = vsel %vm150, %v632, 0
  %v644 = vsel %vm66, %v639, 0
  %646 = vmatpush.bf16.msra.mxu0 0
  %647 = vmatpush.bf16.msra.mxu0 0
  %648 = vmatpush.bf16.msra.mxu0 0
  %649 = vmatpush.bf16.msra.mxu0 0
  %650 = vmatpush.bf16.msra.mxu0 0
  %651 = vmatpush.bf16.msra.mxu0 0
  %652 = vmatpush.bf16.msra.mxu0 0
  %653 = vmatpush.bf16.msra.mxu0 %v644
  %654 = vmatmul.bf16.gmra.mxu0 %v641
  %v655 = vpop.f32.mrf.mxu0
  %v656 = vadd.f32 0.0, %v655
  %v657 = vpop.f32.mrf.mxu0
  %658 = vdwg.mxu0
  %v660 = vsel %vm150, %v614, 0
  %v663 = vsel %vm66, %v613, 0
  %665 = vmatpush.bf16.msra.mxu0 0
  %666 = vmatpush.bf16.msra.mxu0 0
  %667 = vmatpush.bf16.msra.mxu0 0
  %668 = vmatpush.bf16.msra.mxu0 0
  %669 = vmatpush.bf16.msra.mxu0 0
  %670 = vmatpush.bf16.msra.mxu0 0
  %671 = vmatpush.bf16.msra.mxu0 0
  %672 = vmatpush.bf16.msra.mxu0 %v663
  %673 = vmatmul.bf16.gmra.mxu0 %v660
  %v674 = vpop.f32.mrf.mxu0
  %v675 = vadd.f32 %v656, %v674
  %v676 = vpop.f32.mrf.mxu0
  %677 = vdwg.mxu0
  %v678 = vld [vmem:[%s15] sm:$0x2]
  %v680 = vpack.i.b16 %v678, %v678
  %v682 = vperm.slane %v680, 1
  %v683 = vunpack.c.l.bf16 %v682
  %685 = vrot.lane.b32.xlu0 %v683, 2
  %v686 = vpop.permute.xlu0 %685
  %v688 = vmul.f32 %v620, %v686
  %v689 = vmul.f32 %v621, %v686
  %v690 = vpack.c.bf16 %v688, %v688
  %v691 = vpack.c.bf16 %v689, %v689
  %s692 = scalar_lea.vmem %s11, 8
  %v693 = vld [vmem:[%s692] sm:$0xf]
  %696 = vrot.lane.b32.xlu0 %v690, 126
  %v697 = vpop.permute.xlu0 %696
  %698 = vrot.lane.b32.xlu0 %v691, 126
  %v699 = vpop.permute.xlu0 %698
  %vm700 = vcmask 1031168
  %v701 = vsel %vm700, %v697, %v699
  %v703 = vsel %vm150, %v693, 0
  %v706 = vsel %vm66, %v701, 0
  %708 = vmatpush.bf16.msra.mxu0 0
  %709 = vmatpush.bf16.msra.mxu0 0
  %710 = vmatpush.bf16.msra.mxu0 0
  %711 = vmatpush.bf16.msra.mxu0 0
  %712 = vmatpush.bf16.msra.mxu0 0
  %713 = vmatpush.bf16.msra.mxu0 0
  %714 = vmatpush.bf16.msra.mxu0 0
  %715 = vmatpush.bf16.msra.mxu0 %v706
  %716 = vmatmul.bf16.gmra.mxu0 %v703
  %v717 = vpop.f32.mrf.mxu0
  %v718 = vadd.f32 0.0, %v717
  %v719 = vpop.f32.mrf.mxu0
  %720 = vdwg.mxu0
  %v721 = vadd.f32 %v675, %v718
  %v722 = vshrl.u32 %v678, 16
  %v723 = vpack.i.b16 %v722, %v722
  %v725 = vperm.slane %v723, 1
  %v726 = vunpack.c.l.bf16 %v725
  %728 = vrot.lane.b32.xlu0 %v726, 8
  %v729 = vpop.permute.xlu0 %728
  %v731 = vmul.f32 %v620, %v729
  %v732 = vmul.f32 %v621, %v729
  %v733 = vpack.c.bf16 %v731, %v731
  %v734 = vpack.c.bf16 %v732, %v732
  %s735 = scalar_lea.vmem %s11, 12
  %v736 = vld [vmem:[%s735] sm:$0xf]
  %739 = vrot.lane.b32.xlu0 %v733, 120
  %v740 = vpop.permute.xlu0 %739
  %741 = vrot.lane.b32.xlu0 %v734, 120
  %v742 = vpop.permute.xlu0 %741
  %v743 = vsel %vm259, %v740, %v742
  %v745 = vsel %vm150, %v736, 0
  %v748 = vsel %vm66, %v743, 0
  %750 = vmatpush.bf16.msra.mxu0 0
  %751 = vmatpush.bf16.msra.mxu0 0
  %752 = vmatpush.bf16.msra.mxu0 0
  %753 = vmatpush.bf16.msra.mxu0 0
  %754 = vmatpush.bf16.msra.mxu0 0
  %755 = vmatpush.bf16.msra.mxu0 0
  %756 = vmatpush.bf16.msra.mxu0 0
  %757 = vmatpush.bf16.msra.mxu0 %v748
  %758 = vmatmul.bf16.gmra.mxu0 %v745
  %v759 = vpop.f32.mrf.mxu0
  %v760 = vadd.f32 0.0, %v759
  %v761 = vpop.f32.mrf.mxu0
  %762 = vdwg.mxu0
  %v763 = vadd.f32 %v721, %v760
  %s764 = scalar_lea.vmem %s11, 16
  %v765 = vld [vmem:[%s764] sm:$0xf]
  %v767 = vunpack.c.l.b16 %v615
  %v768 = vunpack.c.h.b16 %v615
  %v769 = vpack.c.b16 %v767, %v767
  %v770 = vpack.c.b16 %v768, %v768
  %771 = vrot.lane.b32.xlu0 %v769, 119
  %v772 = vpop.permute.xlu0 %771
  %773 = vrot.lane.b32.xlu0 %v770, 119
  %v774 = vpop.permute.xlu0 %773
  %v775 = vsel %vm293, %v772, %v774
  %v777 = vsel %vm150, %v765, 0
  %v780 = vsel %vm66, %v775, 0
  %782 = vmatpush.bf16.msra.mxu0 0
  %783 = vmatpush.bf16.msra.mxu0 0
  %784 = vmatpush.bf16.msra.mxu0 0
  %785 = vmatpush.bf16.msra.mxu0 0
  %786 = vmatpush.bf16.msra.mxu0 0
  %787 = vmatpush.bf16.msra.mxu0 0
  %788 = vmatpush.bf16.msra.mxu0 0
  %789 = vmatpush.bf16.msra.mxu0 %v780
  %790 = vmatmul.bf16.gmra.mxu0 %v777
  %v791 = vpop.f32.mrf.mxu0
  %v792 = vadd.f32 0.0, %v791
  %v793 = vpop.f32.mrf.mxu0
  %794 = vdwg.mxu0
  %v795 = vadd.f32 %v763, %v792
  %v796 = vld [vmem:[%s15] sm:$0x4]
  %v798 = vshrl.u32 %v796, 16
  %v799 = vpack.i.b16 %v798, %v798
  %v801 = vperm.slane %v799, 2
  %v802 = vunpack.c.l.bf16 %v801
  %804 = vrot.lane.b32.xlu0 %v802, 10
  %v805 = vpop.permute.xlu0 %804
  %v807 = vmul.f32 %v620, %v805
  %v808 = vmul.f32 %v621, %v805
  %v809 = vpack.c.bf16 %v807, %v807
  %v810 = vpack.c.bf16 %v808, %v808
  %s811 = scalar_lea.vmem %s11, 20
  %v812 = vld [vmem:[%s811] sm:$0xf]
  %815 = vrot.lane.b32.xlu0 %v809, 118
  %v816 = vpop.permute.xlu0 %815
  %817 = vrot.lane.b32.xlu0 %v810, 118
  %v818 = vpop.permute.xlu0 %817
  %vm819 = vcmask 965632
  %v820 = vsel %vm819, %v816, %v818
  %v822 = vsel %vm150, %v812, 0
  %v825 = vsel %vm66, %v820, 0
  %827 = vmatpush.bf16.msra.mxu0 0
  %828 = vmatpush.bf16.msra.mxu0 0
  %829 = vmatpush.bf16.msra.mxu0 0
  %830 = vmatpush.bf16.msra.mxu0 0
  %831 = vmatpush.bf16.msra.mxu0 0
  %832 = vmatpush.bf16.msra.mxu0 0
  %833 = vmatpush.bf16.msra.mxu0 0
  %834 = vmatpush.bf16.msra.mxu0 %v825
  %835 = vmatmul.bf16.gmra.mxu0 %v822
  %v836 = vpop.f32.mrf.mxu0
  %v837 = vadd.f32 0.0, %v836
  %v838 = vpop.f32.mrf.mxu0
  %839 = vdwg.mxu0
  %v840 = vadd.f32 %v795, %v837
  %v841 = vld [vmem:[%s15] sm:$0x8]
  %v843 = vpack.i.b16 %v841, %v841
  %v845 = vperm.slane %v843, 3
  %v846 = vunpack.c.l.bf16 %v845
  %848 = vrot.lane.b32.xlu0 %v846, 16
  %v849 = vpop.permute.xlu0 %848
  %v851 = vmul.f32 %v620, %v849
  %v852 = vmul.f32 %v621, %v849
  %v853 = vpack.c.bf16 %v851, %v851
  %v854 = vpack.c.bf16 %v852, %v852
  %s855 = scalar_lea.vmem %s11, 24
  %v856 = vld [vmem:[%s855] sm:$0xf]
  %859 = vrot.lane.b32.xlu0 %v853, 112
  %v860 = vpop.permute.xlu0 %859
  %861 = vrot.lane.b32.xlu0 %v854, 112
  %v862 = vpop.permute.xlu0 %861
  %vm863 = vcmask 916480
  %v864 = vsel %vm863, %v860, %v862
  %v866 = vsel %vm150, %v856, 0
  %v869 = vsel %vm66, %v864, 0
  %871 = vmatpush.bf16.msra.mxu0 0
  %872 = vmatpush.bf16.msra.mxu0 0
  %873 = vmatpush.bf16.msra.mxu0 0
  %874 = vmatpush.bf16.msra.mxu0 0
  %875 = vmatpush.bf16.msra.mxu0 0
  %876 = vmatpush.bf16.msra.mxu0 0
  %877 = vmatpush.bf16.msra.mxu0 0
  %878 = vmatpush.bf16.msra.mxu0 %v869
  %879 = vmatmul.bf16.gmra.mxu0 %v866
  %v880 = vpop.f32.mrf.mxu0
  %v881 = vadd.f32 0.0, %v880
  %v882 = vpop.f32.mrf.mxu0
  %883 = vdwg.mxu0
  %v884 = vadd.f32 %v840, %v881
  %v885 = vshrl.u32 %v841, 16
  %v886 = vpack.i.b16 %v885, %v885
  %v888 = vperm.slane %v886, 3
  %v889 = vunpack.c.l.bf16 %v888
  %891 = vrot.lane.b32.xlu0 %v889, 17
  %v892 = vpop.permute.xlu0 %891
  %v894 = vmul.f32 %v620, %v892
  %v895 = vmul.f32 %v621, %v892
  %v896 = vpack.c.bf16 %v894, %v894
  %v897 = vpack.c.bf16 %v895, %v895
  %s898 = scalar_lea.vmem %s11, 28
  %v899 = vld [vmem:[%s898] sm:$0xf]
  %902 = vrot.lane.b32.xlu0 %v896, 111
  %v903 = vpop.permute.xlu0 %902
  %904 = vrot.lane.b32.xlu0 %v897, 111
  %v905 = vpop.permute.xlu0 %904
  %vm906 = vcmask 908288
  %v907 = vsel %vm906, %v903, %v905
  %v909 = vsel %vm150, %v899, 0
  %v912 = vsel %vm66, %v907, 0
  %914 = vmatpush.bf16.msra.mxu0 0
  %915 = vmatpush.bf16.msra.mxu0 0
  %916 = vmatpush.bf16.msra.mxu0 0
  %917 = vmatpush.bf16.msra.mxu0 0
  %918 = vmatpush.bf16.msra.mxu0 0
  %919 = vmatpush.bf16.msra.mxu0 0
  %920 = vmatpush.bf16.msra.mxu0 0
  %921 = vmatpush.bf16.msra.mxu0 %v912
  %922 = vmatmul.bf16.gmra.mxu0 %v909
  %v923 = vpop.f32.mrf.mxu0
  %v924 = vadd.f32 0.0, %v923
  %v925 = vpop.f32.mrf.mxu0
  %926 = vdwg.mxu0
  %v927 = vadd.f32 %v884, %v924
  %v928 = vld [vmem:[%s15 + $0x4] sm:$0x1]
  %v930 = vpack.i.b16 %v928, %v928
  %v932 = vperm.slane %v930, 0
  %v933 = vunpack.c.l.bf16 %v932
  %935 = vrot.lane.b32.xlu0 %v933, 18
  %v936 = vpop.permute.xlu0 %935
  %v938 = vmul.f32 %v620, %v936
  %v939 = vmul.f32 %v621, %v936
  %v940 = vpack.c.bf16 %v938, %v938
  %v941 = vpack.c.bf16 %v939, %v939
  %s942 = scalar_lea.vmem %s11, 32
  %v943 = vld [vmem:[%s942] sm:$0xf]
  %946 = vrot.lane.b32.xlu0 %v940, 110
  %v947 = vpop.permute.xlu0 %946
  %948 = vrot.lane.b32.xlu0 %v941, 110
  %v949 = vpop.permute.xlu0 %948
  %vm950 = vcmask 900096
  %v951 = vsel %vm950, %v947, %v949
  %v953 = vsel %vm150, %v943, 0
  %v956 = vsel %vm66, %v951, 0
  %958 = vmatpush.bf16.msra.mxu0 0
  %959 = vmatpush.bf16.msra.mxu0 0
  %960 = vmatpush.bf16.msra.mxu0 0
  %961 = vmatpush.bf16.msra.mxu0 0
  %962 = vmatpush.bf16.msra.mxu0 0
  %963 = vmatpush.bf16.msra.mxu0 0
  %964 = vmatpush.bf16.msra.mxu0 0
  %965 = vmatpush.bf16.msra.mxu0 %v956
  %966 = vmatmul.bf16.gmra.mxu0 %v953
  %v967 = vpop.f32.mrf.mxu0
  %v968 = vadd.f32 0.0, %v967
  %v969 = vpop.f32.mrf.mxu0
  %970 = vdwg.mxu0
  %v971 = vadd.f32 %v927, %v968
  %v972 = vld [vmem:[%s12] sm:$0xff]
  %974 = vset.pattern.permute.xlu0 0
  %975 = vperm.xlu0 %974, %v972
  %v976 = vpop.permute.xlu0 %975
  %v978 = vadd.f32 %v971, %v976
  %v979 = vand.u32 2147483647, %v978
  %v980 = vsub.f32 0.0, %v979
  %v981 = vmul.f32 %v980, 1.442695
  %v982 = vpow.pop %v981
  %v983 = vadd.f32 %v982, 1.0
  %v984 = vmul.f32 %v983, %v983
  %vm985 = vcmp.ge.f32.partialorder %v978, 0.0
  %v986 = vmul.f32 %v982, %v982
  %v987 = vsel %vm985, %v986, 1.0
  %v988 = vsub.f32 %v984, %v987
  %v989 = vmul.f32 %v978, %v988
  %v990 = vadd.f32 %v984, %v987
  %v991 = vrcp.pop %v990
  %v992 = vmul.f32 %v989, %v991
  %v993 = vpack.c.bf16 %v992, %v992
  %995 = vrot.lane.b32.xlu0 %v993, 9
  %v996 = vpop.permute.xlu0 %995
  %v997 = vrot.slane %v996, 4
  %v998 = vsel %vm86, %v997, %v996
  %1000 = vst.msk [vmem:[#allocation2] sm:$0xff] %vm90, %v998
  %v1001 = vld [vmem:[#allocation2] sm:$0xf]
  %v1002 = vld [vmem:[%s15] sm:$0x1]
  %v1004 = vpack.i.b16 %v1002, %v1002
  %v1006 = vperm.slane %v1004, 0
  %v1007 = vunpack.c.l.bf16 %v1001
  %v1008 = vunpack.c.l.bf16 %v1006
  %v1009 = vmul.f32 %v1007, %v1008
  %v1010 = vpack.c.bf16 %v1009, %v1009
  %v1011 = vld [vmem:[%s13] sm:$0xf]
  %v1012 = vld [vmem:[#allocation2] sm:$0xff]
  %v1013 = vshrl.u32 %v1002, 16
  %v1014 = vpack.i.b16 %v1013, %v1013
  %v1016 = vperm.slane %v1014, 0
  %v1017 = vunpack.c.l.bf16 %v1012
  %v1018 = vunpack.c.h.bf16 %v1012
  %v1019 = vunpack.c.l.bf16 %v1016
  %1021 = vrot.lane.b32.xlu0 %v1019, 1
  %v1022 = vpop.permute.xlu0 %1021
  %v1024 = vmul.f32 %v1017, %v1022
  %v1025 = vmul.f32 %v1018, %v1022
  %v1026 = vpack.c.bf16 %v1024, %v1024
  %v1027 = vpack.c.bf16 %v1025, %v1025
  %s1028 = scalar_lea.vmem %s13, 4
  %v1029 = vld [vmem:[%s1028] sm:$0xf]
  %1032 = vrot.lane.b32.xlu0 %v1026, 127
  %v1033 = vpop.permute.xlu0 %1032
  %1034 = vrot.lane.b32.xlu0 %v1027, 127
  %v1035 = vpop.permute.xlu0 %1034
  %v1036 = vsel %vm148, %v1033, %v1035
  %v1038 = vsel %vm150, %v1029, 0
  %v1041 = vsel %vm66, %v1036, 0
  %1043 = vmatpush.bf16.msra.mxu0 0
  %1044 = vmatpush.bf16.msra.mxu0 0
  %1045 = vmatpush.bf16.msra.mxu0 0
  %1046 = vmatpush.bf16.msra.mxu0 0
  %1047 = vmatpush.bf16.msra.mxu0 0
  %1048 = vmatpush.bf16.msra.mxu0 0
  %1049 = vmatpush.bf16.msra.mxu0 0
  %1050 = vmatpush.bf16.msra.mxu0 %v1041
  %1051 = vmatmul.bf16.gmra.mxu0 %v1038
  %v1052 = vpop.f32.mrf.mxu0
  %v1053 = vadd.f32 0.0, %v1052
  %v1054 = vpop.f32.mrf.mxu0
  %1055 = vdwg.mxu0
  %v1057 = vsel %vm150, %v1011, 0
  %v1060 = vsel %vm66, %v1010, 0
  %1062 = vmatpush.bf16.msra.mxu0 0
  %1063 = vmatpush.bf16.msra.mxu0 0
  %1064 = vmatpush.bf16.msra.mxu0 0
  %1065 = vmatpush.bf16.msra.mxu0 0
  %1066 = vmatpush.bf16.msra.mxu0 0
  %1067 = vmatpush.bf16.msra.mxu0 0
  %1068 = vmatpush.bf16.msra.mxu0 0
  %1069 = vmatpush.bf16.msra.mxu0 %v1060
  %1070 = vmatmul.bf16.gmra.mxu0 %v1057
  %v1071 = vpop.f32.mrf.mxu0
  %v1072 = vadd.f32 %v1053, %v1071
  %v1073 = vpop.f32.mrf.mxu0
  %1074 = vdwg.mxu0
  %v1075 = vld [vmem:[%s15] sm:$0x2]
  %v1077 = vpack.i.b16 %v1075, %v1075
  %v1079 = vperm.slane %v1077, 1
  %v1080 = vunpack.c.l.bf16 %v1079
  %1082 = vrot.lane.b32.xlu0 %v1080, 2
  %v1083 = vpop.permute.xlu0 %1082
  %v1085 = vmul.f32 %v1017, %v1083
  %v1086 = vmul.f32 %v1018, %v1083
  %v1087 = vpack.c.bf16 %v1085, %v1085
  %v1088 = vpack.c.bf16 %v1086, %v1086
  %s1089 = scalar_lea.vmem %s13, 8
  %v1090 = vld [vmem:[%s1089] sm:$0xf]
  %1093 = vrot.lane.b32.xlu0 %v1087, 126
  %v1094 = vpop.permute.xlu0 %1093
  %1095 = vrot.lane.b32.xlu0 %v1088, 126
  %v1096 = vpop.permute.xlu0 %1095
  %v1097 = vsel %vm700, %v1094, %v1096
  %v1099 = vsel %vm150, %v1090, 0
  %v1102 = vsel %vm66, %v1097, 0
  %1104 = vmatpush.bf16.msra.mxu0 0
  %1105 = vmatpush.bf16.msra.mxu0 0
  %1106 = vmatpush.bf16.msra.mxu0 0
  %1107 = vmatpush.bf16.msra.mxu0 0
  %1108 = vmatpush.bf16.msra.mxu0 0
  %1109 = vmatpush.bf16.msra.mxu0 0
  %1110 = vmatpush.bf16.msra.mxu0 0
  %1111 = vmatpush.bf16.msra.mxu0 %v1102
  %1112 = vmatmul.bf16.gmra.mxu0 %v1099
  %v1113 = vpop.f32.mrf.mxu0
  %v1114 = vadd.f32 0.0, %v1113
  %v1115 = vpop.f32.mrf.mxu0
  %1116 = vdwg.mxu0
  %v1117 = vadd.f32 %v1072, %v1114
  %v1118 = vshrl.u32 %v1075, 16
  %v1119 = vpack.i.b16 %v1118, %v1118
  %v1121 = vperm.slane %v1119, 1
  %v1122 = vunpack.c.l.bf16 %v1121
  %1124 = vrot.lane.b32.xlu0 %v1122, 8
  %v1125 = vpop.permute.xlu0 %1124
  %v1127 = vmul.f32 %v1017, %v1125
  %v1128 = vmul.f32 %v1018, %v1125
  %v1129 = vpack.c.bf16 %v1127, %v1127
  %v1130 = vpack.c.bf16 %v1128, %v1128
  %s1131 = scalar_lea.vmem %s13, 12
  %v1132 = vld [vmem:[%s1131] sm:$0xf]
  %1135 = vrot.lane.b32.xlu0 %v1129, 120
  %v1136 = vpop.permute.xlu0 %1135
  %1137 = vrot.lane.b32.xlu0 %v1130, 120
  %v1138 = vpop.permute.xlu0 %1137
  %v1139 = vsel %vm259, %v1136, %v1138
  %v1141 = vsel %vm150, %v1132, 0
  %v1144 = vsel %vm66, %v1139, 0
  %1146 = vmatpush.bf16.msra.mxu0 0
  %1147 = vmatpush.bf16.msra.mxu0 0
  %1148 = vmatpush.bf16.msra.mxu0 0
  %1149 = vmatpush.bf16.msra.mxu0 0
  %1150 = vmatpush.bf16.msra.mxu0 0
  %1151 = vmatpush.bf16.msra.mxu0 0
  %1152 = vmatpush.bf16.msra.mxu0 0
  %1153 = vmatpush.bf16.msra.mxu0 %v1144
  %1154 = vmatmul.bf16.gmra.mxu0 %v1141
  %v1155 = vpop.f32.mrf.mxu0
  %v1156 = vadd.f32 0.0, %v1155
  %v1157 = vpop.f32.mrf.mxu0
  %1158 = vdwg.mxu0
  %v1159 = vadd.f32 %v1117, %v1156
  %s1160 = scalar_lea.vmem %s13, 16
  %v1161 = vld [vmem:[%s1160] sm:$0xf]
  %v1163 = vunpack.c.l.b16 %v1012
  %v1164 = vunpack.c.h.b16 %v1012
  %v1165 = vpack.c.b16 %v1163, %v1163
  %v1166 = vpack.c.b16 %v1164, %v1164
  %1167 = vrot.lane.b32.xlu0 %v1165, 119
  %v1168 = vpop.permute.xlu0 %1167
  %1169 = vrot.lane.b32.xlu0 %v1166, 119
  %v1170 = vpop.permute.xlu0 %1169
  %v1171 = vsel %vm293, %v1168, %v1170
  %v1173 = vsel %vm150, %v1161, 0
  %v1176 = vsel %vm66, %v1171, 0
  %1178 = vmatpush.bf16.msra.mxu0 0
  %1179 = vmatpush.bf16.msra.mxu0 0
  %1180 = vmatpush.bf16.msra.mxu0 0
  %1181 = vmatpush.bf16.msra.mxu0 0
  %1182 = vmatpush.bf16.msra.mxu0 0
  %1183 = vmatpush.bf16.msra.mxu0 0
  %1184 = vmatpush.bf16.msra.mxu0 0
  %1185 = vmatpush.bf16.msra.mxu0 %v1176
  %1186 = vmatmul.bf16.gmra.mxu0 %v1173
  %v1187 = vpop.f32.mrf.mxu0
  %v1188 = vadd.f32 0.0, %v1187
  %v1189 = vpop.f32.mrf.mxu0
  %1190 = vdwg.mxu0
  %v1191 = vadd.f32 %v1159, %v1188
  %v1192 = vld [vmem:[%s15] sm:$0x4]
  %v1194 = vshrl.u32 %v1192, 16
  %v1195 = vpack.i.b16 %v1194, %v1194
  %v1197 = vperm.slane %v1195, 2
  %v1198 = vunpack.c.l.bf16 %v1197
  %1200 = vrot.lane.b32.xlu0 %v1198, 10
  %v1201 = vpop.permute.xlu0 %1200
  %v1203 = vmul.f32 %v1017, %v1201
  %v1204 = vmul.f32 %v1018, %v1201
  %v1205 = vpack.c.bf16 %v1203, %v1203
  %v1206 = vpack.c.bf16 %v1204, %v1204
  %s1207 = scalar_lea.vmem %s13, 20
  %v1208 = vld [vmem:[%s1207] sm:$0xf]
  %1211 = vrot.lane.b32.xlu0 %v1205, 118
  %v1212 = vpop.permute.xlu0 %1211
  %1213 = vrot.lane.b32.xlu0 %v1206, 118
  %v1214 = vpop.permute.xlu0 %1213
  %v1215 = vsel %vm819, %v1212, %v1214
  %v1217 = vsel %vm150, %v1208, 0
  %v1220 = vsel %vm66, %v1215, 0
  %1222 = vmatpush.bf16.msra.mxu0 0
  %1223 = vmatpush.bf16.msra.mxu0 0
  %1224 = vmatpush.bf16.msra.mxu0 0
  %1225 = vmatpush.bf16.msra.mxu0 0
  %1226 = vmatpush.bf16.msra.mxu0 0
  %1227 = vmatpush.bf16.msra.mxu0 0
  %1228 = vmatpush.bf16.msra.mxu0 0
  %1229 = vmatpush.bf16.msra.mxu0 %v1220
  %1230 = vmatmul.bf16.gmra.mxu0 %v1217
  %v1231 = vpop.f32.mrf.mxu0
  %v1232 = vadd.f32 0.0, %v1231
  %v1233 = vpop.f32.mrf.mxu0
  %1234 = vdwg.mxu0
  %v1235 = vadd.f32 %v1191, %v1232
  %v1236 = vld [vmem:[%s15] sm:$0x8]
  %v1238 = vpack.i.b16 %v1236, %v1236
  %v1240 = vperm.slane %v1238, 3
  %v1241 = vunpack.c.l.bf16 %v1240
  %1243 = vrot.lane.b32.xlu0 %v1241, 16
  %v1244 = vpop.permute.xlu0 %1243
  %v1246 = vmul.f32 %v1017, %v1244
  %v1247 = vmul.f32 %v1018, %v1244
  %v1248 = vpack.c.bf16 %v1246, %v1246
  %v1249 = vpack.c.bf16 %v1247, %v1247
  %s1250 = scalar_lea.vmem %s13, 24
  %v1251 = vld [vmem:[%s1250] sm:$0xf]
  %1254 = vrot.lane.b32.xlu0 %v1248, 112
  %v1255 = vpop.permute.xlu0 %1254
  %1256 = vrot.lane.b32.xlu0 %v1249, 112
  %v1257 = vpop.permute.xlu0 %1256
  %v1258 = vsel %vm863, %v1255, %v1257
  %v1260 = vsel %vm150, %v1251, 0
  %v1263 = vsel %vm66, %v1258, 0
  %1265 = vmatpush.bf16.msra.mxu0 0
  %1266 = vmatpush.bf16.msra.mxu0 0
  %1267 = vmatpush.bf16.msra.mxu0 0
  %1268 = vmatpush.bf16.msra.mxu0 0
  %1269 = vmatpush.bf16.msra.mxu0 0
  %1270 = vmatpush.bf16.msra.mxu0 0
  %1271 = vmatpush.bf16.msra.mxu0 0
  %1272 = vmatpush.bf16.msra.mxu0 %v1263
  %1273 = vmatmul.bf16.gmra.mxu0 %v1260
  %v1274 = vpop.f32.mrf.mxu0
  %v1275 = vadd.f32 0.0, %v1274
  %v1276 = vpop.f32.mrf.mxu0
  %1277 = vdwg.mxu0
  %v1278 = vadd.f32 %v1235, %v1275
  %v1279 = vshrl.u32 %v1236, 16
  %v1280 = vpack.i.b16 %v1279, %v1279
  %v1282 = vperm.slane %v1280, 3
  %v1283 = vunpack.c.l.bf16 %v1282
  %1285 = vrot.lane.b32.xlu0 %v1283, 17
  %v1286 = vpop.permute.xlu0 %1285
  %v1288 = vmul.f32 %v1017, %v1286
  %v1289 = vmul.f32 %v1018, %v1286
  %v1290 = vpack.c.bf16 %v1288, %v1288
  %v1291 = vpack.c.bf16 %v1289, %v1289
  %s1292 = scalar_lea.vmem %s13, 28
  %v1293 = vld [vmem:[%s1292] sm:$0xf]
  %1296 = vrot.lane.b32.xlu0 %v1290, 111
  %v1297 = vpop.permute.xlu0 %1296
  %1298 = vrot.lane.b32.xlu0 %v1291, 111
  %v1299 = vpop.permute.xlu0 %1298
  %v1300 = vsel %vm906, %v1297, %v1299
  %v1302 = vsel %vm150, %v1293, 0
  %v1305 = vsel %vm66, %v1300, 0
  %1307 = vmatpush.bf16.msra.mxu0 0
  %1308 = vmatpush.bf16.msra.mxu0 0
  %1309 = vmatpush.bf16.msra.mxu0 0
  %1310 = vmatpush.bf16.msra.mxu0 0
  %1311 = vmatpush.bf16.msra.mxu0 0
  %1312 = vmatpush.bf16.msra.mxu0 0
  %1313 = vmatpush.bf16.msra.mxu0 0
  %1314 = vmatpush.bf16.msra.mxu0 %v1305
  %1315 = vmatmul.bf16.gmra.mxu0 %v1302
  %v1316 = vpop.f32.mrf.mxu0
  %v1317 = vadd.f32 0.0, %v1316
  %v1318 = vpop.f32.mrf.mxu0
  %1319 = vdwg.mxu0
  %v1320 = vadd.f32 %v1278, %v1317
  %v1321 = vld [vmem:[%s15 + $0x4] sm:$0x1]
  %v1323 = vpack.i.b16 %v1321, %v1321
  %v1325 = vperm.slane %v1323, 0
  %v1326 = vunpack.c.l.bf16 %v1325
  %1328 = vrot.lane.b32.xlu0 %v1326, 18
  %v1329 = vpop.permute.xlu0 %1328
  %v1331 = vmul.f32 %v1017, %v1329
  %v1332 = vmul.f32 %v1018, %v1329
  %v1333 = vpack.c.bf16 %v1331, %v1331
  %v1334 = vpack.c.bf16 %v1332, %v1332
  %s1335 = scalar_lea.vmem %s13, 32
  %v1336 = vld [vmem:[%s1335] sm:$0xf]
  %1339 = vrot.lane.b32.xlu0 %v1333, 110
  %v1340 = vpop.permute.xlu0 %1339
  %1341 = vrot.lane.b32.xlu0 %v1334, 110
  %v1342 = vpop.permute.xlu0 %1341
  %v1343 = vsel %vm950, %v1340, %v1342
  %v1345 = vsel %vm150, %v1336, 0
  %v1348 = vsel %vm66, %v1343, 0
  %1350 = vmatpush.bf16.msra.mxu0 0
  %1351 = vmatpush.bf16.msra.mxu0 0
  %1352 = vmatpush.bf16.msra.mxu0 0
  %1353 = vmatpush.bf16.msra.mxu0 0
  %1354 = vmatpush.bf16.msra.mxu0 0
  %1355 = vmatpush.bf16.msra.mxu0 0
  %1356 = vmatpush.bf16.msra.mxu0 0
  %1357 = vmatpush.bf16.msra.mxu0 %v1348
  %1358 = vmatmul.bf16.gmra.mxu0 %v1345
  %v1359 = vpop.f32.mrf.mxu0
  %v1360 = vadd.f32 0.0, %v1359
  %v1361 = vpop.f32.mrf.mxu0
  %1362 = vdwg.mxu0
  %v1363 = vadd.f32 %v1320, %v1360
  %v1364 = vld [vmem:[%s14] sm:$0xff]
  %1366 = vset.pattern.permute.xlu0 0
  %1367 = vperm.xlu0 %1366, %v1364
  %v1368 = vpop.permute.xlu0 %1367
  %v1370 = vadd.f32 %v1363, %v1368
  %v1371 = vand.u32 2147483647, %v1370
  %v1372 = vsub.f32 0.0, %v1371
  %v1373 = vmul.f32 %v1372, 1.442695
  %v1374 = vpow.pop %v1373
  %v1375 = vadd.f32 %v1374, 1.0
  %v1376 = vmul.f32 %v1375, %v1375
  %vm1377 = vcmp.ge.f32.partialorder %v1370, 0.0
  %v1378 = vmul.f32 %v1374, %v1374
  %v1379 = vsel %vm1377, %v1378, 1.0
  %v1380 = vsub.f32 %v1376, %v1379
  %v1381 = vmul.f32 %v1370, %v1380
  %v1382 = vadd.f32 %v1376, %v1379
  %v1383 = vrcp.pop %v1382
  %v1384 = vmul.f32 %v1381, %v1383
  %v1385 = vld [vmem:[%s16] sm:$0xf]
  %v1386 = vld [vmem:[%s16 + $0x4] sm:$0xf]
  %v1387 = vpack.c.bf16 %v540, %v540
  %v1388 = vld [vmem:[%s17] sm:$0xf]
  %v1389 = vld [vmem:[%s17 + $0x4] sm:$0xf]
  %v1392 = vunpack.c.l.b16 %v1388
  %v1393 = vunpack.c.l.b16 %v1389
  %v1394 = vpack.c.b16 %v1393, %v1392
  %v1396 = vsel %vm150, %v1394, 0
  %v1399 = vsel %vm66, %v596, 0
  %1401 = vmatpush.bf16.msra.mxu0 0
  %1402 = vmatpush.bf16.msra.mxu0 0
  %1403 = vmatpush.bf16.msra.mxu0 0
  %1404 = vmatpush.bf16.msra.mxu0 0
  %1405 = vmatpush.bf16.msra.mxu0 0
  %1406 = vmatpush.bf16.msra.mxu0 0
  %1407 = vmatpush.bf16.msra.mxu0 0
  %1408 = vmatpush.bf16.msra.mxu0 %v1399
  %1409 = vmatmul.bf16.gmra.mxu0 %v1396
  %v1410 = vpop.f32.mrf.mxu0
  %v1411 = vadd.f32 0.0, %v1410
  %v1412 = vpop.f32.mrf.mxu0
  %v1413 = vadd.f32 0.0, %v1412
  %1414 = vdwg.mxu0
  %v1417 = vunpack.c.l.b16 %v1385
  %v1418 = vunpack.c.l.b16 %v1386
  %v1419 = vpack.c.b16 %v1418, %v1417
  %v1421 = vsel %vm150, %v1419, 0
  %v1424 = vsel %vm66, %v1387, 0
  %1426 = vmatpush.bf16.msra.mxu0 0
  %1427 = vmatpush.bf16.msra.mxu0 0
  %1428 = vmatpush.bf16.msra.mxu0 0
  %1429 = vmatpush.bf16.msra.mxu0 0
  %1430 = vmatpush.bf16.msra.mxu0 0
  %1431 = vmatpush.bf16.msra.mxu0 0
  %1432 = vmatpush.bf16.msra.mxu0 0
  %1433 = vmatpush.bf16.msra.mxu0 %v1424
  %1434 = vmatmul.bf16.gmra.mxu0 %v1421
  %v1435 = vpop.f32.mrf.mxu0
  %v1436 = vadd.f32 %v1411, %v1435
  %v1437 = vpop.f32.mrf.mxu0
  %v1438 = vadd.f32 %v1413, %v1437
  %1439 = vdwg.mxu0
  %v1440 = vld [vmem:[%s18] sm:$0xf]
  %v1441 = vld [vmem:[%s18 + $0x4] sm:$0xf]
  %v1442 = vpack.c.bf16 %v1384, %v1384
  %v1445 = vunpack.c.l.b16 %v1440
  %v1446 = vunpack.c.l.b16 %v1441
  %v1447 = vpack.c.b16 %v1446, %v1445
  %v1449 = vsel %vm150, %v1447, 0
  %v1452 = vsel %vm66, %v1442, 0
  %1454 = vmatpush.bf16.msra.mxu0 0
  %1455 = vmatpush.bf16.msra.mxu0 0
  %1456 = vmatpush.bf16.msra.mxu0 0
  %1457 = vmatpush.bf16.msra.mxu0 0
  %1458 = vmatpush.bf16.msra.mxu0 0
  %1459 = vmatpush.bf16.msra.mxu0 0
  %1460 = vmatpush.bf16.msra.mxu0 0
  %1461 = vmatpush.bf16.msra.mxu0 %v1452
  %1462 = vmatmul.bf16.gmra.mxu0 %v1449
  %v1463 = vpop.f32.mrf.mxu0
  %v1464 = vadd.f32 0.0, %v1463
  %v1465 = vpop.f32.mrf.mxu0
  %v1466 = vadd.f32 0.0, %v1465
  %1467 = vdwg.mxu0
  %v1468 = vadd.f32 %v1436, %v1464
  %v1469 = vadd.f32 %v1438, %v1466
  %v1470 = vld [vmem:[%s19] sm:$0xff]
  %v1471 = vld [vmem:[%s19 + $0x8] sm:$0xff]
  %1473 = vset.pattern.permute.xlu0 0
  %1474 = vperm.xlu0 %1473, %v1470
  %v1475 = vpop.permute.xlu0 %1474
  %1478 = vset.pattern.permute.xlu0 0
  %1479 = vperm.xlu0 %1478, %v1471
  %v1480 = vpop.permute.xlu0 %1479
  %v1482 = vadd.f32 %v1468, %v1475
  %v1483 = vadd.f32 %v1469, %v1480
  %v1484 = vand.u32 2147483647, %v1482
  %v1485 = vand.u32 2147483647, %v1483
  %v1486 = vsub.f32 0.0, %v1484
  %v1487 = vsub.f32 0.0, %v1485
  %v1488 = vmul.f32 %v1486, 1.442695
  %v1489 = vpow.pop %v1488
  %v1490 = vmul.f32 %v1487, 1.442695
  %v1491 = vpow.pop %v1490
  %v1492 = vadd.f32 %v1489, 1.0
  %v1493 = vadd.f32 %v1491, 1.0
  %v1494 = vmul.f32 %v1492, %v1492
  %v1495 = vmul.f32 %v1493, %v1493
  %vm1496 = vcmp.ge.f32.partialorder %v1482, 0.0
  %vm1497 = vcmp.ge.f32.partialorder %v1483, 0.0
  %v1498 = vmul.f32 %v1489, %v1489
  %v1499 = vmul.f32 %v1491, %v1491
  %v1500 = vsel %vm1496, %v1498, 1.0
  %v1501 = vsel %vm1497, %v1499, 1.0
  %v1502 = vsub.f32 %v1494, %v1500
  %v1503 = vsub.f32 %v1495, %v1501
  %v1504 = vmul.f32 %v1482, %v1502
  %v1505 = vmul.f32 %v1483, %v1503
  %v1506 = vadd.f32 %v1494, %v1500
  %v1507 = vadd.f32 %v1495, %v1501
  %v1508 = vrcp.pop %v1506
  %v1509 = vrcp.pop %v1507
  %v1510 = vmul.f32 %v1504, %v1508
  %v1511 = vmul.f32 %v1505, %v1509
  %1512 = vst [vmem:[%s20] sm:$0xff] %v1510
  %1513 = vst [vmem:[%s20 + $0x8] sm:$0xff] %v1511
  // Predicated region
  $region82: #{_lambda_.6} parent=0 // pred_check
    _
  $region83: #{_lambda_.6} parent=0 // pred_check_branch
    %1515 = sbr.rel (0) target = $region85
  $region84: #{_lambda_.6} parent=0 // pred_region
    _
  $region85: #{_lambda_.6} parent=0 // pred_fallthru
    _
  // Predicated region
  $region86: #{_lambda_.6} parent=0 // pred_check
    _
  $region87: #{_lambda_.6} parent=0 // pred_check_branch
    %1517 = sbr.rel (0) target = $region89
  $region88: #{_lambda_.6} parent=0 // pred_region
    _
  $region89: #{_lambda_.6} parent=0 // pred_fallthru
    _

// kernel: _lambda_.5
$region0: #{_lambda_.5}
  #allocation0 [shape = 'u32[]', space=smem, size = 0x4, offset = 0x4, fixed_abs, tag = 'smem constant byte address 0x4 - core index']
  #allocation1 [shape = 'u32[72,128]{1,0:T(1,128)}', space=vmem, size = 0x9000, scoped, tag = 'internal scratch']
  #allocation2 [shape = 'bf16[4,546]{1,0:T(4,128)(2,1)}', space=vmem, size = 0x1400, scoped, tag = 'scratch operand']
  %s0 = inlined_call_operand.vmem [shape: bf16[16,128], index: 0, kind: input, shape index: {}]
  %s1 = inlined_call_operand.vmem [shape: bf16[8,512], index: 1, kind: input, shape index: {}]
  %s2 = inlined_call_operand.vmem [shape: bf16[128,512], index: 2, kind: input, shape index: {}]
  %s3 = inlined_call_operand.vmem [shape: bf16[4,16], index: 3, kind: input, shape index: {}]
  %s4 = inlined_call_operand.vmem [shape: bf16[4,16], index: 4, kind: input, shape index: {}]
  %s5 = inlined_call_operand.vmem [shape: bf16[4,8], index: 5, kind: input, shape index: {}]
  %s6 = inlined_call_operand.vmem [shape: bf16[4,8], index: 6, kind: input, shape index: {}]
  %s7 = inlined_call_operand.vmem [shape: f32[4,1], index: 7, kind: input, shape index: {}]
  %s8 = inlined_call_operand.vmem [shape: f32[4,1], index: 8, kind: input, shape index: {}]
  %s9 = inlined_call_operand.vmem [shape: bf16[9,4,4], index: 9, kind: input, shape index: {}]
  %s10 = inlined_call_operand.vmem [shape: f32[4,1], index: 10, kind: input, shape index: {}]
  %s11 = inlined_call_operand.vmem [shape: bf16[9,4,4], index: 11, kind: input, shape index: {}]
  %s12 = inlined_call_operand.vmem [shape: f32[4,1], index: 12, kind: input, shape index: {}]
  %s13 = inlined_call_operand.vmem [shape: bf16[9,512], index: 13, kind: input, shape index: {}]
  %s14 = inlined_call_operand.vmem [shape: bf16[8,4], index: 14, kind: input, shape index: {}]
  %s15 = inlined_call_operand.vmem [shape: bf16[8,4], index: 15, kind: input, shape index: {}]
  %s16 = inlined_call_operand.vmem [shape: bf16[8,4], index: 16, kind: input, shape index: {}]
  %s17 = inlined_call_operand.vmem [shape: f32[8,1], index: 17, kind: input, shape index: {}]
  %s18 = inlined_call_operand.vmem [shape: f32[8,512], index: 18, kind: output, shape index: {}]
  %s19 = sld [smem:[#allocation0]]
  $region82: #{_lambda_.5} parent=0
    _
  %s21 = ssub.s32 1, %s19
  %s22 = scalar_select 0, %s21, %s19
  // Predicated region
  $region2: #{_lambda_.5} parent=0 // pred_check
    _
  $region3: #{_lambda_.5} parent=0 // pred_check_branch
    %24 = sbr.rel (0) target = $region5
  $region4: #{_lambda_.5} parent=0 // pred_region
    _
  $region5: #{_lambda_.5} parent=0 // pred_fallthru
    _
  // Predicated region
  $region6: #{_lambda_.5} parent=0 // pred_check
    _
  $region7: #{_lambda_.5} parent=0 // pred_check_branch
    %26 = sbr.rel (0) target = $region9
  $region8: #{_lambda_.5} parent=0 // pred_region
    _
  $region9: #{_lambda_.5} parent=0 // pred_fallthru
    _
  // Predicated region
  $region10: #{_lambda_.5} parent=0 // pred_check
    _
  $region11: #{_lambda_.5} parent=0 // pred_check_branch
    %28 = sbr.rel (0) target = $region13
  $region12: #{_lambda_.5} parent=0 // pred_region
    _
  $region13: #{_lambda_.5} parent=0 // pred_fallthru
    _
  // Predicated region
  $region14: #{_lambda_.5} parent=0 // pred_check
    _
  $region15: #{_lambda_.5} parent=0 // pred_check_branch
    %30 = sbr.rel (0) target = $region17
  $region16: #{_lambda_.5} parent=0 // pred_region
    _
  $region17: #{_lambda_.5} parent=0 // pred_fallthru
    _
  // Predicated region
  $region18: #{_lambda_.5} parent=0 // pred_check
    _
  $region19: #{_lambda_.5} parent=0 // pred_check_branch
    %32 = sbr.rel (0) target = $region21
  $region20: #{_lambda_.5} parent=0 // pred_region
    _
  $region21: #{_lambda_.5} parent=0 // pred_fallthru
    _
  // Predicated region
  $region22: #{_lambda_.5} parent=0 // pred_check
    _
  $region23: #{_lambda_.5} parent=0 // pred_check_branch
    %34 = sbr.rel (0) target = $region25
  $region24: #{_lambda_.5} parent=0 // pred_region
    _
  $region25: #{_lambda_.5} parent=0 // pred_fallthru
    _
  // Predicated region
  $region26: #{_lambda_.5} parent=0 // pred_check
    _
  $region27: #{_lambda_.5} parent=0 // pred_check_branch
    %36 = sbr.rel (0) target = $region29
  $region28: #{_lambda_.5} parent=0 // pred_region
    _
  $region29: #{_lambda_.5} parent=0 // pred_fallthru
    _
  // Predicated region
  $region30: #{_lambda_.5} parent=0 // pred_check
    _
  $region31: #{_lambda_.5} parent=0 // pred_check_branch
    %38 = sbr.rel (0) target = $region33
  $region32: #{_lambda_.5} parent=0 // pred_region
    _
  $region33: #{_lambda_.5} parent=0 // pred_fallthru
    _
  // Predicated region
  $region34: #{_lambda_.5} parent=0 // pred_check
    _
  $region35: #{_lambda_.5} parent=0 // pred_check_branch
    %40 = sbr.rel (0) target = $region37
  $region36: #{_lambda_.5} parent=0 // pred_region
    _
  $region37: #{_lambda_.5} parent=0 // pred_fallthru
    _
  // Predicated region
  $region38: #{_lambda_.5} parent=0 // pred_check
    _
  $region39: #{_lambda_.5} parent=0 // pred_check_branch
    %42 = sbr.rel (0) target = $region41
  $region40: #{_lambda_.5} parent=0 // pred_region
    _
  $region41: #{_lambda_.5} parent=0 // pred_fallthru
    _
  // Predicated region
  $region42: #{_lambda_.5} parent=0 // pred_check
    _
  $region43: #{_lambda_.5} parent=0 // pred_check_branch
    %44 = sbr.rel (0) target = $region45
  $region44: #{_lambda_.5} parent=0 // pred_region
    _
  $region45: #{_lambda_.5} parent=0 // pred_fallthru
    _
  // Predicated region
  $region46: #{_lambda_.5} parent=0 // pred_check
    _
  $region47: #{_lambda_.5} parent=0 // pred_check_branch
    %46 = sbr.rel (0) target = $region49
  $region48: #{_lambda_.5} parent=0 // pred_region
    _
  $region49: #{_lambda_.5} parent=0 // pred_fallthru
    _
  // Predicated region
  $region50: #{_lambda_.5} parent=0 // pred_check
    _
  $region51: #{_lambda_.5} parent=0 // pred_check_branch
    %48 = sbr.rel (0) target = $region53
  $region52: #{_lambda_.5} parent=0 // pred_region
    _
  $region53: #{_lambda_.5} parent=0 // pred_fallthru
    _
  // Predicated region
  $region54: #{_lambda_.5} parent=0 // pred_check
    _
  $region55: #{_lambda_.5} parent=0 // pred_check_branch
    %50 = sbr.rel (0) target = $region57
  $region56: #{_lambda_.5} parent=0 // pred_region
    _
  $region57: #{_lambda_.5} parent=0 // pred_fallthru
    _
  // Predicated region
  $region58: #{_lambda_.5} parent=0 // pred_check
    _
  $region59: #{_lambda_.5} parent=0 // pred_check_branch
    %52 = sbr.rel (0) target = $region61
  $region60: #{_lambda_.5} parent=0 // pred_region
    _
  $region61: #{_lambda_.5} parent=0 // pred_fallthru
    _
  // Predicated region
  $region62: #{_lambda_.5} parent=0 // pred_check
    _
  $region63: #{_lambda_.5} parent=0 // pred_check_branch
    %54 = sbr.rel (0) target = $region65
  $region64: #{_lambda_.5} parent=0 // pred_region
    _
  $region65: #{_lambda_.5} parent=0 // pred_fallthru
    _
  // Predicated region
  $region66: #{_lambda_.5} parent=0 // pred_check
    _
  $region67: #{_lambda_.5} parent=0 // pred_check_branch
    %56 = sbr.rel (0) target = $region69
  $region68: #{_lambda_.5} parent=0 // pred_region
    _
  $region69: #{_lambda_.5} parent=0 // pred_fallthru
    _
  // Predicated region
  $region70: #{_lambda_.5} parent=0 // pred_check
    _
  $region71: #{_lambda_.5} parent=0 // pred_check_branch
    %58 = sbr.rel (0) target = $region73
  $region72: #{_lambda_.5} parent=0 // pred_region
    _
  $region73: #{_lambda_.5} parent=0 // pred_fallthru
    _
  %60 = vst [vmem:[#allocation2] sm:$0xff] 0
  %vm61 = vcmask 271360
  %62 = vst.msk [vmem:[#allocation2 + $0x8] sm:$0x3] %vm61, 0
  %v63 = vld [vmem:[%s1] sm:$0xff]
  %v64 = vld [vmem:[%s1 + $0x8] sm:$0xff]
  %v65 = vld [vmem:[%s0] sm:$0xf]
  %v66 = vld [vmem:[%s0 + $0x4] sm:$0xf]
  %v67 = vld [vmem:[%s2] sm:$0xff]
  %v68 = vld [vmem:[%s2 + $0x8] sm:$0xff]
  %v69 = vld [vmem:[%s2 + $0x10] sm:$0xff]
  %v70 = vld [vmem:[%s2 + $0x18] sm:$0xff]
  %v71 = vld [vmem:[%s2 + $0x20] sm:$0xff]
  %v72 = vld [vmem:[%s2 + $0x28] sm:$0xff]
  %v73 = vld [vmem:[%s2 + $0x30] sm:$0xff]
  %v74 = vld [vmem:[%s2 + $0x38] sm:$0xff]
  %v75 = vld [vmem:[%s2 + $0x40] sm:$0xff]
  %v76 = vld [vmem:[%s2 + $0x48] sm:$0xff]
  %v77 = vld [vmem:[%s2 + $0x50] sm:$0xff]
  %v78 = vld [vmem:[%s2 + $0x58] sm:$0xff]
  %v79 = vld [vmem:[%s2 + $0x60] sm:$0xff]
  %v80 = vld [vmem:[%s2 + $0x68] sm:$0xff]
  %v81 = vld [vmem:[%s2 + $0x70] sm:$0xff]
  %v82 = vld [vmem:[%s2 + $0x78] sm:$0xff]
  %v83 = vld [vmem:[%s2 + $0x80] sm:$0xff]
  %v84 = vld [vmem:[%s2 + $0x88] sm:$0xff]
  %v85 = vld [vmem:[%s2 + $0x90] sm:$0xff]
  %v86 = vld [vmem:[%s2 + $0x98] sm:$0xff]
  %v87 = vld [vmem:[%s2 + $0xa0] sm:$0xff]
  %v88 = vld [vmem:[%s2 + $0xa8] sm:$0xff]
  %v89 = vld [vmem:[%s2 + $0xb0] sm:$0xff]
  %v90 = vld [vmem:[%s2 + $0xb8] sm:$0xff]
  %v91 = vld [vmem:[%s2 + $0xc0] sm:$0xff]
  %v92 = vld [vmem:[%s2 + $0xc8] sm:$0xff]
  %v93 = vld [vmem:[%s2 + $0xd0] sm:$0xff]
  %v94 = vld [vmem:[%s2 + $0xd8] sm:$0xff]
  %v95 = vld [vmem:[%s2 + $0xe0] sm:$0xff]
  %v96 = vld [vmem:[%s2 + $0xe8] sm:$0xff]
  %v97 = vld [vmem:[%s2 + $0xf0] sm:$0xff]
  %v98 = vld [vmem:[%s2 + $0xf8] sm:$0xff]
  %v99 = vld [vmem:[%s3] sm:$0x3]
  %v100 = vld [vmem:[%s5] sm:$0x3]
  %v101 = vld [vmem:[%s7] sm:$0xf]
  %v104 = vunpack.c.l.b16 %v65
  %v105 = vunpack.c.l.b16 %v66
  %v106 = vpack.c.b16 %v105, %v104
  %vm108 = vcmask 130048
  %v110 = vsel %vm108, %v99, 0
  %112 = vmatpush.bf16.msra.mxu0 0
  %113 = vmatpush.bf16.msra.mxu0 0
  %114 = vmatpush.bf16.msra.mxu0 0
  %115 = vmatpush.bf16.msra.mxu0 0
  %116 = vmatpush.bf16.msra.mxu0 0
  %117 = vmatpush.bf16.msra.mxu0 0
  %118 = vmatpush.bf16.msra.mxu0 0
  %119 = vmatpush.bf16.msra.mxu0 %v106
  %120 = vmatmul.bf16.gmra.mxu0 %v110
  %v121 = vpop.f32.mrf.mxu0
  %v122 = vadd.f32 0.0, %v121
  %v123 = vpop.f32.mrf.mxu0
  %124 = vdwg.mxu0
  %v125 = vpack.c.bf16 %v122, %v122
  %v128 = vunpack.c.l.b16 %v63
  %v129 = vunpack.c.h.b16 %v63
  %v130 = vunpack.c.l.b16 %v64
  %v131 = vunpack.c.h.b16 %v64
  %v132 = vpack.c.b16 %v128, %v128
  %v133 = vpack.c.b16 %v129, %v129
  %v134 = vpack.c.b16 %v130, %v130
  %v135 = vpack.c.b16 %v131, %v131
  %vm136 = vcmask 64512
  %v138 = vsel %vm136, %v100, 0
  %vm140 = vcmask 1043456
  %v142 = vsel %vm140, %v132, 0
  %v145 = vsel %vm140, %v133, 0
  %v148 = vsel %vm140, %v134, 0
  %v151 = vsel %vm140, %v135, 0
  %153 = vmatpush.bf16.msra.mxu0 0
  %154 = vmatpush.bf16.msra.mxu0 0
  %155 = vmatpush.bf16.msra.mxu0 0
  %156 = vmatpush.bf16.msra.mxu0 0
  %157 = vmatpush.bf16.msra.mxu0 0
  %158 = vmatpush.bf16.msra.mxu0 0
  %159 = vmatpush.bf16.msra.mxu0 0
  %160 = vmatpush.bf16.msra.mxu0 %v142
  %161 = vmatmul.bf16.gmra.mxu0 %v138
  %v162 = vpop.f32.mrf.mxu0
  %v163 = vadd.f32 0.0, %v162
  %v164 = vpop.f32.mrf.mxu0
  %165 = vdwg.mxu0
  %166 = vmatpush.bf16.msra.mxu0 0
  %167 = vmatpush.bf16.msra.mxu0 0
  %168 = vmatpush.bf16.msra.mxu0 0
  %169 = vmatpush.bf16.msra.mxu0 0
  %170 = vmatpush.bf16.msra.mxu0 0
  %171 = vmatpush.bf16.msra.mxu0 0
  %172 = vmatpush.bf16.msra.mxu0 0
  %173 = vmatpush.bf16.msra.mxu0 %v145
  %174 = vmatmul.bf16.gmra.mxu0 %v138
  %v175 = vpop.f32.mrf.mxu0
  %v176 = vadd.f32 0.0, %v175
  %v177 = vpop.f32.mrf.mxu0
  %178 = vdwg.mxu0
  %179 = vmatpush.bf16.msra.mxu0 0
  %180 = vmatpush.bf16.msra.mxu0 0
  %181 = vmatpush.bf16.msra.mxu0 0
  %182 = vmatpush.bf16.msra.mxu0 0
  %183 = vmatpush.bf16.msra.mxu0 0
  %184 = vmatpush.bf16.msra.mxu0 0
  %185 = vmatpush.bf16.msra.mxu0 0
  %186 = vmatpush.bf16.msra.mxu0 %v148
  %187 = vmatmul.bf16.gmra.mxu0 %v138
  %v188 = vpop.f32.mrf.mxu0
  %v189 = vadd.f32 0.0, %v188
  %v190 = vpop.f32.mrf.mxu0
  %191 = vdwg.mxu0
  %192 = vmatpush.bf16.msra.mxu0 0
  %193 = vmatpush.bf16.msra.mxu0 0
  %194 = vmatpush.bf16.msra.mxu0 0
  %195 = vmatpush.bf16.msra.mxu0 0
  %196 = vmatpush.bf16.msra.mxu0 0
  %197 = vmatpush.bf16.msra.mxu0 0
  %198 = vmatpush.bf16.msra.mxu0 0
  %199 = vmatpush.bf16.msra.mxu0 %v151
  %200 = vmatmul.bf16.gmra.mxu0 %v138
  %v201 = vpop.f32.mrf.mxu0
  %v202 = vadd.f32 0.0, %v201
  %v203 = vpop.f32.mrf.mxu0
  %204 = vdwg.mxu0
  %v237 = vunpack.c.l.b16 %v67
  %v238 = vunpack.c.h.b16 %v67
  %v239 = vunpack.c.l.b16 %v68
  %v240 = vunpack.c.h.b16 %v68
  %v241 = vunpack.c.l.b16 %v69
  %v242 = vunpack.c.h.b16 %v69
  %v243 = vunpack.c.l.b16 %v70
  %v244 = vunpack.c.h.b16 %v70
  %v245 = vunpack.c.l.b16 %v71
  %v246 = vunpack.c.h.b16 %v71
  %v247 = vunpack.c.l.b16 %v72
  %v248 = vunpack.c.h.b16 %v72
  %v249 = vunpack.c.l.b16 %v73
  %v250 = vunpack.c.h.b16 %v73
  %v251 = vunpack.c.l.b16 %v74
  %v252 = vunpack.c.h.b16 %v74
  %v253 = vunpack.c.l.b16 %v75
  %v254 = vunpack.c.h.b16 %v75
  %v255 = vunpack.c.l.b16 %v76
  %v256 = vunpack.c.h.b16 %v76
  %v257 = vunpack.c.l.b16 %v77
  %v258 = vunpack.c.h.b16 %v77
  %v259 = vunpack.c.l.b16 %v78
  %v260 = vunpack.c.h.b16 %v78
  %v261 = vunpack.c.l.b16 %v79
  %v262 = vunpack.c.h.b16 %v79
  %v263 = vunpack.c.l.b16 %v80
  %v264 = vunpack.c.h.b16 %v80
  %v265 = vunpack.c.l.b16 %v81
  %v266 = vunpack.c.h.b16 %v81
  %v267 = vunpack.c.l.b16 %v82
  %v268 = vunpack.c.h.b16 %v82
  %v269 = vunpack.c.l.b16 %v83
  %v270 = vunpack.c.h.b16 %v83
  %v271 = vunpack.c.l.b16 %v84
  %v272 = vunpack.c.h.b16 %v84
  %v273 = vunpack.c.l.b16 %v85
  %v274 = vunpack.c.h.b16 %v85
  %v275 = vunpack.c.l.b16 %v86
  %v276 = vunpack.c.h.b16 %v86
  %v277 = vunpack.c.l.b16 %v87
  %v278 = vunpack.c.h.b16 %v87
  %v279 = vunpack.c.l.b16 %v88
  %v280 = vunpack.c.h.b16 %v88
  %v281 = vunpack.c.l.b16 %v89
  %v282 = vunpack.c.h.b16 %v89
  %v283 = vunpack.c.l.b16 %v90
  %v284 = vunpack.c.h.b16 %v90
  %v285 = vunpack.c.l.b16 %v91
  %v286 = vunpack.c.h.b16 %v91
  %v287 = vunpack.c.l.b16 %v92
  %v288 = vunpack.c.h.b16 %v92
  %v289 = vunpack.c.l.b16 %v93
  %v290 = vunpack.c.h.b16 %v93
  %v291 = vunpack.c.l.b16 %v94
  %v292 = vunpack.c.h.b16 %v94
  %v293 = vunpack.c.l.b16 %v95
  %v294 = vunpack.c.h.b16 %v95
  %v295 = vunpack.c.l.b16 %v96
  %v296 = vunpack.c.h.b16 %v96
  %v297 = vunpack.c.l.b16 %v97
  %v298 = vunpack.c.h.b16 %v97
  %v299 = vunpack.c.l.b16 %v98
  %v300 = vunpack.c.h.b16 %v98
  %v301 = vpack.c.b16 %v241, %v237
  %v302 = vpack.c.b16 %v242, %v238
  %v303 = vpack.c.b16 %v243, %v239
  %v304 = vpack.c.b16 %v244, %v240
  %v305 = vpack.c.b16 %v249, %v245
  %v306 = vpack.c.b16 %v250, %v246
  %v307 = vpack.c.b16 %v251, %v247
  %v308 = vpack.c.b16 %v252, %v248
  %v309 = vpack.c.b16 %v257, %v253
  %v310 = vpack.c.b16 %v258, %v254
  %v311 = vpack.c.b16 %v259, %v255
  %v312 = vpack.c.b16 %v260, %v256
  %v313 = vpack.c.b16 %v265, %v261
  %v314 = vpack.c.b16 %v266, %v262
  %v315 = vpack.c.b16 %v267, %v263
  %v316 = vpack.c.b16 %v268, %v264
  %v317 = vpack.c.b16 %v273, %v269
  %v318 = vpack.c.b16 %v274, %v270
  %v319 = vpack.c.b16 %v275, %v271
  %v320 = vpack.c.b16 %v276, %v272
  %v321 = vpack.c.b16 %v281, %v277
  %v322 = vpack.c.b16 %v282, %v278
  %v323 = vpack.c.b16 %v283, %v279
  %v324 = vpack.c.b16 %v284, %v280
  %v325 = vpack.c.b16 %v289, %v285
  %v326 = vpack.c.b16 %v290, %v286
  %v327 = vpack.c.b16 %v291, %v287
  %v328 = vpack.c.b16 %v292, %v288
  %v329 = vpack.c.b16 %v297, %v293
  %v330 = vpack.c.b16 %v298, %v294
  %v331 = vpack.c.b16 %v299, %v295
  %v332 = vpack.c.b16 %v300, %v296
  %365 = vmatpush.bf16.msra.mxu0 %v329
  %366 = vmatpush.bf16.msra.mxu0 %v325
  %367 = vmatpush.bf16.msra.mxu0 %v321
  %368 = vmatpush.bf16.msra.mxu0 %v317
  %369 = vmatpush.bf16.msra.mxu0 %v313
  %370 = vmatpush.bf16.msra.mxu0 %v309
  %371 = vmatpush.bf16.msra.mxu0 %v305
  %372 = vmatpush.bf16.msra.mxu0 %v301
  %373 = vmatmul.bf16.gmra.mxu0 %v125
  %v374 = vpop.f32.mrf.mxu0
  %v375 = vadd.f32 %v163, %v374
  %v376 = vpop.f32.mrf.mxu0
  %377 = vdwg.mxu0
  %378 = vmatpush.bf16.msra.mxu0 %v330
  %379 = vmatpush.bf16.msra.mxu0 %v326
  %380 = vmatpush.bf16.msra.mxu0 %v322
  %381 = vmatpush.bf16.msra.mxu0 %v318
  %382 = vmatpush.bf16.msra.mxu0 %v314
  %383 = vmatpush.bf16.msra.mxu0 %v310
  %384 = vmatpush.bf16.msra.mxu0 %v306
  %385 = vmatpush.bf16.msra.mxu0 %v302
  %386 = vmatmul.bf16.gmra.mxu0 %v125
  %v387 = vpop.f32.mrf.mxu0
  %v388 = vadd.f32 %v176, %v387
  %v389 = vpop.f32.mrf.mxu0
  %390 = vdwg.mxu0
  %391 = vmatpush.bf16.msra.mxu0 %v331
  %392 = vmatpush.bf16.msra.mxu0 %v327
  %393 = vmatpush.bf16.msra.mxu0 %v323
  %394 = vmatpush.bf16.msra.mxu0 %v319
  %395 = vmatpush.bf16.msra.mxu0 %v315
  %396 = vmatpush.bf16.msra.mxu0 %v311
  %397 = vmatpush.bf16.msra.mxu0 %v307
  %398 = vmatpush.bf16.msra.mxu0 %v303
  %399 = vmatmul.bf16.gmra.mxu0 %v125
  %v400 = vpop.f32.mrf.mxu0
  %v401 = vadd.f32 %v189, %v400
  %v402 = vpop.f32.mrf.mxu0
  %403 = vdwg.mxu0
  %404 = vmatpush.bf16.msra.mxu0 %v332
  %405 = vmatpush.bf16.msra.mxu0 %v328
  %406 = vmatpush.bf16.msra.mxu0 %v324
  %407 = vmatpush.bf16.msra.mxu0 %v320
  %408 = vmatpush.bf16.msra.mxu0 %v316
  %409 = vmatpush.bf16.msra.mxu0 %v312
  %410 = vmatpush.bf16.msra.mxu0 %v308
  %411 = vmatpush.bf16.msra.mxu0 %v304
  %412 = vmatmul.bf16.gmra.mxu0 %v125
  %v413 = vpop.f32.mrf.mxu0
  %v414 = vadd.f32 %v202, %v413
  %v415 = vpop.f32.mrf.mxu0
  %416 = vdwg.mxu0
  %418 = vset.pattern.permute.xlu0 0
  %419 = vperm.xlu0 %418, %v101
  %v420 = vpop.permute.xlu0 %419
  %v422 = vadd.f32 %v375, %v420
  %v423 = vadd.f32 %v388, %v420
  %v424 = vadd.f32 %v401, %v420
  %v425 = vadd.f32 %v414, %v420
  %v426 = vand.u32 2147483647, %v422
  %v427 = vand.u32 2147483647, %v423
  %v428 = vand.u32 2147483647, %v424
  %v429 = vand.u32 2147483647, %v425
  %v430 = vsub.f32 0.0, %v426
  %v431 = vsub.f32 0.0, %v427
  %v432 = vsub.f32 0.0, %v428
  %v433 = vsub.f32 0.0, %v429
  %v434 = vmul.f32 %v430, 1.442695
  %v435 = vpow.pop %v434
  %v436 = vmul.f32 %v431, 1.442695
  %v437 = vpow.pop %v436
  %v438 = vmul.f32 %v432, 1.442695
  %v439 = vpow.pop %v438
  %v440 = vmul.f32 %v433, 1.442695
  %v441 = vpow.pop %v440
  %v442 = vadd.f32 %v435, 1.0
  %v443 = vadd.f32 %v437, 1.0
  %v444 = vadd.f32 %v439, 1.0
  %v445 = vadd.f32 %v441, 1.0
  %v446 = vmul.f32 %v442, %v442
  %v447 = vmul.f32 %v443, %v443
  %v448 = vmul.f32 %v444, %v444
  %v449 = vmul.f32 %v445, %v445
  %vm450 = vcmp.ge.f32.partialorder %v422, 0.0
  %vm451 = vcmp.ge.f32.partialorder %v423, 0.0
  %vm452 = vcmp.ge.f32.partialorder %v424, 0.0
  %vm453 = vcmp.ge.f32.partialorder %v425, 0.0
  %v454 = vmul.f32 %v435, %v435
  %v455 = vmul.f32 %v437, %v437
  %v456 = vmul.f32 %v439, %v439
  %v457 = vmul.f32 %v441, %v441
  %v458 = vsel %vm450, %v454, 1.0
  %v459 = vsel %vm451, %v455, 1.0
  %v460 = vsel %vm452, %v456, 1.0
  %v461 = vsel %vm453, %v457, 1.0
  %v462 = vsub.f32 %v446, %v458
  %v463 = vsub.f32 %v447, %v459
  %v464 = vsub.f32 %v448, %v460
  %v465 = vsub.f32 %v449, %v461
  %v466 = vmul.f32 %v422, %v462
  %v467 = vmul.f32 %v423, %v463
  %v468 = vmul.f32 %v424, %v464
  %v469 = vmul.f32 %v425, %v465
  %v470 = vadd.f32 %v446, %v458
  %v471 = vadd.f32 %v447, %v459
  %v472 = vadd.f32 %v448, %v460
  %v473 = vadd.f32 %v449, %v461
  %v474 = vrcp.pop %v470
  %v475 = vrcp.pop %v471
  %v476 = vrcp.pop %v472
  %v477 = vrcp.pop %v473
  %v478 = vmul.f32 %v466, %v474
  %v479 = vmul.f32 %v467, %v475
  %v480 = vmul.f32 %v468, %v476
  %v481 = vmul.f32 %v469, %v477
  %v482 = vld [vmem:[%s4] sm:$0x3]
  %v483 = vld [vmem:[%s6] sm:$0x3]
  %v484 = vld [vmem:[%s8] sm:$0xf]
  %v486 = vsel %vm108, %v482, 0
  %488 = vmatpush.bf16.msra.mxu0 0
  %489 = vmatpush.bf16.msra.mxu0 0
  %490 = vmatpush.bf16.msra.mxu0 0
  %491 = vmatpush.bf16.msra.mxu0 0
  %492 = vmatpush.bf16.msra.mxu0 0
  %493 = vmatpush.bf16.msra.mxu0 0
  %494 = vmatpush.bf16.msra.mxu0 0
  %495 = vmatpush.bf16.msra.mxu0 %v106
  %496 = vmatmul.bf16.gmra.mxu0 %v486
  %v497 = vpop.f32.mrf.mxu0
  %v498 = vadd.f32 0.0, %v497
  %v499 = vpop.f32.mrf.mxu0
  %500 = vdwg.mxu0
  %v501 = vpack.c.bf16 %v498, %v498
  %v503 = vsel %vm136, %v483, 0
  %505 = vmatpush.bf16.msra.mxu0 0
  %506 = vmatpush.bf16.msra.mxu0 0
  %507 = vmatpush.bf16.msra.mxu0 0
  %508 = vmatpush.bf16.msra.mxu0 0
  %509 = vmatpush.bf16.msra.mxu0 0
  %510 = vmatpush.bf16.msra.mxu0 0
  %511 = vmatpush.bf16.msra.mxu0 0
  %512 = vmatpush.bf16.msra.mxu0 %v142
  %513 = vmatmul.bf16.gmra.mxu0 %v503
  %v514 = vpop.f32.mrf.mxu0
  %v515 = vadd.f32 0.0, %v514
  %v516 = vpop.f32.mrf.mxu0
  %517 = vdwg.mxu0
  %518 = vmatpush.bf16.msra.mxu0 0
  %519 = vmatpush.bf16.msra.mxu0 0
  %520 = vmatpush.bf16.msra.mxu0 0
  %521 = vmatpush.bf16.msra.mxu0 0
  %522 = vmatpush.bf16.msra.mxu0 0
  %523 = vmatpush.bf16.msra.mxu0 0
  %524 = vmatpush.bf16.msra.mxu0 0
  %525 = vmatpush.bf16.msra.mxu0 %v145
  %526 = vmatmul.bf16.gmra.mxu0 %v503
  %v527 = vpop.f32.mrf.mxu0
  %v528 = vadd.f32 0.0, %v527
  %v529 = vpop.f32.mrf.mxu0
  %530 = vdwg.mxu0
  %531 = vmatpush.bf16.msra.mxu0 0
  %532 = vmatpush.bf16.msra.mxu0 0
  %533 = vmatpush.bf16.msra.mxu0 0
  %534 = vmatpush.bf16.msra.mxu0 0
  %535 = vmatpush.bf16.msra.mxu0 0
  %536 = vmatpush.bf16.msra.mxu0 0
  %537 = vmatpush.bf16.msra.mxu0 0
  %538 = vmatpush.bf16.msra.mxu0 %v148
  %539 = vmatmul.bf16.gmra.mxu0 %v503
  %v540 = vpop.f32.mrf.mxu0
  %v541 = vadd.f32 0.0, %v540
  %v542 = vpop.f32.mrf.mxu0
  %543 = vdwg.mxu0
  %544 = vmatpush.bf16.msra.mxu0 0
  %545 = vmatpush.bf16.msra.mxu0 0
  %546 = vmatpush.bf16.msra.mxu0 0
  %547 = vmatpush.bf16.msra.mxu0 0
  %548 = vmatpush.bf16.msra.mxu0 0
  %549 = vmatpush.bf16.msra.mxu0 0
  %550 = vmatpush.bf16.msra.mxu0 0
  %551 = vmatpush.bf16.msra.mxu0 %v151
  %552 = vmatmul.bf16.gmra.mxu0 %v503
  %v553 = vpop.f32.mrf.mxu0
  %v554 = vadd.f32 0.0, %v553
  %v555 = vpop.f32.mrf.mxu0
  %556 = vdwg.mxu0
  %557 = vmatpush.bf16.msra.mxu0 %v329
  %558 = vmatpush.bf16.msra.mxu0 %v325
  %559 = vmatpush.bf16.msra.mxu0 %v321
  %560 = vmatpush.bf16.msra.mxu0 %v317
  %561 = vmatpush.bf16.msra.mxu0 %v313
  %562 = vmatpush.bf16.msra.mxu0 %v309
  %563 = vmatpush.bf16.msra.mxu0 %v305
  %564 = vmatpush.bf16.msra.mxu0 %v301
  %565 = vmatmul.bf16.gmra.mxu0 %v501
  %v566 = vpop.f32.mrf.mxu0
  %v567 = vadd.f32 %v515, %v566
  %v568 = vpop.f32.mrf.mxu0
  %569 = vdwg.mxu0
  %570 = vmatpush.bf16.msra.mxu0 %v330
  %571 = vmatpush.bf16.msra.mxu0 %v326
  %572 = vmatpush.bf16.msra.mxu0 %v322
  %573 = vmatpush.bf16.msra.mxu0 %v318
  %574 = vmatpush.bf16.msra.mxu0 %v314
  %575 = vmatpush.bf16.msra.mxu0 %v310
  %576 = vmatpush.bf16.msra.mxu0 %v306
  %577 = vmatpush.bf16.msra.mxu0 %v302
  %578 = vmatmul.bf16.gmra.mxu0 %v501
  %v579 = vpop.f32.mrf.mxu0
  %v580 = vadd.f32 %v528, %v579
  %v581 = vpop.f32.mrf.mxu0
  %582 = vdwg.mxu0
  %583 = vmatpush.bf16.msra.mxu0 %v331
  %584 = vmatpush.bf16.msra.mxu0 %v327
  %585 = vmatpush.bf16.msra.mxu0 %v323
  %586 = vmatpush.bf16.msra.mxu0 %v319
  %587 = vmatpush.bf16.msra.mxu0 %v315
  %588 = vmatpush.bf16.msra.mxu0 %v311
  %589 = vmatpush.bf16.msra.mxu0 %v307
  %590 = vmatpush.bf16.msra.mxu0 %v303
  %591 = vmatmul.bf16.gmra.mxu0 %v501
  %v592 = vpop.f32.mrf.mxu0
  %v593 = vadd.f32 %v541, %v592
  %v594 = vpop.f32.mrf.mxu0
  %595 = vdwg.mxu0
  %596 = vmatpush.bf16.msra.mxu0 %v332
  %597 = vmatpush.bf16.msra.mxu0 %v328
  %598 = vmatpush.bf16.msra.mxu0 %v324
  %599 = vmatpush.bf16.msra.mxu0 %v320
  %600 = vmatpush.bf16.msra.mxu0 %v316
  %601 = vmatpush.bf16.msra.mxu0 %v312
  %602 = vmatpush.bf16.msra.mxu0 %v308
  %603 = vmatpush.bf16.msra.mxu0 %v304
  %604 = vmatmul.bf16.gmra.mxu0 %v501
  %v605 = vpop.f32.mrf.mxu0
  %v606 = vadd.f32 %v554, %v605
  %v607 = vpop.f32.mrf.mxu0
  %608 = vdwg.mxu0
  %610 = vset.pattern.permute.xlu0 0
  %611 = vperm.xlu0 %610, %v484
  %v612 = vpop.permute.xlu0 %611
  %v614 = vadd.f32 %v567, %v612
  %v615 = vadd.f32 %v580, %v612
  %v616 = vadd.f32 %v593, %v612
  %v617 = vadd.f32 %v606, %v612
  %v618 = vand.u32 2147483647, %v614
  %v619 = vand.u32 2147483647, %v615
  %v620 = vand.u32 2147483647, %v616
  %v621 = vand.u32 2147483647, %v617
  %v622 = vsub.f32 0.0, %v618
  %v623 = vsub.f32 0.0, %v619
  %v624 = vsub.f32 0.0, %v620
  %v625 = vsub.f32 0.0, %v621
  %v626 = vmul.f32 %v622, 1.442695
  %v627 = vpow.pop %v626
  %v628 = vmul.f32 %v623, 1.442695
  %v629 = vpow.pop %v628
  %v630 = vmul.f32 %v624, 1.442695
  %v631 = vpow.pop %v630
  %v632 = vmul.f32 %v625, 1.442695
  %v633 = vpow.pop %v632
  %v634 = vadd.f32 %v627, 1.0
  %v635 = vadd.f32 %v629, 1.0
  %v636 = vadd.f32 %v631, 1.0
  %v637 = vadd.f32 %v633, 1.0
  %v638 = vmul.f32 %v634, %v634
  %v639 = vmul.f32 %v635, %v635
  %v640 = vmul.f32 %v636, %v636
  %v641 = vmul.f32 %v637, %v637
  %vm642 = vcmp.ge.f32.partialorder %v614, 0.0
  %vm643 = vcmp.ge.f32.partialorder %v615, 0.0
  %vm644 = vcmp.ge.f32.partialorder %v616, 0.0
  %vm645 = vcmp.ge.f32.partialorder %v617, 0.0
  %v646 = vmul.f32 %v627, %v627
  %v647 = vmul.f32 %v629, %v629
  %v648 = vmul.f32 %v631, %v631
  %v649 = vmul.f32 %v633, %v633
  %v650 = vsel %vm642, %v646, 1.0
  %v651 = vsel %vm643, %v647, 1.0
  %v652 = vsel %vm644, %v648, 1.0
  %v653 = vsel %vm645, %v649, 1.0
  %v654 = vsub.f32 %v638, %v650
  %v655 = vsub.f32 %v639, %v651
  %v656 = vsub.f32 %v640, %v652
  %v657 = vsub.f32 %v641, %v653
  %v658 = vmul.f32 %v614, %v654
  %v659 = vmul.f32 %v615, %v655
  %v660 = vmul.f32 %v616, %v656
  %v661 = vmul.f32 %v617, %v657
  %v662 = vadd.f32 %v638, %v650
  %v663 = vadd.f32 %v639, %v651
  %v664 = vadd.f32 %v640, %v652
  %v665 = vadd.f32 %v641, %v653
  %v666 = vrcp.pop %v662
  %v667 = vrcp.pop %v663
  %v668 = vrcp.pop %v664
  %v669 = vrcp.pop %v665
  %v670 = vmul.f32 %v658, %v666
  %v671 = vmul.f32 %v659, %v667
  %v672 = vmul.f32 %v660, %v668
  %v673 = vmul.f32 %v661, %v669
  %v674 = vpack.c.bf16 %v671, %v670
  %v675 = vpack.c.bf16 %v673, %v672
  %v678 = vrot.slane %v674, 2
  %v679 = vrot.slane %v675, 4
  %v680 = vrot.slane %v675, 6
  %vm681 = vcmask 1041408
  %v684 = vsel %vm681, %v674, %v678
  %vm685 = vcmask 1045508
  %v688 = vsel %vm685, %v679, %v680
  %v689 = vsel %vm140, %v684, %v688
  %691 = vrot.lane.b32.xlu0 %v689, 17
  %v692 = vpop.permute.xlu0 %691
  %v693 = vrot.slane %v692, 6
  %vm694 = vcmask 138240
  %v695 = vsel %vm694, %v693, %v692
  %vm698 = vcmask 1041544
  %vm699 = vcmask 1043458
  %vm700 = vmor %vm699, %vm698
  %vm701 = vmor %vm685, %vm700
  %vm702 = vcmask 1047558
  %vm703 = vmor %vm702, %vm701
  %704 = vst.msk [vmem:[#allocation2] sm:$0xff] %vm703, %v695
  %vm705 = vcmask 132096
  %706 = vst.msk [vmem:[#allocation2 + $0x8] sm:$0x3] %vm705, %v693
  %v707 = vld [vmem:[#allocation2] sm:$0xff]
  %v708 = vld [vmem:[%s13] sm:$0x11]
  %v709 = vld [vmem:[%s13 + $0x8] sm:$0x11]
  %v712 = vunpack.c.l.b16 %v708
  %v713 = vunpack.c.h.b16 %v708
  %v714 = vunpack.c.l.b16 %v709
  %v715 = vunpack.c.h.b16 %v709
  %v716 = vpack.c.b16 %v712, %v712
  %v717 = vpack.c.b16 %v713, %v713
  %v718 = vpack.c.b16 %v714, %v714
  %v719 = vpack.c.b16 %v715, %v715
  %v721 = vpack.i.b16 %v716, %v716
  %v723 = vperm.slane %v721, 0
  %v725 = vpack.i.b16 %v717, %v717
  %v727 = vperm.slane %v725, 0
  %v729 = vpack.i.b16 %v718, %v718
  %v731 = vperm.slane %v729, 0
  %v733 = vpack.i.b16 %v719, %v719
  %v735 = vperm.slane %v733, 0
  %v736 = vunpack.c.l.bf16 %v707
  %v737 = vunpack.c.h.bf16 %v707
  %v738 = vunpack.c.l.bf16 %v723
  %v739 = vunpack.c.l.bf16 %v727
  %v740 = vunpack.c.l.bf16 %v731
  %v741 = vunpack.c.l.bf16 %v735
  %v746 = vrot.slane %v739, 4
  %v747 = vrot.slane %v741, 4
  %v748 = vsel %vm140, %v738, %v746
  %v749 = vsel %vm140, %v740, %v747
  %v752 = vmul.f32 %v736, %v748
  %v753 = vmul.f32 %v737, %v749
  %756 = vst [vmem:[#allocation1] ss:$2 sm:$0xff] %v752
  %s757 = scalar_lea.vmem [#allocation1], 16
  %758 = vst [vmem:[%s757] ss:$2 sm:$0xff] %v753
  %v759 = vld.sshfl [vmem:[#allocation1] sm:$0xff pattern:$0x75316420]
  %v760 = vld.sshfl [vmem:[#allocation1 + $0x8] sm:$0xff pattern:$0x75316420]
  %v761 = vld.sshfl [vmem:[#allocation1 + $0x10] sm:$0xff pattern:$0x75316420]
  %v762 = vld.sshfl [vmem:[#allocation1 + $0x18] sm:$0xff pattern:$0x75316420]
  %v767 = vpack.c.bf16 %v759, %v759
  %v768 = vpack.c.bf16 %v760, %v760
  %v769 = vpack.c.bf16 %v761, %v761
  %v770 = vpack.c.bf16 %v762, %v762
  %v771 = vld [vmem:[%s9] sm:$0x3]
  %v772 = vld [vmem:[#allocation2] sm:$0xff]
  %v773 = vld [vmem:[#allocation2 + $0x8] sm:$0x3]
  %v774 = vld [vmem:[%s13] sm:$0x11]
  %v775 = vld [vmem:[%s13 + $0x8] sm:$0x11]
  %v778 = vunpack.c.l.b16 %v774
  %v779 = vunpack.c.h.b16 %v774
  %v780 = vunpack.c.l.b16 %v775
  %v781 = vunpack.c.h.b16 %v775
  %v782 = vpack.c.b16 %v778, %v778
  %v783 = vpack.c.b16 %v779, %v779
  %v784 = vpack.c.b16 %v780, %v780
  %v785 = vpack.c.b16 %v781, %v781
  %v787 = vshrl.u32 %v782, 16
  %v788 = vpack.i.b16 %v787, %v787
  %v790 = vperm.slane %v788, 0
  %v792 = vshrl.u32 %v783, 16
  %v793 = vpack.i.b16 %v792, %v792
  %v795 = vperm.slane %v793, 0
  %v797 = vshrl.u32 %v784, 16
  %v798 = vpack.i.b16 %v797, %v797
  %v800 = vperm.slane %v798, 0
  %v802 = vshrl.u32 %v785, 16
  %v803 = vpack.i.b16 %v802, %v802
  %v805 = vperm.slane %v803, 0
  %v806 = vunpack.c.l.bf16 %v772
  %v807 = vunpack.c.h.bf16 %v772
  %v808 = vunpack.c.l.bf16 %v773
  %v809 = vunpack.c.l.bf16 %v790
  %v810 = vunpack.c.l.bf16 %v795
  %v811 = vunpack.c.l.bf16 %v800
  %v812 = vunpack.c.l.bf16 %v805
  %v817 = vrot.slane %v810, 4
  %v818 = vrot.slane %v812, 4
  %v819 = vsel %vm140, %v809, %v817
  %v820 = vsel %vm140, %v811, %v818
  %821 = vrot.lane.b32.xlu0 %v819, 1
  %v822 = vpop.permute.xlu0 %821
  %823 = vrot.lane.b32.xlu0 %v820, 1
  %v824 = vpop.permute.xlu0 %823
  %v825 = vrot.slane %v822, 4
  %v826 = vrot.slane %v824, 4
  %vm827 = vcmask 7168
  %v828 = vsel %vm827, %v825, %v822
  %v829 = vsel %vm140, %v825, %v826
  %v830 = vsel %vm827, %v829, %v824
  %v834 = vmul.f32 %v806, %v828
  %v835 = vmul.f32 %v807, %v830
  %v836 = vmul.f32 %v808, %v826
  %840 = vst [vmem:[#allocation1] ss:$2 sm:$0xff] %v834
  %s841 = scalar_lea.vmem [#allocation1], 16
  %842 = vst [vmem:[%s841] ss:$2 sm:$0xff] %v835
  %s843 = scalar_lea.vmem [#allocation1], 32
  %844 = vst [vmem:[%s843] ss:$2 sm:$0xff] %v836
  %v845 = vld.sshfl [vmem:[#allocation1] sm:$0xff pattern:$0x75316420]
  %v846 = vld.sshfl [vmem:[#allocation1 + $0x8] sm:$0xff pattern:$0x75316420]
  %v847 = vld.sshfl [vmem:[#allocation1 + $0x10] sm:$0xff pattern:$0x75316420]
  %v848 = vld.sshfl [vmem:[#allocation1 + $0x18] sm:$0xff pattern:$0x75316420]
  %v849 = vld.sshfl [vmem:[#allocation1 + $0x20] sm:$0xff pattern:$0x75316420]
  %v855 = vpack.c.bf16 %v845, %v845
  %v856 = vpack.c.bf16 %v846, %v846
  %v857 = vpack.c.bf16 %v847, %v847
  %v858 = vpack.c.bf16 %v848, %v848
  %v859 = vpack.c.bf16 %v849, %v849
  %s860 = scalar_lea.vmem %s9, 2
  %v861 = vld [vmem:[%s860] sm:$0x3]
  %867 = vrot.lane.b32.xlu0 %v855, 127
  %v868 = vpop.permute.xlu0 %867
  %869 = vrot.lane.b32.xlu0 %v856, 127
  %v870 = vpop.permute.xlu0 %869
  %871 = vrot.lane.b32.xlu0 %v857, 127
  %v872 = vpop.permute.xlu0 %871
  %873 = vrot.lane.b32.xlu0 %v858, 127
  %v874 = vpop.permute.xlu0 %873
  %875 = vrot.lane.b32.xlu0 %v859, 127
  %v876 = vpop.permute.xlu0 %875
  %vm877 = vcmask 1039360
  %v878 = vsel %vm877, %v868, %v870
  %v879 = vsel %vm877, %v870, %v872
  %v880 = vsel %vm877, %v872, %v874
  %v881 = vsel %vm877, %v874, %v876
  %vm882 = vcmask 31744
  %v884 = vsel %vm882, %v861, 0
  %v887 = vsel %vm681, %v878, 0
  %v890 = vsel %vm681, %v879, 0
  %v893 = vsel %vm681, %v880, 0
  %v896 = vsel %vm681, %v881, 0
  %898 = vmatpush.bf16.msra.mxu0 0
  %899 = vmatpush.bf16.msra.mxu0 0
  %900 = vmatpush.bf16.msra.mxu0 0
  %901 = vmatpush.bf16.msra.mxu0 0
  %902 = vmatpush.bf16.msra.mxu0 0
  %903 = vmatpush.bf16.msra.mxu0 0
  %904 = vmatpush.bf16.msra.mxu0 0
  %905 = vmatpush.bf16.msra.mxu0 %v887
  %906 = vmatmul.bf16.gmra.mxu0 %v884
  %v907 = vpop.f32.mrf.mxu0
  %v908 = vadd.f32 0.0, %v907
  %v909 = vpop.f32.mrf.mxu0
  %910 = vdwg.mxu0
  %911 = vmatpush.bf16.msra.mxu0 0
  %912 = vmatpush.bf16.msra.mxu0 0
  %913 = vmatpush.bf16.msra.mxu0 0
  %914 = vmatpush.bf16.msra.mxu0 0
  %915 = vmatpush.bf16.msra.mxu0 0
  %916 = vmatpush.bf16.msra.mxu0 0
  %917 = vmatpush.bf16.msra.mxu0 0
  %918 = vmatpush.bf16.msra.mxu0 %v890
  %919 = vmatmul.bf16.gmra.mxu0 %v884
  %v920 = vpop.f32.mrf.mxu0
  %v921 = vadd.f32 0.0, %v920
  %v922 = vpop.f32.mrf.mxu0
  %923 = vdwg.mxu0
  %924 = vmatpush.bf16.msra.mxu0 0
  %925 = vmatpush.bf16.msra.mxu0 0
  %926 = vmatpush.bf16.msra.mxu0 0
  %927 = vmatpush.bf16.msra.mxu0 0
  %928 = vmatpush.bf16.msra.mxu0 0
  %929 = vmatpush.bf16.msra.mxu0 0
  %930 = vmatpush.bf16.msra.mxu0 0
  %931 = vmatpush.bf16.msra.mxu0 %v893
  %932 = vmatmul.bf16.gmra.mxu0 %v884
  %v933 = vpop.f32.mrf.mxu0
  %v934 = vadd.f32 0.0, %v933
  %v935 = vpop.f32.mrf.mxu0
  %936 = vdwg.mxu0
  %937 = vmatpush.bf16.msra.mxu0 0
  %938 = vmatpush.bf16.msra.mxu0 0
  %939 = vmatpush.bf16.msra.mxu0 0
  %940 = vmatpush.bf16.msra.mxu0 0
  %941 = vmatpush.bf16.msra.mxu0 0
  %942 = vmatpush.bf16.msra.mxu0 0
  %943 = vmatpush.bf16.msra.mxu0 0
  %944 = vmatpush.bf16.msra.mxu0 %v896
  %945 = vmatmul.bf16.gmra.mxu0 %v884
  %v946 = vpop.f32.mrf.mxu0
  %v947 = vadd.f32 0.0, %v946
  %v948 = vpop.f32.mrf.mxu0
  %949 = vdwg.mxu0
  %v951 = vsel %vm882, %v771, 0
  %v954 = vsel %vm681, %v767, 0
  %v957 = vsel %vm681, %v768, 0
  %v960 = vsel %vm681, %v769, 0
  %v963 = vsel %vm681, %v770, 0
  %965 = vmatpush.bf16.msra.mxu0 0
  %966 = vmatpush.bf16.msra.mxu0 0
  %967 = vmatpush.bf16.msra.mxu0 0
  %968 = vmatpush.bf16.msra.mxu0 0
  %969 = vmatpush.bf16.msra.mxu0 0
  %970 = vmatpush.bf16.msra.mxu0 0
  %971 = vmatpush.bf16.msra.mxu0 0
  %972 = vmatpush.bf16.msra.mxu0 %v954
  %973 = vmatmul.bf16.gmra.mxu0 %v951
  %v974 = vpop.f32.mrf.mxu0
  %v975 = vadd.f32 %v908, %v974
  %v976 = vpop.f32.mrf.mxu0
  %977 = vdwg.mxu0
  %978 = vmatpush.bf16.msra.mxu0 0
  %979 = vmatpush.bf16.msra.mxu0 0
  %980 = vmatpush.bf16.msra.mxu0 0
  %981 = vmatpush.bf16.msra.mxu0 0
  %982 = vmatpush.bf16.msra.mxu0 0
  %983 = vmatpush.bf16.msra.mxu0 0
  %984 = vmatpush.bf16.msra.mxu0 0
  %985 = vmatpush.bf16.msra.mxu0 %v957
  %986 = vmatmul.bf16.gmra.mxu0 %v951
  %v987 = vpop.f32.mrf.mxu0
  %v988 = vadd.f32 %v921, %v987
  %v989 = vpop.f32.mrf.mxu0
  %990 = vdwg.mxu0
  %991 = vmatpush.bf16.msra.mxu0 0
  %992 = vmatpush.bf16.msra.mxu0 0
  %993 = vmatpush.bf16.msra.mxu0 0
  %994 = vmatpush.bf16.msra.mxu0 0
  %995 = vmatpush.bf16.msra.mxu0 0
  %996 = vmatpush.bf16.msra.mxu0 0
  %997 = vmatpush.bf16.msra.mxu0 0
  %998 = vmatpush.bf16.msra.mxu0 %v960
  %999 = vmatmul.bf16.gmra.mxu0 %v951
  %v1000 = vpop.f32.mrf.mxu0
  %v1001 = vadd.f32 %v934, %v1000
  %v1002 = vpop.f32.mrf.mxu0
  %1003 = vdwg.mxu0
  %1004 = vmatpush.bf16.msra.mxu0 0
  %1005 = vmatpush.bf16.msra.mxu0 0
  %1006 = vmatpush.bf16.msra.mxu0 0
  %1007 = vmatpush.bf16.msra.mxu0 0
  %1008 = vmatpush.bf16.msra.mxu0 0
  %1009 = vmatpush.bf16.msra.mxu0 0
  %1010 = vmatpush.bf16.msra.mxu0 0
  %1011 = vmatpush.bf16.msra.mxu0 %v963
  %1012 = vmatmul.bf16.gmra.mxu0 %v951
  %v1013 = vpop.f32.mrf.mxu0
  %v1014 = vadd.f32 %v947, %v1013
  %v1015 = vpop.f32.mrf.mxu0
  %1016 = vdwg.mxu0
  %v1017 = vld [vmem:[#allocation2] sm:$0xff]
  %v1018 = vld [vmem:[#allocation2 + $0x8] sm:$0x3]
  %v1019 = vld [vmem:[%s13] sm:$0x22]
  %v1020 = vld [vmem:[%s13 + $0x8] sm:$0x22]
  %v1023 = vunpack.c.l.b16 %v1019
  %v1024 = vunpack.c.h.b16 %v1019
  %v1025 = vunpack.c.l.b16 %v1020
  %v1026 = vunpack.c.h.b16 %v1020
  %v1027 = vpack.c.b16 %v1023, %v1023
  %v1028 = vpack.c.b16 %v1024, %v1024
  %v1029 = vpack.c.b16 %v1025, %v1025
  %v1030 = vpack.c.b16 %v1026, %v1026
  %v1032 = vpack.i.b16 %v1027, %v1027
  %v1034 = vperm.slane %v1032, 1
  %v1036 = vpack.i.b16 %v1028, %v1028
  %v1038 = vperm.slane %v1036, 1
  %v1040 = vpack.i.b16 %v1029, %v1029
  %v1042 = vperm.slane %v1040, 1
  %v1044 = vpack.i.b16 %v1030, %v1030
  %v1046 = vperm.slane %v1044, 1
  %v1047 = vunpack.c.l.bf16 %v1017
  %v1048 = vunpack.c.h.bf16 %v1017
  %v1049 = vunpack.c.l.bf16 %v1018
  %v1050 = vunpack.c.l.bf16 %v1034
  %v1051 = vunpack.c.l.bf16 %v1038
  %v1052 = vunpack.c.l.bf16 %v1042
  %v1053 = vunpack.c.l.bf16 %v1046
  %v1058 = vrot.slane %v1051, 4
  %v1059 = vrot.slane %v1053, 4
  %v1060 = vsel %vm140, %v1050, %v1058
  %v1061 = vsel %vm140, %v1052, %v1059
  %1062 = vrot.lane.b32.xlu0 %v1060, 2
  %v1063 = vpop.permute.xlu0 %1062
  %1064 = vrot.lane.b32.xlu0 %v1061, 2
  %v1065 = vpop.permute.xlu0 %1064
  %v1066 = vrot.slane %v1063, 4
  %v1067 = vrot.slane %v1065, 4
  %vm1068 = vcmask 15360
  %v1069 = vsel %vm1068, %v1066, %v1063
  %v1070 = vsel %vm140, %v1066, %v1067
  %v1071 = vsel %vm1068, %v1070, %v1065
  %v1075 = vmul.f32 %v1047, %v1069
  %v1076 = vmul.f32 %v1048, %v1071
  %v1077 = vmul.f32 %v1049, %v1067
  %1081 = vst [vmem:[#allocation1] ss:$2 sm:$0xff] %v1075
  %s1082 = scalar_lea.vmem [#allocation1], 16
  %1083 = vst [vmem:[%s1082] ss:$2 sm:$0xff] %v1076
  %s1084 = scalar_lea.vmem [#allocation1], 32
  %1085 = vst [vmem:[%s1084] ss:$2 sm:$0xff] %v1077
  %v1086 = vld.sshfl [vmem:[#allocation1] sm:$0xff pattern:$0x75316420]
  %v1087 = vld.sshfl [vmem:[#allocation1 + $0x8] sm:$0xff pattern:$0x75316420]
  %v1088 = vld.sshfl [vmem:[#allocation1 + $0x10] sm:$0xff pattern:$0x75316420]
  %v1089 = vld.sshfl [vmem:[#allocation1 + $0x18] sm:$0xff pattern:$0x75316420]
  %v1090 = vld.sshfl [vmem:[#allocation1 + $0x20] sm:$0xff pattern:$0x75316420]
  %v1096 = vpack.c.bf16 %v1086, %v1086
  %v1097 = vpack.c.bf16 %v1087, %v1087
  %v1098 = vpack.c.bf16 %v1088, %v1088
  %v1099 = vpack.c.bf16 %v1089, %v1089
  %v1100 = vpack.c.bf16 %v1090, %v1090
  %s1101 = scalar_lea.vmem %s9, 4
  %v1102 = vld [vmem:[%s1101] sm:$0x3]
  %1108 = vrot.lane.b32.xlu0 %v1096, 126
  %v1109 = vpop.permute.xlu0 %1108
  %1110 = vrot.lane.b32.xlu0 %v1097, 126
  %v1111 = vpop.permute.xlu0 %1110
  %1112 = vrot.lane.b32.xlu0 %v1098, 126
  %v1113 = vpop.permute.xlu0 %1112
  %1114 = vrot.lane.b32.xlu0 %v1099, 126
  %v1115 = vpop.permute.xlu0 %1114
  %1116 = vrot.lane.b32.xlu0 %v1100, 126
  %v1117 = vpop.permute.xlu0 %1116
  %vm1118 = vcmask 1031168
  %v1119 = vsel %vm1118, %v1109, %v1111
  %v1120 = vsel %vm1118, %v1111, %v1113
  %v1121 = vsel %vm1118, %v1113, %v1115
  %v1122 = vsel %vm1118, %v1115, %v1117
  %v1124 = vsel %vm882, %v1102, 0
  %v1127 = vsel %vm681, %v1119, 0
  %v1130 = vsel %vm681, %v1120, 0
  %v1133 = vsel %vm681, %v1121, 0
  %v1136 = vsel %vm681, %v1122, 0
  %1138 = vmatpush.bf16.msra.mxu0 0
  %1139 = vmatpush.bf16.msra.mxu0 0
  %1140 = vmatpush.bf16.msra.mxu0 0
  %1141 = vmatpush.bf16.msra.mxu0 0
  %1142 = vmatpush.bf16.msra.mxu0 0
  %1143 = vmatpush.bf16.msra.mxu0 0
  %1144 = vmatpush.bf16.msra.mxu0 0
  %1145 = vmatpush.bf16.msra.mxu0 %v1127
  %1146 = vmatmul.bf16.gmra.mxu0 %v1124
  %v1147 = vpop.f32.mrf.mxu0
  %v1148 = vadd.f32 0.0, %v1147
  %v1149 = vpop.f32.mrf.mxu0
  %1150 = vdwg.mxu0
  %1151 = vmatpush.bf16.msra.mxu0 0
  %1152 = vmatpush.bf16.msra.mxu0 0
  %1153 = vmatpush.bf16.msra.mxu0 0
  %1154 = vmatpush.bf16.msra.mxu0 0
  %1155 = vmatpush.bf16.msra.mxu0 0
  %1156 = vmatpush.bf16.msra.mxu0 0
  %1157 = vmatpush.bf16.msra.mxu0 0
  %1158 = vmatpush.bf16.msra.mxu0 %v1130
  %1159 = vmatmul.bf16.gmra.mxu0 %v1124
  %v1160 = vpop.f32.mrf.mxu0
  %v1161 = vadd.f32 0.0, %v1160
  %v1162 = vpop.f32.mrf.mxu0
  %1163 = vdwg.mxu0
  %1164 = vmatpush.bf16.msra.mxu0 0
  %1165 = vmatpush.bf16.msra.mxu0 0
  %1166 = vmatpush.bf16.msra.mxu0 0
  %1167 = vmatpush.bf16.msra.mxu0 0
  %1168 = vmatpush.bf16.msra.mxu0 0
  %1169 = vmatpush.bf16.msra.mxu0 0
  %1170 = vmatpush.bf16.msra.mxu0 0
  %1171 = vmatpush.bf16.msra.mxu0 %v1133
  %1172 = vmatmul.bf16.gmra.mxu0 %v1124
  %v1173 = vpop.f32.mrf.mxu0
  %v1174 = vadd.f32 0.0, %v1173
  %v1175 = vpop.f32.mrf.mxu0
  %1176 = vdwg.mxu0
  %1177 = vmatpush.bf16.msra.mxu0 0
  %1178 = vmatpush.bf16.msra.mxu0 0
  %1179 = vmatpush.bf16.msra.mxu0 0
  %1180 = vmatpush.bf16.msra.mxu0 0
  %1181 = vmatpush.bf16.msra.mxu0 0
  %1182 = vmatpush.bf16.msra.mxu0 0
  %1183 = vmatpush.bf16.msra.mxu0 0
  %1184 = vmatpush.bf16.msra.mxu0 %v1136
  %1185 = vmatmul.bf16.gmra.mxu0 %v1124
  %v1186 = vpop.f32.mrf.mxu0
  %v1187 = vadd.f32 0.0, %v1186
  %v1188 = vpop.f32.mrf.mxu0
  %1189 = vdwg.mxu0
  %v1190 = vadd.f32 %v975, %v1148
  %v1191 = vadd.f32 %v988, %v1161
  %v1192 = vadd.f32 %v1001, %v1174
  %v1193 = vadd.f32 %v1014, %v1187
  %v1194 = vld [vmem:[#allocation2] sm:$0xff]
  %v1195 = vld [vmem:[#allocation2 + $0x8] sm:$0x3]
  %v1196 = vld [vmem:[%s13] sm:$0x22]
  %v1197 = vld [vmem:[%s13 + $0x8] sm:$0x22]
  %v1200 = vunpack.c.l.b16 %v1196
  %v1201 = vunpack.c.h.b16 %v1196
  %v1202 = vunpack.c.l.b16 %v1197
  %v1203 = vunpack.c.h.b16 %v1197
  %v1204 = vpack.c.b16 %v1200, %v1200
  %v1205 = vpack.c.b16 %v1201, %v1201
  %v1206 = vpack.c.b16 %v1202, %v1202
  %v1207 = vpack.c.b16 %v1203, %v1203
  %v1209 = vshrl.u32 %v1204, 16
  %v1210 = vpack.i.b16 %v1209, %v1209
  %v1212 = vperm.slane %v1210, 1
  %v1214 = vshrl.u32 %v1205, 16
  %v1215 = vpack.i.b16 %v1214, %v1214
  %v1217 = vperm.slane %v1215, 1
  %v1219 = vshrl.u32 %v1206, 16
  %v1220 = vpack.i.b16 %v1219, %v1219
  %v1222 = vperm.slane %v1220, 1
  %v1224 = vshrl.u32 %v1207, 16
  %v1225 = vpack.i.b16 %v1224, %v1224
  %v1227 = vperm.slane %v1225, 1
  %v1228 = vunpack.c.l.bf16 %v1194
  %v1229 = vunpack.c.h.bf16 %v1194
  %v1230 = vunpack.c.l.bf16 %v1195
  %v1231 = vunpack.c.l.bf16 %v1212
  %v1232 = vunpack.c.l.bf16 %v1217
  %v1233 = vunpack.c.l.bf16 %v1222
  %v1234 = vunpack.c.l.bf16 %v1227
  %v1239 = vrot.slane %v1232, 4
  %v1240 = vrot.slane %v1234, 4
  %v1241 = vsel %vm140, %v1231, %v1239
  %v1242 = vsel %vm140, %v1233, %v1240
  %1243 = vrot.lane.b32.xlu0 %v1241, 16
  %v1244 = vpop.permute.xlu0 %1243
  %1245 = vrot.lane.b32.xlu0 %v1242, 16
  %v1246 = vpop.permute.xlu0 %1245
  %v1247 = vrot.slane %v1244, 4
  %v1248 = vrot.slane %v1246, 4
  %v1249 = vsel %vm108, %v1247, %v1244
  %v1250 = vsel %vm140, %v1247, %v1248
  %v1251 = vsel %vm108, %v1250, %v1246
  %v1255 = vmul.f32 %v1228, %v1249
  %v1256 = vmul.f32 %v1229, %v1251
  %v1257 = vmul.f32 %v1230, %v1248
  %1261 = vst [vmem:[#allocation1] ss:$2 sm:$0xff] %v1255
  %s1262 = scalar_lea.vmem [#allocation1], 16
  %1263 = vst [vmem:[%s1262] ss:$2 sm:$0xff] %v1256
  %s1264 = scalar_lea.vmem [#allocation1], 32
  %1265 = vst [vmem:[%s1264] ss:$2 sm:$0xff] %v1257
  %v1266 = vld.sshfl [vmem:[#allocation1] sm:$0xff pattern:$0x75316420]
  %v1267 = vld.sshfl [vmem:[#allocation1 + $0x8] sm:$0xff pattern:$0x75316420]
  %v1268 = vld.sshfl [vmem:[#allocation1 + $0x10] sm:$0xff pattern:$0x75316420]
  %v1269 = vld.sshfl [vmem:[#allocation1 + $0x18] sm:$0xff pattern:$0x75316420]
  %v1270 = vld.sshfl [vmem:[#allocation1 + $0x20] sm:$0xff pattern:$0x75316420]
  %v1276 = vpack.c.bf16 %v1266, %v1266
  %v1277 = vpack.c.bf16 %v1267, %v1267
  %v1278 = vpack.c.bf16 %v1268, %v1268
  %v1279 = vpack.c.bf16 %v1269, %v1269
  %v1280 = vpack.c.bf16 %v1270, %v1270
  %s1281 = scalar_lea.vmem %s9, 6
  %v1282 = vld [vmem:[%s1281] sm:$0x3]
  %1288 = vrot.lane.b32.xlu0 %v1276, 112
  %v1289 = vpop.permute.xlu0 %1288
  %1290 = vrot.lane.b32.xlu0 %v1277, 112
  %v1291 = vpop.permute.xlu0 %1290
  %1292 = vrot.lane.b32.xlu0 %v1278, 112
  %v1293 = vpop.permute.xlu0 %1292
  %1294 = vrot.lane.b32.xlu0 %v1279, 112
  %v1295 = vpop.permute.xlu0 %1294
  %1296 = vrot.lane.b32.xlu0 %v1280, 112
  %v1297 = vpop.permute.xlu0 %1296
  %vm1298 = vcmask 916480
  %v1299 = vsel %vm1298, %v1289, %v1291
  %v1300 = vsel %vm1298, %v1291, %v1293
  %v1301 = vsel %vm1298, %v1293, %v1295
  %v1302 = vsel %vm1298, %v1295, %v1297
  %v1304 = vsel %vm882, %v1282, 0
  %v1307 = vsel %vm681, %v1299, 0
  %v1310 = vsel %vm681, %v1300, 0
  %v1313 = vsel %vm681, %v1301, 0
  %v1316 = vsel %vm681, %v1302, 0
  %1318 = vmatpush.bf16.msra.mxu0 0
  %1319 = vmatpush.bf16.msra.mxu0 0
  %1320 = vmatpush.bf16.msra.mxu0 0
  %1321 = vmatpush.bf16.msra.mxu0 0
  %1322 = vmatpush.bf16.msra.mxu0 0
  %1323 = vmatpush.bf16.msra.mxu0 0
  %1324 = vmatpush.bf16.msra.mxu0 0
  %1325 = vmatpush.bf16.msra.mxu0 %v1307
  %1326 = vmatmul.bf16.gmra.mxu0 %v1304
  %v1327 = vpop.f32.mrf.mxu0
  %v1328 = vadd.f32 0.0, %v1327
  %v1329 = vpop.f32.mrf.mxu0
  %1330 = vdwg.mxu0
  %1331 = vmatpush.bf16.msra.mxu0 0
  %1332 = vmatpush.bf16.msra.mxu0 0
  %1333 = vmatpush.bf16.msra.mxu0 0
  %1334 = vmatpush.bf16.msra.mxu0 0
  %1335 = vmatpush.bf16.msra.mxu0 0
  %1336 = vmatpush.bf16.msra.mxu0 0
  %1337 = vmatpush.bf16.msra.mxu0 0
  %1338 = vmatpush.bf16.msra.mxu0 %v1310
  %1339 = vmatmul.bf16.gmra.mxu0 %v1304
  %v1340 = vpop.f32.mrf.mxu0
  %v1341 = vadd.f32 0.0, %v1340
  %v1342 = vpop.f32.mrf.mxu0
  %1343 = vdwg.mxu0
  %1344 = vmatpush.bf16.msra.mxu0 0
  %1345 = vmatpush.bf16.msra.mxu0 0
  %1346 = vmatpush.bf16.msra.mxu0 0
  %1347 = vmatpush.bf16.msra.mxu0 0
  %1348 = vmatpush.bf16.msra.mxu0 0
  %1349 = vmatpush.bf16.msra.mxu0 0
  %1350 = vmatpush.bf16.msra.mxu0 0
  %1351 = vmatpush.bf16.msra.mxu0 %v1313
  %1352 = vmatmul.bf16.gmra.mxu0 %v1304
  %v1353 = vpop.f32.mrf.mxu0
  %v1354 = vadd.f32 0.0, %v1353
  %v1355 = vpop.f32.mrf.mxu0
  %1356 = vdwg.mxu0
  %1357 = vmatpush.bf16.msra.mxu0 0
  %1358 = vmatpush.bf16.msra.mxu0 0
  %1359 = vmatpush.bf16.msra.mxu0 0
  %1360 = vmatpush.bf16.msra.mxu0 0
  %1361 = vmatpush.bf16.msra.mxu0 0
  %1362 = vmatpush.bf16.msra.mxu0 0
  %1363 = vmatpush.bf16.msra.mxu0 0
  %1364 = vmatpush.bf16.msra.mxu0 %v1316
  %1365 = vmatmul.bf16.gmra.mxu0 %v1304
  %v1366 = vpop.f32.mrf.mxu0
  %v1367 = vadd.f32 0.0, %v1366
  %v1368 = vpop.f32.mrf.mxu0
  %1369 = vdwg.mxu0
  %v1370 = vadd.f32 %v1190, %v1328
  %v1371 = vadd.f32 %v1191, %v1341
  %v1372 = vadd.f32 %v1192, %v1354
  %v1373 = vadd.f32 %v1193, %v1367
  %v1374 = vld [vmem:[#allocation2] sm:$0xff]
  %v1375 = vld [vmem:[#allocation2 + $0x8] sm:$0x3]
  %s1376 = scalar_lea.vmem %s9, 8
  %v1377 = vld [vmem:[%s1376] sm:$0x3]
  %1379 = vst [vmem:[#allocation1] ss:$4 sm:$0xff] %v1374
  %s1381 = scalar_lea.vmem [#allocation1], 32
  %1382 = vst [vmem:[%s1381] ss:$4 sm:$0xff] %v1375
  %v1383 = vld.sshfl [vmem:[#allocation1] sm:$0xff pattern:$0x73625140]
  %v1385 = vld.sshfl [vmem:[#allocation1 + $0x8] sm:$0xff pattern:$0x73625140]
  %v1387 = vld.sshfl [vmem:[#allocation1 + $0x10] sm:$0xff pattern:$0x73625140]
  %v1389 = vld.sshfl [vmem:[#allocation1 + $0x18] sm:$0xff pattern:$0x73625140]
  %v1391 = vld.sshfl [vmem:[#allocation1 + $0x20] sm:$0xff pattern:$0x73625140]
  %1393 = vrot.lane.b32.xlu0 %v1383, 111
  %v1394 = vpop.permute.xlu0 %1393
  %1395 = vrot.lane.b32.xlu0 %v1385, 111
  %v1396 = vpop.permute.xlu0 %1395
  %1397 = vrot.lane.b32.xlu0 %v1387, 111
  %v1398 = vpop.permute.xlu0 %1397
  %1399 = vrot.lane.b32.xlu0 %v1389, 111
  %v1400 = vpop.permute.xlu0 %1399
  %1401 = vrot.lane.b32.xlu0 %v1391, 111
  %v1402 = vpop.permute.xlu0 %1401
  %vm1403 = vcmask 908288
  %v1404 = vsel %vm1403, %v1394, %v1396
  %v1405 = vsel %vm1403, %v1396, %v1398
  %v1406 = vsel %vm1403, %v1398, %v1400
  %v1407 = vsel %vm1403, %v1400, %v1402
  %v1409 = vsel %vm882, %v1377, 0
  %v1412 = vsel %vm681, %v1404, 0
  %v1415 = vsel %vm681, %v1405, 0
  %v1418 = vsel %vm681, %v1406, 0
  %v1421 = vsel %vm681, %v1407, 0
  %1423 = vmatpush.bf16.msra.mxu0 0
  %1424 = vmatpush.bf16.msra.mxu0 0
  %1425 = vmatpush.bf16.msra.mxu0 0
  %1426 = vmatpush.bf16.msra.mxu0 0
  %1427 = vmatpush.bf16.msra.mxu0 0
  %1428 = vmatpush.bf16.msra.mxu0 0
  %1429 = vmatpush.bf16.msra.mxu0 0
  %1430 = vmatpush.bf16.msra.mxu0 %v1412
  %1431 = vmatmul.bf16.gmra.mxu0 %v1409
  %v1432 = vpop.f32.mrf.mxu0
  %v1433 = vadd.f32 0.0, %v1432
  %v1434 = vpop.f32.mrf.mxu0
  %1435 = vdwg.mxu0
  %1436 = vmatpush.bf16.msra.mxu0 0
  %1437 = vmatpush.bf16.msra.mxu0 0
  %1438 = vmatpush.bf16.msra.mxu0 0
  %1439 = vmatpush.bf16.msra.mxu0 0
  %1440 = vmatpush.bf16.msra.mxu0 0
  %1441 = vmatpush.bf16.msra.mxu0 0
  %1442 = vmatpush.bf16.msra.mxu0 0
  %1443 = vmatpush.bf16.msra.mxu0 %v1415
  %1444 = vmatmul.bf16.gmra.mxu0 %v1409
  %v1445 = vpop.f32.mrf.mxu0
  %v1446 = vadd.f32 0.0, %v1445
  %v1447 = vpop.f32.mrf.mxu0
  %1448 = vdwg.mxu0
  %1449 = vmatpush.bf16.msra.mxu0 0
  %1450 = vmatpush.bf16.msra.mxu0 0
  %1451 = vmatpush.bf16.msra.mxu0 0
  %1452 = vmatpush.bf16.msra.mxu0 0
  %1453 = vmatpush.bf16.msra.mxu0 0
  %1454 = vmatpush.bf16.msra.mxu0 0
  %1455 = vmatpush.bf16.msra.mxu0 0
  %1456 = vmatpush.bf16.msra.mxu0 %v1418
  %1457 = vmatmul.bf16.gmra.mxu0 %v1409
  %v1458 = vpop.f32.mrf.mxu0
  %v1459 = vadd.f32 0.0, %v1458
  %v1460 = vpop.f32.mrf.mxu0
  %1461 = vdwg.mxu0
  %1462 = vmatpush.bf16.msra.mxu0 0
  %1463 = vmatpush.bf16.msra.mxu0 0
  %1464 = vmatpush.bf16.msra.mxu0 0
  %1465 = vmatpush.bf16.msra.mxu0 0
  %1466 = vmatpush.bf16.msra.mxu0 0
  %1467 = vmatpush.bf16.msra.mxu0 0
  %1468 = vmatpush.bf16.msra.mxu0 0
  %1469 = vmatpush.bf16.msra.mxu0 %v1421
  %1470 = vmatmul.bf16.gmra.mxu0 %v1409
  %v1471 = vpop.f32.mrf.mxu0
  %v1472 = vadd.f32 0.0, %v1471
  %v1473 = vpop.f32.mrf.mxu0
  %1474 = vdwg.mxu0
  %v1475 = vadd.f32 %v1370, %v1433
  %v1476 = vadd.f32 %v1371, %v1446
  %v1477 = vadd.f32 %v1372, %v1459
  %v1478 = vadd.f32 %v1373, %v1472
  %v1479 = vld [vmem:[#allocation2] sm:$0xff]
  %v1480 = vld [vmem:[#allocation2 + $0x8] sm:$0x3]
  %v1481 = vld [vmem:[%s13] sm:$0x44]
  %v1482 = vld [vmem:[%s13 + $0x8] sm:$0x44]
  %v1485 = vunpack.c.l.b16 %v1481
  %v1486 = vunpack.c.h.b16 %v1481
  %v1487 = vunpack.c.l.b16 %v1482
  %v1488 = vunpack.c.h.b16 %v1482
  %v1489 = vpack.c.b16 %v1485, %v1485
  %v1490 = vpack.c.b16 %v1486, %v1486
  %v1491 = vpack.c.b16 %v1487, %v1487
  %v1492 = vpack.c.b16 %v1488, %v1488
  %v1494 = vshrl.u32 %v1489, 16
  %v1495 = vpack.i.b16 %v1494, %v1494
  %v1497 = vperm.slane %v1495, 2
  %v1499 = vshrl.u32 %v1490, 16
  %v1500 = vpack.i.b16 %v1499, %v1499
  %v1502 = vperm.slane %v1500, 2
  %v1504 = vshrl.u32 %v1491, 16
  %v1505 = vpack.i.b16 %v1504, %v1504
  %v1507 = vperm.slane %v1505, 2
  %v1509 = vshrl.u32 %v1492, 16
  %v1510 = vpack.i.b16 %v1509, %v1509
  %v1512 = vperm.slane %v1510, 2
  %v1513 = vunpack.c.l.bf16 %v1479
  %v1514 = vunpack.c.h.bf16 %v1479
  %v1515 = vunpack.c.l.bf16 %v1480
  %v1516 = vunpack.c.l.bf16 %v1497
  %v1517 = vunpack.c.l.bf16 %v1502
  %v1518 = vunpack.c.l.bf16 %v1507
  %v1519 = vunpack.c.l.bf16 %v1512
  %v1524 = vrot.slane %v1517, 4
  %v1525 = vrot.slane %v1519, 4
  %v1526 = vsel %vm140, %v1516, %v1524
  %v1527 = vsel %vm140, %v1518, %v1525
  %1528 = vrot.lane.b32.xlu0 %v1526, 18
  %v1529 = vpop.permute.xlu0 %1528
  %1530 = vrot.lane.b32.xlu0 %v1527, 18
  %v1531 = vpop.permute.xlu0 %1530
  %v1532 = vrot.slane %v1529, 4
  %v1533 = vrot.slane %v1531, 4
  %vm1534 = vcmask 146432
  %v1535 = vsel %vm1534, %v1532, %v1529
  %v1536 = vsel %vm140, %v1532, %v1533
  %v1537 = vsel %vm1534, %v1536, %v1531
  %v1541 = vmul.f32 %v1513, %v1535
  %v1542 = vmul.f32 %v1514, %v1537
  %v1543 = vmul.f32 %v1515, %v1533
  %1547 = vst [vmem:[#allocation1] ss:$2 sm:$0xff] %v1541
  %s1548 = scalar_lea.vmem [#allocation1], 16
  %1549 = vst [vmem:[%s1548] ss:$2 sm:$0xff] %v1542
  %s1550 = scalar_lea.vmem [#allocation1], 32
  %1551 = vst [vmem:[%s1550] ss:$2 sm:$0xff] %v1543
  %v1552 = vld.sshfl [vmem:[#allocation1] sm:$0xff pattern:$0x75316420]
  %v1553 = vld.sshfl [vmem:[#allocation1 + $0x8] sm:$0xff pattern:$0x75316420]
  %v1554 = vld.sshfl [vmem:[#allocation1 + $0x10] sm:$0xff pattern:$0x75316420]
  %v1555 = vld.sshfl [vmem:[#allocation1 + $0x18] sm:$0xff pattern:$0x75316420]
  %v1556 = vld.sshfl [vmem:[#allocation1 + $0x20] sm:$0xff pattern:$0x75316420]
  %v1562 = vpack.c.bf16 %v1552, %v1552
  %v1563 = vpack.c.bf16 %v1553, %v1553
  %v1564 = vpack.c.bf16 %v1554, %v1554
  %v1565 = vpack.c.bf16 %v1555, %v1555
  %v1566 = vpack.c.bf16 %v1556, %v1556
  %s1567 = scalar_lea.vmem %s9, 10
  %v1568 = vld [vmem:[%s1567] sm:$0x3]
  %1574 = vrot.lane.b32.xlu0 %v1562, 110
  %v1575 = vpop.permute.xlu0 %1574
  %1576 = vrot.lane.b32.xlu0 %v1563, 110
  %v1577 = vpop.permute.xlu0 %1576
  %1578 = vrot.lane.b32.xlu0 %v1564, 110
  %v1579 = vpop.permute.xlu0 %1578
  %1580 = vrot.lane.b32.xlu0 %v1565, 110
  %v1581 = vpop.permute.xlu0 %1580
  %1582 = vrot.lane.b32.xlu0 %v1566, 110
  %v1583 = vpop.permute.xlu0 %1582
  %vm1584 = vcmask 900096
  %v1585 = vsel %vm1584, %v1575, %v1577
  %v1586 = vsel %vm1584, %v1577, %v1579
  %v1587 = vsel %vm1584, %v1579, %v1581
  %v1588 = vsel %vm1584, %v1581, %v1583
  %v1590 = vsel %vm882, %v1568, 0
  %v1593 = vsel %vm681, %v1585, 0
  %v1596 = vsel %vm681, %v1586, 0
  %v1599 = vsel %vm681, %v1587, 0
  %v1602 = vsel %vm681, %v1588, 0
  %1604 = vmatpush.bf16.msra.mxu0 0
  %1605 = vmatpush.bf16.msra.mxu0 0
  %1606 = vmatpush.bf16.msra.mxu0 0
  %1607 = vmatpush.bf16.msra.mxu0 0
  %1608 = vmatpush.bf16.msra.mxu0 0
  %1609 = vmatpush.bf16.msra.mxu0 0
  %1610 = vmatpush.bf16.msra.mxu0 0
  %1611 = vmatpush.bf16.msra.mxu0 %v1593
  %1612 = vmatmul.bf16.gmra.mxu0 %v1590
  %v1613 = vpop.f32.mrf.mxu0
  %v1614 = vadd.f32 0.0, %v1613
  %v1615 = vpop.f32.mrf.mxu0
  %1616 = vdwg.mxu0
  %1617 = vmatpush.bf16.msra.mxu0 0
  %1618 = vmatpush.bf16.msra.mxu0 0
  %1619 = vmatpush.bf16.msra.mxu0 0
  %1620 = vmatpush.bf16.msra.mxu0 0
  %1621 = vmatpush.bf16.msra.mxu0 0
  %1622 = vmatpush.bf16.msra.mxu0 0
  %1623 = vmatpush.bf16.msra.mxu0 0
  %1624 = vmatpush.bf16.msra.mxu0 %v1596
  %1625 = vmatmul.bf16.gmra.mxu0 %v1590
  %v1626 = vpop.f32.mrf.mxu0
  %v1627 = vadd.f32 0.0, %v1626
  %v1628 = vpop.f32.mrf.mxu0
  %1629 = vdwg.mxu0
  %1630 = vmatpush.bf16.msra.mxu0 0
  %1631 = vmatpush.bf16.msra.mxu0 0
  %1632 = vmatpush.bf16.msra.mxu0 0
  %1633 = vmatpush.bf16.msra.mxu0 0
  %1634 = vmatpush.bf16.msra.mxu0 0
  %1635 = vmatpush.bf16.msra.mxu0 0
  %1636 = vmatpush.bf16.msra.mxu0 0
  %1637 = vmatpush.bf16.msra.mxu0 %v1599
  %1638 = vmatmul.bf16.gmra.mxu0 %v1590
  %v1639 = vpop.f32.mrf.mxu0
  %v1640 = vadd.f32 0.0, %v1639
  %v1641 = vpop.f32.mrf.mxu0
  %1642 = vdwg.mxu0
  %1643 = vmatpush.bf16.msra.mxu0 0
  %1644 = vmatpush.bf16.msra.mxu0 0
  %1645 = vmatpush.bf16.msra.mxu0 0
  %1646 = vmatpush.bf16.msra.mxu0 0
  %1647 = vmatpush.bf16.msra.mxu0 0
  %1648 = vmatpush.bf16.msra.mxu0 0
  %1649 = vmatpush.bf16.msra.mxu0 0
  %1650 = vmatpush.bf16.msra.mxu0 %v1602
  %1651 = vmatmul.bf16.gmra.mxu0 %v1590
  %v1652 = vpop.f32.mrf.mxu0
  %v1653 = vadd.f32 0.0, %v1652
  %v1654 = vpop.f32.mrf.mxu0
  %1655 = vdwg.mxu0
  %v1656 = vadd.f32 %v1475, %v1614
  %v1657 = vadd.f32 %v1476, %v1627
  %v1658 = vadd.f32 %v1477, %v1640
  %v1659 = vadd.f32 %v1478, %v1653
  %v1660 = vld [vmem:[#allocation2] sm:$0xff]
  %v1661 = vld [vmem:[#allocation2 + $0x8] sm:$0x3]
  %v1662 = vld [vmem:[%s13] sm:$0x88]
  %v1663 = vld [vmem:[%s13 + $0x8] sm:$0x88]
  %v1666 = vunpack.c.l.b16 %v1662
  %v1667 = vunpack.c.h.b16 %v1662
  %v1668 = vunpack.c.l.b16 %v1663
  %v1669 = vunpack.c.h.b16 %v1663
  %v1670 = vpack.c.b16 %v1666, %v1666
  %v1671 = vpack.c.b16 %v1667, %v1667
  %v1672 = vpack.c.b16 %v1668, %v1668
  %v1673 = vpack.c.b16 %v1669, %v1669
  %v1675 = vpack.i.b16 %v1670, %v1670
  %v1677 = vperm.slane %v1675, 3
  %v1679 = vpack.i.b16 %v1671, %v1671
  %v1681 = vperm.slane %v1679, 3
  %v1683 = vpack.i.b16 %v1672, %v1672
  %v1685 = vperm.slane %v1683, 3
  %v1687 = vpack.i.b16 %v1673, %v1673
  %v1689 = vperm.slane %v1687, 3
  %v1690 = vunpack.c.l.bf16 %v1660
  %v1691 = vunpack.c.h.bf16 %v1660
  %v1692 = vunpack.c.l.bf16 %v1661
  %v1693 = vunpack.c.l.bf16 %v1677
  %v1694 = vunpack.c.l.bf16 %v1681
  %v1695 = vunpack.c.l.bf16 %v1685
  %v1696 = vunpack.c.l.bf16 %v1689
  %v1701 = vrot.slane %v1694, 4
  %v1702 = vrot.slane %v1696, 4
  %v1703 = vsel %vm140, %v1693, %v1701
  %v1704 = vsel %vm140, %v1695, %v1702
  %1705 = vrot.lane.b32.xlu0 %v1703, 32
  %v1706 = vpop.permute.xlu0 %1705
  %1707 = vrot.lane.b32.xlu0 %v1704, 32
  %v1708 = vpop.permute.xlu0 %1707
  %v1709 = vrot.slane %v1706, 4
  %v1710 = vrot.slane %v1708, 4
  %vm1711 = vcmask 261120
  %v1712 = vsel %vm1711, %v1709, %v1706
  %v1713 = vsel %vm140, %v1709, %v1710
  %v1714 = vsel %vm1711, %v1713, %v1708
  %v1718 = vmul.f32 %v1690, %v1712
  %v1719 = vmul.f32 %v1691, %v1714
  %v1720 = vmul.f32 %v1692, %v1710
  %1724 = vst [vmem:[#allocation1] ss:$2 sm:$0xff] %v1718
  %s1725 = scalar_lea.vmem [#allocation1], 16
  %1726 = vst [vmem:[%s1725] ss:$2 sm:$0xff] %v1719
  %s1727 = scalar_lea.vmem [#allocation1], 32
  %1728 = vst [vmem:[%s1727] ss:$2 sm:$0xff] %v1720
  %v1729 = vld.sshfl [vmem:[#allocation1] sm:$0xff pattern:$0x75316420]
  %v1730 = vld.sshfl [vmem:[#allocation1 + $0x8] sm:$0xff pattern:$0x75316420]
  %v1731 = vld.sshfl [vmem:[#allocation1 + $0x10] sm:$0xff pattern:$0x75316420]
  %v1732 = vld.sshfl [vmem:[#allocation1 + $0x18] sm:$0xff pattern:$0x75316420]
  %v1733 = vld.sshfl [vmem:[#allocation1 + $0x20] sm:$0xff pattern:$0x75316420]
  %v1739 = vpack.c.bf16 %v1729, %v1729
  %v1740 = vpack.c.bf16 %v1730, %v1730
  %v1741 = vpack.c.bf16 %v1731, %v1731
  %v1742 = vpack.c.bf16 %v1732, %v1732
  %v1743 = vpack.c.bf16 %v1733, %v1733
  %s1744 = scalar_lea.vmem %s9, 12
  %v1745 = vld [vmem:[%s1744] sm:$0x3]
  %1751 = vrot.lane.b32.xlu0 %v1739, 96
  %v1752 = vpop.permute.xlu0 %1751
  %1753 = vrot.lane.b32.xlu0 %v1740, 96
  %v1754 = vpop.permute.xlu0 %1753
  %1755 = vrot.lane.b32.xlu0 %v1741, 96
  %v1756 = vpop.permute.xlu0 %1755
  %1757 = vrot.lane.b32.xlu0 %v1742, 96
  %v1758 = vpop.permute.xlu0 %1757
  %1759 = vrot.lane.b32.xlu0 %v1743, 96
  %v1760 = vpop.permute.xlu0 %1759
  %vm1761 = vcmask 785408
  %v1762 = vsel %vm1761, %v1752, %v1754
  %v1763 = vsel %vm1761, %v1754, %v1756
  %v1764 = vsel %vm1761, %v1756, %v1758
  %v1765 = vsel %vm1761, %v1758, %v1760
  %v1767 = vsel %vm882, %v1745, 0
  %v1770 = vsel %vm681, %v1762, 0
  %v1773 = vsel %vm681, %v1763, 0
  %v1776 = vsel %vm681, %v1764, 0
  %v1779 = vsel %vm681, %v1765, 0
  %1781 = vmatpush.bf16.msra.mxu0 0
  %1782 = vmatpush.bf16.msra.mxu0 0
  %1783 = vmatpush.bf16.msra.mxu0 0
  %1784 = vmatpush.bf16.msra.mxu0 0
  %1785 = vmatpush.bf16.msra.mxu0 0
  %1786 = vmatpush.bf16.msra.mxu0 0
  %1787 = vmatpush.bf16.msra.mxu0 0
  %1788 = vmatpush.bf16.msra.mxu0 %v1770
  %1789 = vmatmul.bf16.gmra.mxu0 %v1767
  %v1790 = vpop.f32.mrf.mxu0
  %v1791 = vadd.f32 0.0, %v1790
  %v1792 = vpop.f32.mrf.mxu0
  %1793 = vdwg.mxu0
  %1794 = vmatpush.bf16.msra.mxu0 0
  %1795 = vmatpush.bf16.msra.mxu0 0
  %1796 = vmatpush.bf16.msra.mxu0 0
  %1797 = vmatpush.bf16.msra.mxu0 0
  %1798 = vmatpush.bf16.msra.mxu0 0
  %1799 = vmatpush.bf16.msra.mxu0 0
  %1800 = vmatpush.bf16.msra.mxu0 0
  %1801 = vmatpush.bf16.msra.mxu0 %v1773
  %1802 = vmatmul.bf16.gmra.mxu0 %v1767
  %v1803 = vpop.f32.mrf.mxu0
  %v1804 = vadd.f32 0.0, %v1803
  %v1805 = vpop.f32.mrf.mxu0
  %1806 = vdwg.mxu0
  %1807 = vmatpush.bf16.msra.mxu0 0
  %1808 = vmatpush.bf16.msra.mxu0 0
  %1809 = vmatpush.bf16.msra.mxu0 0
  %1810 = vmatpush.bf16.msra.mxu0 0
  %1811 = vmatpush.bf16.msra.mxu0 0
  %1812 = vmatpush.bf16.msra.mxu0 0
  %1813 = vmatpush.bf16.msra.mxu0 0
  %1814 = vmatpush.bf16.msra.mxu0 %v1776
  %1815 = vmatmul.bf16.gmra.mxu0 %v1767
  %v1816 = vpop.f32.mrf.mxu0
  %v1817 = vadd.f32 0.0, %v1816
  %v1818 = vpop.f32.mrf.mxu0
  %1819 = vdwg.mxu0
  %1820 = vmatpush.bf16.msra.mxu0 0
  %1821 = vmatpush.bf16.msra.mxu0 0
  %1822 = vmatpush.bf16.msra.mxu0 0
  %1823 = vmatpush.bf16.msra.mxu0 0
  %1824 = vmatpush.bf16.msra.mxu0 0
  %1825 = vmatpush.bf16.msra.mxu0 0
  %1826 = vmatpush.bf16.msra.mxu0 0
  %1827 = vmatpush.bf16.msra.mxu0 %v1779
  %1828 = vmatmul.bf16.gmra.mxu0 %v1767
  %v1829 = vpop.f32.mrf.mxu0
  %v1830 = vadd.f32 0.0, %v1829
  %v1831 = vpop.f32.mrf.mxu0
  %1832 = vdwg.mxu0
  %v1833 = vadd.f32 %v1656, %v1791
  %v1834 = vadd.f32 %v1657, %v1804
  %v1835 = vadd.f32 %v1658, %v1817
  %v1836 = vadd.f32 %v1659, %v1830
  %v1837 = vld [vmem:[#allocation2] sm:$0xff]
  %v1838 = vld [vmem:[#allocation2 + $0x8] sm:$0x3]
  %v1839 = vld [vmem:[%s13] sm:$0x88]
  %v1840 = vld [vmem:[%s13 + $0x8] sm:$0x88]
  %v1843 = vunpack.c.l.b16 %v1839
  %v1844 = vunpack.c.h.b16 %v1839
  %v1845 = vunpack.c.l.b16 %v1840
  %v1846 = vunpack.c.h.b16 %v1840
  %v1847 = vpack.c.b16 %v1843, %v1843
  %v1848 = vpack.c.b16 %v1844, %v1844
  %v1849 = vpack.c.b16 %v1845, %v1845
  %v1850 = vpack.c.b16 %v1846, %v1846
  %v1852 = vshrl.u32 %v1847, 16
  %v1853 = vpack.i.b16 %v1852, %v1852
  %v1855 = vperm.slane %v1853, 3
  %v1857 = vshrl.u32 %v1848, 16
  %v1858 = vpack.i.b16 %v1857, %v1857
  %v1860 = vperm.slane %v1858, 3
  %v1862 = vshrl.u32 %v1849, 16
  %v1863 = vpack.i.b16 %v1862, %v1862
  %v1865 = vperm.slane %v1863, 3
  %v1867 = vshrl.u32 %v1850, 16
  %v1868 = vpack.i.b16 %v1867, %v1867
  %v1870 = vperm.slane %v1868, 3
  %v1871 = vunpack.c.l.bf16 %v1837
  %v1872 = vunpack.c.h.bf16 %v1837
  %v1873 = vunpack.c.l.bf16 %v1838
  %v1874 = vunpack.c.l.bf16 %v1855
  %v1875 = vunpack.c.l.bf16 %v1860
  %v1876 = vunpack.c.l.bf16 %v1865
  %v1877 = vunpack.c.l.bf16 %v1870
  %v1882 = vrot.slane %v1875, 4
  %v1883 = vrot.slane %v1877, 4
  %v1884 = vsel %vm140, %v1874, %v1882
  %v1885 = vsel %vm140, %v1876, %v1883
  %1886 = vrot.lane.b32.xlu0 %v1884, 33
  %v1887 = vpop.permute.xlu0 %1886
  %1888 = vrot.lane.b32.xlu0 %v1885, 33
  %v1889 = vpop.permute.xlu0 %1888
  %v1890 = vrot.slane %v1887, 4
  %v1891 = vrot.slane %v1889, 4
  %vm1892 = vcmask 269312
  %v1893 = vsel %vm1892, %v1890, %v1887
  %v1894 = vsel %vm140, %v1890, %v1891
  %v1895 = vsel %vm1892, %v1894, %v1889
  %v1899 = vmul.f32 %v1871, %v1893
  %v1900 = vmul.f32 %v1872, %v1895
  %v1901 = vmul.f32 %v1873, %v1891
  %1905 = vst [vmem:[#allocation1] ss:$2 sm:$0xff] %v1899
  %s1906 = scalar_lea.vmem [#allocation1], 16
  %1907 = vst [vmem:[%s1906] ss:$2 sm:$0xff] %v1900
  %s1908 = scalar_lea.vmem [#allocation1], 32
  %1909 = vst [vmem:[%s1908] ss:$2 sm:$0xff] %v1901
  %v1910 = vld.sshfl [vmem:[#allocation1] sm:$0xff pattern:$0x75316420]
  %v1911 = vld.sshfl [vmem:[#allocation1 + $0x8] sm:$0xff pattern:$0x75316420]
  %v1912 = vld.sshfl [vmem:[#allocation1 + $0x10] sm:$0xff pattern:$0x75316420]
  %v1913 = vld.sshfl [vmem:[#allocation1 + $0x18] sm:$0xff pattern:$0x75316420]
  %v1914 = vld.sshfl [vmem:[#allocation1 + $0x20] sm:$0xff pattern:$0x75316420]
  %v1920 = vpack.c.bf16 %v1910, %v1910
  %v1921 = vpack.c.bf16 %v1911, %v1911
  %v1922 = vpack.c.bf16 %v1912, %v1912
  %v1923 = vpack.c.bf16 %v1913, %v1913
  %v1924 = vpack.c.bf16 %v1914, %v1914
  %s1925 = scalar_lea.vmem %s9, 14
  %v1926 = vld [vmem:[%s1925] sm:$0x3]
  %1932 = vrot.lane.b32.xlu0 %v1920, 95
  %v1933 = vpop.permute.xlu0 %1932
  %1934 = vrot.lane.b32.xlu0 %v1921, 95
  %v1935 = vpop.permute.xlu0 %1934
  %1936 = vrot.lane.b32.xlu0 %v1922, 95
  %v1937 = vpop.permute.xlu0 %1936
  %1938 = vrot.lane.b32.xlu0 %v1923, 95
  %v1939 = vpop.permute.xlu0 %1938
  %1940 = vrot.lane.b32.xlu0 %v1924, 95
  %v1941 = vpop.permute.xlu0 %1940
  %vm1942 = vcmask 777216
  %v1943 = vsel %vm1942, %v1933, %v1935
  %v1944 = vsel %vm1942, %v1935, %v1937
  %v1945 = vsel %vm1942, %v1937, %v1939
  %v1946 = vsel %vm1942, %v1939, %v1941
  %v1948 = vsel %vm882, %v1926, 0
  %v1951 = vsel %vm681, %v1943, 0
  %v1954 = vsel %vm681, %v1944, 0
  %v1957 = vsel %vm681, %v1945, 0
  %v1960 = vsel %vm681, %v1946, 0
  %1962 = vmatpush.bf16.msra.mxu0 0
  %1963 = vmatpush.bf16.msra.mxu0 0
  %1964 = vmatpush.bf16.msra.mxu0 0
  %1965 = vmatpush.bf16.msra.mxu0 0
  %1966 = vmatpush.bf16.msra.mxu0 0
  %1967 = vmatpush.bf16.msra.mxu0 0
  %1968 = vmatpush.bf16.msra.mxu0 0
  %1969 = vmatpush.bf16.msra.mxu0 %v1951
  %1970 = vmatmul.bf16.gmra.mxu0 %v1948
  %v1971 = vpop.f32.mrf.mxu0
  %v1972 = vadd.f32 0.0, %v1971
  %v1973 = vpop.f32.mrf.mxu0
  %1974 = vdwg.mxu0
  %1975 = vmatpush.bf16.msra.mxu0 0
  %1976 = vmatpush.bf16.msra.mxu0 0
  %1977 = vmatpush.bf16.msra.mxu0 0
  %1978 = vmatpush.bf16.msra.mxu0 0
  %1979 = vmatpush.bf16.msra.mxu0 0
  %1980 = vmatpush.bf16.msra.mxu0 0
  %1981 = vmatpush.bf16.msra.mxu0 0
  %1982 = vmatpush.bf16.msra.mxu0 %v1954
  %1983 = vmatmul.bf16.gmra.mxu0 %v1948
  %v1984 = vpop.f32.mrf.mxu0
  %v1985 = vadd.f32 0.0, %v1984
  %v1986 = vpop.f32.mrf.mxu0
  %1987 = vdwg.mxu0
  %1988 = vmatpush.bf16.msra.mxu0 0
  %1989 = vmatpush.bf16.msra.mxu0 0
  %1990 = vmatpush.bf16.msra.mxu0 0
  %1991 = vmatpush.bf16.msra.mxu0 0
  %1992 = vmatpush.bf16.msra.mxu0 0
  %1993 = vmatpush.bf16.msra.mxu0 0
  %1994 = vmatpush.bf16.msra.mxu0 0
  %1995 = vmatpush.bf16.msra.mxu0 %v1957
  %1996 = vmatmul.bf16.gmra.mxu0 %v1948
  %v1997 = vpop.f32.mrf.mxu0
  %v1998 = vadd.f32 0.0, %v1997
  %v1999 = vpop.f32.mrf.mxu0
  %2000 = vdwg.mxu0
  %2001 = vmatpush.bf16.msra.mxu0 0
  %2002 = vmatpush.bf16.msra.mxu0 0
  %2003 = vmatpush.bf16.msra.mxu0 0
  %2004 = vmatpush.bf16.msra.mxu0 0
  %2005 = vmatpush.bf16.msra.mxu0 0
  %2006 = vmatpush.bf16.msra.mxu0 0
  %2007 = vmatpush.bf16.msra.mxu0 0
  %2008 = vmatpush.bf16.msra.mxu0 %v1960
  %2009 = vmatmul.bf16.gmra.mxu0 %v1948
  %v2010 = vpop.f32.mrf.mxu0
  %v2011 = vadd.f32 0.0, %v2010
  %v2012 = vpop.f32.mrf.mxu0
  %2013 = vdwg.mxu0
  %v2014 = vadd.f32 %v1833, %v1972
  %v2015 = vadd.f32 %v1834, %v1985
  %v2016 = vadd.f32 %v1835, %v1998
  %v2017 = vadd.f32 %v1836, %v2011
  %v2018 = vld [vmem:[#allocation2] sm:$0xff]
  %v2019 = vld [vmem:[#allocation2 + $0x8] sm:$0x3]
  %v2020 = vld [vmem:[%s13 + $0x10] sm:$0x11]
  %v2021 = vld [vmem:[%s13 + $0x18] sm:$0x11]
  %v2024 = vunpack.c.l.b16 %v2020
  %v2025 = vunpack.c.h.b16 %v2020
  %v2026 = vunpack.c.l.b16 %v2021
  %v2027 = vunpack.c.h.b16 %v2021
  %v2028 = vpack.c.b16 %v2024, %v2024
  %v2029 = vpack.c.b16 %v2025, %v2025
  %v2030 = vpack.c.b16 %v2026, %v2026
  %v2031 = vpack.c.b16 %v2027, %v2027
  %v2033 = vpack.i.b16 %v2028, %v2028
  %v2035 = vperm.slane %v2033, 0
  %v2037 = vpack.i.b16 %v2029, %v2029
  %v2039 = vperm.slane %v2037, 0
  %v2041 = vpack.i.b16 %v2030, %v2030
  %v2043 = vperm.slane %v2041, 0
  %v2045 = vpack.i.b16 %v2031, %v2031
  %v2047 = vperm.slane %v2045, 0
  %v2048 = vunpack.c.l.bf16 %v2018
  %v2049 = vunpack.c.h.bf16 %v2018
  %v2050 = vunpack.c.l.bf16 %v2019
  %v2051 = vunpack.c.l.bf16 %v2035
  %v2052 = vunpack.c.l.bf16 %v2039
  %v2053 = vunpack.c.l.bf16 %v2043
  %v2054 = vunpack.c.l.bf16 %v2047
  %v2059 = vrot.slane %v2052, 4
  %v2060 = vrot.slane %v2054, 4
  %v2061 = vsel %vm140, %v2051, %v2059
  %v2062 = vsel %vm140, %v2053, %v2060
  %2063 = vrot.lane.b32.xlu0 %v2061, 34
  %v2064 = vpop.permute.xlu0 %2063
  %2065 = vrot.lane.b32.xlu0 %v2062, 34
  %v2066 = vpop.permute.xlu0 %2065
  %v2067 = vrot.slane %v2064, 4
  %v2068 = vrot.slane %v2066, 4
  %vm2069 = vcmask 277504
  %v2070 = vsel %vm2069, %v2067, %v2064
  %v2071 = vsel %vm140, %v2067, %v2068
  %v2072 = vsel %vm2069, %v2071, %v2066
  %v2076 = vmul.f32 %v2048, %v2070
  %v2077 = vmul.f32 %v2049, %v2072
  %v2078 = vmul.f32 %v2050, %v2068
  %2082 = vst [vmem:[#allocation1] ss:$2 sm:$0xff] %v2076
  %s2083 = scalar_lea.vmem [#allocation1], 16
  %2084 = vst [vmem:[%s2083] ss:$2 sm:$0xff] %v2077
  %s2085 = scalar_lea.vmem [#allocation1], 32
  %2086 = vst [vmem:[%s2085] ss:$2 sm:$0xff] %v2078
  %v2087 = vld.sshfl [vmem:[#allocation1] sm:$0xff pattern:$0x75316420]
  %v2088 = vld.sshfl [vmem:[#allocation1 + $0x8] sm:$0xff pattern:$0x75316420]
  %v2089 = vld.sshfl [vmem:[#allocation1 + $0x10] sm:$0xff pattern:$0x75316420]
  %v2090 = vld.sshfl [vmem:[#allocation1 + $0x18] sm:$0xff pattern:$0x75316420]
  %v2091 = vld.sshfl [vmem:[#allocation1 + $0x20] sm:$0xff pattern:$0x75316420]
  %v2097 = vpack.c.bf16 %v2087, %v2087
  %v2098 = vpack.c.bf16 %v2088, %v2088
  %v2099 = vpack.c.bf16 %v2089, %v2089
  %v2100 = vpack.c.bf16 %v2090, %v2090
  %v2101 = vpack.c.bf16 %v2091, %v2091
  %s2102 = scalar_lea.vmem %s9, 16
  %v2103 = vld [vmem:[%s2102] sm:$0x3]
  %2109 = vrot.lane.b32.xlu0 %v2097, 94
  %v2110 = vpop.permute.xlu0 %2109
  %2111 = vrot.lane.b32.xlu0 %v2098, 94
  %v2112 = vpop.permute.xlu0 %2111
  %2113 = vrot.lane.b32.xlu0 %v2099, 94
  %v2114 = vpop.permute.xlu0 %2113
  %2115 = vrot.lane.b32.xlu0 %v2100, 94
  %v2116 = vpop.permute.xlu0 %2115
  %2117 = vrot.lane.b32.xlu0 %v2101, 94
  %v2118 = vpop.permute.xlu0 %2117
  %vm2119 = vcmask 769024
  %v2120 = vsel %vm2119, %v2110, %v2112
  %v2121 = vsel %vm2119, %v2112, %v2114
  %v2122 = vsel %vm2119, %v2114, %v2116
  %v2123 = vsel %vm2119, %v2116, %v2118
  %v2125 = vsel %vm882, %v2103, 0
  %v2128 = vsel %vm681, %v2120, 0
  %v2131 = vsel %vm681, %v2121, 0
  %v2134 = vsel %vm681, %v2122, 0
  %v2137 = vsel %vm681, %v2123, 0
  %2139 = vmatpush.bf16.msra.mxu0 0
  %2140 = vmatpush.bf16.msra.mxu0 0
  %2141 = vmatpush.bf16.msra.mxu0 0
  %2142 = vmatpush.bf16.msra.mxu0 0
  %2143 = vmatpush.bf16.msra.mxu0 0
  %2144 = vmatpush.bf16.msra.mxu0 0
  %2145 = vmatpush.bf16.msra.mxu0 0
  %2146 = vmatpush.bf16.msra.mxu0 %v2128
  %2147 = vmatmul.bf16.gmra.mxu0 %v2125
  %v2148 = vpop.f32.mrf.mxu0
  %v2149 = vadd.f32 0.0, %v2148
  %v2150 = vpop.f32.mrf.mxu0
  %2151 = vdwg.mxu0
  %2152 = vmatpush.bf16.msra.mxu0 0
  %2153 = vmatpush.bf16.msra.mxu0 0
  %2154 = vmatpush.bf16.msra.mxu0 0
  %2155 = vmatpush.bf16.msra.mxu0 0
  %2156 = vmatpush.bf16.msra.mxu0 0
  %2157 = vmatpush.bf16.msra.mxu0 0
  %2158 = vmatpush.bf16.msra.mxu0 0
  %2159 = vmatpush.bf16.msra.mxu0 %v2131
  %2160 = vmatmul.bf16.gmra.mxu0 %v2125
  %v2161 = vpop.f32.mrf.mxu0
  %v2162 = vadd.f32 0.0, %v2161
  %v2163 = vpop.f32.mrf.mxu0
  %2164 = vdwg.mxu0
  %2165 = vmatpush.bf16.msra.mxu0 0
  %2166 = vmatpush.bf16.msra.mxu0 0
  %2167 = vmatpush.bf16.msra.mxu0 0
  %2168 = vmatpush.bf16.msra.mxu0 0
  %2169 = vmatpush.bf16.msra.mxu0 0
  %2170 = vmatpush.bf16.msra.mxu0 0
  %2171 = vmatpush.bf16.msra.mxu0 0
  %2172 = vmatpush.bf16.msra.mxu0 %v2134
  %2173 = vmatmul.bf16.gmra.mxu0 %v2125
  %v2174 = vpop.f32.mrf.mxu0
  %v2175 = vadd.f32 0.0, %v2174
  %v2176 = vpop.f32.mrf.mxu0
  %2177 = vdwg.mxu0
  %2178 = vmatpush.bf16.msra.mxu0 0
  %2179 = vmatpush.bf16.msra.mxu0 0
  %2180 = vmatpush.bf16.msra.mxu0 0
  %2181 = vmatpush.bf16.msra.mxu0 0
  %2182 = vmatpush.bf16.msra.mxu0 0
  %2183 = vmatpush.bf16.msra.mxu0 0
  %2184 = vmatpush.bf16.msra.mxu0 0
  %2185 = vmatpush.bf16.msra.mxu0 %v2137
  %2186 = vmatmul.bf16.gmra.mxu0 %v2125
  %v2187 = vpop.f32.mrf.mxu0
  %v2188 = vadd.f32 0.0, %v2187
  %v2189 = vpop.f32.mrf.mxu0
  %2190 = vdwg.mxu0
  %v2191 = vadd.f32 %v2014, %v2149
  %v2192 = vadd.f32 %v2015, %v2162
  %v2193 = vadd.f32 %v2016, %v2175
  %v2194 = vadd.f32 %v2017, %v2188
  %v2195 = vld [vmem:[%s10] sm:$0xf]
  %2197 = vset.pattern.permute.xlu0 0
  %2198 = vperm.xlu0 %2197, %v2195
  %v2199 = vpop.permute.xlu0 %2198
  %v2201 = vadd.f32 %v2191, %v2199
  %v2202 = vadd.f32 %v2192, %v2199
  %v2203 = vadd.f32 %v2193, %v2199
  %v2204 = vadd.f32 %v2194, %v2199
  %v2205 = vand.u32 2147483647, %v2201
  %v2206 = vand.u32 2147483647, %v2202
  %v2207 = vand.u32 2147483647, %v2203
  %v2208 = vand.u32 2147483647, %v2204
  %v2209 = vsub.f32 0.0, %v2205
  %v2210 = vsub.f32 0.0, %v2206
  %v2211 = vsub.f32 0.0, %v2207
  %v2212 = vsub.f32 0.0, %v2208
  %v2213 = vmul.f32 %v2209, 1.442695
  %v2214 = vpow.pop %v2213
  %v2215 = vmul.f32 %v2210, 1.442695
  %v2216 = vpow.pop %v2215
  %v2217 = vmul.f32 %v2211, 1.442695
  %v2218 = vpow.pop %v2217
  %v2219 = vmul.f32 %v2212, 1.442695
  %v2220 = vpow.pop %v2219
  %v2221 = vadd.f32 %v2214, 1.0
  %v2222 = vadd.f32 %v2216, 1.0
  %v2223 = vadd.f32 %v2218, 1.0
  %v2224 = vadd.f32 %v2220, 1.0
  %v2225 = vmul.f32 %v2221, %v2221
  %v2226 = vmul.f32 %v2222, %v2222
  %v2227 = vmul.f32 %v2223, %v2223
  %v2228 = vmul.f32 %v2224, %v2224
  %vm2229 = vcmp.ge.f32.partialorder %v2201, 0.0
  %vm2230 = vcmp.ge.f32.partialorder %v2202, 0.0
  %vm2231 = vcmp.ge.f32.partialorder %v2203, 0.0
  %vm2232 = vcmp.ge.f32.partialorder %v2204, 0.0
  %v2233 = vmul.f32 %v2214, %v2214
  %v2234 = vmul.f32 %v2216, %v2216
  %v2235 = vmul.f32 %v2218, %v2218
  %v2236 = vmul.f32 %v2220, %v2220
  %v2237 = vsel %vm2229, %v2233, 1.0
  %v2238 = vsel %vm2230, %v2234, 1.0
  %v2239 = vsel %vm2231, %v2235, 1.0
  %v2240 = vsel %vm2232, %v2236, 1.0
  %v2241 = vsub.f32 %v2225, %v2237
  %v2242 = vsub.f32 %v2226, %v2238
  %v2243 = vsub.f32 %v2227, %v2239
  %v2244 = vsub.f32 %v2228, %v2240
  %v2245 = vmul.f32 %v2201, %v2241
  %v2246 = vmul.f32 %v2202, %v2242
  %v2247 = vmul.f32 %v2203, %v2243
  %v2248 = vmul.f32 %v2204, %v2244
  %v2249 = vadd.f32 %v2225, %v2237
  %v2250 = vadd.f32 %v2226, %v2238
  %v2251 = vadd.f32 %v2227, %v2239
  %v2252 = vadd.f32 %v2228, %v2240
  %v2253 = vrcp.pop %v2249
  %v2254 = vrcp.pop %v2250
  %v2255 = vrcp.pop %v2251
  %v2256 = vrcp.pop %v2252
  %v2257 = vmul.f32 %v2245, %v2253
  %v2258 = vmul.f32 %v2246, %v2254
  %v2259 = vmul.f32 %v2247, %v2255
  %v2260 = vmul.f32 %v2248, %v2256
  %v2261 = vpack.c.bf16 %v2258, %v2257
  %v2262 = vpack.c.bf16 %v2260, %v2259
  %v2265 = vrot.slane %v2261, 2
  %v2266 = vrot.slane %v2262, 4
  %v2267 = vrot.slane %v2262, 6
  %v2270 = vsel %vm681, %v2261, %v2265
  %v2273 = vsel %vm685, %v2266, %v2267
  %v2274 = vsel %vm140, %v2270, %v2273
  %2276 = vrot.lane.b32.xlu0 %v2274, 17
  %v2277 = vpop.permute.xlu0 %2276
  %v2278 = vrot.slane %v2277, 6
  %v2279 = vsel %vm694, %v2278, %v2277
  %2282 = vst.msk [vmem:[#allocation2] sm:$0xff] %vm703, %v2279
  %2283 = vst.msk [vmem:[#allocation2 + $0x8] sm:$0x3] %vm705, %v2278
  %v2284 = vld [vmem:[#allocation2] sm:$0xff]
  %v2285 = vld [vmem:[%s13] sm:$0x11]
  %v2286 = vld [vmem:[%s13 + $0x8] sm:$0x11]
  %v2289 = vunpack.c.l.b16 %v2285
  %v2290 = vunpack.c.h.b16 %v2285
  %v2291 = vunpack.c.l.b16 %v2286
  %v2292 = vunpack.c.h.b16 %v2286
  %v2293 = vpack.c.b16 %v2289, %v2289
  %v2294 = vpack.c.b16 %v2290, %v2290
  %v2295 = vpack.c.b16 %v2291, %v2291
  %v2296 = vpack.c.b16 %v2292, %v2292
  %v2298 = vpack.i.b16 %v2293, %v2293
  %v2300 = vperm.slane %v2298, 0
  %v2302 = vpack.i.b16 %v2294, %v2294
  %v2304 = vperm.slane %v2302, 0
  %v2306 = vpack.i.b16 %v2295, %v2295
  %v2308 = vperm.slane %v2306, 0
  %v2310 = vpack.i.b16 %v2296, %v2296
  %v2312 = vperm.slane %v2310, 0
  %v2313 = vunpack.c.l.bf16 %v2284
  %v2314 = vunpack.c.h.bf16 %v2284
  %v2315 = vunpack.c.l.bf16 %v2300
  %v2316 = vunpack.c.l.bf16 %v2304
  %v2317 = vunpack.c.l.bf16 %v2308
  %v2318 = vunpack.c.l.bf16 %v2312
  %v2323 = vrot.slane %v2316, 4
  %v2324 = vrot.slane %v2318, 4
  %v2325 = vsel %vm140, %v2315, %v2323
  %v2326 = vsel %vm140, %v2317, %v2324
  %v2329 = vmul.f32 %v2313, %v2325
  %v2330 = vmul.f32 %v2314, %v2326
  %2333 = vst [vmem:[#allocation1] ss:$2 sm:$0xff] %v2329
  %s2334 = scalar_lea.vmem [#allocation1], 16
  %2335 = vst [vmem:[%s2334] ss:$2 sm:$0xff] %v2330
  %v2336 = vld.sshfl [vmem:[#allocation1] sm:$0xff pattern:$0x75316420]
  %v2337 = vld.sshfl [vmem:[#allocation1 + $0x8] sm:$0xff pattern:$0x75316420]
  %v2338 = vld.sshfl [vmem:[#allocation1 + $0x10] sm:$0xff pattern:$0x75316420]
  %v2339 = vld.sshfl [vmem:[#allocation1 + $0x18] sm:$0xff pattern:$0x75316420]
  %v2344 = vpack.c.bf16 %v2336, %v2336
  %v2345 = vpack.c.bf16 %v2337, %v2337
  %v2346 = vpack.c.bf16 %v2338, %v2338
  %v2347 = vpack.c.bf16 %v2339, %v2339
  %v2348 = vld [vmem:[%s11] sm:$0x3]
  %v2349 = vld [vmem:[#allocation2] sm:$0xff]
  %v2350 = vld [vmem:[#allocation2 + $0x8] sm:$0x3]
  %v2351 = vld [vmem:[%s13] sm:$0x11]
  %v2352 = vld [vmem:[%s13 + $0x8] sm:$0x11]
  %v2355 = vunpack.c.l.b16 %v2351
  %v2356 = vunpack.c.h.b16 %v2351
  %v2357 = vunpack.c.l.b16 %v2352
  %v2358 = vunpack.c.h.b16 %v2352
  %v2359 = vpack.c.b16 %v2355, %v2355
  %v2360 = vpack.c.b16 %v2356, %v2356
  %v2361 = vpack.c.b16 %v2357, %v2357
  %v2362 = vpack.c.b16 %v2358, %v2358
  %v2364 = vshrl.u32 %v2359, 16
  %v2365 = vpack.i.b16 %v2364, %v2364
  %v2367 = vperm.slane %v2365, 0
  %v2369 = vshrl.u32 %v2360, 16
  %v2370 = vpack.i.b16 %v2369, %v2369
  %v2372 = vperm.slane %v2370, 0
  %v2374 = vshrl.u32 %v2361, 16
  %v2375 = vpack.i.b16 %v2374, %v2374
  %v2377 = vperm.slane %v2375, 0
  %v2379 = vshrl.u32 %v2362, 16
  %v2380 = vpack.i.b16 %v2379, %v2379
  %v2382 = vperm.slane %v2380, 0
  %v2383 = vunpack.c.l.bf16 %v2349
  %v2384 = vunpack.c.h.bf16 %v2349
  %v2385 = vunpack.c.l.bf16 %v2350
  %v2386 = vunpack.c.l.bf16 %v2367
  %v2387 = vunpack.c.l.bf16 %v2372
  %v2388 = vunpack.c.l.bf16 %v2377
  %v2389 = vunpack.c.l.bf16 %v2382
  %v2394 = vrot.slane %v2387, 4
  %v2395 = vrot.slane %v2389, 4
  %v2396 = vsel %vm140, %v2386, %v2394
  %v2397 = vsel %vm140, %v2388, %v2395
  %2398 = vrot.lane.b32.xlu0 %v2396, 1
  %v2399 = vpop.permute.xlu0 %2398
  %2400 = vrot.lane.b32.xlu0 %v2397, 1
  %v2401 = vpop.permute.xlu0 %2400
  %v2402 = vrot.slane %v2399, 4
  %v2403 = vrot.slane %v2401, 4
  %v2404 = vsel %vm827, %v2402, %v2399
  %v2405 = vsel %vm140, %v2402, %v2403
  %v2406 = vsel %vm827, %v2405, %v2401
  %v2410 = vmul.f32 %v2383, %v2404
  %v2411 = vmul.f32 %v2384, %v2406
  %v2412 = vmul.f32 %v2385, %v2403
  %2416 = vst [vmem:[#allocation1] ss:$2 sm:$0xff] %v2410
  %s2417 = scalar_lea.vmem [#allocation1], 16
  %2418 = vst [vmem:[%s2417] ss:$2 sm:$0xff] %v2411
  %s2419 = scalar_lea.vmem [#allocation1], 32
  %2420 = vst [vmem:[%s2419] ss:$2 sm:$0xff] %v2412
  %v2421 = vld.sshfl [vmem:[#allocation1] sm:$0xff pattern:$0x75316420]
  %v2422 = vld.sshfl [vmem:[#allocation1 + $0x8] sm:$0xff pattern:$0x75316420]
  %v2423 = vld.sshfl [vmem:[#allocation1 + $0x10] sm:$0xff pattern:$0x75316420]
  %v2424 = vld.sshfl [vmem:[#allocation1 + $0x18] sm:$0xff pattern:$0x75316420]
  %v2425 = vld.sshfl [vmem:[#allocation1 + $0x20] sm:$0xff pattern:$0x75316420]
  %v2431 = vpack.c.bf16 %v2421, %v2421
  %v2432 = vpack.c.bf16 %v2422, %v2422
  %v2433 = vpack.c.bf16 %v2423, %v2423
  %v2434 = vpack.c.bf16 %v2424, %v2424
  %v2435 = vpack.c.bf16 %v2425, %v2425
  %s2436 = scalar_lea.vmem %s11, 2
  %v2437 = vld [vmem:[%s2436] sm:$0x3]
  %2443 = vrot.lane.b32.xlu0 %v2431, 127
  %v2444 = vpop.permute.xlu0 %2443
  %2445 = vrot.lane.b32.xlu0 %v2432, 127
  %v2446 = vpop.permute.xlu0 %2445
  %2447 = vrot.lane.b32.xlu0 %v2433, 127
  %v2448 = vpop.permute.xlu0 %2447
  %2449 = vrot.lane.b32.xlu0 %v2434, 127
  %v2450 = vpop.permute.xlu0 %2449
  %2451 = vrot.lane.b32.xlu0 %v2435, 127
  %v2452 = vpop.permute.xlu0 %2451
  %v2453 = vsel %vm877, %v2444, %v2446
  %v2454 = vsel %vm877, %v2446, %v2448
  %v2455 = vsel %vm877, %v2448, %v2450
  %v2456 = vsel %vm877, %v2450, %v2452
  %v2458 = vsel %vm882, %v2437, 0
  %v2461 = vsel %vm681, %v2453, 0
  %v2464 = vsel %vm681, %v2454, 0
  %v2467 = vsel %vm681, %v2455, 0
  %v2470 = vsel %vm681, %v2456, 0
  %2472 = vmatpush.bf16.msra.mxu0 0
  %2473 = vmatpush.bf16.msra.mxu0 0
  %2474 = vmatpush.bf16.msra.mxu0 0
  %2475 = vmatpush.bf16.msra.mxu0 0
  %2476 = vmatpush.bf16.msra.mxu0 0
  %2477 = vmatpush.bf16.msra.mxu0 0
  %2478 = vmatpush.bf16.msra.mxu0 0
  %2479 = vmatpush.bf16.msra.mxu0 %v2461
  %2480 = vmatmul.bf16.gmra.mxu0 %v2458
  %v2481 = vpop.f32.mrf.mxu0
  %v2482 = vadd.f32 0.0, %v2481
  %v2483 = vpop.f32.mrf.mxu0
  %2484 = vdwg.mxu0
  %2485 = vmatpush.bf16.msra.mxu0 0
  %2486 = vmatpush.bf16.msra.mxu0 0
  %2487 = vmatpush.bf16.msra.mxu0 0
  %2488 = vmatpush.bf16.msra.mxu0 0
  %2489 = vmatpush.bf16.msra.mxu0 0
  %2490 = vmatpush.bf16.msra.mxu0 0
  %2491 = vmatpush.bf16.msra.mxu0 0
  %2492 = vmatpush.bf16.msra.mxu0 %v2464
  %2493 = vmatmul.bf16.gmra.mxu0 %v2458
  %v2494 = vpop.f32.mrf.mxu0
  %v2495 = vadd.f32 0.0, %v2494
  %v2496 = vpop.f32.mrf.mxu0
  %2497 = vdwg.mxu0
  %2498 = vmatpush.bf16.msra.mxu0 0
  %2499 = vmatpush.bf16.msra.mxu0 0
  %2500 = vmatpush.bf16.msra.mxu0 0
  %2501 = vmatpush.bf16.msra.mxu0 0
  %2502 = vmatpush.bf16.msra.mxu0 0
  %2503 = vmatpush.bf16.msra.mxu0 0
  %2504 = vmatpush.bf16.msra.mxu0 0
  %2505 = vmatpush.bf16.msra.mxu0 %v2467
  %2506 = vmatmul.bf16.gmra.mxu0 %v2458
  %v2507 = vpop.f32.mrf.mxu0
  %v2508 = vadd.f32 0.0, %v2507
  %v2509 = vpop.f32.mrf.mxu0
  %2510 = vdwg.mxu0
  %2511 = vmatpush.bf16.msra.mxu0 0
  %2512 = vmatpush.bf16.msra.mxu0 0
  %2513 = vmatpush.bf16.msra.mxu0 0
  %2514 = vmatpush.bf16.msra.mxu0 0
  %2515 = vmatpush.bf16.msra.mxu0 0
  %2516 = vmatpush.bf16.msra.mxu0 0
  %2517 = vmatpush.bf16.msra.mxu0 0
  %2518 = vmatpush.bf16.msra.mxu0 %v2470
  %2519 = vmatmul.bf16.gmra.mxu0 %v2458
  %v2520 = vpop.f32.mrf.mxu0
  %v2521 = vadd.f32 0.0, %v2520
  %v2522 = vpop.f32.mrf.mxu0
  %2523 = vdwg.mxu0
  %v2525 = vsel %vm882, %v2348, 0
  %v2528 = vsel %vm681, %v2344, 0
  %v2531 = vsel %vm681, %v2345, 0
  %v2534 = vsel %vm681, %v2346, 0
  %v2537 = vsel %vm681, %v2347, 0
  %2539 = vmatpush.bf16.msra.mxu0 0
  %2540 = vmatpush.bf16.msra.mxu0 0
  %2541 = vmatpush.bf16.msra.mxu0 0
  %2542 = vmatpush.bf16.msra.mxu0 0
  %2543 = vmatpush.bf16.msra.mxu0 0
  %2544 = vmatpush.bf16.msra.mxu0 0
  %2545 = vmatpush.bf16.msra.mxu0 0
  %2546 = vmatpush.bf16.msra.mxu0 %v2528
  %2547 = vmatmul.bf16.gmra.mxu0 %v2525
  %v2548 = vpop.f32.mrf.mxu0
  %v2549 = vadd.f32 %v2482, %v2548
  %v2550 = vpop.f32.mrf.mxu0
  %2551 = vdwg.mxu0
  %2552 = vmatpush.bf16.msra.mxu0 0
  %2553 = vmatpush.bf16.msra.mxu0 0
  %2554 = vmatpush.bf16.msra.mxu0 0
  %2555 = vmatpush.bf16.msra.mxu0 0
  %2556 = vmatpush.bf16.msra.mxu0 0
  %2557 = vmatpush.bf16.msra.mxu0 0
  %2558 = vmatpush.bf16.msra.mxu0 0
  %2559 = vmatpush.bf16.msra.mxu0 %v2531
  %2560 = vmatmul.bf16.gmra.mxu0 %v2525
  %v2561 = vpop.f32.mrf.mxu0
  %v2562 = vadd.f32 %v2495, %v2561
  %v2563 = vpop.f32.mrf.mxu0
  %2564 = vdwg.mxu0
  %2565 = vmatpush.bf16.msra.mxu0 0
  %2566 = vmatpush.bf16.msra.mxu0 0
  %2567 = vmatpush.bf16.msra.mxu0 0
  %2568 = vmatpush.bf16.msra.mxu0 0
  %2569 = vmatpush.bf16.msra.mxu0 0
  %2570 = vmatpush.bf16.msra.mxu0 0
  %2571 = vmatpush.bf16.msra.mxu0 0
  %2572 = vmatpush.bf16.msra.mxu0 %v2534
  %2573 = vmatmul.bf16.gmra.mxu0 %v2525
  %v2574 = vpop.f32.mrf.mxu0
  %v2575 = vadd.f32 %v2508, %v2574
  %v2576 = vpop.f32.mrf.mxu0
  %2577 = vdwg.mxu0
  %2578 = vmatpush.bf16.msra.mxu0 0
  %2579 = vmatpush.bf16.msra.mxu0 0
  %2580 = vmatpush.bf16.msra.mxu0 0
  %2581 = vmatpush.bf16.msra.mxu0 0
  %2582 = vmatpush.bf16.msra.mxu0 0
  %2583 = vmatpush.bf16.msra.mxu0 0
  %2584 = vmatpush.bf16.msra.mxu0 0
  %2585 = vmatpush.bf16.msra.mxu0 %v2537
  %2586 = vmatmul.bf16.gmra.mxu0 %v2525
  %v2587 = vpop.f32.mrf.mxu0
  %v2588 = vadd.f32 %v2521, %v2587
  %v2589 = vpop.f32.mrf.mxu0
  %2590 = vdwg.mxu0
  %v2591 = vld [vmem:[#allocation2] sm:$0xff]
  %v2592 = vld [vmem:[#allocation2 + $0x8] sm:$0x3]
  %v2593 = vld [vmem:[%s13] sm:$0x22]
  %v2594 = vld [vmem:[%s13 + $0x8] sm:$0x22]
  %v2597 = vunpack.c.l.b16 %v2593
  %v2598 = vunpack.c.h.b16 %v2593
  %v2599 = vunpack.c.l.b16 %v2594
  %v2600 = vunpack.c.h.b16 %v2594
  %v2601 = vpack.c.b16 %v2597, %v2597
  %v2602 = vpack.c.b16 %v2598, %v2598
  %v2603 = vpack.c.b16 %v2599, %v2599
  %v2604 = vpack.c.b16 %v2600, %v2600
  %v2606 = vpack.i.b16 %v2601, %v2601
  %v2608 = vperm.slane %v2606, 1
  %v2610 = vpack.i.b16 %v2602, %v2602
  %v2612 = vperm.slane %v2610, 1
  %v2614 = vpack.i.b16 %v2603, %v2603
  %v2616 = vperm.slane %v2614, 1
  %v2618 = vpack.i.b16 %v2604, %v2604
  %v2620 = vperm.slane %v2618, 1
  %v2621 = vunpack.c.l.bf16 %v2591
  %v2622 = vunpack.c.h.bf16 %v2591
  %v2623 = vunpack.c.l.bf16 %v2592
  %v2624 = vunpack.c.l.bf16 %v2608
  %v2625 = vunpack.c.l.bf16 %v2612
  %v2626 = vunpack.c.l.bf16 %v2616
  %v2627 = vunpack.c.l.bf16 %v2620
  %v2632 = vrot.slane %v2625, 4
  %v2633 = vrot.slane %v2627, 4
  %v2634 = vsel %vm140, %v2624, %v2632
  %v2635 = vsel %vm140, %v2626, %v2633
  %2636 = vrot.lane.b32.xlu0 %v2634, 2
  %v2637 = vpop.permute.xlu0 %2636
  %2638 = vrot.lane.b32.xlu0 %v2635, 2
  %v2639 = vpop.permute.xlu0 %2638
  %v2640 = vrot.slane %v2637, 4
  %v2641 = vrot.slane %v2639, 4
  %v2642 = vsel %vm1068, %v2640, %v2637
  %v2643 = vsel %vm140, %v2640, %v2641
  %v2644 = vsel %vm1068, %v2643, %v2639
  %v2648 = vmul.f32 %v2621, %v2642
  %v2649 = vmul.f32 %v2622, %v2644
  %v2650 = vmul.f32 %v2623, %v2641
  %2654 = vst [vmem:[#allocation1] ss:$2 sm:$0xff] %v2648
  %s2655 = scalar_lea.vmem [#allocation1], 16
  %2656 = vst [vmem:[%s2655] ss:$2 sm:$0xff] %v2649
  %s2657 = scalar_lea.vmem [#allocation1], 32
  %2658 = vst [vmem:[%s2657] ss:$2 sm:$0xff] %v2650
  %v2659 = vld.sshfl [vmem:[#allocation1] sm:$0xff pattern:$0x75316420]
  %v2660 = vld.sshfl [vmem:[#allocation1 + $0x8] sm:$0xff pattern:$0x75316420]
  %v2661 = vld.sshfl [vmem:[#allocation1 + $0x10] sm:$0xff pattern:$0x75316420]
  %v2662 = vld.sshfl [vmem:[#allocation1 + $0x18] sm:$0xff pattern:$0x75316420]
  %v2663 = vld.sshfl [vmem:[#allocation1 + $0x20] sm:$0xff pattern:$0x75316420]
  %v2669 = vpack.c.bf16 %v2659, %v2659
  %v2670 = vpack.c.bf16 %v2660, %v2660
  %v2671 = vpack.c.bf16 %v2661, %v2661
  %v2672 = vpack.c.bf16 %v2662, %v2662
  %v2673 = vpack.c.bf16 %v2663, %v2663
  %s2674 = scalar_lea.vmem %s11, 4
  %v2675 = vld [vmem:[%s2674] sm:$0x3]
  %2681 = vrot.lane.b32.xlu0 %v2669, 126
  %v2682 = vpop.permute.xlu0 %2681
  %2683 = vrot.lane.b32.xlu0 %v2670, 126
  %v2684 = vpop.permute.xlu0 %2683
  %2685 = vrot.lane.b32.xlu0 %v2671, 126
  %v2686 = vpop.permute.xlu0 %2685
  %2687 = vrot.lane.b32.xlu0 %v2672, 126
  %v2688 = vpop.permute.xlu0 %2687
  %2689 = vrot.lane.b32.xlu0 %v2673, 126
  %v2690 = vpop.permute.xlu0 %2689
  %v2691 = vsel %vm1118, %v2682, %v2684
  %v2692 = vsel %vm1118, %v2684, %v2686
  %v2693 = vsel %vm1118, %v2686, %v2688
  %v2694 = vsel %vm1118, %v2688, %v2690
  %v2696 = vsel %vm882, %v2675, 0
  %v2699 = vsel %vm681, %v2691, 0
  %v2702 = vsel %vm681, %v2692, 0
  %v2705 = vsel %vm681, %v2693, 0
  %v2708 = vsel %vm681, %v2694, 0
  %2710 = vmatpush.bf16.msra.mxu0 0
  %2711 = vmatpush.bf16.msra.mxu0 0
  %2712 = vmatpush.bf16.msra.mxu0 0
  %2713 = vmatpush.bf16.msra.mxu0 0
  %2714 = vmatpush.bf16.msra.mxu0 0
  %2715 = vmatpush.bf16.msra.mxu0 0
  %2716 = vmatpush.bf16.msra.mxu0 0
  %2717 = vmatpush.bf16.msra.mxu0 %v2699
  %2718 = vmatmul.bf16.gmra.mxu0 %v2696
  %v2719 = vpop.f32.mrf.mxu0
  %v2720 = vadd.f32 0.0, %v2719
  %v2721 = vpop.f32.mrf.mxu0
  %2722 = vdwg.mxu0
  %2723 = vmatpush.bf16.msra.mxu0 0
  %2724 = vmatpush.bf16.msra.mxu0 0
  %2725 = vmatpush.bf16.msra.mxu0 0
  %2726 = vmatpush.bf16.msra.mxu0 0
  %2727 = vmatpush.bf16.msra.mxu0 0
  %2728 = vmatpush.bf16.msra.mxu0 0
  %2729 = vmatpush.bf16.msra.mxu0 0
  %2730 = vmatpush.bf16.msra.mxu0 %v2702
  %2731 = vmatmul.bf16.gmra.mxu0 %v2696
  %v2732 = vpop.f32.mrf.mxu0
  %v2733 = vadd.f32 0.0, %v2732
  %v2734 = vpop.f32.mrf.mxu0
  %2735 = vdwg.mxu0
  %2736 = vmatpush.bf16.msra.mxu0 0
  %2737 = vmatpush.bf16.msra.mxu0 0
  %2738 = vmatpush.bf16.msra.mxu0 0
  %2739 = vmatpush.bf16.msra.mxu0 0
  %2740 = vmatpush.bf16.msra.mxu0 0
  %2741 = vmatpush.bf16.msra.mxu0 0
  %2742 = vmatpush.bf16.msra.mxu0 0
  %2743 = vmatpush.bf16.msra.mxu0 %v2705
  %2744 = vmatmul.bf16.gmra.mxu0 %v2696
  %v2745 = vpop.f32.mrf.mxu0
  %v2746 = vadd.f32 0.0, %v2745
  %v2747 = vpop.f32.mrf.mxu0
  %2748 = vdwg.mxu0
  %2749 = vmatpush.bf16.msra.mxu0 0
  %2750 = vmatpush.bf16.msra.mxu0 0
  %2751 = vmatpush.bf16.msra.mxu0 0
  %2752 = vmatpush.bf16.msra.mxu0 0
  %2753 = vmatpush.bf16.msra.mxu0 0
  %2754 = vmatpush.bf16.msra.mxu0 0
  %2755 = vmatpush.bf16.msra.mxu0 0
  %2756 = vmatpush.bf16.msra.mxu0 %v2708
  %2757 = vmatmul.bf16.gmra.mxu0 %v2696
  %v2758 = vpop.f32.mrf.mxu0
  %v2759 = vadd.f32 0.0, %v2758
  %v2760 = vpop.f32.mrf.mxu0
  %2761 = vdwg.mxu0
  %v2762 = vadd.f32 %v2549, %v2720
  %v2763 = vadd.f32 %v2562, %v2733
  %v2764 = vadd.f32 %v2575, %v2746
  %v2765 = vadd.f32 %v2588, %v2759
  %v2766 = vld [vmem:[#allocation2] sm:$0xff]
  %v2767 = vld [vmem:[#allocation2 + $0x8] sm:$0x3]
  %v2768 = vld [vmem:[%s13] sm:$0x22]
  %v2769 = vld [vmem:[%s13 + $0x8] sm:$0x22]
  %v2772 = vunpack.c.l.b16 %v2768
  %v2773 = vunpack.c.h.b16 %v2768
  %v2774 = vunpack.c.l.b16 %v2769
  %v2775 = vunpack.c.h.b16 %v2769
  %v2776 = vpack.c.b16 %v2772, %v2772
  %v2777 = vpack.c.b16 %v2773, %v2773
  %v2778 = vpack.c.b16 %v2774, %v2774
  %v2779 = vpack.c.b16 %v2775, %v2775
  %v2781 = vshrl.u32 %v2776, 16
  %v2782 = vpack.i.b16 %v2781, %v2781
  %v2784 = vperm.slane %v2782, 1
  %v2786 = vshrl.u32 %v2777, 16
  %v2787 = vpack.i.b16 %v2786, %v2786
  %v2789 = vperm.slane %v2787, 1
  %v2791 = vshrl.u32 %v2778, 16
  %v2792 = vpack.i.b16 %v2791, %v2791
  %v2794 = vperm.slane %v2792, 1
  %v2796 = vshrl.u32 %v2779, 16
  %v2797 = vpack.i.b16 %v2796, %v2796
  %v2799 = vperm.slane %v2797, 1
  %v2800 = vunpack.c.l.bf16 %v2766
  %v2801 = vunpack.c.h.bf16 %v2766
  %v2802 = vunpack.c.l.bf16 %v2767
  %v2803 = vunpack.c.l.bf16 %v2784
  %v2804 = vunpack.c.l.bf16 %v2789
  %v2805 = vunpack.c.l.bf16 %v2794
  %v2806 = vunpack.c.l.bf16 %v2799
  %v2811 = vrot.slane %v2804, 4
  %v2812 = vrot.slane %v2806, 4
  %v2813 = vsel %vm140, %v2803, %v2811
  %v2814 = vsel %vm140, %v2805, %v2812
  %2815 = vrot.lane.b32.xlu0 %v2813, 16
  %v2816 = vpop.permute.xlu0 %2815
  %2817 = vrot.lane.b32.xlu0 %v2814, 16
  %v2818 = vpop.permute.xlu0 %2817
  %v2819 = vrot.slane %v2816, 4
  %v2820 = vrot.slane %v2818, 4
  %v2821 = vsel %vm108, %v2819, %v2816
  %v2822 = vsel %vm140, %v2819, %v2820
  %v2823 = vsel %vm108, %v2822, %v2818
  %v2827 = vmul.f32 %v2800, %v2821
  %v2828 = vmul.f32 %v2801, %v2823
  %v2829 = vmul.f32 %v2802, %v2820
  %2833 = vst [vmem:[#allocation1] ss:$2 sm:$0xff] %v2827
  %s2834 = scalar_lea.vmem [#allocation1], 16
  %2835 = vst [vmem:[%s2834] ss:$2 sm:$0xff] %v2828
  %s2836 = scalar_lea.vmem [#allocation1], 32
  %2837 = vst [vmem:[%s2836] ss:$2 sm:$0xff] %v2829
  %v2838 = vld.sshfl [vmem:[#allocation1] sm:$0xff pattern:$0x75316420]
  %v2839 = vld.sshfl [vmem:[#allocation1 + $0x8] sm:$0xff pattern:$0x75316420]
  %v2840 = vld.sshfl [vmem:[#allocation1 + $0x10] sm:$0xff pattern:$0x75316420]
  %v2841 = vld.sshfl [vmem:[#allocation1 + $0x18] sm:$0xff pattern:$0x75316420]
  %v2842 = vld.sshfl [vmem:[#allocation1 + $0x20] sm:$0xff pattern:$0x75316420]
  %v2848 = vpack.c.bf16 %v2838, %v2838
  %v2849 = vpack.c.bf16 %v2839, %v2839
  %v2850 = vpack.c.bf16 %v2840, %v2840
  %v2851 = vpack.c.bf16 %v2841, %v2841
  %v2852 = vpack.c.bf16 %v2842, %v2842
  %s2853 = scalar_lea.vmem %s11, 6
  %v2854 = vld [vmem:[%s2853] sm:$0x3]
  %2860 = vrot.lane.b32.xlu0 %v2848, 112
  %v2861 = vpop.permute.xlu0 %2860
  %2862 = vrot.lane.b32.xlu0 %v2849, 112
  %v2863 = vpop.permute.xlu0 %2862
  %2864 = vrot.lane.b32.xlu0 %v2850, 112
  %v2865 = vpop.permute.xlu0 %2864
  %2866 = vrot.lane.b32.xlu0 %v2851, 112
  %v2867 = vpop.permute.xlu0 %2866
  %2868 = vrot.lane.b32.xlu0 %v2852, 112
  %v2869 = vpop.permute.xlu0 %2868
  %v2870 = vsel %vm1298, %v2861, %v2863
  %v2871 = vsel %vm1298, %v2863, %v2865
  %v2872 = vsel %vm1298, %v2865, %v2867
  %v2873 = vsel %vm1298, %v2867, %v2869
  %v2875 = vsel %vm882, %v2854, 0
  %v2878 = vsel %vm681, %v2870, 0
  %v2881 = vsel %vm681, %v2871, 0
  %v2884 = vsel %vm681, %v2872, 0
  %v2887 = vsel %vm681, %v2873, 0
  %2889 = vmatpush.bf16.msra.mxu0 0
  %2890 = vmatpush.bf16.msra.mxu0 0
  %2891 = vmatpush.bf16.msra.mxu0 0
  %2892 = vmatpush.bf16.msra.mxu0 0
  %2893 = vmatpush.bf16.msra.mxu0 0
  %2894 = vmatpush.bf16.msra.mxu0 0
  %2895 = vmatpush.bf16.msra.mxu0 0
  %2896 = vmatpush.bf16.msra.mxu0 %v2878
  %2897 = vmatmul.bf16.gmra.mxu0 %v2875
  %v2898 = vpop.f32.mrf.mxu0
  %v2899 = vadd.f32 0.0, %v2898
  %v2900 = vpop.f32.mrf.mxu0
  %2901 = vdwg.mxu0
  %2902 = vmatpush.bf16.msra.mxu0 0
  %2903 = vmatpush.bf16.msra.mxu0 0
  %2904 = vmatpush.bf16.msra.mxu0 0
  %2905 = vmatpush.bf16.msra.mxu0 0
  %2906 = vmatpush.bf16.msra.mxu0 0
  %2907 = vmatpush.bf16.msra.mxu0 0
  %2908 = vmatpush.bf16.msra.mxu0 0
  %2909 = vmatpush.bf16.msra.mxu0 %v2881
  %2910 = vmatmul.bf16.gmra.mxu0 %v2875
  %v2911 = vpop.f32.mrf.mxu0
  %v2912 = vadd.f32 0.0, %v2911
  %v2913 = vpop.f32.mrf.mxu0
  %2914 = vdwg.mxu0
  %2915 = vmatpush.bf16.msra.mxu0 0
  %2916 = vmatpush.bf16.msra.mxu0 0
  %2917 = vmatpush.bf16.msra.mxu0 0
  %2918 = vmatpush.bf16.msra.mxu0 0
  %2919 = vmatpush.bf16.msra.mxu0 0
  %2920 = vmatpush.bf16.msra.mxu0 0
  %2921 = vmatpush.bf16.msra.mxu0 0
  %2922 = vmatpush.bf16.msra.mxu0 %v2884
  %2923 = vmatmul.bf16.gmra.mxu0 %v2875
  %v2924 = vpop.f32.mrf.mxu0
  %v2925 = vadd.f32 0.0, %v2924
  %v2926 = vpop.f32.mrf.mxu0
  %2927 = vdwg.mxu0
  %2928 = vmatpush.bf16.msra.mxu0 0
  %2929 = vmatpush.bf16.msra.mxu0 0
  %2930 = vmatpush.bf16.msra.mxu0 0
  %2931 = vmatpush.bf16.msra.mxu0 0
  %2932 = vmatpush.bf16.msra.mxu0 0
  %2933 = vmatpush.bf16.msra.mxu0 0
  %2934 = vmatpush.bf16.msra.mxu0 0
  %2935 = vmatpush.bf16.msra.mxu0 %v2887
  %2936 = vmatmul.bf16.gmra.mxu0 %v2875
  %v2937 = vpop.f32.mrf.mxu0
  %v2938 = vadd.f32 0.0, %v2937
  %v2939 = vpop.f32.mrf.mxu0
  %2940 = vdwg.mxu0
  %v2941 = vadd.f32 %v2762, %v2899
  %v2942 = vadd.f32 %v2763, %v2912
  %v2943 = vadd.f32 %v2764, %v2925
  %v2944 = vadd.f32 %v2765, %v2938
  %v2945 = vld [vmem:[#allocation2] sm:$0xff]
  %v2946 = vld [vmem:[#allocation2 + $0x8] sm:$0x3]
  %s2947 = scalar_lea.vmem %s11, 8
  %v2948 = vld [vmem:[%s2947] sm:$0x3]
  %2950 = vst [vmem:[#allocation1] ss:$4 sm:$0xff] %v2945
  %s2952 = scalar_lea.vmem [#allocation1], 32
  %2953 = vst [vmem:[%s2952] ss:$4 sm:$0xff] %v2946
  %v2954 = vld.sshfl [vmem:[#allocation1] sm:$0xff pattern:$0x73625140]
  %v2956 = vld.sshfl [vmem:[#allocation1 + $0x8] sm:$0xff pattern:$0x73625140]
  %v2958 = vld.sshfl [vmem:[#allocation1 + $0x10] sm:$0xff pattern:$0x73625140]
  %v2960 = vld.sshfl [vmem:[#allocation1 + $0x18] sm:$0xff pattern:$0x73625140]
  %v2962 = vld.sshfl [vmem:[#allocation1 + $0x20] sm:$0xff pattern:$0x73625140]
  %2964 = vrot.lane.b32.xlu0 %v2954, 111
  %v2965 = vpop.permute.xlu0 %2964
  %2966 = vrot.lane.b32.xlu0 %v2956, 111
  %v2967 = vpop.permute.xlu0 %2966
  %2968 = vrot.lane.b32.xlu0 %v2958, 111
  %v2969 = vpop.permute.xlu0 %2968
  %2970 = vrot.lane.b32.xlu0 %v2960, 111
  %v2971 = vpop.permute.xlu0 %2970
  %2972 = vrot.lane.b32.xlu0 %v2962, 111
  %v2973 = vpop.permute.xlu0 %2972
  %v2974 = vsel %vm1403, %v2965, %v2967
  %v2975 = vsel %vm1403, %v2967, %v2969
  %v2976 = vsel %vm1403, %v2969, %v2971
  %v2977 = vsel %vm1403, %v2971, %v2973
  %v2979 = vsel %vm882, %v2948, 0
  %v2982 = vsel %vm681, %v2974, 0
  %v2985 = vsel %vm681, %v2975, 0
  %v2988 = vsel %vm681, %v2976, 0
  %v2991 = vsel %vm681, %v2977, 0
  %2993 = vmatpush.bf16.msra.mxu0 0
  %2994 = vmatpush.bf16.msra.mxu0 0
  %2995 = vmatpush.bf16.msra.mxu0 0
  %2996 = vmatpush.bf16.msra.mxu0 0
  %2997 = vmatpush.bf16.msra.mxu0 0
  %2998 = vmatpush.bf16.msra.mxu0 0
  %2999 = vmatpush.bf16.msra.mxu0 0
  %3000 = vmatpush.bf16.msra.mxu0 %v2982
  %3001 = vmatmul.bf16.gmra.mxu0 %v2979
  %v3002 = vpop.f32.mrf.mxu0
  %v3003 = vadd.f32 0.0, %v3002
  %v3004 = vpop.f32.mrf.mxu0
  %3005 = vdwg.mxu0
  %3006 = vmatpush.bf16.msra.mxu0 0
  %3007 = vmatpush.bf16.msra.mxu0 0
  %3008 = vmatpush.bf16.msra.mxu0 0
  %3009 = vmatpush.bf16.msra.mxu0 0
  %3010 = vmatpush.bf16.msra.mxu0 0
  %3011 = vmatpush.bf16.msra.mxu0 0
  %3012 = vmatpush.bf16.msra.mxu0 0
  %3013 = vmatpush.bf16.msra.mxu0 %v2985
  %3014 = vmatmul.bf16.gmra.mxu0 %v2979
  %v3015 = vpop.f32.mrf.mxu0
  %v3016 = vadd.f32 0.0, %v3015
  %v3017 = vpop.f32.mrf.mxu0
  %3018 = vdwg.mxu0
  %3019 = vmatpush.bf16.msra.mxu0 0
  %3020 = vmatpush.bf16.msra.mxu0 0
  %3021 = vmatpush.bf16.msra.mxu0 0
  %3022 = vmatpush.bf16.msra.mxu0 0
  %3023 = vmatpush.bf16.msra.mxu0 0
  %3024 = vmatpush.bf16.msra.mxu0 0
  %3025 = vmatpush.bf16.msra.mxu0 0
  %3026 = vmatpush.bf16.msra.mxu0 %v2988
  %3027 = vmatmul.bf16.gmra.mxu0 %v2979
  %v3028 = vpop.f32.mrf.mxu0
  %v3029 = vadd.f32 0.0, %v3028
  %v3030 = vpop.f32.mrf.mxu0
  %3031 = vdwg.mxu0
  %3032 = vmatpush.bf16.msra.mxu0 0
  %3033 = vmatpush.bf16.msra.mxu0 0
  %3034 = vmatpush.bf16.msra.mxu0 0
  %3035 = vmatpush.bf16.msra.mxu0 0
  %3036 = vmatpush.bf16.msra.mxu0 0
  %3037 = vmatpush.bf16.msra.mxu0 0
  %3038 = vmatpush.bf16.msra.mxu0 0
  %3039 = vmatpush.bf16.msra.mxu0 %v2991
  %3040 = vmatmul.bf16.gmra.mxu0 %v2979
  %v3041 = vpop.f32.mrf.mxu0
  %v3042 = vadd.f32 0.0, %v3041
  %v3043 = vpop.f32.mrf.mxu0
  %3044 = vdwg.mxu0
  %v3045 = vadd.f32 %v2941, %v3003
  %v3046 = vadd.f32 %v2942, %v3016
  %v3047 = vadd.f32 %v2943, %v3029
  %v3048 = vadd.f32 %v2944, %v3042
  %v3049 = vld [vmem:[#allocation2] sm:$0xff]
  %v3050 = vld [vmem:[#allocation2 + $0x8] sm:$0x3]
  %v3051 = vld [vmem:[%s13] sm:$0x44]
  %v3052 = vld [vmem:[%s13 + $0x8] sm:$0x44]
  %v3055 = vunpack.c.l.b16 %v3051
  %v3056 = vunpack.c.h.b16 %v3051
  %v3057 = vunpack.c.l.b16 %v3052
  %v3058 = vunpack.c.h.b16 %v3052
  %v3059 = vpack.c.b16 %v3055, %v3055
  %v3060 = vpack.c.b16 %v3056, %v3056
  %v3061 = vpack.c.b16 %v3057, %v3057
  %v3062 = vpack.c.b16 %v3058, %v3058
  %v3064 = vshrl.u32 %v3059, 16
  %v3065 = vpack.i.b16 %v3064, %v3064
  %v3067 = vperm.slane %v3065, 2
  %v3069 = vshrl.u32 %v3060, 16
  %v3070 = vpack.i.b16 %v3069, %v3069
  %v3072 = vperm.slane %v3070, 2
  %v3074 = vshrl.u32 %v3061, 16
  %v3075 = vpack.i.b16 %v3074, %v3074
  %v3077 = vperm.slane %v3075, 2
  %v3079 = vshrl.u32 %v3062, 16
  %v3080 = vpack.i.b16 %v3079, %v3079
  %v3082 = vperm.slane %v3080, 2
  %v3083 = vunpack.c.l.bf16 %v3049
  %v3084 = vunpack.c.h.bf16 %v3049
  %v3085 = vunpack.c.l.bf16 %v3050
  %v3086 = vunpack.c.l.bf16 %v3067
  %v3087 = vunpack.c.l.bf16 %v3072
  %v3088 = vunpack.c.l.bf16 %v3077
  %v3089 = vunpack.c.l.bf16 %v3082
  %v3094 = vrot.slane %v3087, 4
  %v3095 = vrot.slane %v3089, 4
  %v3096 = vsel %vm140, %v3086, %v3094
  %v3097 = vsel %vm140, %v3088, %v3095
  %3098 = vrot.lane.b32.xlu0 %v3096, 18
  %v3099 = vpop.permute.xlu0 %3098
  %3100 = vrot.lane.b32.xlu0 %v3097, 18
  %v3101 = vpop.permute.xlu0 %3100
  %v3102 = vrot.slane %v3099, 4
  %v3103 = vrot.slane %v3101, 4
  %v3104 = vsel %vm1534, %v3102, %v3099
  %v3105 = vsel %vm140, %v3102, %v3103
  %v3106 = vsel %vm1534, %v3105, %v3101
  %v3110 = vmul.f32 %v3083, %v3104
  %v3111 = vmul.f32 %v3084, %v3106
  %v3112 = vmul.f32 %v3085, %v3103
  %3116 = vst [vmem:[#allocation1] ss:$2 sm:$0xff] %v3110
  %s3117 = scalar_lea.vmem [#allocation1], 16
  %3118 = vst [vmem:[%s3117] ss:$2 sm:$0xff] %v3111
  %s3119 = scalar_lea.vmem [#allocation1], 32
  %3120 = vst [vmem:[%s3119] ss:$2 sm:$0xff] %v3112
  %v3121 = vld.sshfl [vmem:[#allocation1] sm:$0xff pattern:$0x75316420]
  %v3122 = vld.sshfl [vmem:[#allocation1 + $0x8] sm:$0xff pattern:$0x75316420]
  %v3123 = vld.sshfl [vmem:[#allocation1 + $0x10] sm:$0xff pattern:$0x75316420]
  %v3124 = vld.sshfl [vmem:[#allocation1 + $0x18] sm:$0xff pattern:$0x75316420]
  %v3125 = vld.sshfl [vmem:[#allocation1 + $0x20] sm:$0xff pattern:$0x75316420]
  %v3131 = vpack.c.bf16 %v3121, %v3121
  %v3132 = vpack.c.bf16 %v3122, %v3122
  %v3133 = vpack.c.bf16 %v3123, %v3123
  %v3134 = vpack.c.bf16 %v3124, %v3124
  %v3135 = vpack.c.bf16 %v3125, %v3125
  %s3136 = scalar_lea.vmem %s11, 10
  %v3137 = vld [vmem:[%s3136] sm:$0x3]
  %3143 = vrot.lane.b32.xlu0 %v3131, 110
  %v3144 = vpop.permute.xlu0 %3143
  %3145 = vrot.lane.b32.xlu0 %v3132, 110
  %v3146 = vpop.permute.xlu0 %3145
  %3147 = vrot.lane.b32.xlu0 %v3133, 110
  %v3148 = vpop.permute.xlu0 %3147
  %3149 = vrot.lane.b32.xlu0 %v3134, 110
  %v3150 = vpop.permute.xlu0 %3149
  %3151 = vrot.lane.b32.xlu0 %v3135, 110
  %v3152 = vpop.permute.xlu0 %3151
  %v3153 = vsel %vm1584, %v3144, %v3146
  %v3154 = vsel %vm1584, %v3146, %v3148
  %v3155 = vsel %vm1584, %v3148, %v3150
  %v3156 = vsel %vm1584, %v3150, %v3152
  %v3158 = vsel %vm882, %v3137, 0
  %v3161 = vsel %vm681, %v3153, 0
  %v3164 = vsel %vm681, %v3154, 0
  %v3167 = vsel %vm681, %v3155, 0
  %v3170 = vsel %vm681, %v3156, 0
  %3172 = vmatpush.bf16.msra.mxu0 0
  %3173 = vmatpush.bf16.msra.mxu0 0
  %3174 = vmatpush.bf16.msra.mxu0 0
  %3175 = vmatpush.bf16.msra.mxu0 0
  %3176 = vmatpush.bf16.msra.mxu0 0
  %3177 = vmatpush.bf16.msra.mxu0 0
  %3178 = vmatpush.bf16.msra.mxu0 0
  %3179 = vmatpush.bf16.msra.mxu0 %v3161
  %3180 = vmatmul.bf16.gmra.mxu0 %v3158
  %v3181 = vpop.f32.mrf.mxu0
  %v3182 = vadd.f32 0.0, %v3181
  %v3183 = vpop.f32.mrf.mxu0
  %3184 = vdwg.mxu0
  %3185 = vmatpush.bf16.msra.mxu0 0
  %3186 = vmatpush.bf16.msra.mxu0 0
  %3187 = vmatpush.bf16.msra.mxu0 0
  %3188 = vmatpush.bf16.msra.mxu0 0
  %3189 = vmatpush.bf16.msra.mxu0 0
  %3190 = vmatpush.bf16.msra.mxu0 0
  %3191 = vmatpush.bf16.msra.mxu0 0
  %3192 = vmatpush.bf16.msra.mxu0 %v3164
  %3193 = vmatmul.bf16.gmra.mxu0 %v3158
  %v3194 = vpop.f32.mrf.mxu0
  %v3195 = vadd.f32 0.0, %v3194
  %v3196 = vpop.f32.mrf.mxu0
  %3197 = vdwg.mxu0
  %3198 = vmatpush.bf16.msra.mxu0 0
  %3199 = vmatpush.bf16.msra.mxu0 0
  %3200 = vmatpush.bf16.msra.mxu0 0
  %3201 = vmatpush.bf16.msra.mxu0 0
  %3202 = vmatpush.bf16.msra.mxu0 0
  %3203 = vmatpush.bf16.msra.mxu0 0
  %3204 = vmatpush.bf16.msra.mxu0 0
  %3205 = vmatpush.bf16.msra.mxu0 %v3167
  %3206 = vmatmul.bf16.gmra.mxu0 %v3158
  %v3207 = vpop.f32.mrf.mxu0
  %v3208 = vadd.f32 0.0, %v3207
  %v3209 = vpop.f32.mrf.mxu0
  %3210 = vdwg.mxu0
  %3211 = vmatpush.bf16.msra.mxu0 0
  %3212 = vmatpush.bf16.msra.mxu0 0
  %3213 = vmatpush.bf16.msra.mxu0 0
  %3214 = vmatpush.bf16.msra.mxu0 0
  %3215 = vmatpush.bf16.msra.mxu0 0
  %3216 = vmatpush.bf16.msra.mxu0 0
  %3217 = vmatpush.bf16.msra.mxu0 0
  %3218 = vmatpush.bf16.msra.mxu0 %v3170
  %3219 = vmatmul.bf16.gmra.mxu0 %v3158
  %v3220 = vpop.f32.mrf.mxu0
  %v3221 = vadd.f32 0.0, %v3220
  %v3222 = vpop.f32.mrf.mxu0
  %3223 = vdwg.mxu0
  %v3224 = vadd.f32 %v3045, %v3182
  %v3225 = vadd.f32 %v3046, %v3195
  %v3226 = vadd.f32 %v3047, %v3208
  %v3227 = vadd.f32 %v3048, %v3221
  %v3228 = vld [vmem:[#allocation2] sm:$0xff]
  %v3229 = vld [vmem:[#allocation2 + $0x8] sm:$0x3]
  %v3230 = vld [vmem:[%s13] sm:$0x88]
  %v3231 = vld [vmem:[%s13 + $0x8] sm:$0x88]
  %v3234 = vunpack.c.l.b16 %v3230
  %v3235 = vunpack.c.h.b16 %v3230
  %v3236 = vunpack.c.l.b16 %v3231
  %v3237 = vunpack.c.h.b16 %v3231
  %v3238 = vpack.c.b16 %v3234, %v3234
  %v3239 = vpack.c.b16 %v3235, %v3235
  %v3240 = vpack.c.b16 %v3236, %v3236
  %v3241 = vpack.c.b16 %v3237, %v3237
  %v3243 = vpack.i.b16 %v3238, %v3238
  %v3245 = vperm.slane %v3243, 3
  %v3247 = vpack.i.b16 %v3239, %v3239
  %v3249 = vperm.slane %v3247, 3
  %v3251 = vpack.i.b16 %v3240, %v3240
  %v3253 = vperm.slane %v3251, 3
  %v3255 = vpack.i.b16 %v3241, %v3241
  %v3257 = vperm.slane %v3255, 3
  %v3258 = vunpack.c.l.bf16 %v3228
  %v3259 = vunpack.c.h.bf16 %v3228
  %v3260 = vunpack.c.l.bf16 %v3229
  %v3261 = vunpack.c.l.bf16 %v3245
  %v3262 = vunpack.c.l.bf16 %v3249
  %v3263 = vunpack.c.l.bf16 %v3253
  %v3264 = vunpack.c.l.bf16 %v3257
  %v3269 = vrot.slane %v3262, 4
  %v3270 = vrot.slane %v3264, 4
  %v3271 = vsel %vm140, %v3261, %v3269
  %v3272 = vsel %vm140, %v3263, %v3270
  %3273 = vrot.lane.b32.xlu0 %v3271, 32
  %v3274 = vpop.permute.xlu0 %3273
  %3275 = vrot.lane.b32.xlu0 %v3272, 32
  %v3276 = vpop.permute.xlu0 %3275
  %v3277 = vrot.slane %v3274, 4
  %v3278 = vrot.slane %v3276, 4
  %v3279 = vsel %vm1711, %v3277, %v3274
  %v3280 = vsel %vm140, %v3277, %v3278
  %v3281 = vsel %vm1711, %v3280, %v3276
  %v3285 = vmul.f32 %v3258, %v3279
  %v3286 = vmul.f32 %v3259, %v3281
  %v3287 = vmul.f32 %v3260, %v3278
  %3291 = vst [vmem:[#allocation1] ss:$2 sm:$0xff] %v3285
  %s3292 = scalar_lea.vmem [#allocation1], 16
  %3293 = vst [vmem:[%s3292] ss:$2 sm:$0xff] %v3286
  %s3294 = scalar_lea.vmem [#allocation1], 32
  %3295 = vst [vmem:[%s3294] ss:$2 sm:$0xff] %v3287
  %v3296 = vld.sshfl [vmem:[#allocation1] sm:$0xff pattern:$0x75316420]
  %v3297 = vld.sshfl [vmem:[#allocation1 + $0x8] sm:$0xff pattern:$0x75316420]
  %v3298 = vld.sshfl [vmem:[#allocation1 + $0x10] sm:$0xff pattern:$0x75316420]
  %v3299 = vld.sshfl [vmem:[#allocation1 + $0x18] sm:$0xff pattern:$0x75316420]
  %v3300 = vld.sshfl [vmem:[#allocation1 + $0x20] sm:$0xff pattern:$0x75316420]
  %v3306 = vpack.c.bf16 %v3296, %v3296
  %v3307 = vpack.c.bf16 %v3297, %v3297
  %v3308 = vpack.c.bf16 %v3298, %v3298
  %v3309 = vpack.c.bf16 %v3299, %v3299
  %v3310 = vpack.c.bf16 %v3300, %v3300
  %s3311 = scalar_lea.vmem %s11, 12
  %v3312 = vld [vmem:[%s3311] sm:$0x3]
  %3318 = vrot.lane.b32.xlu0 %v3306, 96
  %v3319 = vpop.permute.xlu0 %3318
  %3320 = vrot.lane.b32.xlu0 %v3307, 96
  %v3321 = vpop.permute.xlu0 %3320
  %3322 = vrot.lane.b32.xlu0 %v3308, 96
  %v3323 = vpop.permute.xlu0 %3322
  %3324 = vrot.lane.b32.xlu0 %v3309, 96
  %v3325 = vpop.permute.xlu0 %3324
  %3326 = vrot.lane.b32.xlu0 %v3310, 96
  %v3327 = vpop.permute.xlu0 %3326
  %v3328 = vsel %vm1761, %v3319, %v3321
  %v3329 = vsel %vm1761, %v3321, %v3323
  %v3330 = vsel %vm1761, %v3323, %v3325
  %v3331 = vsel %vm1761, %v3325, %v3327
  %v3333 = vsel %vm882, %v3312, 0
  %v3336 = vsel %vm681, %v3328, 0
  %v3339 = vsel %vm681, %v3329, 0
  %v3342 = vsel %vm681, %v3330, 0
  %v3345 = vsel %vm681, %v3331, 0
  %3347 = vmatpush.bf16.msra.mxu0 0
  %3348 = vmatpush.bf16.msra.mxu0 0
  %3349 = vmatpush.bf16.msra.mxu0 0
  %3350 = vmatpush.bf16.msra.mxu0 0
  %3351 = vmatpush.bf16.msra.mxu0 0
  %3352 = vmatpush.bf16.msra.mxu0 0
  %3353 = vmatpush.bf16.msra.mxu0 0
  %3354 = vmatpush.bf16.msra.mxu0 %v3336
  %3355 = vmatmul.bf16.gmra.mxu0 %v3333
  %v3356 = vpop.f32.mrf.mxu0
  %v3357 = vadd.f32 0.0, %v3356
  %v3358 = vpop.f32.mrf.mxu0
  %3359 = vdwg.mxu0
  %3360 = vmatpush.bf16.msra.mxu0 0
  %3361 = vmatpush.bf16.msra.mxu0 0
  %3362 = vmatpush.bf16.msra.mxu0 0
  %3363 = vmatpush.bf16.msra.mxu0 0
  %3364 = vmatpush.bf16.msra.mxu0 0
  %3365 = vmatpush.bf16.msra.mxu0 0
  %3366 = vmatpush.bf16.msra.mxu0 0
  %3367 = vmatpush.bf16.msra.mxu0 %v3339
  %3368 = vmatmul.bf16.gmra.mxu0 %v3333
  %v3369 = vpop.f32.mrf.mxu0
  %v3370 = vadd.f32 0.0, %v3369
  %v3371 = vpop.f32.mrf.mxu0
  %3372 = vdwg.mxu0
  %3373 = vmatpush.bf16.msra.mxu0 0
  %3374 = vmatpush.bf16.msra.mxu0 0
  %3375 = vmatpush.bf16.msra.mxu0 0
  %3376 = vmatpush.bf16.msra.mxu0 0
  %3377 = vmatpush.bf16.msra.mxu0 0
  %3378 = vmatpush.bf16.msra.mxu0 0
  %3379 = vmatpush.bf16.msra.mxu0 0
  %3380 = vmatpush.bf16.msra.mxu0 %v3342
  %3381 = vmatmul.bf16.gmra.mxu0 %v3333
  %v3382 = vpop.f32.mrf.mxu0
  %v3383 = vadd.f32 0.0, %v3382
  %v3384 = vpop.f32.mrf.mxu0
  %3385 = vdwg.mxu0
  %3386 = vmatpush.bf16.msra.mxu0 0
  %3387 = vmatpush.bf16.msra.mxu0 0
  %3388 = vmatpush.bf16.msra.mxu0 0
  %3389 = vmatpush.bf16.msra.mxu0 0
  %3390 = vmatpush.bf16.msra.mxu0 0
  %3391 = vmatpush.bf16.msra.mxu0 0
  %3392 = vmatpush.bf16.msra.mxu0 0
  %3393 = vmatpush.bf16.msra.mxu0 %v3345
  %3394 = vmatmul.bf16.gmra.mxu0 %v3333
  %v3395 = vpop.f32.mrf.mxu0
  %v3396 = vadd.f32 0.0, %v3395
  %v3397 = vpop.f32.mrf.mxu0
  %3398 = vdwg.mxu0
  %v3399 = vadd.f32 %v3224, %v3357
  %v3400 = vadd.f32 %v3225, %v3370
  %v3401 = vadd.f32 %v3226, %v3383
  %v3402 = vadd.f32 %v3227, %v3396
  %v3403 = vld [vmem:[#allocation2] sm:$0xff]
  %v3404 = vld [vmem:[#allocation2 + $0x8] sm:$0x3]
  %v3405 = vld [vmem:[%s13] sm:$0x88]
  %v3406 = vld [vmem:[%s13 + $0x8] sm:$0x88]
  %v3409 = vunpack.c.l.b16 %v3405
  %v3410 = vunpack.c.h.b16 %v3405
  %v3411 = vunpack.c.l.b16 %v3406
  %v3412 = vunpack.c.h.b16 %v3406
  %v3413 = vpack.c.b16 %v3409, %v3409
  %v3414 = vpack.c.b16 %v3410, %v3410
  %v3415 = vpack.c.b16 %v3411, %v3411
  %v3416 = vpack.c.b16 %v3412, %v3412
  %v3418 = vshrl.u32 %v3413, 16
  %v3419 = vpack.i.b16 %v3418, %v3418
  %v3421 = vperm.slane %v3419, 3
  %v3423 = vshrl.u32 %v3414, 16
  %v3424 = vpack.i.b16 %v3423, %v3423
  %v3426 = vperm.slane %v3424, 3
  %v3428 = vshrl.u32 %v3415, 16
  %v3429 = vpack.i.b16 %v3428, %v3428
  %v3431 = vperm.slane %v3429, 3
  %v3433 = vshrl.u32 %v3416, 16
  %v3434 = vpack.i.b16 %v3433, %v3433
  %v3436 = vperm.slane %v3434, 3
  %v3437 = vunpack.c.l.bf16 %v3403
  %v3438 = vunpack.c.h.bf16 %v3403
  %v3439 = vunpack.c.l.bf16 %v3404
  %v3440 = vunpack.c.l.bf16 %v3421
  %v3441 = vunpack.c.l.bf16 %v3426
  %v3442 = vunpack.c.l.bf16 %v3431
  %v3443 = vunpack.c.l.bf16 %v3436
  %v3448 = vrot.slane %v3441, 4
  %v3449 = vrot.slane %v3443, 4
  %v3450 = vsel %vm140, %v3440, %v3448
  %v3451 = vsel %vm140, %v3442, %v3449
  %3452 = vrot.lane.b32.xlu0 %v3450, 33
  %v3453 = vpop.permute.xlu0 %3452
  %3454 = vrot.lane.b32.xlu0 %v3451, 33
  %v3455 = vpop.permute.xlu0 %3454
  %v3456 = vrot.slane %v3453, 4
  %v3457 = vrot.slane %v3455, 4
  %v3458 = vsel %vm1892, %v3456, %v3453
  %v3459 = vsel %vm140, %v3456, %v3457
  %v3460 = vsel %vm1892, %v3459, %v3455
  %v3464 = vmul.f32 %v3437, %v3458
  %v3465 = vmul.f32 %v3438, %v3460
  %v3466 = vmul.f32 %v3439, %v3457
  %3470 = vst [vmem:[#allocation1] ss:$2 sm:$0xff] %v3464
  %s3471 = scalar_lea.vmem [#allocation1], 16
  %3472 = vst [vmem:[%s3471] ss:$2 sm:$0xff] %v3465
  %s3473 = scalar_lea.vmem [#allocation1], 32
  %3474 = vst [vmem:[%s3473] ss:$2 sm:$0xff] %v3466
  %v3475 = vld.sshfl [vmem:[#allocation1] sm:$0xff pattern:$0x75316420]
  %v3476 = vld.sshfl [vmem:[#allocation1 + $0x8] sm:$0xff pattern:$0x75316420]
  %v3477 = vld.sshfl [vmem:[#allocation1 + $0x10] sm:$0xff pattern:$0x75316420]
  %v3478 = vld.sshfl [vmem:[#allocation1 + $0x18] sm:$0xff pattern:$0x75316420]
  %v3479 = vld.sshfl [vmem:[#allocation1 + $0x20] sm:$0xff pattern:$0x75316420]
  %v3485 = vpack.c.bf16 %v3475, %v3475
  %v3486 = vpack.c.bf16 %v3476, %v3476
  %v3487 = vpack.c.bf16 %v3477, %v3477
  %v3488 = vpack.c.bf16 %v3478, %v3478
  %v3489 = vpack.c.bf16 %v3479, %v3479
  %s3490 = scalar_lea.vmem %s11, 14
  %v3491 = vld [vmem:[%s3490] sm:$0x3]
  %3497 = vrot.lane.b32.xlu0 %v3485, 95
  %v3498 = vpop.permute.xlu0 %3497
  %3499 = vrot.lane.b32.xlu0 %v3486, 95
  %v3500 = vpop.permute.xlu0 %3499
  %3501 = vrot.lane.b32.xlu0 %v3487, 95
  %v3502 = vpop.permute.xlu0 %3501
  %3503 = vrot.lane.b32.xlu0 %v3488, 95
  %v3504 = vpop.permute.xlu0 %3503
  %3505 = vrot.lane.b32.xlu0 %v3489, 95
  %v3506 = vpop.permute.xlu0 %3505
  %v3507 = vsel %vm1942, %v3498, %v3500
  %v3508 = vsel %vm1942, %v3500, %v3502
  %v3509 = vsel %vm1942, %v3502, %v3504
  %v3510 = vsel %vm1942, %v3504, %v3506
  %v3512 = vsel %vm882, %v3491, 0
  %v3515 = vsel %vm681, %v3507, 0
  %v3518 = vsel %vm681, %v3508, 0
  %v3521 = vsel %vm681, %v3509, 0
  %v3524 = vsel %vm681, %v3510, 0
  %3526 = vmatpush.bf16.msra.mxu0 0
  %3527 = vmatpush.bf16.msra.mxu0 0
  %3528 = vmatpush.bf16.msra.mxu0 0
  %3529 = vmatpush.bf16.msra.mxu0 0
  %3530 = vmatpush.bf16.msra.mxu0 0
  %3531 = vmatpush.bf16.msra.mxu0 0
  %3532 = vmatpush.bf16.msra.mxu0 0
  %3533 = vmatpush.bf16.msra.mxu0 %v3515
  %3534 = vmatmul.bf16.gmra.mxu0 %v3512
  %v3535 = vpop.f32.mrf.mxu0
  %v3536 = vadd.f32 0.0, %v3535
  %v3537 = vpop.f32.mrf.mxu0
  %3538 = vdwg.mxu0
  %3539 = vmatpush.bf16.msra.mxu0 0
  %3540 = vmatpush.bf16.msra.mxu0 0
  %3541 = vmatpush.bf16.msra.mxu0 0
  %3542 = vmatpush.bf16.msra.mxu0 0
  %3543 = vmatpush.bf16.msra.mxu0 0
  %3544 = vmatpush.bf16.msra.mxu0 0
  %3545 = vmatpush.bf16.msra.mxu0 0
  %3546 = vmatpush.bf16.msra.mxu0 %v3518
  %3547 = vmatmul.bf16.gmra.mxu0 %v3512
  %v3548 = vpop.f32.mrf.mxu0
  %v3549 = vadd.f32 0.0, %v3548
  %v3550 = vpop.f32.mrf.mxu0
  %3551 = vdwg.mxu0
  %3552 = vmatpush.bf16.msra.mxu0 0
  %3553 = vmatpush.bf16.msra.mxu0 0
  %3554 = vmatpush.bf16.msra.mxu0 0
  %3555 = vmatpush.bf16.msra.mxu0 0
  %3556 = vmatpush.bf16.msra.mxu0 0
  %3557 = vmatpush.bf16.msra.mxu0 0
  %3558 = vmatpush.bf16.msra.mxu0 0
  %3559 = vmatpush.bf16.msra.mxu0 %v3521
  %3560 = vmatmul.bf16.gmra.mxu0 %v3512
  %v3561 = vpop.f32.mrf.mxu0
  %v3562 = vadd.f32 0.0, %v3561
  %v3563 = vpop.f32.mrf.mxu0
  %3564 = vdwg.mxu0
  %3565 = vmatpush.bf16.msra.mxu0 0
  %3566 = vmatpush.bf16.msra.mxu0 0
  %3567 = vmatpush.bf16.msra.mxu0 0
  %3568 = vmatpush.bf16.msra.mxu0 0
  %3569 = vmatpush.bf16.msra.mxu0 0
  %3570 = vmatpush.bf16.msra.mxu0 0
  %3571 = vmatpush.bf16.msra.mxu0 0
  %3572 = vmatpush.bf16.msra.mxu0 %v3524
  %3573 = vmatmul.bf16.gmra.mxu0 %v3512
  %v3574 = vpop.f32.mrf.mxu0
  %v3575 = vadd.f32 0.0, %v3574
  %v3576 = vpop.f32.mrf.mxu0
  %3577 = vdwg.mxu0
  %v3578 = vadd.f32 %v3399, %v3536
  %v3579 = vadd.f32 %v3400, %v3549
  %v3580 = vadd.f32 %v3401, %v3562
  %v3581 = vadd.f32 %v3402, %v3575
  %v3582 = vld [vmem:[#allocation2] sm:$0xff]
  %v3583 = vld [vmem:[#allocation2 + $0x8] sm:$0x3]
  %v3584 = vld [vmem:[%s13 + $0x10] sm:$0x11]
  %v3585 = vld [vmem:[%s13 + $0x18] sm:$0x11]
  %v3588 = vunpack.c.l.b16 %v3584
  %v3589 = vunpack.c.h.b16 %v3584
  %v3590 = vunpack.c.l.b16 %v3585
  %v3591 = vunpack.c.h.b16 %v3585
  %v3592 = vpack.c.b16 %v3588, %v3588
  %v3593 = vpack.c.b16 %v3589, %v3589
  %v3594 = vpack.c.b16 %v3590, %v3590
  %v3595 = vpack.c.b16 %v3591, %v3591
  %v3597 = vpack.i.b16 %v3592, %v3592
  %v3599 = vperm.slane %v3597, 0
  %v3601 = vpack.i.b16 %v3593, %v3593
  %v3603 = vperm.slane %v3601, 0
  %v3605 = vpack.i.b16 %v3594, %v3594
  %v3607 = vperm.slane %v3605, 0
  %v3609 = vpack.i.b16 %v3595, %v3595
  %v3611 = vperm.slane %v3609, 0
  %v3612 = vunpack.c.l.bf16 %v3582
  %v3613 = vunpack.c.h.bf16 %v3582
  %v3614 = vunpack.c.l.bf16 %v3583
  %v3615 = vunpack.c.l.bf16 %v3599
  %v3616 = vunpack.c.l.bf16 %v3603
  %v3617 = vunpack.c.l.bf16 %v3607
  %v3618 = vunpack.c.l.bf16 %v3611
  %v3623 = vrot.slane %v3616, 4
  %v3624 = vrot.slane %v3618, 4
  %v3625 = vsel %vm140, %v3615, %v3623
  %v3626 = vsel %vm140, %v3617, %v3624
  %3627 = vrot.lane.b32.xlu0 %v3625, 34
  %v3628 = vpop.permute.xlu0 %3627
  %3629 = vrot.lane.b32.xlu0 %v3626, 34
  %v3630 = vpop.permute.xlu0 %3629
  %v3631 = vrot.slane %v3628, 4
  %v3632 = vrot.slane %v3630, 4
  %v3633 = vsel %vm2069, %v3631, %v3628
  %v3634 = vsel %vm140, %v3631, %v3632
  %v3635 = vsel %vm2069, %v3634, %v3630
  %v3639 = vmul.f32 %v3612, %v3633
  %v3640 = vmul.f32 %v3613, %v3635
  %v3641 = vmul.f32 %v3614, %v3632
  %3645 = vst [vmem:[#allocation1] ss:$2 sm:$0xff] %v3639
  %s3646 = scalar_lea.vmem [#allocation1], 16
  %3647 = vst [vmem:[%s3646] ss:$2 sm:$0xff] %v3640
  %s3648 = scalar_lea.vmem [#allocation1], 32
  %3649 = vst [vmem:[%s3648] ss:$2 sm:$0xff] %v3641
  %v3650 = vld.sshfl [vmem:[#allocation1] sm:$0xff pattern:$0x75316420]
  %v3651 = vld.sshfl [vmem:[#allocation1 + $0x8] sm:$0xff pattern:$0x75316420]
  %v3652 = vld.sshfl [vmem:[#allocation1 + $0x10] sm:$0xff pattern:$0x75316420]
  %v3653 = vld.sshfl [vmem:[#allocation1 + $0x18] sm:$0xff pattern:$0x75316420]
  %v3654 = vld.sshfl [vmem:[#allocation1 + $0x20] sm:$0xff pattern:$0x75316420]
  %v3660 = vpack.c.bf16 %v3650, %v3650
  %v3661 = vpack.c.bf16 %v3651, %v3651
  %v3662 = vpack.c.bf16 %v3652, %v3652
  %v3663 = vpack.c.bf16 %v3653, %v3653
  %v3664 = vpack.c.bf16 %v3654, %v3654
  %s3665 = scalar_lea.vmem %s11, 16
  %v3666 = vld [vmem:[%s3665] sm:$0x3]
  %3672 = vrot.lane.b32.xlu0 %v3660, 94
  %v3673 = vpop.permute.xlu0 %3672
  %3674 = vrot.lane.b32.xlu0 %v3661, 94
  %v3675 = vpop.permute.xlu0 %3674
  %3676 = vrot.lane.b32.xlu0 %v3662, 94
  %v3677 = vpop.permute.xlu0 %3676
  %3678 = vrot.lane.b32.xlu0 %v3663, 94
  %v3679 = vpop.permute.xlu0 %3678
  %3680 = vrot.lane.b32.xlu0 %v3664, 94
  %v3681 = vpop.permute.xlu0 %3680
  %v3682 = vsel %vm2119, %v3673, %v3675
  %v3683 = vsel %vm2119, %v3675, %v3677
  %v3684 = vsel %vm2119, %v3677, %v3679
  %v3685 = vsel %vm2119, %v3679, %v3681
  %v3687 = vsel %vm882, %v3666, 0
  %v3690 = vsel %vm681, %v3682, 0
  %v3693 = vsel %vm681, %v3683, 0
  %v3696 = vsel %vm681, %v3684, 0
  %v3699 = vsel %vm681, %v3685, 0
  %3701 = vmatpush.bf16.msra.mxu0 0
  %3702 = vmatpush.bf16.msra.mxu0 0
  %3703 = vmatpush.bf16.msra.mxu0 0
  %3704 = vmatpush.bf16.msra.mxu0 0
  %3705 = vmatpush.bf16.msra.mxu0 0
  %3706 = vmatpush.bf16.msra.mxu0 0
  %3707 = vmatpush.bf16.msra.mxu0 0
  %3708 = vmatpush.bf16.msra.mxu0 %v3690
  %3709 = vmatmul.bf16.gmra.mxu0 %v3687
  %v3710 = vpop.f32.mrf.mxu0
  %v3711 = vadd.f32 0.0, %v3710
  %v3712 = vpop.f32.mrf.mxu0
  %3713 = vdwg.mxu0
  %3714 = vmatpush.bf16.msra.mxu0 0
  %3715 = vmatpush.bf16.msra.mxu0 0
  %3716 = vmatpush.bf16.msra.mxu0 0
  %3717 = vmatpush.bf16.msra.mxu0 0
  %3718 = vmatpush.bf16.msra.mxu0 0
  %3719 = vmatpush.bf16.msra.mxu0 0
  %3720 = vmatpush.bf16.msra.mxu0 0
  %3721 = vmatpush.bf16.msra.mxu0 %v3693
  %3722 = vmatmul.bf16.gmra.mxu0 %v3687
  %v3723 = vpop.f32.mrf.mxu0
  %v3724 = vadd.f32 0.0, %v3723
  %v3725 = vpop.f32.mrf.mxu0
  %3726 = vdwg.mxu0
  %3727 = vmatpush.bf16.msra.mxu0 0
  %3728 = vmatpush.bf16.msra.mxu0 0
  %3729 = vmatpush.bf16.msra.mxu0 0
  %3730 = vmatpush.bf16.msra.mxu0 0
  %3731 = vmatpush.bf16.msra.mxu0 0
  %3732 = vmatpush.bf16.msra.mxu0 0
  %3733 = vmatpush.bf16.msra.mxu0 0
  %3734 = vmatpush.bf16.msra.mxu0 %v3696
  %3735 = vmatmul.bf16.gmra.mxu0 %v3687
  %v3736 = vpop.f32.mrf.mxu0
  %v3737 = vadd.f32 0.0, %v3736
  %v3738 = vpop.f32.mrf.mxu0
  %3739 = vdwg.mxu0
  %3740 = vmatpush.bf16.msra.mxu0 0
  %3741 = vmatpush.bf16.msra.mxu0 0
  %3742 = vmatpush.bf16.msra.mxu0 0
  %3743 = vmatpush.bf16.msra.mxu0 0
  %3744 = vmatpush.bf16.msra.mxu0 0
  %3745 = vmatpush.bf16.msra.mxu0 0
  %3746 = vmatpush.bf16.msra.mxu0 0
  %3747 = vmatpush.bf16.msra.mxu0 %v3699
  %3748 = vmatmul.bf16.gmra.mxu0 %v3687
  %v3749 = vpop.f32.mrf.mxu0
  %v3750 = vadd.f32 0.0, %v3749
  %v3751 = vpop.f32.mrf.mxu0
  %3752 = vdwg.mxu0
  %v3753 = vadd.f32 %v3578, %v3711
  %v3754 = vadd.f32 %v3579, %v3724
  %v3755 = vadd.f32 %v3580, %v3737
  %v3756 = vadd.f32 %v3581, %v3750
  %v3757 = vld [vmem:[%s12] sm:$0xf]
  %3759 = vset.pattern.permute.xlu0 0
  %3760 = vperm.xlu0 %3759, %v3757
  %v3761 = vpop.permute.xlu0 %3760
  %v3763 = vadd.f32 %v3753, %v3761
  %v3764 = vadd.f32 %v3754, %v3761
  %v3765 = vadd.f32 %v3755, %v3761
  %v3766 = vadd.f32 %v3756, %v3761
  %v3767 = vand.u32 2147483647, %v3763
  %v3768 = vand.u32 2147483647, %v3764
  %v3769 = vand.u32 2147483647, %v3765
  %v3770 = vand.u32 2147483647, %v3766
  %v3771 = vsub.f32 0.0, %v3767
  %v3772 = vsub.f32 0.0, %v3768
  %v3773 = vsub.f32 0.0, %v3769
  %v3774 = vsub.f32 0.0, %v3770
  %v3775 = vmul.f32 %v3771, 1.442695
  %v3776 = vpow.pop %v3775
  %v3777 = vmul.f32 %v3772, 1.442695
  %v3778 = vpow.pop %v3777
  %v3779 = vmul.f32 %v3773, 1.442695
  %v3780 = vpow.pop %v3779
  %v3781 = vmul.f32 %v3774, 1.442695
  %v3782 = vpow.pop %v3781
  %v3783 = vadd.f32 %v3776, 1.0
  %v3784 = vadd.f32 %v3778, 1.0
  %v3785 = vadd.f32 %v3780, 1.0
  %v3786 = vadd.f32 %v3782, 1.0
  %v3787 = vmul.f32 %v3783, %v3783
  %v3788 = vmul.f32 %v3784, %v3784
  %v3789 = vmul.f32 %v3785, %v3785
  %v3790 = vmul.f32 %v3786, %v3786
  %vm3791 = vcmp.ge.f32.partialorder %v3763, 0.0
  %vm3792 = vcmp.ge.f32.partialorder %v3764, 0.0
  %vm3793 = vcmp.ge.f32.partialorder %v3765, 0.0
  %vm3794 = vcmp.ge.f32.partialorder %v3766, 0.0
  %v3795 = vmul.f32 %v3776, %v3776
  %v3796 = vmul.f32 %v3778, %v3778
  %v3797 = vmul.f32 %v3780, %v3780
  %v3798 = vmul.f32 %v3782, %v3782
  %v3799 = vsel %vm3791, %v3795, 1.0
  %v3800 = vsel %vm3792, %v3796, 1.0
  %v3801 = vsel %vm3793, %v3797, 1.0
  %v3802 = vsel %vm3794, %v3798, 1.0
  %v3803 = vsub.f32 %v3787, %v3799
  %v3804 = vsub.f32 %v3788, %v3800
  %v3805 = vsub.f32 %v3789, %v3801
  %v3806 = vsub.f32 %v3790, %v3802
  %v3807 = vmul.f32 %v3763, %v3803
  %v3808 = vmul.f32 %v3764, %v3804
  %v3809 = vmul.f32 %v3765, %v3805
  %v3810 = vmul.f32 %v3766, %v3806
  %v3811 = vadd.f32 %v3787, %v3799
  %v3812 = vadd.f32 %v3788, %v3800
  %v3813 = vadd.f32 %v3789, %v3801
  %v3814 = vadd.f32 %v3790, %v3802
  %v3815 = vrcp.pop %v3811
  %v3816 = vrcp.pop %v3812
  %v3817 = vrcp.pop %v3813
  %v3818 = vrcp.pop %v3814
  %v3819 = vmul.f32 %v3807, %v3815
  %v3820 = vmul.f32 %v3808, %v3816
  %v3821 = vmul.f32 %v3809, %v3817
  %v3822 = vmul.f32 %v3810, %v3818
  %v3823 = vld [vmem:[%s14] sm:$0xf]
  %v3824 = vpack.c.bf16 %v478, %v478
  %v3825 = vpack.c.bf16 %v479, %v479
  %v3826 = vpack.c.bf16 %v480, %v480
  %v3827 = vpack.c.bf16 %v481, %v481
  %v3828 = vld [vmem:[%s15] sm:$0xf]
  %v3829 = vunpack.c.l.b16 %v674
  %v3830 = vunpack.c.h.b16 %v674
  %v3831 = vunpack.c.l.b16 %v675
  %v3832 = vunpack.c.h.b16 %v675
  %v3833 = vpack.c.b16 %v3829, %v3829
  %v3834 = vpack.c.b16 %v3830, %v3830
  %v3835 = vpack.c.b16 %v3831, %v3831
  %v3836 = vpack.c.b16 %v3832, %v3832
  %v3838 = vsel %vm882, %v3828, 0
  %v3841 = vsel %vm681, %v3833, 0
  %v3844 = vsel %vm681, %v3834, 0
  %v3847 = vsel %vm681, %v3835, 0
  %v3850 = vsel %vm681, %v3836, 0
  %3852 = vmatpush.bf16.msra.mxu0 0
  %3853 = vmatpush.bf16.msra.mxu0 0
  %3854 = vmatpush.bf16.msra.mxu0 0
  %3855 = vmatpush.bf16.msra.mxu0 0
  %3856 = vmatpush.bf16.msra.mxu0 0
  %3857 = vmatpush.bf16.msra.mxu0 0
  %3858 = vmatpush.bf16.msra.mxu0 0
  %3859 = vmatpush.bf16.msra.mxu0 %v3841
  %3860 = vmatmul.bf16.gmra.mxu0 %v3838
  %v3861 = vpop.f32.mrf.mxu0
  %v3862 = vadd.f32 0.0, %v3861
  %v3863 = vpop.f32.mrf.mxu0
  %3864 = vdwg.mxu0
  %3865 = vmatpush.bf16.msra.mxu0 0
  %3866 = vmatpush.bf16.msra.mxu0 0
  %3867 = vmatpush.bf16.msra.mxu0 0
  %3868 = vmatpush.bf16.msra.mxu0 0
  %3869 = vmatpush.bf16.msra.mxu0 0
  %3870 = vmatpush.bf16.msra.mxu0 0
  %3871 = vmatpush.bf16.msra.mxu0 0
  %3872 = vmatpush.bf16.msra.mxu0 %v3844
  %3873 = vmatmul.bf16.gmra.mxu0 %v3838
  %v3874 = vpop.f32.mrf.mxu0
  %v3875 = vadd.f32 0.0, %v3874
  %v3876 = vpop.f32.mrf.mxu0
  %3877 = vdwg.mxu0
  %3878 = vmatpush.bf16.msra.mxu0 0
  %3879 = vmatpush.bf16.msra.mxu0 0
  %3880 = vmatpush.bf16.msra.mxu0 0
  %3881 = vmatpush.bf16.msra.mxu0 0
  %3882 = vmatpush.bf16.msra.mxu0 0
  %3883 = vmatpush.bf16.msra.mxu0 0
  %3884 = vmatpush.bf16.msra.mxu0 0
  %3885 = vmatpush.bf16.msra.mxu0 %v3847
  %3886 = vmatmul.bf16.gmra.mxu0 %v3838
  %v3887 = vpop.f32.mrf.mxu0
  %v3888 = vadd.f32 0.0, %v3887
  %v3889 = vpop.f32.mrf.mxu0
  %3890 = vdwg.mxu0
  %3891 = vmatpush.bf16.msra.mxu0 0
  %3892 = vmatpush.bf16.msra.mxu0 0
  %3893 = vmatpush.bf16.msra.mxu0 0
  %3894 = vmatpush.bf16.msra.mxu0 0
  %3895 = vmatpush.bf16.msra.mxu0 0
  %3896 = vmatpush.bf16.msra.mxu0 0
  %3897 = vmatpush.bf16.msra.mxu0 0
  %3898 = vmatpush.bf16.msra.mxu0 %v3850
  %3899 = vmatmul.bf16.gmra.mxu0 %v3838
  %v3900 = vpop.f32.mrf.mxu0
  %v3901 = vadd.f32 0.0, %v3900
  %v3902 = vpop.f32.mrf.mxu0
  %3903 = vdwg.mxu0
  %v3905 = vsel %vm882, %v3823, 0
  %v3908 = vsel %vm681, %v3824, 0
  %v3911 = vsel %vm681, %v3825, 0
  %v3914 = vsel %vm681, %v3826, 0
  %v3917 = vsel %vm681, %v3827, 0
  %3919 = vmatpush.bf16.msra.mxu0 0
  %3920 = vmatpush.bf16.msra.mxu0 0
  %3921 = vmatpush.bf16.msra.mxu0 0
  %3922 = vmatpush.bf16.msra.mxu0 0
  %3923 = vmatpush.bf16.msra.mxu0 0
  %3924 = vmatpush.bf16.msra.mxu0 0
  %3925 = vmatpush.bf16.msra.mxu0 0
  %3926 = vmatpush.bf16.msra.mxu0 %v3908
  %3927 = vmatmul.bf16.gmra.mxu0 %v3905
  %v3928 = vpop.f32.mrf.mxu0
  %v3929 = vadd.f32 %v3862, %v3928
  %v3930 = vpop.f32.mrf.mxu0
  %3931 = vdwg.mxu0
  %3932 = vmatpush.bf16.msra.mxu0 0
  %3933 = vmatpush.bf16.msra.mxu0 0
  %3934 = vmatpush.bf16.msra.mxu0 0
  %3935 = vmatpush.bf16.msra.mxu0 0
  %3936 = vmatpush.bf16.msra.mxu0 0
  %3937 = vmatpush.bf16.msra.mxu0 0
  %3938 = vmatpush.bf16.msra.mxu0 0
  %3939 = vmatpush.bf16.msra.mxu0 %v3911
  %3940 = vmatmul.bf16.gmra.mxu0 %v3905
  %v3941 = vpop.f32.mrf.mxu0
  %v3942 = vadd.f32 %v3875, %v3941
  %v3943 = vpop.f32.mrf.mxu0
  %3944 = vdwg.mxu0
  %3945 = vmatpush.bf16.msra.mxu0 0
  %3946 = vmatpush.bf16.msra.mxu0 0
  %3947 = vmatpush.bf16.msra.mxu0 0
  %3948 = vmatpush.bf16.msra.mxu0 0
  %3949 = vmatpush.bf16.msra.mxu0 0
  %3950 = vmatpush.bf16.msra.mxu0 0
  %3951 = vmatpush.bf16.msra.mxu0 0
  %3952 = vmatpush.bf16.msra.mxu0 %v3914
  %3953 = vmatmul.bf16.gmra.mxu0 %v3905
  %v3954 = vpop.f32.mrf.mxu0
  %v3955 = vadd.f32 %v3888, %v3954
  %v3956 = vpop.f32.mrf.mxu0
  %3957 = vdwg.mxu0
  %3958 = vmatpush.bf16.msra.mxu0 0
  %3959 = vmatpush.bf16.msra.mxu0 0
  %3960 = vmatpush.bf16.msra.mxu0 0
  %3961 = vmatpush.bf16.msra.mxu0 0
  %3962 = vmatpush.bf16.msra.mxu0 0
  %3963 = vmatpush.bf16.msra.mxu0 0
  %3964 = vmatpush.bf16.msra.mxu0 0
  %3965 = vmatpush.bf16.msra.mxu0 %v3917
  %3966 = vmatmul.bf16.gmra.mxu0 %v3905
  %v3967 = vpop.f32.mrf.mxu0
  %v3968 = vadd.f32 %v3901, %v3967
  %v3969 = vpop.f32.mrf.mxu0
  %3970 = vdwg.mxu0
  %v3971 = vld [vmem:[%s16] sm:$0xf]
  %v3972 = vpack.c.bf16 %v3819, %v3819
  %v3973 = vpack.c.bf16 %v3820, %v3820
  %v3974 = vpack.c.bf16 %v3821, %v3821
  %v3975 = vpack.c.bf16 %v3822, %v3822
  %v3977 = vsel %vm882, %v3971, 0
  %v3980 = vsel %vm681, %v3972, 0
  %v3983 = vsel %vm681, %v3973, 0
  %v3986 = vsel %vm681, %v3974, 0
  %v3989 = vsel %vm681, %v3975, 0
  %3991 = vmatpush.bf16.msra.mxu0 0
  %3992 = vmatpush.bf16.msra.mxu0 0
  %3993 = vmatpush.bf16.msra.mxu0 0
  %3994 = vmatpush.bf16.msra.mxu0 0
  %3995 = vmatpush.bf16.msra.mxu0 0
  %3996 = vmatpush.bf16.msra.mxu0 0
  %3997 = vmatpush.bf16.msra.mxu0 0
  %3998 = vmatpush.bf16.msra.mxu0 %v3980
  %3999 = vmatmul.bf16.gmra.mxu0 %v3977
  %v4000 = vpop.f32.mrf.mxu0
  %v4001 = vadd.f32 0.0, %v4000
  %v4002 = vpop.f32.mrf.mxu0
  %4003 = vdwg.mxu0
  %4004 = vmatpush.bf16.msra.mxu0 0
  %4005 = vmatpush.bf16.msra.mxu0 0
  %4006 = vmatpush.bf16.msra.mxu0 0
  %4007 = vmatpush.bf16.msra.mxu0 0
  %4008 = vmatpush.bf16.msra.mxu0 0
  %4009 = vmatpush.bf16.msra.mxu0 0
  %4010 = vmatpush.bf16.msra.mxu0 0
  %4011 = vmatpush.bf16.msra.mxu0 %v3983
  %4012 = vmatmul.bf16.gmra.mxu0 %v3977
  %v4013 = vpop.f32.mrf.mxu0
  %v4014 = vadd.f32 0.0, %v4013
  %v4015 = vpop.f32.mrf.mxu0
  %4016 = vdwg.mxu0
  %4017 = vmatpush.bf16.msra.mxu0 0
  %4018 = vmatpush.bf16.msra.mxu0 0
  %4019 = vmatpush.bf16.msra.mxu0 0
  %4020 = vmatpush.bf16.msra.mxu0 0
  %4021 = vmatpush.bf16.msra.mxu0 0
  %4022 = vmatpush.bf16.msra.mxu0 0
  %4023 = vmatpush.bf16.msra.mxu0 0
  %4024 = vmatpush.bf16.msra.mxu0 %v3986
  %4025 = vmatmul.bf16.gmra.mxu0 %v3977
  %v4026 = vpop.f32.mrf.mxu0
  %v4027 = vadd.f32 0.0, %v4026
  %v4028 = vpop.f32.mrf.mxu0
  %4029 = vdwg.mxu0
  %4030 = vmatpush.bf16.msra.mxu0 0
  %4031 = vmatpush.bf16.msra.mxu0 0
  %4032 = vmatpush.bf16.msra.mxu0 0
  %4033 = vmatpush.bf16.msra.mxu0 0
  %4034 = vmatpush.bf16.msra.mxu0 0
  %4035 = vmatpush.bf16.msra.mxu0 0
  %4036 = vmatpush.bf16.msra.mxu0 0
  %4037 = vmatpush.bf16.msra.mxu0 %v3989
  %4038 = vmatmul.bf16.gmra.mxu0 %v3977
  %v4039 = vpop.f32.mrf.mxu0
  %v4040 = vadd.f32 0.0, %v4039
  %v4041 = vpop.f32.mrf.mxu0
  %4042 = vdwg.mxu0
  %v4043 = vadd.f32 %v3929, %v4001
  %v4044 = vadd.f32 %v3942, %v4014
  %v4045 = vadd.f32 %v3955, %v4027
  %v4046 = vadd.f32 %v3968, %v4040
  %v4047 = vld [vmem:[%s17] sm:$0xff]
  %4049 = vset.pattern.permute.xlu0 0
  %4050 = vperm.xlu0 %4049, %v4047
  %v4051 = vpop.permute.xlu0 %4050
  %v4053 = vadd.f32 %v4043, %v4051
  %v4054 = vadd.f32 %v4044, %v4051
  %v4055 = vadd.f32 %v4045, %v4051
  %v4056 = vadd.f32 %v4046, %v4051
  %v4057 = vand.u32 2147483647, %v4053
  %v4058 = vand.u32 2147483647, %v4054
  %v4059 = vand.u32 2147483647, %v4055
  %v4060 = vand.u32 2147483647, %v4056
  %v4061 = vsub.f32 0.0, %v4057
  %v4062 = vsub.f32 0.0, %v4058
  %v4063 = vsub.f32 0.0, %v4059
  %v4064 = vsub.f32 0.0, %v4060
  %v4065 = vmul.f32 %v4061, 1.442695
  %v4066 = vpow.pop %v4065
  %v4067 = vmul.f32 %v4062, 1.442695
  %v4068 = vpow.pop %v4067
  %v4069 = vmul.f32 %v4063, 1.442695
  %v4070 = vpow.pop %v4069
  %v4071 = vmul.f32 %v4064, 1.442695
  %v4072 = vpow.pop %v4071
  %v4073 = vadd.f32 %v4066, 1.0
  %v4074 = vadd.f32 %v4068, 1.0
  %v4075 = vadd.f32 %v4070, 1.0
  %v4076 = vadd.f32 %v4072, 1.0
  %v4077 = vmul.f32 %v4073, %v4073
  %v4078 = vmul.f32 %v4074, %v4074
  %v4079 = vmul.f32 %v4075, %v4075
  %v4080 = vmul.f32 %v4076, %v4076
  %vm4081 = vcmp.ge.f32.partialorder %v4053, 0.0
  %vm4082 = vcmp.ge.f32.partialorder %v4054, 0.0
  %vm4083 = vcmp.ge.f32.partialorder %v4055, 0.0
  %vm4084 = vcmp.ge.f32.partialorder %v4056, 0.0
  %v4085 = vmul.f32 %v4066, %v4066
  %v4086 = vmul.f32 %v4068, %v4068
  %v4087 = vmul.f32 %v4070, %v4070
  %v4088 = vmul.f32 %v4072, %v4072
  %v4089 = vsel %vm4081, %v4085, 1.0
  %v4090 = vsel %vm4082, %v4086, 1.0
  %v4091 = vsel %vm4083, %v4087, 1.0
  %v4092 = vsel %vm4084, %v4088, 1.0
  %v4093 = vsub.f32 %v4077, %v4089
  %v4094 = vsub.f32 %v4078, %v4090
  %v4095 = vsub.f32 %v4079, %v4091
  %v4096 = vsub.f32 %v4080, %v4092
  %v4097 = vmul.f32 %v4053, %v4093
  %v4098 = vmul.f32 %v4054, %v4094
  %v4099 = vmul.f32 %v4055, %v4095
  %v4100 = vmul.f32 %v4056, %v4096
  %v4101 = vadd.f32 %v4077, %v4089
  %v4102 = vadd.f32 %v4078, %v4090
  %v4103 = vadd.f32 %v4079, %v4091
  %v4104 = vadd.f32 %v4080, %v4092
  %v4105 = vrcp.pop %v4101
  %v4106 = vrcp.pop %v4102
  %v4107 = vrcp.pop %v4103
  %v4108 = vrcp.pop %v4104
  %v4109 = vmul.f32 %v4097, %v4105
  %v4110 = vmul.f32 %v4098, %v4106
  %v4111 = vmul.f32 %v4099, %v4107
  %v4112 = vmul.f32 %v4100, %v4108
  %4113 = vst [vmem:[%s18] sm:$0xff] %v4109
  %4114 = vst [vmem:[%s18 + $0x8] sm:$0xff] %v4110
  %4115 = vst [vmem:[%s18 + $0x10] sm:$0xff] %v4111
  %4116 = vst [vmem:[%s18 + $0x18] sm:$0xff] %v4112
  // Predicated region
  $region74: #{_lambda_.5} parent=0 // pred_check
    _
  $region75: #{_lambda_.5} parent=0 // pred_check_branch
    %4118 = sbr.rel (0) target = $region77
  $region76: #{_lambda_.5} parent=0 // pred_region
    _
  $region77: #{_lambda_.5} parent=0 // pred_fallthru
    _
  // Predicated region
  $region78: #{_lambda_.5} parent=0 // pred_check
    _
  $region79: #{_lambda_.5} parent=0 // pred_check_branch
    %4120 = sbr.rel (0) target = $region81
  $region80: #{_lambda_.5} parent=0 // pred_region
    _
  $region81: #{_lambda_.5} parent=0 // pred_fallthru
    _

// kernel: _lambda_.7
$region0: #{_lambda_.7}
  #allocation0 [shape = 'u32[]', space=smem, size = 0x4, offset = 0x4, fixed_abs, tag = 'smem constant byte address 0x4 - core index']
  #allocation1 [shape = 'u32[72,128]{1,0:T(1,128)}', space=vmem, size = 0x9000, scoped, tag = 'internal scratch']
  #allocation2 [shape = 'bf16[16,42]{1,0:T(8,128)(2,1)}', space=vmem, size = 0x1000, scoped, tag = 'scratch operand']
  #allocation3 [shape = 'bf16[64,37]{1,0:T(8,128)(2,1)}', space=vmem, size = 0x4000, scoped, tag = 'scratch operand']
  %s0 = inlined_call_operand.vmem [shape: bf16[4,16,32], index: 0, kind: input, shape index: {}]
  %s1 = inlined_call_operand.vmem [shape: bf16[32,32], index: 1, kind: input, shape index: {}]
  %s2 = inlined_call_operand.vmem [shape: bf16[9,16,16], index: 2, kind: input, shape index: {}]
  %s3 = inlined_call_operand.vmem [shape: f32[16,1], index: 3, kind: input, shape index: {}]
  %s4 = inlined_call_operand.vmem [shape: bf16[9,32], index: 4, kind: input, shape index: {}]
  %s5 = inlined_call_operand.vmem [shape: bf16[16,16], index: 5, kind: input, shape index: {}]
  %s6 = inlined_call_operand.vmem [shape: bf16[16,16], index: 6, kind: input, shape index: {}]
  %s7 = inlined_call_operand.vmem [shape: bf16[16,32], index: 7, kind: input, shape index: {}]
  %s8 = inlined_call_operand.vmem [shape: bf16[16,32], index: 8, kind: input, shape index: {}]
  %s9 = inlined_call_operand.vmem [shape: f32[16,1], index: 9, kind: input, shape index: {}]
  %s10 = inlined_call_operand.vmem [shape: f32[16,1], index: 10, kind: input, shape index: {}]
  %s11 = inlined_call_operand.vmem [shape: bf16[9,16,16], index: 11, kind: input, shape index: {}]
  %s12 = inlined_call_operand.vmem [shape: f32[16,1], index: 12, kind: input, shape index: {}]
  %s13 = inlined_call_operand.vmem [shape: bf16[9,16,16], index: 13, kind: input, shape index: {}]
  %s14 = inlined_call_operand.vmem [shape: f32[16,1], index: 14, kind: input, shape index: {}]
  %s15 = inlined_call_operand.vmem [shape: bf16[9,32], index: 15, kind: input, shape index: {}]
  %s16 = inlined_call_operand.vmem [shape: bf16[32,16], index: 16, kind: input, shape index: {}]
  %s17 = inlined_call_operand.vmem [shape: bf16[32,16], index: 17, kind: input, shape index: {}]
  %s18 = inlined_call_operand.vmem [shape: bf16[32,16], index: 18, kind: input, shape index: {}]
  %s19 = inlined_call_operand.vmem [shape: f32[32,1], index: 19, kind: input, shape index: {}]
  %s20 = inlined_call_operand.vmem [shape: f32[32,32], index: 20, kind: output, shape index: {}]
  %s21 = sld [smem:[#allocation0]]
  $region90: #{_lambda_.7} parent=0
    _
  %s23 = ssub.s32 1, %s21
  %s24 = scalar_select 0, %s23, %s21
  // Predicated region
  $region2: #{_lambda_.7} parent=0 // pred_check
    _
  $region3: #{_lambda_.7} parent=0 // pred_check_branch
    %26 = sbr.rel (0) target = $region5
  $region4: #{_lambda_.7} parent=0 // pred_region
    _
  $region5: #{_lambda_.7} parent=0 // pred_fallthru
    _
  // Predicated region
  $region6: #{_lambda_.7} parent=0 // pred_check
    _
  $region7: #{_lambda_.7} parent=0 // pred_check_branch
    %28 = sbr.rel (0) target = $region9
  $region8: #{_lambda_.7} parent=0 // pred_region
    _
  $region9: #{_lambda_.7} parent=0 // pred_fallthru
    _
  // Predicated region
  $region10: #{_lambda_.7} parent=0 // pred_check
    _
  $region11: #{_lambda_.7} parent=0 // pred_check_branch
    %30 = sbr.rel (0) target = $region13
  $region12: #{_lambda_.7} parent=0 // pred_region
    _
  $region13: #{_lambda_.7} parent=0 // pred_fallthru
    _
  // Predicated region
  $region14: #{_lambda_.7} parent=0 // pred_check
    _
  $region15: #{_lambda_.7} parent=0 // pred_check_branch
    %32 = sbr.rel (0) target = $region17
  $region16: #{_lambda_.7} parent=0 // pred_region
    _
  $region17: #{_lambda_.7} parent=0 // pred_fallthru
    _
  // Predicated region
  $region18: #{_lambda_.7} parent=0 // pred_check
    _
  $region19: #{_lambda_.7} parent=0 // pred_check_branch
    %34 = sbr.rel (0) target = $region21
  $region20: #{_lambda_.7} parent=0 // pred_region
    _
  $region21: #{_lambda_.7} parent=0 // pred_fallthru
    _
  // Predicated region
  $region22: #{_lambda_.7} parent=0 // pred_check
    _
  $region23: #{_lambda_.7} parent=0 // pred_check_branch
    %36 = sbr.rel (0) target = $region25
  $region24: #{_lambda_.7} parent=0 // pred_region
    _
  $region25: #{_lambda_.7} parent=0 // pred_fallthru
    _
  // Predicated region
  $region26: #{_lambda_.7} parent=0 // pred_check
    _
  $region27: #{_lambda_.7} parent=0 // pred_check_branch
    %38 = sbr.rel (0) target = $region29
  $region28: #{_lambda_.7} parent=0 // pred_region
    _
  $region29: #{_lambda_.7} parent=0 // pred_fallthru
    _
  // Predicated region
  $region30: #{_lambda_.7} parent=0 // pred_check
    _
  $region31: #{_lambda_.7} parent=0 // pred_check_branch
    %40 = sbr.rel (0) target = $region33
  $region32: #{_lambda_.7} parent=0 // pred_region
    _
  $region33: #{_lambda_.7} parent=0 // pred_fallthru
    _
  // Predicated region
  $region34: #{_lambda_.7} parent=0 // pred_check
    _
  $region35: #{_lambda_.7} parent=0 // pred_check_branch
    %42 = sbr.rel (0) target = $region37
  $region36: #{_lambda_.7} parent=0 // pred_region
    _
  $region37: #{_lambda_.7} parent=0 // pred_fallthru
    _
  // Predicated region
  $region38: #{_lambda_.7} parent=0 // pred_check
    _
  $region39: #{_lambda_.7} parent=0 // pred_check_branch
    %44 = sbr.rel (0) target = $region41
  $region40: #{_lambda_.7} parent=0 // pred_region
    _
  $region41: #{_lambda_.7} parent=0 // pred_fallthru
    _
  // Predicated region
  $region42: #{_lambda_.7} parent=0 // pred_check
    _
  $region43: #{_lambda_.7} parent=0 // pred_check_branch
    %46 = sbr.rel (0) target = $region45
  $region44: #{_lambda_.7} parent=0 // pred_region
    _
  $region45: #{_lambda_.7} parent=0 // pred_fallthru
    _
  // Predicated region
  $region46: #{_lambda_.7} parent=0 // pred_check
    _
  $region47: #{_lambda_.7} parent=0 // pred_check_branch
    %48 = sbr.rel (0) target = $region49
  $region48: #{_lambda_.7} parent=0 // pred_region
    _
  $region49: #{_lambda_.7} parent=0 // pred_fallthru
    _
  // Predicated region
  $region50: #{_lambda_.7} parent=0 // pred_check
    _
  $region51: #{_lambda_.7} parent=0 // pred_check_branch
    %50 = sbr.rel (0) target = $region53
  $region52: #{_lambda_.7} parent=0 // pred_region
    _
  $region53: #{_lambda_.7} parent=0 // pred_fallthru
    _
  // Predicated region
  $region54: #{_lambda_.7} parent=0 // pred_check
    _
  $region55: #{_lambda_.7} parent=0 // pred_check_branch
    %52 = sbr.rel (0) target = $region57
  $region56: #{_lambda_.7} parent=0 // pred_region
    _
  $region57: #{_lambda_.7} parent=0 // pred_fallthru
    _
  // Predicated region
  $region58: #{_lambda_.7} parent=0 // pred_check
    _
  $region59: #{_lambda_.7} parent=0 // pred_check_branch
    %54 = sbr.rel (0) target = $region61
  $region60: #{_lambda_.7} parent=0 // pred_region
    _
  $region61: #{_lambda_.7} parent=0 // pred_fallthru
    _
  // Predicated region
  $region62: #{_lambda_.7} parent=0 // pred_check
    _
  $region63: #{_lambda_.7} parent=0 // pred_check_branch
    %56 = sbr.rel (0) target = $region65
  $region64: #{_lambda_.7} parent=0 // pred_region
    _
  $region65: #{_lambda_.7} parent=0 // pred_fallthru
    _
  // Predicated region
  $region66: #{_lambda_.7} parent=0 // pred_check
    _
  $region67: #{_lambda_.7} parent=0 // pred_check_branch
    %58 = sbr.rel (0) target = $region69
  $region68: #{_lambda_.7} parent=0 // pred_region
    _
  $region69: #{_lambda_.7} parent=0 // pred_fallthru
    _
  // Predicated region
  $region70: #{_lambda_.7} parent=0 // pred_check
    _
  $region71: #{_lambda_.7} parent=0 // pred_check_branch
    %60 = sbr.rel (0) target = $region73
  $region72: #{_lambda_.7} parent=0 // pred_region
    _
  $region73: #{_lambda_.7} parent=0 // pred_fallthru
    _
  // Predicated region
  $region74: #{_lambda_.7} parent=0 // pred_check
    _
  $region75: #{_lambda_.7} parent=0 // pred_check_branch
    %62 = sbr.rel (0) target = $region77
  $region76: #{_lambda_.7} parent=0 // pred_region
    _
  $region77: #{_lambda_.7} parent=0 // pred_fallthru
    _
  // Predicated region
  $region78: #{_lambda_.7} parent=0 // pred_check
    _
  $region79: #{_lambda_.7} parent=0 // pred_check_branch
    %64 = sbr.rel (0) target = $region81
  $region80: #{_lambda_.7} parent=0 // pred_region
    _
  $region81: #{_lambda_.7} parent=0 // pred_fallthru
    _
  %vm66 = vcmask 338944
  %67 = vst.msk [vmem:[#allocation2] sm:$0xf] %vm66, 0
  %68 = vst.msk [vmem:[#allocation2 + $0x4] sm:$0xf] %vm66, 0
  %v69 = vld [vmem:[%s1] sm:$0xf]
  %v70 = vld [vmem:[%s1 + $0x4] sm:$0xf]
  %v71 = vld [vmem:[%s1 + $0x8] sm:$0xf]
  %v72 = vld [vmem:[%s1 + $0xc] sm:$0xf]
  %vm73 = vcmask 297984
  %74 = vst.msk [vmem:[#allocation3] sm:$0xf] %vm73, 0
  %75 = vst.msk [vmem:[#allocation3 + $0x4] sm:$0xf] %vm73, 0
  %76 = vst.msk [vmem:[#allocation3 + $0x8] sm:$0xf] %vm73, 0
  %77 = vst.msk [vmem:[#allocation3 + $0xc] sm:$0xf] %vm73, 0
  %78 = vst.msk [vmem:[#allocation3 + $0x10] sm:$0xf] %vm73, 0
  %79 = vst.msk [vmem:[#allocation3 + $0x14] sm:$0xf] %vm73, 0
  %80 = vst.msk [vmem:[#allocation3 + $0x18] sm:$0xf] %vm73, 0
  %81 = vst.msk [vmem:[#allocation3 + $0x1c] sm:$0xf] %vm73, 0
  %v82 = vld [vmem:[%s0] sm:$0xf]
  %v83 = vld [vmem:[%s0 + $0x4] sm:$0xf]
  %v84 = vld [vmem:[%s0 + $0x8] sm:$0xf]
  %v85 = vld [vmem:[%s0 + $0xc] sm:$0xf]
  %v86 = vld [vmem:[%s0 + $0x10] sm:$0xf]
  %v87 = vld [vmem:[%s0 + $0x14] sm:$0xf]
  %v88 = vld [vmem:[%s0 + $0x18] sm:$0xf]
  %v89 = vld [vmem:[%s0 + $0x1c] sm:$0xf]
  %92 = vrot.lane.b32.xlu0 %v82, 5
  %v93 = vpop.permute.xlu0 %92
  %94 = vrot.lane.b32.xlu0 %v83, 5
  %v95 = vpop.permute.xlu0 %94
  %vm98 = vcmask 298024
  %99 = vst.msk [vmem:[#allocation3] sm:$0xf] %vm98, %v93
  %100 = vst.msk [vmem:[#allocation3 + $0x4] sm:$0xf] %vm98, %v95
  %103 = vrot.lane.b32.xlu0 %v84, 5
  %v104 = vpop.permute.xlu0 %103
  %105 = vrot.lane.b32.xlu0 %v85, 5
  %v106 = vpop.permute.xlu0 %105
  %109 = vst.msk [vmem:[#allocation3 + $0x8] sm:$0xf] %vm98, %v104
  %110 = vst.msk [vmem:[#allocation3 + $0xc] sm:$0xf] %vm98, %v106
  %113 = vrot.lane.b32.xlu0 %v86, 5
  %v114 = vpop.permute.xlu0 %113
  %115 = vrot.lane.b32.xlu0 %v87, 5
  %v116 = vpop.permute.xlu0 %115
  %119 = vst.msk [vmem:[#allocation3 + $0x10] sm:$0xf] %vm98, %v114
  %120 = vst.msk [vmem:[#allocation3 + $0x14] sm:$0xf] %vm98, %v116
  %123 = vrot.lane.b32.xlu0 %v88, 5
  %v124 = vpop.permute.xlu0 %123
  %125 = vrot.lane.b32.xlu0 %v89, 5
  %v126 = vpop.permute.xlu0 %125
  %129 = vst.msk [vmem:[#allocation3 + $0x18] sm:$0xf] %vm98, %v124
  %130 = vst.msk [vmem:[#allocation3 + $0x1c] sm:$0xf] %vm98, %v126
  %v131 = vld [vmem:[#allocation3 + $0x18] sm:$0xf]
  %v132 = vld [vmem:[#allocation3 + $0x1c] sm:$0xf]
  %v133 = vld [vmem:[%s4] sm:$0x1]
  %v135 = vpack.i.b16 %v133, %v133
  %v137 = vperm.slane %v135, 0
  %v138 = vunpack.c.l.bf16 %v131
  %v139 = vunpack.c.l.bf16 %v132
  %v140 = vunpack.c.l.bf16 %v137
  %v141 = vmul.f32 %v138, %v140
  %v142 = vmul.f32 %v139, %v140
  %v143 = vpack.c.bf16 %v142, %v141
  %v144 = vld [vmem:[%s2] sm:$0xf]
  %v145 = vld [vmem:[%s2 + $0x4] sm:$0xf]
  %v146 = vld [vmem:[#allocation3 + $0x10] sm:$0xf]
  %v147 = vld [vmem:[#allocation3 + $0x14] sm:$0xf]
  %v148 = vshrl.u32 %v133, 16
  %v149 = vpack.i.b16 %v148, %v148
  %v151 = vperm.slane %v149, 0
  %v152 = vunpack.c.l.bf16 %v146
  %v153 = vunpack.c.l.bf16 %v147
  %v154 = vunpack.c.l.bf16 %v151
  %156 = vrot.lane.b32.xlu0 %v154, 1
  %v157 = vpop.permute.xlu0 %156
  %v159 = vmul.f32 %v152, %v157
  %v160 = vmul.f32 %v153, %v157
  %v161 = vpack.c.bf16 %v160, %v159
  %s162 = scalar_lea.vmem %s2, 8
  %v163 = vld [vmem:[%s162] sm:$0xf]
  %v164 = vld [vmem:[%s162 + $0x4] sm:$0xf]
  %v167 = vunpack.c.l.b16 %v163
  %v168 = vunpack.c.l.b16 %v164
  %v169 = vpack.c.b16 %v168, %v167
  %171 = vrot.lane.b32.xlu0 %v161, 127
  %v172 = vpop.permute.xlu0 %171
  %vm174 = vcmask 130048
  %v176 = vsel %vm174, %v169, 0
  %178 = vmatpush.bf16.msra.mxu0 0
  %179 = vmatpush.bf16.msra.mxu0 0
  %180 = vmatpush.bf16.msra.mxu0 0
  %181 = vmatpush.bf16.msra.mxu0 0
  %182 = vmatpush.bf16.msra.mxu0 0
  %183 = vmatpush.bf16.msra.mxu0 0
  %184 = vmatpush.bf16.msra.mxu0 0
  %185 = vmatpush.bf16.msra.mxu0 %v172
  %186 = vmatmul.bf16.gmra.mxu0 %v176
  %v187 = vpop.f32.mrf.mxu0
  %v188 = vadd.f32 0.0, %v187
  %v189 = vpop.f32.mrf.mxu0
  %v190 = vadd.f32 0.0, %v189
  %191 = vdwg.mxu0
  %v194 = vunpack.c.l.b16 %v144
  %v195 = vunpack.c.l.b16 %v145
  %v196 = vpack.c.b16 %v195, %v194
  %v198 = vsel %vm174, %v196, 0
  %200 = vmatpush.bf16.msra.mxu0 0
  %201 = vmatpush.bf16.msra.mxu0 0
  %202 = vmatpush.bf16.msra.mxu0 0
  %203 = vmatpush.bf16.msra.mxu0 0
  %204 = vmatpush.bf16.msra.mxu0 0
  %205 = vmatpush.bf16.msra.mxu0 0
  %206 = vmatpush.bf16.msra.mxu0 0
  %207 = vmatpush.bf16.msra.mxu0 %v143
  %208 = vmatmul.bf16.gmra.mxu0 %v198
  %v209 = vpop.f32.mrf.mxu0
  %v210 = vadd.f32 %v188, %v209
  %v211 = vpop.f32.mrf.mxu0
  %v212 = vadd.f32 %v190, %v211
  %213 = vdwg.mxu0
  %v214 = vld [vmem:[%s4] sm:$0x2]
  %v216 = vpack.i.b16 %v214, %v214
  %v218 = vperm.slane %v216, 1
  %v219 = vunpack.c.l.bf16 %v218
  %221 = vrot.lane.b32.xlu0 %v219, 1
  %v222 = vpop.permute.xlu0 %221
  %v224 = vmul.f32 %v138, %v222
  %v225 = vmul.f32 %v139, %v222
  %v226 = vpack.c.bf16 %v225, %v224
  %s227 = scalar_lea.vmem %s2, 16
  %v228 = vld [vmem:[%s227] sm:$0xf]
  %v229 = vld [vmem:[%s227 + $0x4] sm:$0xf]
  %v232 = vunpack.c.l.b16 %v228
  %v233 = vunpack.c.l.b16 %v229
  %v234 = vpack.c.b16 %v233, %v232
  %236 = vrot.lane.b32.xlu0 %v226, 127
  %v237 = vpop.permute.xlu0 %236
  %v240 = vsel %vm174, %v234, 0
  %242 = vmatpush.bf16.msra.mxu0 0
  %243 = vmatpush.bf16.msra.mxu0 0
  %244 = vmatpush.bf16.msra.mxu0 0
  %245 = vmatpush.bf16.msra.mxu0 0
  %246 = vmatpush.bf16.msra.mxu0 0
  %247 = vmatpush.bf16.msra.mxu0 0
  %248 = vmatpush.bf16.msra.mxu0 0
  %249 = vmatpush.bf16.msra.mxu0 %v237
  %250 = vmatmul.bf16.gmra.mxu0 %v240
  %v251 = vpop.f32.mrf.mxu0
  %v252 = vadd.f32 0.0, %v251
  %v253 = vpop.f32.mrf.mxu0
  %v254 = vadd.f32 0.0, %v253
  %255 = vdwg.mxu0
  %v256 = vadd.f32 %v210, %v252
  %v257 = vadd.f32 %v212, %v254
  %v258 = vld [vmem:[#allocation3 + $0x8] sm:$0xf]
  %v259 = vld [vmem:[#allocation3 + $0xc] sm:$0xf]
  %v260 = vshrl.u32 %v214, 16
  %v261 = vpack.i.b16 %v260, %v260
  %v263 = vperm.slane %v261, 1
  %v264 = vunpack.c.l.bf16 %v258
  %v265 = vunpack.c.l.bf16 %v259
  %v266 = vunpack.c.l.bf16 %v263
  %268 = vrot.lane.b32.xlu0 %v266, 4
  %v269 = vpop.permute.xlu0 %268
  %v271 = vmul.f32 %v264, %v269
  %v272 = vmul.f32 %v265, %v269
  %v273 = vpack.c.bf16 %v272, %v271
  %s274 = scalar_lea.vmem %s2, 24
  %v275 = vld [vmem:[%s274] sm:$0xf]
  %v276 = vld [vmem:[%s274 + $0x4] sm:$0xf]
  %v279 = vunpack.c.l.b16 %v275
  %v280 = vunpack.c.l.b16 %v276
  %v281 = vpack.c.b16 %v280, %v279
  %283 = vrot.lane.b32.xlu0 %v273, 124
  %v284 = vpop.permute.xlu0 %283
  %v287 = vsel %vm174, %v281, 0
  %289 = vmatpush.bf16.msra.mxu0 0
  %290 = vmatpush.bf16.msra.mxu0 0
  %291 = vmatpush.bf16.msra.mxu0 0
  %292 = vmatpush.bf16.msra.mxu0 0
  %293 = vmatpush.bf16.msra.mxu0 0
  %294 = vmatpush.bf16.msra.mxu0 0
  %295 = vmatpush.bf16.msra.mxu0 0
  %296 = vmatpush.bf16.msra.mxu0 %v284
  %297 = vmatmul.bf16.gmra.mxu0 %v287
  %v298 = vpop.f32.mrf.mxu0
  %v299 = vadd.f32 0.0, %v298
  %v300 = vpop.f32.mrf.mxu0
  %v301 = vadd.f32 0.0, %v300
  %302 = vdwg.mxu0
  %v303 = vadd.f32 %v256, %v299
  %v304 = vadd.f32 %v257, %v301
  %v305 = vld [vmem:[#allocation3] sm:$0xf]
  %v306 = vld [vmem:[#allocation3 + $0x4] sm:$0xf]
  %s307 = scalar_lea.vmem %s2, 32
  %v308 = vld [vmem:[%s307] sm:$0xf]
  %v309 = vld [vmem:[%s307 + $0x4] sm:$0xf]
  %v312 = vunpack.c.l.b16 %v308
  %v313 = vunpack.c.l.b16 %v309
  %v314 = vpack.c.b16 %v313, %v312
  %v317 = vunpack.c.l.b16 %v305
  %v318 = vunpack.c.l.b16 %v306
  %v319 = vpack.c.b16 %v318, %v317
  %320 = vrot.lane.b32.xlu0 %v319, 123
  %v321 = vpop.permute.xlu0 %320
  %v324 = vsel %vm174, %v314, 0
  %326 = vmatpush.bf16.msra.mxu0 0
  %327 = vmatpush.bf16.msra.mxu0 0
  %328 = vmatpush.bf16.msra.mxu0 0
  %329 = vmatpush.bf16.msra.mxu0 0
  %330 = vmatpush.bf16.msra.mxu0 0
  %331 = vmatpush.bf16.msra.mxu0 0
  %332 = vmatpush.bf16.msra.mxu0 0
  %333 = vmatpush.bf16.msra.mxu0 %v321
  %334 = vmatmul.bf16.gmra.mxu0 %v324
  %v335 = vpop.f32.mrf.mxu0
  %v336 = vadd.f32 0.0, %v335
  %v337 = vpop.f32.mrf.mxu0
  %v338 = vadd.f32 0.0, %v337
  %339 = vdwg.mxu0
  %v340 = vadd.f32 %v303, %v336
  %v341 = vadd.f32 %v304, %v338
  %s342 = scalar_lea.vmem %s2, 40
  %v343 = vld [vmem:[%s342] sm:$0xf]
  %v344 = vld [vmem:[%s342 + $0x4] sm:$0xf]
  %v347 = vunpack.c.l.b16 %v343
  %v348 = vunpack.c.l.b16 %v344
  %v349 = vpack.c.b16 %v348, %v347
  %v352 = vunpack.c.l.b16 %v258
  %v353 = vunpack.c.l.b16 %v259
  %v354 = vpack.c.b16 %v353, %v352
  %355 = vrot.lane.b32.xlu0 %v354, 123
  %v356 = vpop.permute.xlu0 %355
  %v359 = vsel %vm174, %v349, 0
  %361 = vmatpush.bf16.msra.mxu0 0
  %362 = vmatpush.bf16.msra.mxu0 0
  %363 = vmatpush.bf16.msra.mxu0 0
  %364 = vmatpush.bf16.msra.mxu0 0
  %365 = vmatpush.bf16.msra.mxu0 0
  %366 = vmatpush.bf16.msra.mxu0 0
  %367 = vmatpush.bf16.msra.mxu0 0
  %368 = vmatpush.bf16.msra.mxu0 %v356
  %369 = vmatmul.bf16.gmra.mxu0 %v359
  %v370 = vpop.f32.mrf.mxu0
  %v371 = vadd.f32 0.0, %v370
  %v372 = vpop.f32.mrf.mxu0
  %v373 = vadd.f32 0.0, %v372
  %374 = vdwg.mxu0
  %v375 = vadd.f32 %v340, %v371
  %v376 = vadd.f32 %v341, %v373
  %v377 = vld [vmem:[%s4] sm:$0x8]
  %v379 = vpack.i.b16 %v377, %v377
  %v381 = vperm.slane %v379, 3
  %v382 = vunpack.c.l.bf16 %v381
  %384 = vrot.lane.b32.xlu0 %v382, 4
  %v385 = vpop.permute.xlu0 %384
  %v387 = vmul.f32 %v138, %v385
  %v388 = vmul.f32 %v139, %v385
  %v389 = vpack.c.bf16 %v388, %v387
  %s390 = scalar_lea.vmem %s2, 48
  %v391 = vld [vmem:[%s390] sm:$0xf]
  %v392 = vld [vmem:[%s390 + $0x4] sm:$0xf]
  %v395 = vunpack.c.l.b16 %v391
  %v396 = vunpack.c.l.b16 %v392
  %v397 = vpack.c.b16 %v396, %v395
  %399 = vrot.lane.b32.xlu0 %v389, 124
  %v400 = vpop.permute.xlu0 %399
  %v403 = vsel %vm174, %v397, 0
  %405 = vmatpush.bf16.msra.mxu0 0
  %406 = vmatpush.bf16.msra.mxu0 0
  %407 = vmatpush.bf16.msra.mxu0 0
  %408 = vmatpush.bf16.msra.mxu0 0
  %409 = vmatpush.bf16.msra.mxu0 0
  %410 = vmatpush.bf16.msra.mxu0 0
  %411 = vmatpush.bf16.msra.mxu0 0
  %412 = vmatpush.bf16.msra.mxu0 %v400
  %413 = vmatmul.bf16.gmra.mxu0 %v403
  %v414 = vpop.f32.mrf.mxu0
  %v415 = vadd.f32 0.0, %v414
  %v416 = vpop.f32.mrf.mxu0
  %v417 = vadd.f32 0.0, %v416
  %418 = vdwg.mxu0
  %v419 = vadd.f32 %v375, %v415
  %v420 = vadd.f32 %v376, %v417
  %s421 = scalar_lea.vmem %s2, 56
  %v422 = vld [vmem:[%s421] sm:$0xf]
  %v423 = vld [vmem:[%s421 + $0x4] sm:$0xf]
  %v426 = vunpack.c.l.b16 %v422
  %v427 = vunpack.c.l.b16 %v423
  %v428 = vpack.c.b16 %v427, %v426
  %v431 = vunpack.c.l.b16 %v146
  %v432 = vunpack.c.l.b16 %v147
  %v433 = vpack.c.b16 %v432, %v431
  %434 = vrot.lane.b32.xlu0 %v433, 123
  %v435 = vpop.permute.xlu0 %434
  %v438 = vsel %vm174, %v428, 0
  %440 = vmatpush.bf16.msra.mxu0 0
  %441 = vmatpush.bf16.msra.mxu0 0
  %442 = vmatpush.bf16.msra.mxu0 0
  %443 = vmatpush.bf16.msra.mxu0 0
  %444 = vmatpush.bf16.msra.mxu0 0
  %445 = vmatpush.bf16.msra.mxu0 0
  %446 = vmatpush.bf16.msra.mxu0 0
  %447 = vmatpush.bf16.msra.mxu0 %v435
  %448 = vmatmul.bf16.gmra.mxu0 %v438
  %v449 = vpop.f32.mrf.mxu0
  %v450 = vadd.f32 0.0, %v449
  %v451 = vpop.f32.mrf.mxu0
  %v452 = vadd.f32 0.0, %v451
  %453 = vdwg.mxu0
  %v454 = vadd.f32 %v419, %v450
  %v455 = vadd.f32 %v420, %v452
  %s456 = scalar_lea.vmem %s2, 64
  %v457 = vld [vmem:[%s456] sm:$0xf]
  %v458 = vld [vmem:[%s456 + $0x4] sm:$0xf]
  %v461 = vunpack.c.l.b16 %v457
  %v462 = vunpack.c.l.b16 %v458
  %v463 = vpack.c.b16 %v462, %v461
  %v466 = vunpack.c.l.b16 %v131
  %v467 = vunpack.c.l.b16 %v132
  %v468 = vpack.c.b16 %v467, %v466
  %469 = vrot.lane.b32.xlu0 %v468, 123
  %v470 = vpop.permute.xlu0 %469
  %v473 = vsel %vm174, %v463, 0
  %475 = vmatpush.bf16.msra.mxu0 0
  %476 = vmatpush.bf16.msra.mxu0 0
  %477 = vmatpush.bf16.msra.mxu0 0
  %478 = vmatpush.bf16.msra.mxu0 0
  %479 = vmatpush.bf16.msra.mxu0 0
  %480 = vmatpush.bf16.msra.mxu0 0
  %481 = vmatpush.bf16.msra.mxu0 0
  %482 = vmatpush.bf16.msra.mxu0 %v470
  %483 = vmatmul.bf16.gmra.mxu0 %v473
  %v484 = vpop.f32.mrf.mxu0
  %v485 = vadd.f32 0.0, %v484
  %v486 = vpop.f32.mrf.mxu0
  %v487 = vadd.f32 0.0, %v486
  %488 = vdwg.mxu0
  %v489 = vadd.f32 %v454, %v485
  %v490 = vadd.f32 %v455, %v487
  %v491 = vld [vmem:[%s3] sm:$0xff]
  %v492 = vld [vmem:[%s3 + $0x8] sm:$0xff]
  %494 = vset.pattern.permute.xlu0 0
  %495 = vperm.xlu0 %494, %v491
  %v496 = vpop.permute.xlu0 %495
  %499 = vset.pattern.permute.xlu0 0
  %500 = vperm.xlu0 %499, %v492
  %v501 = vpop.permute.xlu0 %500
  %v503 = vadd.f32 %v489, %v496
  %v504 = vadd.f32 %v490, %v501
  %v505 = vand.u32 2147483647, %v503
  %v506 = vand.u32 2147483647, %v504
  %v507 = vsub.f32 0.0, %v505
  %v508 = vsub.f32 0.0, %v506
  %v509 = vmul.f32 %v507, 1.442695
  %v510 = vpow.pop %v509
  %v511 = vmul.f32 %v508, 1.442695
  %v512 = vpow.pop %v511
  %v513 = vadd.f32 %v510, 1.0
  %v514 = vadd.f32 %v512, 1.0
  %v515 = vmul.f32 %v513, %v513
  %v516 = vmul.f32 %v514, %v514
  %vm517 = vcmp.ge.f32.partialorder %v503, 0.0
  %vm518 = vcmp.ge.f32.partialorder %v504, 0.0
  %v519 = vmul.f32 %v510, %v510
  %v520 = vmul.f32 %v512, %v512
  %v521 = vsel %vm517, %v519, 1.0
  %v522 = vsel %vm518, %v520, 1.0
  %v523 = vsub.f32 %v515, %v521
  %v524 = vsub.f32 %v516, %v522
  %v525 = vmul.f32 %v503, %v523
  %v526 = vmul.f32 %v504, %v524
  %v527 = vadd.f32 %v515, %v521
  %v528 = vadd.f32 %v516, %v522
  %v529 = vrcp.pop %v527
  %v530 = vrcp.pop %v528
  %v531 = vmul.f32 %v525, %v529
  %v532 = vmul.f32 %v526, %v530
  %v533 = vpack.c.bf16 %v532, %v531
  %v534 = vld [vmem:[%s5] sm:$0xf]
  %v535 = vld [vmem:[%s5 + $0x4] sm:$0xf]
  %v536 = vld [vmem:[%s7] sm:$0xf]
  %v537 = vld [vmem:[%s7 + $0x4] sm:$0xf]
  %v538 = vld [vmem:[%s9] sm:$0xff]
  %v539 = vld [vmem:[%s9 + $0x8] sm:$0xff]
  %v542 = vunpack.c.l.b16 %v536
  %v543 = vunpack.c.l.b16 %v537
  %v544 = vpack.c.b16 %v543, %v542
  %v549 = vunpack.c.l.b16 %v69
  %v550 = vunpack.c.l.b16 %v70
  %v551 = vunpack.c.l.b16 %v71
  %v552 = vunpack.c.l.b16 %v72
  %v553 = vpack.c.b16 %v550, %v549
  %v554 = vpack.c.b16 %v552, %v551
  %vm557 = vcmask 261120
  %v559 = vsel %vm557, %v544, 0
  %561 = vmatpush.bf16.msra.mxu0 0
  %562 = vmatpush.bf16.msra.mxu0 0
  %563 = vmatpush.bf16.msra.mxu0 0
  %564 = vmatpush.bf16.msra.mxu0 0
  %565 = vmatpush.bf16.msra.mxu0 0
  %566 = vmatpush.bf16.msra.mxu0 0
  %567 = vmatpush.bf16.msra.mxu0 %v554
  %568 = vmatpush.bf16.msra.mxu0 %v553
  %569 = vmatmul.bf16.gmra.mxu0 %v559
  %v570 = vpop.f32.mrf.mxu0
  %v571 = vadd.f32 0.0, %v570
  %v572 = vpop.f32.mrf.mxu0
  %v573 = vadd.f32 0.0, %v572
  %574 = vdwg.mxu0
  %v577 = vunpack.c.l.b16 %v534
  %v578 = vunpack.c.l.b16 %v535
  %v579 = vpack.c.b16 %v578, %v577
  %v581 = vsel %vm174, %v579, 0
  %583 = vmatpush.bf16.msra.mxu0 0
  %584 = vmatpush.bf16.msra.mxu0 0
  %585 = vmatpush.bf16.msra.mxu0 0
  %586 = vmatpush.bf16.msra.mxu0 0
  %587 = vmatpush.bf16.msra.mxu0 0
  %588 = vmatpush.bf16.msra.mxu0 0
  %589 = vmatpush.bf16.msra.mxu0 0
  %590 = vmatpush.bf16.msra.mxu0 %v533
  %591 = vmatmul.bf16.gmra.mxu0 %v581
  %v592 = vpop.f32.mrf.mxu0
  %v593 = vadd.f32 %v571, %v592
  %v594 = vpop.f32.mrf.mxu0
  %v595 = vadd.f32 %v573, %v594
  %596 = vdwg.mxu0
  %598 = vset.pattern.permute.xlu0 0
  %599 = vperm.xlu0 %598, %v538
  %v600 = vpop.permute.xlu0 %599
  %603 = vset.pattern.permute.xlu0 0
  %604 = vperm.xlu0 %603, %v539
  %v605 = vpop.permute.xlu0 %604
  %v607 = vadd.f32 %v593, %v600
  %v608 = vadd.f32 %v595, %v605
  %v609 = vand.u32 2147483647, %v607
  %v610 = vand.u32 2147483647, %v608
  %v611 = vsub.f32 0.0, %v609
  %v612 = vsub.f32 0.0, %v610
  %v613 = vmul.f32 %v611, 1.442695
  %v614 = vpow.pop %v613
  %v615 = vmul.f32 %v612, 1.442695
  %v616 = vpow.pop %v615
  %v617 = vadd.f32 %v614, 1.0
  %v618 = vadd.f32 %v616, 1.0
  %v619 = vmul.f32 %v617, %v617
  %v620 = vmul.f32 %v618, %v618
  %vm621 = vcmp.ge.f32.partialorder %v607, 0.0
  %vm622 = vcmp.ge.f32.partialorder %v608, 0.0
  %v623 = vmul.f32 %v614, %v614
  %v624 = vmul.f32 %v616, %v616
  %v625 = vsel %vm621, %v623, 1.0
  %v626 = vsel %vm622, %v624, 1.0
  %v627 = vsub.f32 %v619, %v625
  %v628 = vsub.f32 %v620, %v626
  %v629 = vmul.f32 %v607, %v627
  %v630 = vmul.f32 %v608, %v628
  %v631 = vadd.f32 %v619, %v625
  %v632 = vadd.f32 %v620, %v626
  %v633 = vrcp.pop %v631
  %v634 = vrcp.pop %v632
  %v635 = vmul.f32 %v629, %v633
  %v636 = vmul.f32 %v630, %v634
  %v637 = vld [vmem:[%s6] sm:$0xf]
  %v638 = vld [vmem:[%s6 + $0x4] sm:$0xf]
  %v639 = vld [vmem:[%s8] sm:$0xf]
  %v640 = vld [vmem:[%s8 + $0x4] sm:$0xf]
  %v641 = vld [vmem:[%s10] sm:$0xff]
  %v642 = vld [vmem:[%s10 + $0x8] sm:$0xff]
  %v645 = vunpack.c.l.b16 %v639
  %v646 = vunpack.c.l.b16 %v640
  %v647 = vpack.c.b16 %v646, %v645
  %v649 = vsel %vm557, %v647, 0
  %651 = vmatpush.bf16.msra.mxu0 0
  %652 = vmatpush.bf16.msra.mxu0 0
  %653 = vmatpush.bf16.msra.mxu0 0
  %654 = vmatpush.bf16.msra.mxu0 0
  %655 = vmatpush.bf16.msra.mxu0 0
  %656 = vmatpush.bf16.msra.mxu0 0
  %657 = vmatpush.bf16.msra.mxu0 %v554
  %658 = vmatpush.bf16.msra.mxu0 %v553
  %659 = vmatmul.bf16.gmra.mxu0 %v649
  %v660 = vpop.f32.mrf.mxu0
  %v661 = vadd.f32 0.0, %v660
  %v662 = vpop.f32.mrf.mxu0
  %v663 = vadd.f32 0.0, %v662
  %664 = vdwg.mxu0
  %v667 = vunpack.c.l.b16 %v637
  %v668 = vunpack.c.l.b16 %v638
  %v669 = vpack.c.b16 %v668, %v667
  %v671 = vsel %vm174, %v669, 0
  %673 = vmatpush.bf16.msra.mxu0 0
  %674 = vmatpush.bf16.msra.mxu0 0
  %675 = vmatpush.bf16.msra.mxu0 0
  %676 = vmatpush.bf16.msra.mxu0 0
  %677 = vmatpush.bf16.msra.mxu0 0
  %678 = vmatpush.bf16.msra.mxu0 0
  %679 = vmatpush.bf16.msra.mxu0 0
  %680 = vmatpush.bf16.msra.mxu0 %v533
  %681 = vmatmul.bf16.gmra.mxu0 %v671
  %v682 = vpop.f32.mrf.mxu0
  %v683 = vadd.f32 %v661, %v682
  %v684 = vpop.f32.mrf.mxu0
  %v685 = vadd.f32 %v663, %v684
  %686 = vdwg.mxu0
  %688 = vset.pattern.permute.xlu0 0
  %689 = vperm.xlu0 %688, %v641
  %v690 = vpop.permute.xlu0 %689
  %693 = vset.pattern.permute.xlu0 0
  %694 = vperm.xlu0 %693, %v642
  %v695 = vpop.permute.xlu0 %694
  %v697 = vadd.f32 %v683, %v690
  %v698 = vadd.f32 %v685, %v695
  %v699 = vand.u32 2147483647, %v697
  %v700 = vand.u32 2147483647, %v698
  %v701 = vsub.f32 0.0, %v699
  %v702 = vsub.f32 0.0, %v700
  %v703 = vmul.f32 %v701, 1.442695
  %v704 = vpow.pop %v703
  %v705 = vmul.f32 %v702, 1.442695
  %v706 = vpow.pop %v705
  %v707 = vadd.f32 %v704, 1.0
  %v708 = vadd.f32 %v706, 1.0
  %v709 = vmul.f32 %v707, %v707
  %v710 = vmul.f32 %v708, %v708
  %vm711 = vcmp.ge.f32.partialorder %v697, 0.0
  %vm712 = vcmp.ge.f32.partialorder %v698, 0.0
  %v713 = vmul.f32 %v704, %v704
  %v714 = vmul.f32 %v706, %v706
  %v715 = vsel %vm711, %v713, 1.0
  %v716 = vsel %vm712, %v714, 1.0
  %v717 = vsub.f32 %v709, %v715
  %v718 = vsub.f32 %v710, %v716
  %v719 = vmul.f32 %v697, %v717
  %v720 = vmul.f32 %v698, %v718
  %v721 = vadd.f32 %v709, %v715
  %v722 = vadd.f32 %v710, %v716
  %v723 = vrcp.pop %v721
  %v724 = vrcp.pop %v722
  %v725 = vmul.f32 %v719, %v723
  %v726 = vmul.f32 %v720, %v724
  %v727 = vpack.c.bf16 %v725, %v725
  %v728 = vpack.c.bf16 %v726, %v726
  %731 = vrot.lane.b32.xlu0 %v727, 5
  %v732 = vpop.permute.xlu0 %731
  %733 = vrot.lane.b32.xlu0 %v728, 5
  %v734 = vpop.permute.xlu0 %733
  %737 = vst.msk [vmem:[#allocation2] sm:$0xf] %vm98, %v732
  %738 = vst.msk [vmem:[#allocation2 + $0x4] sm:$0xf] %vm98, %v734
  %v739 = vld [vmem:[#allocation2] sm:$0xf]
  %v740 = vld [vmem:[#allocation2 + $0x4] sm:$0xf]
  %v741 = vld [vmem:[%s15] sm:$0x1]
  %v743 = vpack.i.b16 %v741, %v741
  %v745 = vperm.slane %v743, 0
  %v746 = vunpack.c.l.bf16 %v739
  %v747 = vunpack.c.l.bf16 %v740
  %v748 = vunpack.c.l.bf16 %v745
  %v749 = vmul.f32 %v746, %v748
  %v750 = vmul.f32 %v747, %v748
  %v751 = vpack.c.bf16 %v750, %v749
  %v752 = vld [vmem:[%s11] sm:$0xf]
  %v753 = vld [vmem:[%s11 + $0x4] sm:$0xf]
  %v754 = vshrl.u32 %v741, 16
  %v755 = vpack.i.b16 %v754, %v754
  %v757 = vperm.slane %v755, 0
  %v758 = vunpack.c.l.bf16 %v757
  %760 = vrot.lane.b32.xlu0 %v758, 1
  %v761 = vpop.permute.xlu0 %760
  %v763 = vmul.f32 %v746, %v761
  %v764 = vmul.f32 %v747, %v761
  %v765 = vpack.c.bf16 %v764, %v763
  %s766 = scalar_lea.vmem %s11, 8
  %v767 = vld [vmem:[%s766] sm:$0xf]
  %v768 = vld [vmem:[%s766 + $0x4] sm:$0xf]
  %v771 = vunpack.c.l.b16 %v767
  %v772 = vunpack.c.l.b16 %v768
  %v773 = vpack.c.b16 %v772, %v771
  %775 = vrot.lane.b32.xlu0 %v765, 127
  %v776 = vpop.permute.xlu0 %775
  %v779 = vsel %vm174, %v773, 0
  %781 = vmatpush.bf16.msra.mxu0 0
  %782 = vmatpush.bf16.msra.mxu0 0
  %783 = vmatpush.bf16.msra.mxu0 0
  %784 = vmatpush.bf16.msra.mxu0 0
  %785 = vmatpush.bf16.msra.mxu0 0
  %786 = vmatpush.bf16.msra.mxu0 0
  %787 = vmatpush.bf16.msra.mxu0 0
  %788 = vmatpush.bf16.msra.mxu0 %v776
  %789 = vmatmul.bf16.gmra.mxu0 %v779
  %v790 = vpop.f32.mrf.mxu0
  %v791 = vadd.f32 0.0, %v790
  %v792 = vpop.f32.mrf.mxu0
  %v793 = vadd.f32 0.0, %v792
  %794 = vdwg.mxu0
  %v797 = vunpack.c.l.b16 %v752
  %v798 = vunpack.c.l.b16 %v753
  %v799 = vpack.c.b16 %v798, %v797
  %v801 = vsel %vm174, %v799, 0
  %803 = vmatpush.bf16.msra.mxu0 0
  %804 = vmatpush.bf16.msra.mxu0 0
  %805 = vmatpush.bf16.msra.mxu0 0
  %806 = vmatpush.bf16.msra.mxu0 0
  %807 = vmatpush.bf16.msra.mxu0 0
  %808 = vmatpush.bf16.msra.mxu0 0
  %809 = vmatpush.bf16.msra.mxu0 0
  %810 = vmatpush.bf16.msra.mxu0 %v751
  %811 = vmatmul.bf16.gmra.mxu0 %v801
  %v812 = vpop.f32.mrf.mxu0
  %v813 = vadd.f32 %v791, %v812
  %v814 = vpop.f32.mrf.mxu0
  %v815 = vadd.f32 %v793, %v814
  %816 = vdwg.mxu0
  %v817 = vld [vmem:[%s15] sm:$0x2]
  %v819 = vpack.i.b16 %v817, %v817
  %v821 = vperm.slane %v819, 1
  %v822 = vunpack.c.l.bf16 %v821
  %824 = vrot.lane.b32.xlu0 %v822, 2
  %v825 = vpop.permute.xlu0 %824
  %v827 = vmul.f32 %v746, %v825
  %v828 = vmul.f32 %v747, %v825
  %v829 = vpack.c.bf16 %v828, %v827
  %s830 = scalar_lea.vmem %s11, 16
  %v831 = vld [vmem:[%s830] sm:$0xf]
  %v832 = vld [vmem:[%s830 + $0x4] sm:$0xf]
  %v835 = vunpack.c.l.b16 %v831
  %v836 = vunpack.c.l.b16 %v832
  %v837 = vpack.c.b16 %v836, %v835
  %839 = vrot.lane.b32.xlu0 %v829, 126
  %v840 = vpop.permute.xlu0 %839
  %v843 = vsel %vm174, %v837, 0
  %845 = vmatpush.bf16.msra.mxu0 0
  %846 = vmatpush.bf16.msra.mxu0 0
  %847 = vmatpush.bf16.msra.mxu0 0
  %848 = vmatpush.bf16.msra.mxu0 0
  %849 = vmatpush.bf16.msra.mxu0 0
  %850 = vmatpush.bf16.msra.mxu0 0
  %851 = vmatpush.bf16.msra.mxu0 0
  %852 = vmatpush.bf16.msra.mxu0 %v840
  %853 = vmatmul.bf16.gmra.mxu0 %v843
  %v854 = vpop.f32.mrf.mxu0
  %v855 = vadd.f32 0.0, %v854
  %v856 = vpop.f32.mrf.mxu0
  %v857 = vadd.f32 0.0, %v856
  %858 = vdwg.mxu0
  %v859 = vadd.f32 %v813, %v855
  %v860 = vadd.f32 %v815, %v857
  %v861 = vshrl.u32 %v817, 16
  %v862 = vpack.i.b16 %v861, %v861
  %v864 = vperm.slane %v862, 1
  %v865 = vunpack.c.l.bf16 %v864
  %867 = vrot.lane.b32.xlu0 %v865, 4
  %v868 = vpop.permute.xlu0 %867
  %v870 = vmul.f32 %v746, %v868
  %v871 = vmul.f32 %v747, %v868
  %v872 = vpack.c.bf16 %v871, %v870
  %s873 = scalar_lea.vmem %s11, 24
  %v874 = vld [vmem:[%s873] sm:$0xf]
  %v875 = vld [vmem:[%s873 + $0x4] sm:$0xf]
  %v878 = vunpack.c.l.b16 %v874
  %v879 = vunpack.c.l.b16 %v875
  %v880 = vpack.c.b16 %v879, %v878
  %882 = vrot.lane.b32.xlu0 %v872, 124
  %v883 = vpop.permute.xlu0 %882
  %v886 = vsel %vm174, %v880, 0
  %888 = vmatpush.bf16.msra.mxu0 0
  %889 = vmatpush.bf16.msra.mxu0 0
  %890 = vmatpush.bf16.msra.mxu0 0
  %891 = vmatpush.bf16.msra.mxu0 0
  %892 = vmatpush.bf16.msra.mxu0 0
  %893 = vmatpush.bf16.msra.mxu0 0
  %894 = vmatpush.bf16.msra.mxu0 0
  %895 = vmatpush.bf16.msra.mxu0 %v883
  %896 = vmatmul.bf16.gmra.mxu0 %v886
  %v897 = vpop.f32.mrf.mxu0
  %v898 = vadd.f32 0.0, %v897
  %v899 = vpop.f32.mrf.mxu0
  %v900 = vadd.f32 0.0, %v899
  %901 = vdwg.mxu0
  %v902 = vadd.f32 %v859, %v898
  %v903 = vadd.f32 %v860, %v900
  %s904 = scalar_lea.vmem %s11, 32
  %v905 = vld [vmem:[%s904] sm:$0xf]
  %v906 = vld [vmem:[%s904 + $0x4] sm:$0xf]
  %v909 = vunpack.c.l.b16 %v905
  %v910 = vunpack.c.l.b16 %v906
  %v911 = vpack.c.b16 %v910, %v909
  %v914 = vunpack.c.l.b16 %v739
  %v915 = vunpack.c.l.b16 %v740
  %v916 = vpack.c.b16 %v915, %v914
  %917 = vrot.lane.b32.xlu0 %v916, 123
  %v918 = vpop.permute.xlu0 %917
  %v921 = vsel %vm174, %v911, 0
  %923 = vmatpush.bf16.msra.mxu0 0
  %924 = vmatpush.bf16.msra.mxu0 0
  %925 = vmatpush.bf16.msra.mxu0 0
  %926 = vmatpush.bf16.msra.mxu0 0
  %927 = vmatpush.bf16.msra.mxu0 0
  %928 = vmatpush.bf16.msra.mxu0 0
  %929 = vmatpush.bf16.msra.mxu0 0
  %930 = vmatpush.bf16.msra.mxu0 %v918
  %931 = vmatmul.bf16.gmra.mxu0 %v921
  %v932 = vpop.f32.mrf.mxu0
  %v933 = vadd.f32 0.0, %v932
  %v934 = vpop.f32.mrf.mxu0
  %v935 = vadd.f32 0.0, %v934
  %936 = vdwg.mxu0
  %v937 = vadd.f32 %v902, %v933
  %v938 = vadd.f32 %v903, %v935
  %v939 = vld [vmem:[%s15] sm:$0x4]
  %v941 = vshrl.u32 %v939, 16
  %v942 = vpack.i.b16 %v941, %v941
  %v944 = vperm.slane %v942, 2
  %v945 = vunpack.c.l.bf16 %v944
  %947 = vrot.lane.b32.xlu0 %v945, 6
  %v948 = vpop.permute.xlu0 %947
  %v950 = vmul.f32 %v746, %v948
  %v951 = vmul.f32 %v747, %v948
  %v952 = vpack.c.bf16 %v951, %v950
  %s953 = scalar_lea.vmem %s11, 40
  %v954 = vld [vmem:[%s953] sm:$0xf]
  %v955 = vld [vmem:[%s953 + $0x4] sm:$0xf]
  %v958 = vunpack.c.l.b16 %v954
  %v959 = vunpack.c.l.b16 %v955
  %v960 = vpack.c.b16 %v959, %v958
  %962 = vrot.lane.b32.xlu0 %v952, 122
  %v963 = vpop.permute.xlu0 %962
  %v966 = vsel %vm174, %v960, 0
  %968 = vmatpush.bf16.msra.mxu0 0
  %969 = vmatpush.bf16.msra.mxu0 0
  %970 = vmatpush.bf16.msra.mxu0 0
  %971 = vmatpush.bf16.msra.mxu0 0
  %972 = vmatpush.bf16.msra.mxu0 0
  %973 = vmatpush.bf16.msra.mxu0 0
  %974 = vmatpush.bf16.msra.mxu0 0
  %975 = vmatpush.bf16.msra.mxu0 %v963
  %976 = vmatmul.bf16.gmra.mxu0 %v966
  %v977 = vpop.f32.mrf.mxu0
  %v978 = vadd.f32 0.0, %v977
  %v979 = vpop.f32.mrf.mxu0
  %v980 = vadd.f32 0.0, %v979
  %981 = vdwg.mxu0
  %v982 = vadd.f32 %v937, %v978
  %v983 = vadd.f32 %v938, %v980
  %v984 = vld [vmem:[%s15] sm:$0x8]
  %v986 = vpack.i.b16 %v984, %v984
  %v988 = vperm.slane %v986, 3
  %v989 = vunpack.c.l.bf16 %v988
  %991 = vrot.lane.b32.xlu0 %v989, 8
  %v992 = vpop.permute.xlu0 %991
  %v994 = vmul.f32 %v746, %v992
  %v995 = vmul.f32 %v747, %v992
  %v996 = vpack.c.bf16 %v995, %v994
  %s997 = scalar_lea.vmem %s11, 48
  %v998 = vld [vmem:[%s997] sm:$0xf]
  %v999 = vld [vmem:[%s997 + $0x4] sm:$0xf]
  %v1002 = vunpack.c.l.b16 %v998
  %v1003 = vunpack.c.l.b16 %v999
  %v1004 = vpack.c.b16 %v1003, %v1002
  %1006 = vrot.lane.b32.xlu0 %v996, 120
  %v1007 = vpop.permute.xlu0 %1006
  %v1010 = vsel %vm174, %v1004, 0
  %1012 = vmatpush.bf16.msra.mxu0 0
  %1013 = vmatpush.bf16.msra.mxu0 0
  %1014 = vmatpush.bf16.msra.mxu0 0
  %1015 = vmatpush.bf16.msra.mxu0 0
  %1016 = vmatpush.bf16.msra.mxu0 0
  %1017 = vmatpush.bf16.msra.mxu0 0
  %1018 = vmatpush.bf16.msra.mxu0 0
  %1019 = vmatpush.bf16.msra.mxu0 %v1007
  %1020 = vmatmul.bf16.gmra.mxu0 %v1010
  %v1021 = vpop.f32.mrf.mxu0
  %v1022 = vadd.f32 0.0, %v1021
  %v1023 = vpop.f32.mrf.mxu0
  %v1024 = vadd.f32 0.0, %v1023
  %1025 = vdwg.mxu0
  %v1026 = vadd.f32 %v982, %v1022
  %v1027 = vadd.f32 %v983, %v1024
  %v1028 = vshrl.u32 %v984, 16
  %v1029 = vpack.i.b16 %v1028, %v1028
  %v1031 = vperm.slane %v1029, 3
  %v1032 = vunpack.c.l.bf16 %v1031
  %1034 = vrot.lane.b32.xlu0 %v1032, 9
  %v1035 = vpop.permute.xlu0 %1034
  %v1037 = vmul.f32 %v746, %v1035
  %v1038 = vmul.f32 %v747, %v1035
  %v1039 = vpack.c.bf16 %v1038, %v1037
  %s1040 = scalar_lea.vmem %s11, 56
  %v1041 = vld [vmem:[%s1040] sm:$0xf]
  %v1042 = vld [vmem:[%s1040 + $0x4] sm:$0xf]
  %v1045 = vunpack.c.l.b16 %v1041
  %v1046 = vunpack.c.l.b16 %v1042
  %v1047 = vpack.c.b16 %v1046, %v1045
  %1049 = vrot.lane.b32.xlu0 %v1039, 119
  %v1050 = vpop.permute.xlu0 %1049
  %v1053 = vsel %vm174, %v1047, 0
  %1055 = vmatpush.bf16.msra.mxu0 0
  %1056 = vmatpush.bf16.msra.mxu0 0
  %1057 = vmatpush.bf16.msra.mxu0 0
  %1058 = vmatpush.bf16.msra.mxu0 0
  %1059 = vmatpush.bf16.msra.mxu0 0
  %1060 = vmatpush.bf16.msra.mxu0 0
  %1061 = vmatpush.bf16.msra.mxu0 0
  %1062 = vmatpush.bf16.msra.mxu0 %v1050
  %1063 = vmatmul.bf16.gmra.mxu0 %v1053
  %v1064 = vpop.f32.mrf.mxu0
  %v1065 = vadd.f32 0.0, %v1064
  %v1066 = vpop.f32.mrf.mxu0
  %v1067 = vadd.f32 0.0, %v1066
  %1068 = vdwg.mxu0
  %v1069 = vadd.f32 %v1026, %v1065
  %v1070 = vadd.f32 %v1027, %v1067
  %v1071 = vld [vmem:[%s15 + $0x4] sm:$0x1]
  %v1073 = vpack.i.b16 %v1071, %v1071
  %v1075 = vperm.slane %v1073, 0
  %v1076 = vunpack.c.l.bf16 %v1075
  %1078 = vrot.lane.b32.xlu0 %v1076, 10
  %v1079 = vpop.permute.xlu0 %1078
  %v1081 = vmul.f32 %v746, %v1079
  %v1082 = vmul.f32 %v747, %v1079
  %v1083 = vpack.c.bf16 %v1082, %v1081
  %s1084 = scalar_lea.vmem %s11, 64
  %v1085 = vld [vmem:[%s1084] sm:$0xf]
  %v1086 = vld [vmem:[%s1084 + $0x4] sm:$0xf]
  %v1089 = vunpack.c.l.b16 %v1085
  %v1090 = vunpack.c.l.b16 %v1086
  %v1091 = vpack.c.b16 %v1090, %v1089
  %1093 = vrot.lane.b32.xlu0 %v1083, 118
  %v1094 = vpop.permute.xlu0 %1093
  %v1097 = vsel %vm174, %v1091, 0
  %1099 = vmatpush.bf16.msra.mxu0 0
  %1100 = vmatpush.bf16.msra.mxu0 0
  %1101 = vmatpush.bf16.msra.mxu0 0
  %1102 = vmatpush.bf16.msra.mxu0 0
  %1103 = vmatpush.bf16.msra.mxu0 0
  %1104 = vmatpush.bf16.msra.mxu0 0
  %1105 = vmatpush.bf16.msra.mxu0 0
  %1106 = vmatpush.bf16.msra.mxu0 %v1094
  %1107 = vmatmul.bf16.gmra.mxu0 %v1097
  %v1108 = vpop.f32.mrf.mxu0
  %v1109 = vadd.f32 0.0, %v1108
  %v1110 = vpop.f32.mrf.mxu0
  %v1111 = vadd.f32 0.0, %v1110
  %1112 = vdwg.mxu0
  %v1113 = vadd.f32 %v1069, %v1109
  %v1114 = vadd.f32 %v1070, %v1111
  %v1115 = vld [vmem:[%s12] sm:$0xff]
  %v1116 = vld [vmem:[%s12 + $0x8] sm:$0xff]
  %1118 = vset.pattern.permute.xlu0 0
  %1119 = vperm.xlu0 %1118, %v1115
  %v1120 = vpop.permute.xlu0 %1119
  %1123 = vset.pattern.permute.xlu0 0
  %1124 = vperm.xlu0 %1123, %v1116
  %v1125 = vpop.permute.xlu0 %1124
  %v1127 = vadd.f32 %v1113, %v1120
  %v1128 = vadd.f32 %v1114, %v1125
  %v1129 = vand.u32 2147483647, %v1127
  %v1130 = vand.u32 2147483647, %v1128
  %v1131 = vsub.f32 0.0, %v1129
  %v1132 = vsub.f32 0.0, %v1130
  %v1133 = vmul.f32 %v1131, 1.442695
  %v1134 = vpow.pop %v1133
  %v1135 = vmul.f32 %v1132, 1.442695
  %v1136 = vpow.pop %v1135
  %v1137 = vadd.f32 %v1134, 1.0
  %v1138 = vadd.f32 %v1136, 1.0
  %v1139 = vmul.f32 %v1137, %v1137
  %v1140 = vmul.f32 %v1138, %v1138
  %vm1141 = vcmp.ge.f32.partialorder %v1127, 0.0
  %vm1142 = vcmp.ge.f32.partialorder %v1128, 0.0
  %v1143 = vmul.f32 %v1134, %v1134
  %v1144 = vmul.f32 %v1136, %v1136
  %v1145 = vsel %vm1141, %v1143, 1.0
  %v1146 = vsel %vm1142, %v1144, 1.0
  %v1147 = vsub.f32 %v1139, %v1145
  %v1148 = vsub.f32 %v1140, %v1146
  %v1149 = vmul.f32 %v1127, %v1147
  %v1150 = vmul.f32 %v1128, %v1148
  %v1151 = vadd.f32 %v1139, %v1145
  %v1152 = vadd.f32 %v1140, %v1146
  %v1153 = vrcp.pop %v1151
  %v1154 = vrcp.pop %v1152
  %v1155 = vmul.f32 %v1149, %v1153
  %v1156 = vmul.f32 %v1150, %v1154
  %v1157 = vpack.c.bf16 %v1155, %v1155
  %v1158 = vpack.c.bf16 %v1156, %v1156
  %1161 = vrot.lane.b32.xlu0 %v1157, 5
  %v1162 = vpop.permute.xlu0 %1161
  %1163 = vrot.lane.b32.xlu0 %v1158, 5
  %v1164 = vpop.permute.xlu0 %1163
  %1167 = vst.msk [vmem:[#allocation2] sm:$0xf] %vm98, %v1162
  %1168 = vst.msk [vmem:[#allocation2 + $0x4] sm:$0xf] %vm98, %v1164
  %v1169 = vld [vmem:[#allocation2] sm:$0xf]
  %v1170 = vld [vmem:[#allocation2 + $0x4] sm:$0xf]
  %v1171 = vld [vmem:[%s15] sm:$0x1]
  %v1173 = vpack.i.b16 %v1171, %v1171
  %v1175 = vperm.slane %v1173, 0
  %v1176 = vunpack.c.l.bf16 %v1169
  %v1177 = vunpack.c.l.bf16 %v1170
  %v1178 = vunpack.c.l.bf16 %v1175
  %v1179 = vmul.f32 %v1176, %v1178
  %v1180 = vmul.f32 %v1177, %v1178
  %v1181 = vpack.c.bf16 %v1180, %v1179
  %v1182 = vld [vmem:[%s13] sm:$0xf]
  %v1183 = vld [vmem:[%s13 + $0x4] sm:$0xf]
  %v1184 = vshrl.u32 %v1171, 16
  %v1185 = vpack.i.b16 %v1184, %v1184
  %v1187 = vperm.slane %v1185, 0
  %v1188 = vunpack.c.l.bf16 %v1187
  %1190 = vrot.lane.b32.xlu0 %v1188, 1
  %v1191 = vpop.permute.xlu0 %1190
  %v1193 = vmul.f32 %v1176, %v1191
  %v1194 = vmul.f32 %v1177, %v1191
  %v1195 = vpack.c.bf16 %v1194, %v1193
  %s1196 = scalar_lea.vmem %s13, 8
  %v1197 = vld [vmem:[%s1196] sm:$0xf]
  %v1198 = vld [vmem:[%s1196 + $0x4] sm:$0xf]
  %v1201 = vunpack.c.l.b16 %v1197
  %v1202 = vunpack.c.l.b16 %v1198
  %v1203 = vpack.c.b16 %v1202, %v1201
  %1205 = vrot.lane.b32.xlu0 %v1195, 127
  %v1206 = vpop.permute.xlu0 %1205
  %v1209 = vsel %vm174, %v1203, 0
  %1211 = vmatpush.bf16.msra.mxu0 0
  %1212 = vmatpush.bf16.msra.mxu0 0
  %1213 = vmatpush.bf16.msra.mxu0 0
  %1214 = vmatpush.bf16.msra.mxu0 0
  %1215 = vmatpush.bf16.msra.mxu0 0
  %1216 = vmatpush.bf16.msra.mxu0 0
  %1217 = vmatpush.bf16.msra.mxu0 0
  %1218 = vmatpush.bf16.msra.mxu0 %v1206
  %1219 = vmatmul.bf16.gmra.mxu0 %v1209
  %v1220 = vpop.f32.mrf.mxu0
  %v1221 = vadd.f32 0.0, %v1220
  %v1222 = vpop.f32.mrf.mxu0
  %v1223 = vadd.f32 0.0, %v1222
  %1224 = vdwg.mxu0
  %v1227 = vunpack.c.l.b16 %v1182
  %v1228 = vunpack.c.l.b16 %v1183
  %v1229 = vpack.c.b16 %v1228, %v1227
  %v1231 = vsel %vm174, %v1229, 0
  %1233 = vmatpush.bf16.msra.mxu0 0
  %1234 = vmatpush.bf16.msra.mxu0 0
  %1235 = vmatpush.bf16.msra.mxu0 0
  %1236 = vmatpush.bf16.msra.mxu0 0
  %1237 = vmatpush.bf16.msra.mxu0 0
  %1238 = vmatpush.bf16.msra.mxu0 0
  %1239 = vmatpush.bf16.msra.mxu0 0
  %1240 = vmatpush.bf16.msra.mxu0 %v1181
  %1241 = vmatmul.bf16.gmra.mxu0 %v1231
  %v1242 = vpop.f32.mrf.mxu0
  %v1243 = vadd.f32 %v1221, %v1242
  %v1244 = vpop.f32.mrf.mxu0
  %v1245 = vadd.f32 %v1223, %v1244
  %1246 = vdwg.mxu0
  %v1247 = vld [vmem:[%s15] sm:$0x2]
  %v1249 = vpack.i.b16 %v1247, %v1247
  %v1251 = vperm.slane %v1249, 1
  %v1252 = vunpack.c.l.bf16 %v1251
  %1254 = vrot.lane.b32.xlu0 %v1252, 2
  %v1255 = vpop.permute.xlu0 %1254
  %v1257 = vmul.f32 %v1176, %v1255
  %v1258 = vmul.f32 %v1177, %v1255
  %v1259 = vpack.c.bf16 %v1258, %v1257
  %s1260 = scalar_lea.vmem %s13, 16
  %v1261 = vld [vmem:[%s1260] sm:$0xf]
  %v1262 = vld [vmem:[%s1260 + $0x4] sm:$0xf]
  %v1265 = vunpack.c.l.b16 %v1261
  %v1266 = vunpack.c.l.b16 %v1262
  %v1267 = vpack.c.b16 %v1266, %v1265
  %1269 = vrot.lane.b32.xlu0 %v1259, 126
  %v1270 = vpop.permute.xlu0 %1269
  %v1273 = vsel %vm174, %v1267, 0
  %1275 = vmatpush.bf16.msra.mxu0 0
  %1276 = vmatpush.bf16.msra.mxu0 0
  %1277 = vmatpush.bf16.msra.mxu0 0
  %1278 = vmatpush.bf16.msra.mxu0 0
  %1279 = vmatpush.bf16.msra.mxu0 0
  %1280 = vmatpush.bf16.msra.mxu0 0
  %1281 = vmatpush.bf16.msra.mxu0 0
  %1282 = vmatpush.bf16.msra.mxu0 %v1270
  %1283 = vmatmul.bf16.gmra.mxu0 %v1273
  %v1284 = vpop.f32.mrf.mxu0
  %v1285 = vadd.f32 0.0, %v1284
  %v1286 = vpop.f32.mrf.mxu0
  %v1287 = vadd.f32 0.0, %v1286
  %1288 = vdwg.mxu0
  %v1289 = vadd.f32 %v1243, %v1285
  %v1290 = vadd.f32 %v1245, %v1287
  %v1291 = vshrl.u32 %v1247, 16
  %v1292 = vpack.i.b16 %v1291, %v1291
  %v1294 = vperm.slane %v1292, 1
  %v1295 = vunpack.c.l.bf16 %v1294
  %1297 = vrot.lane.b32.xlu0 %v1295, 4
  %v1298 = vpop.permute.xlu0 %1297
  %v1300 = vmul.f32 %v1176, %v1298
  %v1301 = vmul.f32 %v1177, %v1298
  %v1302 = vpack.c.bf16 %v1301, %v1300
  %s1303 = scalar_lea.vmem %s13, 24
  %v1304 = vld [vmem:[%s1303] sm:$0xf]
  %v1305 = vld [vmem:[%s1303 + $0x4] sm:$0xf]
  %v1308 = vunpack.c.l.b16 %v1304
  %v1309 = vunpack.c.l.b16 %v1305
  %v1310 = vpack.c.b16 %v1309, %v1308
  %1312 = vrot.lane.b32.xlu0 %v1302, 124
  %v1313 = vpop.permute.xlu0 %1312
  %v1316 = vsel %vm174, %v1310, 0
  %1318 = vmatpush.bf16.msra.mxu0 0
  %1319 = vmatpush.bf16.msra.mxu0 0
  %1320 = vmatpush.bf16.msra.mxu0 0
  %1321 = vmatpush.bf16.msra.mxu0 0
  %1322 = vmatpush.bf16.msra.mxu0 0
  %1323 = vmatpush.bf16.msra.mxu0 0
  %1324 = vmatpush.bf16.msra.mxu0 0
  %1325 = vmatpush.bf16.msra.mxu0 %v1313
  %1326 = vmatmul.bf16.gmra.mxu0 %v1316
  %v1327 = vpop.f32.mrf.mxu0
  %v1328 = vadd.f32 0.0, %v1327
  %v1329 = vpop.f32.mrf.mxu0
  %v1330 = vadd.f32 0.0, %v1329
  %1331 = vdwg.mxu0
  %v1332 = vadd.f32 %v1289, %v1328
  %v1333 = vadd.f32 %v1290, %v1330
  %s1334 = scalar_lea.vmem %s13, 32
  %v1335 = vld [vmem:[%s1334] sm:$0xf]
  %v1336 = vld [vmem:[%s1334 + $0x4] sm:$0xf]
  %v1339 = vunpack.c.l.b16 %v1335
  %v1340 = vunpack.c.l.b16 %v1336
  %v1341 = vpack.c.b16 %v1340, %v1339
  %v1344 = vunpack.c.l.b16 %v1169
  %v1345 = vunpack.c.l.b16 %v1170
  %v1346 = vpack.c.b16 %v1345, %v1344
  %1347 = vrot.lane.b32.xlu0 %v1346, 123
  %v1348 = vpop.permute.xlu0 %1347
  %v1351 = vsel %vm174, %v1341, 0
  %1353 = vmatpush.bf16.msra.mxu0 0
  %1354 = vmatpush.bf16.msra.mxu0 0
  %1355 = vmatpush.bf16.msra.mxu0 0
  %1356 = vmatpush.bf16.msra.mxu0 0
  %1357 = vmatpush.bf16.msra.mxu0 0
  %1358 = vmatpush.bf16.msra.mxu0 0
  %1359 = vmatpush.bf16.msra.mxu0 0
  %1360 = vmatpush.bf16.msra.mxu0 %v1348
  %1361 = vmatmul.bf16.gmra.mxu0 %v1351
  %v1362 = vpop.f32.mrf.mxu0
  %v1363 = vadd.f32 0.0, %v1362
  %v1364 = vpop.f32.mrf.mxu0
  %v1365 = vadd.f32 0.0, %v1364
  %1366 = vdwg.mxu0
  %v1367 = vadd.f32 %v1332, %v1363
  %v1368 = vadd.f32 %v1333, %v1365
  %v1369 = vld [vmem:[%s15] sm:$0x4]
  %v1371 = vshrl.u32 %v1369, 16
  %v1372 = vpack.i.b16 %v1371, %v1371
  %v1374 = vperm.slane %v1372, 2
  %v1375 = vunpack.c.l.bf16 %v1374
  %1377 = vrot.lane.b32.xlu0 %v1375, 6
  %v1378 = vpop.permute.xlu0 %1377
  %v1380 = vmul.f32 %v1176, %v1378
  %v1381 = vmul.f32 %v1177, %v1378
  %v1382 = vpack.c.bf16 %v1381, %v1380
  %s1383 = scalar_lea.vmem %s13, 40
  %v1384 = vld [vmem:[%s1383] sm:$0xf]
  %v1385 = vld [vmem:[%s1383 + $0x4] sm:$0xf]
  %v1388 = vunpack.c.l.b16 %v1384
  %v1389 = vunpack.c.l.b16 %v1385
  %v1390 = vpack.c.b16 %v1389, %v1388
  %1392 = vrot.lane.b32.xlu0 %v1382, 122
  %v1393 = vpop.permute.xlu0 %1392
  %v1396 = vsel %vm174, %v1390, 0
  %1398 = vmatpush.bf16.msra.mxu0 0
  %1399 = vmatpush.bf16.msra.mxu0 0
  %1400 = vmatpush.bf16.msra.mxu0 0
  %1401 = vmatpush.bf16.msra.mxu0 0
  %1402 = vmatpush.bf16.msra.mxu0 0
  %1403 = vmatpush.bf16.msra.mxu0 0
  %1404 = vmatpush.bf16.msra.mxu0 0
  %1405 = vmatpush.bf16.msra.mxu0 %v1393
  %1406 = vmatmul.bf16.gmra.mxu0 %v1396
  %v1407 = vpop.f32.mrf.mxu0
  %v1408 = vadd.f32 0.0, %v1407
  %v1409 = vpop.f32.mrf.mxu0
  %v1410 = vadd.f32 0.0, %v1409
  %1411 = vdwg.mxu0
  %v1412 = vadd.f32 %v1367, %v1408
  %v1413 = vadd.f32 %v1368, %v1410
  %v1414 = vld [vmem:[%s15] sm:$0x8]
  %v1416 = vpack.i.b16 %v1414, %v1414
  %v1418 = vperm.slane %v1416, 3
  %v1419 = vunpack.c.l.bf16 %v1418
  %1421 = vrot.lane.b32.xlu0 %v1419, 8
  %v1422 = vpop.permute.xlu0 %1421
  %v1424 = vmul.f32 %v1176, %v1422
  %v1425 = vmul.f32 %v1177, %v1422
  %v1426 = vpack.c.bf16 %v1425, %v1424
  %s1427 = scalar_lea.vmem %s13, 48
  %v1428 = vld [vmem:[%s1427] sm:$0xf]
  %v1429 = vld [vmem:[%s1427 + $0x4] sm:$0xf]
  %v1432 = vunpack.c.l.b16 %v1428
  %v1433 = vunpack.c.l.b16 %v1429
  %v1434 = vpack.c.b16 %v1433, %v1432
  %1436 = vrot.lane.b32.xlu0 %v1426, 120
  %v1437 = vpop.permute.xlu0 %1436
  %v1440 = vsel %vm174, %v1434, 0
  %1442 = vmatpush.bf16.msra.mxu0 0
  %1443 = vmatpush.bf16.msra.mxu0 0
  %1444 = vmatpush.bf16.msra.mxu0 0
  %1445 = vmatpush.bf16.msra.mxu0 0
  %1446 = vmatpush.bf16.msra.mxu0 0
  %1447 = vmatpush.bf16.msra.mxu0 0
  %1448 = vmatpush.bf16.msra.mxu0 0
  %1449 = vmatpush.bf16.msra.mxu0 %v1437
  %1450 = vmatmul.bf16.gmra.mxu0 %v1440
  %v1451 = vpop.f32.mrf.mxu0
  %v1452 = vadd.f32 0.0, %v1451
  %v1453 = vpop.f32.mrf.mxu0
  %v1454 = vadd.f32 0.0, %v1453
  %1455 = vdwg.mxu0
  %v1456 = vadd.f32 %v1412, %v1452
  %v1457 = vadd.f32 %v1413, %v1454
  %v1458 = vshrl.u32 %v1414, 16
  %v1459 = vpack.i.b16 %v1458, %v1458
  %v1461 = vperm.slane %v1459, 3
  %v1462 = vunpack.c.l.bf16 %v1461
  %1464 = vrot.lane.b32.xlu0 %v1462, 9
  %v1465 = vpop.permute.xlu0 %1464
  %v1467 = vmul.f32 %v1176, %v1465
  %v1468 = vmul.f32 %v1177, %v1465
  %v1469 = vpack.c.bf16 %v1468, %v1467
  %s1470 = scalar_lea.vmem %s13, 56
  %v1471 = vld [vmem:[%s1470] sm:$0xf]
  %v1472 = vld [vmem:[%s1470 + $0x4] sm:$0xf]
  %v1475 = vunpack.c.l.b16 %v1471
  %v1476 = vunpack.c.l.b16 %v1472
  %v1477 = vpack.c.b16 %v1476, %v1475
  %1479 = vrot.lane.b32.xlu0 %v1469, 119
  %v1480 = vpop.permute.xlu0 %1479
  %v1483 = vsel %vm174, %v1477, 0
  %1485 = vmatpush.bf16.msra.mxu0 0
  %1486 = vmatpush.bf16.msra.mxu0 0
  %1487 = vmatpush.bf16.msra.mxu0 0
  %1488 = vmatpush.bf16.msra.mxu0 0
  %1489 = vmatpush.bf16.msra.mxu0 0
  %1490 = vmatpush.bf16.msra.mxu0 0
  %1491 = vmatpush.bf16.msra.mxu0 0
  %1492 = vmatpush.bf16.msra.mxu0 %v1480
  %1493 = vmatmul.bf16.gmra.mxu0 %v1483
  %v1494 = vpop.f32.mrf.mxu0
  %v1495 = vadd.f32 0.0, %v1494
  %v1496 = vpop.f32.mrf.mxu0
  %v1497 = vadd.f32 0.0, %v1496
  %1498 = vdwg.mxu0
  %v1499 = vadd.f32 %v1456, %v1495
  %v1500 = vadd.f32 %v1457, %v1497
  %v1501 = vld [vmem:[%s15 + $0x4] sm:$0x1]
  %v1503 = vpack.i.b16 %v1501, %v1501
  %v1505 = vperm.slane %v1503, 0
  %v1506 = vunpack.c.l.bf16 %v1505
  %1508 = vrot.lane.b32.xlu0 %v1506, 10
  %v1509 = vpop.permute.xlu0 %1508
  %v1511 = vmul.f32 %v1176, %v1509
  %v1512 = vmul.f32 %v1177, %v1509
  %v1513 = vpack.c.bf16 %v1512, %v1511
  %s1514 = scalar_lea.vmem %s13, 64
  %v1515 = vld [vmem:[%s1514] sm:$0xf]
  %v1516 = vld [vmem:[%s1514 + $0x4] sm:$0xf]
  %v1519 = vunpack.c.l.b16 %v1515
  %v1520 = vunpack.c.l.b16 %v1516
  %v1521 = vpack.c.b16 %v1520, %v1519
  %1523 = vrot.lane.b32.xlu0 %v1513, 118
  %v1524 = vpop.permute.xlu0 %1523
  %v1527 = vsel %vm174, %v1521, 0
  %1529 = vmatpush.bf16.msra.mxu0 0
  %1530 = vmatpush.bf16.msra.mxu0 0
  %1531 = vmatpush.bf16.msra.mxu0 0
  %1532 = vmatpush.bf16.msra.mxu0 0
  %1533 = vmatpush.bf16.msra.mxu0 0
  %1534 = vmatpush.bf16.msra.mxu0 0
  %1535 = vmatpush.bf16.msra.mxu0 0
  %1536 = vmatpush.bf16.msra.mxu0 %v1524
  %1537 = vmatmul.bf16.gmra.mxu0 %v1527
  %v1538 = vpop.f32.mrf.mxu0
  %v1539 = vadd.f32 0.0, %v1538
  %v1540 = vpop.f32.mrf.mxu0
  %v1541 = vadd.f32 0.0, %v1540
  %1542 = vdwg.mxu0
  %v1543 = vadd.f32 %v1499, %v1539
  %v1544 = vadd.f32 %v1500, %v1541
  %v1545 = vld [vmem:[%s14] sm:$0xff]
  %v1546 = vld [vmem:[%s14 + $0x8] sm:$0xff]
  %1548 = vset.pattern.permute.xlu0 0
  %1549 = vperm.xlu0 %1548, %v1545
  %v1550 = vpop.permute.xlu0 %1549
  %1553 = vset.pattern.permute.xlu0 0
  %1554 = vperm.xlu0 %1553, %v1546
  %v1555 = vpop.permute.xlu0 %1554
  %v1557 = vadd.f32 %v1543, %v1550
  %v1558 = vadd.f32 %v1544, %v1555
  %v1559 = vand.u32 2147483647, %v1557
  %v1560 = vand.u32 2147483647, %v1558
  %v1561 = vsub.f32 0.0, %v1559
  %v1562 = vsub.f32 0.0, %v1560
  %v1563 = vmul.f32 %v1561, 1.442695
  %v1564 = vpow.pop %v1563
  %v1565 = vmul.f32 %v1562, 1.442695
  %v1566 = vpow.pop %v1565
  %v1567 = vadd.f32 %v1564, 1.0
  %v1568 = vadd.f32 %v1566, 1.0
  %v1569 = vmul.f32 %v1567, %v1567
  %v1570 = vmul.f32 %v1568, %v1568
  %vm1571 = vcmp.ge.f32.partialorder %v1557, 0.0
  %vm1572 = vcmp.ge.f32.partialorder %v1558, 0.0
  %v1573 = vmul.f32 %v1564, %v1564
  %v1574 = vmul.f32 %v1566, %v1566
  %v1575 = vsel %vm1571, %v1573, 1.0
  %v1576 = vsel %vm1572, %v1574, 1.0
  %v1577 = vsub.f32 %v1569, %v1575
  %v1578 = vsub.f32 %v1570, %v1576
  %v1579 = vmul.f32 %v1557, %v1577
  %v1580 = vmul.f32 %v1558, %v1578
  %v1581 = vadd.f32 %v1569, %v1575
  %v1582 = vadd.f32 %v1570, %v1576
  %v1583 = vrcp.pop %v1581
  %v1584 = vrcp.pop %v1582
  %v1585 = vmul.f32 %v1579, %v1583
  %v1586 = vmul.f32 %v1580, %v1584
  %v1587 = vld [vmem:[%s16] sm:$0xf]
  %v1588 = vld [vmem:[%s16 + $0x4] sm:$0xf]
  %v1589 = vld [vmem:[%s16 + $0x8] sm:$0xf]
  %v1590 = vld [vmem:[%s16 + $0xc] sm:$0xf]
  %v1591 = vpack.c.bf16 %v636, %v635
  %v1592 = vld [vmem:[%s17] sm:$0xf]
  %v1593 = vld [vmem:[%s17 + $0x4] sm:$0xf]
  %v1594 = vld [vmem:[%s17 + $0x8] sm:$0xf]
  %v1595 = vld [vmem:[%s17 + $0xc] sm:$0xf]
  %v1600 = vunpack.c.l.b16 %v1592
  %v1601 = vunpack.c.l.b16 %v1593
  %v1602 = vunpack.c.l.b16 %v1594
  %v1603 = vunpack.c.l.b16 %v1595
  %v1604 = vpack.c.b16 %v1601, %v1600
  %v1605 = vpack.c.b16 %v1603, %v1602
  %v1606 = vunpack.c.l.b16 %v727
  %v1607 = vunpack.c.l.b16 %v728
  %v1608 = vpack.c.b16 %v1607, %v1606
  %v1611 = vsel %vm174, %v1604, 0
  %v1614 = vsel %vm174, %v1605, 0
  %1616 = vmatpush.bf16.msra.mxu0 0
  %1617 = vmatpush.bf16.msra.mxu0 0
  %1618 = vmatpush.bf16.msra.mxu0 0
  %1619 = vmatpush.bf16.msra.mxu0 0
  %1620 = vmatpush.bf16.msra.mxu0 0
  %1621 = vmatpush.bf16.msra.mxu0 0
  %1622 = vmatpush.bf16.msra.mxu0 0
  %1623 = vmatpush.bf16.msra.mxu0 %v1608
  %1624 = vmatmul.bf16.gmra.mxu0 %v1611
  %v1625 = vpop.f32.mrf.mxu0
  %v1626 = vadd.f32 0.0, %v1625
  %v1627 = vpop.f32.mrf.mxu0
  %v1628 = vadd.f32 0.0, %v1627
  %1629 = vmatmul.bf16.gmra.mxu0 %v1614
  %v1630 = vpop.f32.mrf.mxu0
  %v1631 = vadd.f32 0.0, %v1630
  %v1632 = vpop.f32.mrf.mxu0
  %v1633 = vadd.f32 0.0, %v1632
  %1634 = vdwg.mxu0
  %v1639 = vunpack.c.l.b16 %v1587
  %v1640 = vunpack.c.l.b16 %v1588
  %v1641 = vunpack.c.l.b16 %v1589
  %v1642 = vunpack.c.l.b16 %v1590
  %v1643 = vpack.c.b16 %v1640, %v1639
  %v1644 = vpack.c.b16 %v1642, %v1641
  %v1646 = vsel %vm174, %v1643, 0
  %v1649 = vsel %vm174, %v1644, 0
  %1651 = vmatpush.bf16.msra.mxu0 0
  %1652 = vmatpush.bf16.msra.mxu0 0
  %1653 = vmatpush.bf16.msra.mxu0 0
  %1654 = vmatpush.bf16.msra.mxu0 0
  %1655 = vmatpush.bf16.msra.mxu0 0
  %1656 = vmatpush.bf16.msra.mxu0 0
  %1657 = vmatpush.bf16.msra.mxu0 0
  %1658 = vmatpush.bf16.msra.mxu0 %v1591
  %1659 = vmatmul.bf16.gmra.mxu0 %v1646
  %v1660 = vpop.f32.mrf.mxu0
  %v1661 = vadd.f32 %v1626, %v1660
  %v1662 = vpop.f32.mrf.mxu0
  %v1663 = vadd.f32 %v1628, %v1662
  %1664 = vmatmul.bf16.gmra.mxu0 %v1649
  %v1665 = vpop.f32.mrf.mxu0
  %v1666 = vadd.f32 %v1631, %v1665
  %v1667 = vpop.f32.mrf.mxu0
  %v1668 = vadd.f32 %v1633, %v1667
  %1669 = vdwg.mxu0
  %v1670 = vld [vmem:[%s18] sm:$0xf]
  %v1671 = vld [vmem:[%s18 + $0x4] sm:$0xf]
  %v1672 = vld [vmem:[%s18 + $0x8] sm:$0xf]
  %v1673 = vld [vmem:[%s18 + $0xc] sm:$0xf]
  %v1674 = vpack.c.bf16 %v1586, %v1585
  %v1679 = vunpack.c.l.b16 %v1670
  %v1680 = vunpack.c.l.b16 %v1671
  %v1681 = vunpack.c.l.b16 %v1672
  %v1682 = vunpack.c.l.b16 %v1673
  %v1683 = vpack.c.b16 %v1680, %v1679
  %v1684 = vpack.c.b16 %v1682, %v1681
  %v1686 = vsel %vm174, %v1683, 0
  %v1689 = vsel %vm174, %v1684, 0
  %1691 = vmatpush.bf16.msra.mxu0 0
  %1692 = vmatpush.bf16.msra.mxu0 0
  %1693 = vmatpush.bf16.msra.mxu0 0
  %1694 = vmatpush.bf16.msra.mxu0 0
  %1695 = vmatpush.bf16.msra.mxu0 0
  %1696 = vmatpush.bf16.msra.mxu0 0
  %1697 = vmatpush.bf16.msra.mxu0 0
  %1698 = vmatpush.bf16.msra.mxu0 %v1674
  %1699 = vmatmul.bf16.gmra.mxu0 %v1686
  %v1700 = vpop.f32.mrf.mxu0
  %v1701 = vadd.f32 0.0, %v1700
  %v1702 = vpop.f32.mrf.mxu0
  %v1703 = vadd.f32 0.0, %v1702
  %1704 = vmatmul.bf16.gmra.mxu0 %v1689
  %v1705 = vpop.f32.mrf.mxu0
  %v1706 = vadd.f32 0.0, %v1705
  %v1707 = vpop.f32.mrf.mxu0
  %v1708 = vadd.f32 0.0, %v1707
  %1709 = vdwg.mxu0
  %v1710 = vadd.f32 %v1661, %v1701
  %v1711 = vadd.f32 %v1663, %v1703
  %v1712 = vadd.f32 %v1666, %v1706
  %v1713 = vadd.f32 %v1668, %v1708
  %v1714 = vld [vmem:[%s19] sm:$0xff]
  %v1715 = vld [vmem:[%s19 + $0x8] sm:$0xff]
  %v1716 = vld [vmem:[%s19 + $0x10] sm:$0xff]
  %v1717 = vld [vmem:[%s19 + $0x18] sm:$0xff]
  %1719 = vset.pattern.permute.xlu0 0
  %1720 = vperm.xlu0 %1719, %v1714
  %v1721 = vpop.permute.xlu0 %1720
  %1724 = vset.pattern.permute.xlu0 0
  %1725 = vperm.xlu0 %1724, %v1715
  %v1726 = vpop.permute.xlu0 %1725
  %1729 = vset.pattern.permute.xlu0 0
  %1730 = vperm.xlu0 %1729, %v1716
  %v1731 = vpop.permute.xlu0 %1730
  %1734 = vset.pattern.permute.xlu0 0
  %1735 = vperm.xlu0 %1734, %v1717
  %v1736 = vpop.permute.xlu0 %1735
  %v1738 = vadd.f32 %v1710, %v1721
  %v1739 = vadd.f32 %v1711, %v1726
  %v1740 = vadd.f32 %v1712, %v1731
  %v1741 = vadd.f32 %v1713, %v1736
  %v1742 = vand.u32 2147483647, %v1738
  %v1743 = vand.u32 2147483647, %v1739
  %v1744 = vand.u32 2147483647, %v1740
  %v1745 = vand.u32 2147483647, %v1741
  %v1746 = vsub.f32 0.0, %v1742
  %v1747 = vsub.f32 0.0, %v1743
  %v1748 = vsub.f32 0.0, %v1744
  %v1749 = vsub.f32 0.0, %v1745
  %v1750 = vmul.f32 %v1746, 1.442695
  %v1751 = vpow.pop %v1750
  %v1752 = vmul.f32 %v1747, 1.442695
  %v1753 = vpow.pop %v1752
  %v1754 = vmul.f32 %v1748, 1.442695
  %v1755 = vpow.pop %v1754
  %v1756 = vmul.f32 %v1749, 1.442695
  %v1757 = vpow.pop %v1756
  %v1758 = vadd.f32 %v1751, 1.0
  %v1759 = vadd.f32 %v1753, 1.0
  %v1760 = vadd.f32 %v1755, 1.0
  %v1761 = vadd.f32 %v1757, 1.0
  %v1762 = vmul.f32 %v1758, %v1758
  %v1763 = vmul.f32 %v1759, %v1759
  %v1764 = vmul.f32 %v1760, %v1760
  %v1765 = vmul.f32 %v1761, %v1761
  %vm1766 = vcmp.ge.f32.partialorder %v1738, 0.0
  %vm1767 = vcmp.ge.f32.partialorder %v1739, 0.0
  %vm1768 = vcmp.ge.f32.partialorder %v1740, 0.0
  %vm1769 = vcmp.ge.f32.partialorder %v1741, 0.0
  %v1770 = vmul.f32 %v1751, %v1751
  %v1771 = vmul.f32 %v1753, %v1753
  %v1772 = vmul.f32 %v1755, %v1755
  %v1773 = vmul.f32 %v1757, %v1757
  %v1774 = vsel %vm1766, %v1770, 1.0
  %v1775 = vsel %vm1767, %v1771, 1.0
  %v1776 = vsel %vm1768, %v1772, 1.0
  %v1777 = vsel %vm1769, %v1773, 1.0
  %v1778 = vsub.f32 %v1762, %v1774
  %v1779 = vsub.f32 %v1763, %v1775
  %v1780 = vsub.f32 %v1764, %v1776
  %v1781 = vsub.f32 %v1765, %v1777
  %v1782 = vmul.f32 %v1738, %v1778
  %v1783 = vmul.f32 %v1739, %v1779
  %v1784 = vmul.f32 %v1740, %v1780
  %v1785 = vmul.f32 %v1741, %v1781
  %v1786 = vadd.f32 %v1762, %v1774
  %v1787 = vadd.f32 %v1763, %v1775
  %v1788 = vadd.f32 %v1764, %v1776
  %v1789 = vadd.f32 %v1765, %v1777
  %v1790 = vrcp.pop %v1786
  %v1791 = vrcp.pop %v1787
  %v1792 = vrcp.pop %v1788
  %v1793 = vrcp.pop %v1789
  %v1794 = vmul.f32 %v1782, %v1790
  %v1795 = vmul.f32 %v1783, %v1791
  %v1796 = vmul.f32 %v1784, %v1792
  %v1797 = vmul.f32 %v1785, %v1793
  %1798 = vst.msk [vmem:[%s20] sm:$0xff] %vm557, %v1794
  %1799 = vst.msk [vmem:[%s20 + $0x8] sm:$0xff] %vm557, %v1795
  %1800 = vst.msk [vmem:[%s20 + $0x10] sm:$0xff] %vm557, %v1796
  %1801 = vst.msk [vmem:[%s20 + $0x18] sm:$0xff] %vm557, %v1797
  // Predicated region
  $region82: #{_lambda_.7} parent=0 // pred_check
    _
  $region83: #{_lambda_.7} parent=0 // pred_check_branch
    %1803 = sbr.rel (0) target = $region85
  $region84: #{_lambda_.7} parent=0 // pred_region
    _
  $region85: #{_lambda_.7} parent=0 // pred_fallthru
    _
  // Predicated region
  $region86: #{_lambda_.7} parent=0 // pred_check
    _
  $region87: #{_lambda_.7} parent=0 // pred_check_branch
    %1805 = sbr.rel (0) target = $region89
  $region88: #{_lambda_.7} parent=0 // pred_region
    _
  $region89: #{_lambda_.7} parent=0 // pred_fallthru
    _

</llo_original>
